<compile_context>
chip_gen: v6e
topology: v6e:2x2x1
jax: 0.10.0
libtpu: 0.0.40
codegen_flags: <defaults>
</compile_context>

<pallas_src>
import jax
import jax.numpy as jnp
import numpy as np
from jax.experimental import pallas as pl
from jax.experimental.pallas import tpu as pltpu

# ---------------------------------------------------------------------------
# Fixed small geometry for this script.
# ---------------------------------------------------------------------------
NUM_CLASSES = 1000
H = W = 16                        # input spatial size
HP = H + 2                        # padded-grid height (1-pixel ring)
WP = W + 2                        # padded-grid width (ring + extra right pad so that
while (HP * WP) % 8:              #  rows-per-image is sublane (8) aligned)  -> 20
    WP += 1
RI = HP * WP                      # flat rows per image on the padded grid  -> 360
MARGIN = ((WP + 1 + 7) // 8) * 8  # halo rows above/below act1 (>= WP+1, mult of 8) -> 24

CIN = 3
C1 = 64                           # true conv1 out channels
C1P = 128                         # conv1 out channels padded to a full lane group
C2 = 128                          # conv2 out channels
KC1 = 9 * CIN                     # conv1 im2col depth (27)
KC1P = 32                         # ... padded so HBM rows are 128-byte aligned
KC2 = 9 * C1P                     # conv2 stacked-K depth (1152)
NCP = 1024                        # classifier width padded 1000 -> 1024 (lane dense)
CR = 120                          # conv row-chunk size (rows); must divide RI

# Wrap-around invariant of the flat layout: a tap offset d in {-(WP+1) .. +(WP+1)} may
# cross image-row (and, with the folded batch, image) boundaries.  This is safe because
#   (a) the ring of act1 is masked to zero, so kept (interior) outputs only ever add
#       zeros from those rows,
#   (b) outputs on ring rows are discarded by the masked average pool, and
#   (c) MARGIN >= WP+1 keeps every shifted read inside the (zero-initialized) scratch.
assert MARGIN >= WP + 1 and MARGIN % 8 == 0
assert RI % CR == 0 and CR % 8 == 0 and RI % 8 == 0


# ---------------------------------------------------------------------------
# Fused kernel: one invocation = whole batch, everything stays in VMEM.
# ---------------------------------------------------------------------------
def fused_cnn_kernel(x1_ref, mask_ref, w1_ref, b1_ref, w2_ref, b2_ref,
                     wfc_ref, bfc_ref, o_ref, act1e_ref):
    """x1_ref   : (N*RI, 32)       conv1 im2col rows (flat padded grid), K padded 27->32
       mask_ref : (RI, 1)          1.0 on interior pixels, 0.0 on the padding ring
       w1_ref   : (32, 128)  f32   conv1 weights, taps stacked on K, Cout padded
       b1_ref   : (1, 128)   f32
       w2_ref   : (1152,128) bf16  conv2 weights, tap-major on K
       b2_ref   : (1, 128)   f32
       wfc_ref  : (128,1024) f32   classifier, columns padded 1000 -> 1024
       bfc_ref  : (1, 1024)  f32
       o_ref    : (N, 1024)  f32   logits
       act1e_ref: (MARGIN + N*RI + MARGIN, 128) f32 scratch (conv1 act + zero halos)
    """
    f32, bf16 = jnp.float32, jnp.bfloat16
    n = o_ref.shape[0]
    R = n * RI
    inv_hw = 1.0 / float(H * W)

    # Zero the top/bottom halos once; they double as conv2's out-of-image zero padding
    # and keep every shifted-window read finite.
    act1e_ref[0:MARGIN, :] = jnp.zeros((MARGIN, C1P), f32)
    act1e_ref[MARGIN + R:MARGIN + R + MARGIN, :] = jnp.zeros((MARGIN, C1P), f32)

    # ---- conv1: stacked-K (K=32) matmul per row chunk + bias + ReLU + ring mask ----
    for c in range(R // CR):
        r0 = c * CR
        lm = r0 % RI                                    # mask is shared by all images
        a1 = jnp.dot(x1_ref[r0:r0 + CR, :], w1_ref[...], preferred_element_type=f32)
        a1 = jnp.maximum(a1 + b1_ref[...], 0.0) * mask_ref[lm:lm + CR, :]
        act1e_ref[MARGIN + r0:MARGIN + r0 + CR, :] = a1

    # ---- conv2: 9 shifted-window bf16 tap dots per row chunk, f32 accumulation,
    #      bias + ReLU, fused with the masked global average pool ----
    pooled_rows = []
    for i in range(n):
        pooled_i = jnp.zeros((1, C2), f32)
        for cl in range(RI // CR):
            r0 = i * RI + cl * CR
            lm = cl * CR
            acc = jnp.zeros((CR, C2), f32)
            for kh in range(3):
                for kw in range(3):
                    t = kh * 3 + kw
                    d = (kh - 1) * WP + (kw - 1)        # static flat-row shift
                    lhs = act1e_ref[MARGIN + d + r0:MARGIN + d + r0 + CR, :]
                    acc = acc + jnp.dot(lhs.astype(bf16),
                                        w2_ref[t * C1P:(t + 1) * C1P, :],
                                        preferred_element_type=f32)
            a2 = jnp.maximum(acc + b2_ref[...], 0.0)
            # masked average-pool contribution of this chunk (ring rows contribute 0)
            pooled_i = pooled_i + jnp.sum(a2 * mask_ref[lm:lm + CR, :],
                                          axis=0, keepdims=True) * inv_hw
        pooled_rows.append(pooled_i)
    pooled = jnp.concatenate(pooled_rows, axis=0)        # (n, 128) f32

    # ---- classifier head (kept f32: negligible FLOPs, keeps logits tight) ----
    o_ref[...] = jnp.dot(pooled, wfc_ref[...], preferred_element_type=f32) + bfc_ref[...]


# ---------------------------------------------------------------------------
# JAX wrapper.
# ---------------------------------------------------------------------------
@jax.jit
def simple_cnn_forward(kparams, x_nchw):
    """Forward pass of SimpleCNN; x_nchw is (N, 3, 16, 16) float32."""
    n = x_nchw.shape[0]
    x = jnp.transpose(x_nchw, (0, 2, 3, 1))                              # NHWC
    # conv1 im2col on the padded HPxWP grid; K padded 27 -> 32 (aligned DMA rows).
    xp = jnp.pad(x, ((0, 0), (2, 2), (2, 2 + (WP - (W + 2))), (0, 0)))
    taps = [xp[:, kh:kh + HP, kw:kw + WP, :] for kh in range(3) for kw in range(3)]
    x1 = jnp.concatenate(taps, axis=-1).reshape(n * RI, KC1)
    x1 = jnp.pad(x1, ((0, 0), (0, KC1P - KC1)))                          # (N*RI, 32)

    out = pl.pallas_call(
        fused_cnn_kernel,
        out_shape=jax.ShapeDtypeStruct((n, NCP), jnp.float32),
        grid_spec=pltpu.PrefetchScalarGridSpec(
            num_scalar_prefetch=0,
            grid=(1,),                                         # whole batch in one step
            in_specs=[
                pl.BlockSpec((n * RI, KC1P), lambda i: (0, 0)),  # x1 (im2col rows)
                pl.BlockSpec((RI, 1), lambda i: (0, 0)),         # interior mask
                pl.BlockSpec((KC1P, C1P), lambda i: (0, 0)),     # w1
                pl.BlockSpec((1, C1P), lambda i: (0, 0)),        # b1
                pl.BlockSpec((KC2, C2), lambda i: (0, 0)),       # w2 (bf16)
                pl.BlockSpec((1, C2), lambda i: (0, 0)),         # b2
                pl.BlockSpec((C2, NCP), lambda i: (0, 0)),       # wfc
                pl.BlockSpec((1, NCP), lambda i: (0, 0)),        # bfc
            ],
            out_specs=pl.BlockSpec((n, NCP), lambda i: (0, 0)),
            scratch_shapes=[
                pltpu.VMEM((MARGIN + n * RI + MARGIN, C1P), jnp.float32),  # act1 + halos
            ],
        ),
        compiler_params=pltpu.CompilerParams(
            dimension_semantics=("arbitrary",)),
    )(x1, kparams["mask"], kparams["w1"], kparams["b1"],
      kparams["w2"], kparams["b2"], kparams["wfc"], kparams["bfc"])

    return out[:, :NUM_CLASSES]


# ---------------------------------------------------------------------------
# Parameters (module layout) + one-time repack into kernel layout.
# ---------------------------------------------------------------------------
def init_params(key, num_classes=NUM_CLASSES):
    """Deterministic params matching nn.Conv2d / nn.Linear shapes (HWIO / (in,out))."""
    ks = jax.random.split(key, 6)

    def uni(k, shape, fan_in):
        bound = 1.0 / jnp.sqrt(float(fan_in))
        return jax.random.uniform(k, shape, jnp.float32, -bound, bound)

    return {
        "conv1_w": uni(ks[0], (3, 3, CIN, C1), 9 * CIN),      # HWIO
        "conv1_b": uni(ks[1], (C1,), 9 * CIN),
        "conv2_w": uni(ks[2], (3, 3, C1, C2), 9 * C1),        # HWIO
        "conv2_b": uni(ks[3], (C2,), 9 * C1),
        "fc_w":   uni(ks[4], (C2, num_classes), C2),          # (in, out)
        "fc_b":   uni(ks[5], (num_classes,), C2),
    }


def prepare_params(p):
    """One-time repack of module params into the fused kernel's layout (outside jit)."""
    nc = p["fc_w"].shape[-1]
    w1 = p["conv1_w"].reshape(KC1, C1)
    w1 = jnp.pad(w1, ((0, KC1P - KC1), (0, C1P - C1)))                   # (32, 128)
    b1 = jnp.pad(p["conv1_b"], (0, C1P - C1)).reshape(1, C1P)
    w2 = jnp.pad(p["conv2_w"], ((0, 0), (0, 0), (0, C1P - C1), (0, 0)))  # (3,3,128,128)
    w2 = w2.reshape(KC2, C2).astype(jnp.bfloat16)                        # (1152,128) bf16
    b2 = p["conv2_b"].reshape(1, C2)
    wfc = jnp.pad(p["fc_w"], ((0, 0), (0, NCP - nc)))                    # (128, 1024)
    bfc = jnp.pad(p["fc_b"], (0, NCP - nc)).reshape(1, NCP)

    yy, xx = np.meshgrid(np.arange(HP), np.arange(WP), indexing="ij")
    valid = ((yy >= 1) & (yy <= H) & (xx >= 1) & (xx <= W)).astype(np.float32)
    mask = jnp.asarray(valid.reshape(RI, 1))

    return {"w1": w1, "b1": b1, "w2": w2, "b2": b2, "wfc": wfc, "bfc": bfc,
            "mask": mask}


# ---------------------------------------------------------------------------
# Plain-JAX reference for correctness checking.
# ---------------------------------------------------------------------------
def reference_forward(params, x_nchw):
    x = jnp.transpose(x_nchw, (0, 2, 3, 1))

    def conv(x, w, b):
        y = jax.lax.conv_general_dilated(
            x, w, window_strides=(1, 1), padding="SAME",
            dimension_numbers=("NHWC", "HWIO", "NHWC"))
        return jnp.maximum(y + b, 0.0)

    x = conv(x, params["conv1_w"], params["conv1_b"])
    x = conv(x, params["conv2_w"], params["conv2_b"])
    pooled = jnp.mean(x, axis=(1, 2))
    return pooled @ params["fc_w"] + params["fc_b"]


if __name__ == "__main__":
    key = jax.random.PRNGKey(0)
    kp, kx = jax.random.split(key)
    params = init_params(kp, NUM_CLASSES)
    kparams = prepare_params(params)

    # PyTorch-convention input: NCHW, batch=2, 3 channels, 16x16 spatial.
    x = jax.random.normal(kx, (2, CIN, H, W), dtype=jnp.float32)

    out = simple_cnn_forward(kparams, x)
    out = jax.block_until_ready(out)
    assert out.shape == (2, NUM_CLASSES), out.shape

    ref = reference_forward(params, x)
    # bf16 conv2 operands (f32 accumulation) -> relax tolerance slightly vs pure f32.
    assert jnp.allclose(out, ref, rtol=1e-2, atol=1e-2), (
        float(jnp.max(jnp.abs(out - ref))))

    print("KERNEL_OK")
</pallas_src>

<mosaic_0001>
module attributes {stable_mosaic.version = 11 : i64} {
  func.func @fused_cnn_kernel(%arg0: i32, %arg1: memref<720x32xf32, #tpu.memory_space<vmem>>, %arg2: memref<360x1xf32, #tpu.memory_space<vmem>>, %arg3: memref<32x128xf32, #tpu.memory_space<vmem>>, %arg4: memref<1x128xf32, #tpu.memory_space<vmem>>, %arg5: memref<1152x128xbf16, #tpu.memory_space<vmem>>, %arg6: memref<1x128xf32, #tpu.memory_space<vmem>>, %arg7: memref<128x1024xf32, #tpu.memory_space<vmem>>, %arg8: memref<1x1024xf32, #tpu.memory_space<vmem>>, %arg9: memref<2x1024xf32, #tpu.memory_space<vmem>>, %arg10: memref<768x128xf32, #tpu.memory_space<vmem>>) attributes {dimension_semantics = [#tpu.dimension_semantics<arbitrary>], iteration_bounds = array<i64: 1>, scalar_prefetch = 0 : i64, scratch_operands = 1 : i64, tpu.core_type = #tpu.core_type<tc>, window_params = [{pipeline_mode = #tpu.pipeline_mode<synchronous>, transform_indices = @transform_0, window_bounds = array<i64: 720, 32>}, {pipeline_mode = #tpu.pipeline_mode<synchronous>, transform_indices = @transform_1, window_bounds = array<i64: 360, 1>}, {pipeline_mode = #tpu.pipeline_mode<synchronous>, transform_indices = @transform_2, window_bounds = array<i64: 32, 128>}, {pipeline_mode = #tpu.pipeline_mode<synchronous>, transform_indices = @transform_3, window_bounds = array<i64: 1, 128>}, {pipeline_mode = #tpu.pipeline_mode<synchronous>, transform_indices = @transform_4, window_bounds = array<i64: 1152, 128>}, {pipeline_mode = #tpu.pipeline_mode<synchronous>, transform_indices = @transform_5, window_bounds = array<i64: 1, 128>}, {pipeline_mode = #tpu.pipeline_mode<synchronous>, transform_indices = @transform_6, window_bounds = array<i64: 128, 1024>}, {pipeline_mode = #tpu.pipeline_mode<synchronous>, transform_indices = @transform_7, window_bounds = array<i64: 1, 1024>}, {pipeline_mode = #tpu.pipeline_mode<synchronous>, transform_indices = @transform_8, window_bounds = array<i64: 2, 1024>}]} {
    %cst = arith.constant 0.000000e+00 : f32
    %0 = vector.broadcast %cst : f32 to vector<24x128xf32>
    %c0 = arith.constant 0 : index
    %c0_0 = arith.constant 0 : index
    %1 = vector.load %arg10[%c0, %c0_0] : memref<768x128xf32, #tpu.memory_space<vmem>>, vector<24x128xf32>
    tpu.vector_store %arg10[%c0, %c0_0], %0 {strides = array<i32>} : memref<768x128xf32, #tpu.memory_space<vmem>>, vector<24x128xf32>,
    %cst_1 = arith.constant 0.000000e+00 : f32
    %2 = vector.broadcast %cst_1 : f32 to vector<24x128xf32>
    %c744 = arith.constant 744 : index
    %c0_2 = arith.constant 0 : index
    %3 = vector.load %arg10[%c744, %c0_2] : memref<768x128xf32, #tpu.memory_space<vmem>>, vector<24x128xf32>
    tpu.vector_store %arg10[%c744, %c0_2], %2 {strides = array<i32>} : memref<768x128xf32, #tpu.memory_space<vmem>>, vector<24x128xf32>,
    %c0_3 = arith.constant 0 : index
    %c0_4 = arith.constant 0 : index
    %4 = vector.load %arg1[%c0_3, %c0_4] : memref<720x32xf32, #tpu.memory_space<vmem>>, vector<120x32xf32>
    %c0_5 = arith.constant 0 : index
    %c0_6 = arith.constant 0 : index
    %5 = vector.load %arg3[%c0_5, %c0_6] : memref<32x128xf32, #tpu.memory_space<vmem>>, vector<32x128xf32>
    %cst_7 = arith.constant dense<0.000000e+00> : vector<120x128xf32>
    %6 = tpu.matmul %4, %5, %cst_7 {dimension_numbers = #tpu.dot_dimension_numbers<[1], [0], [0], [1], [0, 0, 1, 1], [], []>} : vector<120x32xf32>, vector<32x128xf32>, vector<120x128xf32> -> vector<120x128xf32>
    %c0_8 = arith.constant 0 : index
    %c0_9 = arith.constant 0 : index
    %7 = vector.load %arg4[%c0_8, %c0_9] : memref<1x128xf32, #tpu.memory_space<vmem>>, vector<1x128xf32>
    %8 = vector.broadcast %7 : vector<1x128xf32> to vector<120x128xf32>
    %9 = arith.addf %6, %8 : vector<120x128xf32>
    %cst_10 = arith.constant 0.000000e+00 : f32
    %10 = vector.broadcast %cst_10 : f32 to vector<120x128xf32>
    %11 = arith.maximumf %9, %10 : vector<120x128xf32>
    %c0_11 = arith.constant 0 : index
    %c0_12 = arith.constant 0 : index
    %12 = vector.load %arg2[%c0_11, %c0_12] : memref<360x1xf32, #tpu.memory_space<vmem>>, vector<120x1xf32>
    %13 = vector.broadcast %12 : vector<120x1xf32> to vector<120x128xf32>
    %14 = arith.mulf %11, %13 : vector<120x128xf32>
    %c24 = arith.constant 24 : index
    %c0_13 = arith.constant 0 : index
    %15 = vector.load %arg10[%c24, %c0_13] : memref<768x128xf32, #tpu.memory_space<vmem>>, vector<120x128xf32>
    tpu.vector_store %arg10[%c24, %c0_13], %14 {strides = array<i32>} : memref<768x128xf32, #tpu.memory_space<vmem>>, vector<120x128xf32>,
    %c120 = arith.constant 120 : index
    %c0_14 = arith.constant 0 : index
    %16 = vector.load %arg1[%c120, %c0_14] : memref<720x32xf32, #tpu.memory_space<vmem>>, vector<120x32xf32>
    %c0_15 = arith.constant 0 : index
    %c0_16 = arith.constant 0 : index
    %17 = vector.load %arg3[%c0_15, %c0_16] : memref<32x128xf32, #tpu.memory_space<vmem>>, vector<32x128xf32>
    %cst_17 = arith.constant dense<0.000000e+00> : vector<120x128xf32>
    %18 = tpu.matmul %16, %17, %cst_17 {dimension_numbers = #tpu.dot_dimension_numbers<[1], [0], [0], [1], [0, 0, 1, 1], [], []>} : vector<120x32xf32>, vector<32x128xf32>, vector<120x128xf32> -> vector<120x128xf32>
    %c0_18 = arith.constant 0 : index
    %c0_19 = arith.constant 0 : index
    %19 = vector.load %arg4[%c0_18, %c0_19] : memref<1x128xf32, #tpu.memory_space<vmem>>, vector<1x128xf32>
    %20 = vector.broadcast %19 : vector<1x128xf32> to vector<120x128xf32>
    %21 = arith.addf %18, %20 : vector<120x128xf32>
    %cst_20 = arith.constant 0.000000e+00 : f32
    %22 = vector.broadcast %cst_20 : f32 to vector<120x128xf32>
    %23 = arith.maximumf %21, %22 : vector<120x128xf32>
    %c120_21 = arith.constant 120 : index
    %c0_22 = arith.constant 0 : index
    %24 = vector.load %arg2[%c120_21, %c0_22] : memref<360x1xf32, #tpu.memory_space<vmem>>, vector<120x1xf32>
    %25 = vector.broadcast %24 : vector<120x1xf32> to vector<120x128xf32>
    %26 = arith.mulf %23, %25 : vector<120x128xf32>
    %c144 = arith.constant 144 : index
    %c0_23 = arith.constant 0 : index
    %27 = vector.load %arg10[%c144, %c0_23] : memref<768x128xf32, #tpu.memory_space<vmem>>, vector<120x128xf32>
    tpu.vector_store %arg10[%c144, %c0_23], %26 {strides = array<i32>} : memref<768x128xf32, #tpu.memory_space<vmem>>, vector<120x128xf32>,
    %c240 = arith.constant 240 : index
    %c0_24 = arith.constant 0 : index
    %28 = vector.load %arg1[%c240, %c0_24] : memref<720x32xf32, #tpu.memory_space<vmem>>, vector<120x32xf32>
    %c0_25 = arith.constant 0 : index
    %c0_26 = arith.constant 0 : index
    %29 = vector.load %arg3[%c0_25, %c0_26] : memref<32x128xf32, #tpu.memory_space<vmem>>, vector<32x128xf32>
    %cst_27 = arith.constant dense<0.000000e+00> : vector<120x128xf32>
    %30 = tpu.matmul %28, %29, %cst_27 {dimension_numbers = #tpu.dot_dimension_numbers<[1], [0], [0], [1], [0, 0, 1, 1], [], []>} : vector<120x32xf32>, vector<32x128xf32>, vector<120x128xf32> -> vector<120x128xf32>
    %c0_28 = arith.constant 0 : index
    %c0_29 = arith.constant 0 : index
    %31 = vector.load %arg4[%c0_28, %c0_29] : memref<1x128xf32, #tpu.memory_space<vmem>>, vector<1x128xf32>
    %32 = vector.broadcast %31 : vector<1x128xf32> to vector<120x128xf32>
    %33 = arith.addf %30, %32 : vector<120x128xf32>
    %cst_30 = arith.constant 0.000000e+00 : f32
    %34 = vector.broadcast %cst_30 : f32 to vector<120x128xf32>
    %35 = arith.maximumf %33, %34 : vector<120x128xf32>
    %c240_31 = arith.constant 240 : index
    %c0_32 = arith.constant 0 : index
    %36 = vector.load %arg2[%c240_31, %c0_32] : memref<360x1xf32, #tpu.memory_space<vmem>>, vector<120x1xf32>
    %37 = vector.broadcast %36 : vector<120x1xf32> to vector<120x128xf32>
    %38 = arith.mulf %35, %37 : vector<120x128xf32>
    %c264 = arith.constant 264 : index
    %c0_33 = arith.constant 0 : index
    %39 = vector.load %arg10[%c264, %c0_33] : memref<768x128xf32, #tpu.memory_space<vmem>>, vector<120x128xf32>
    tpu.vector_store %arg10[%c264, %c0_33], %38 {strides = array<i32>} : memref<768x128xf32, #tpu.memory_space<vmem>>, vector<120x128xf32>,
    %c360 = arith.constant 360 : index
    %c0_34 = arith.constant 0 : index
    %40 = vector.load %arg1[%c360, %c0_34] : memref<720x32xf32, #tpu.memory_space<vmem>>, vector<120x32xf32>
    %c0_35 = arith.constant 0 : index
    %c0_36 = arith.constant 0 : index
    %41 = vector.load %arg3[%c0_35, %c0_36] : memref<32x128xf32, #tpu.memory_space<vmem>>, vector<32x128xf32>
    %cst_37 = arith.constant dense<0.000000e+00> : vector<120x128xf32>
    %42 = tpu.matmul %40, %41, %cst_37 {dimension_numbers = #tpu.dot_dimension_numbers<[1], [0], [0], [1], [0, 0, 1, 1], [], []>} : vector<120x32xf32>, vector<32x128xf32>, vector<120x128xf32> -> vector<120x128xf32>
    %c0_38 = arith.constant 0 : index
    %c0_39 = arith.constant 0 : index
    %43 = vector.load %arg4[%c0_38, %c0_39] : memref<1x128xf32, #tpu.memory_space<vmem>>, vector<1x128xf32>
    %44 = vector.broadcast %43 : vector<1x128xf32> to vector<120x128xf32>
    %45 = arith.addf %42, %44 : vector<120x128xf32>
    %cst_40 = arith.constant 0.000000e+00 : f32
    %46 = vector.broadcast %cst_40 : f32 to vector<120x128xf32>
    %47 = arith.maximumf %45, %46 : vector<120x128xf32>
    %c0_41 = arith.constant 0 : index
    %c0_42 = arith.constant 0 : index
    %48 = vector.load %arg2[%c0_41, %c0_42] : memref<360x1xf32, #tpu.memory_space<vmem>>, vector<120x1xf32>
    %49 = vector.broadcast %48 : vector<120x1xf32> to vector<120x128xf32>
    %50 = arith.mulf %47, %49 : vector<120x128xf32>
    %c384 = arith.constant 384 : index
    %c0_43 = arith.constant 0 : index
    %51 = vector.load %arg10[%c384, %c0_43] : memref<768x128xf32, #tpu.memory_space<vmem>>, vector<120x128xf32>
    tpu.vector_store %arg10[%c384, %c0_43], %50 {strides = array<i32>} : memref<768x128xf32, #tpu.memory_space<vmem>>, vector<120x128xf32>,
    %c480 = arith.constant 480 : index
    %c0_44 = arith.constant 0 : index
    %52 = vector.load %arg1[%c480, %c0_44] : memref<720x32xf32, #tpu.memory_space<vmem>>, vector<120x32xf32>
    %c0_45 = arith.constant 0 : index
    %c0_46 = arith.constant 0 : index
    %53 = vector.load %arg3[%c0_45, %c0_46] : memref<32x128xf32, #tpu.memory_space<vmem>>, vector<32x128xf32>
    %cst_47 = arith.constant dense<0.000000e+00> : vector<120x128xf32>
    %54 = tpu.matmul %52, %53, %cst_47 {dimension_numbers = #tpu.dot_dimension_numbers<[1], [0], [0], [1], [0, 0, 1, 1], [], []>} : vector<120x32xf32>, vector<32x128xf32>, vector<120x128xf32> -> vector<120x128xf32>
    %c0_48 = arith.constant 0 : index
    %c0_49 = arith.constant 0 : index
    %55 = vector.load %arg4[%c0_48, %c0_49] : memref<1x128xf32, #tpu.memory_space<vmem>>, vector<1x128xf32>
    %56 = vector.broadcast %55 : vector<1x128xf32> to vector<120x128xf32>
    %57 = arith.addf %54, %56 : vector<120x128xf32>
    %cst_50 = arith.constant 0.000000e+00 : f32
    %58 = vector.broadcast %cst_50 : f32 to vector<120x128xf32>
    %59 = arith.maximumf %57, %58 : vector<120x128xf32>
    %c120_51 = arith.constant 120 : index
    %c0_52 = arith.constant 0 : index
    %60 = vector.load %arg2[%c120_51, %c0_52] : memref<360x1xf32, #tpu.memory_space<vmem>>, vector<120x1xf32>
    %61 = vector.broadcast %60 : vector<120x1xf32> to vector<120x128xf32>
    %62 = arith.mulf %59, %61 : vector<120x128xf32>
    %c504 = arith.constant 504 : index
    %c0_53 = arith.constant 0 : index
    %63 = vector.load %arg10[%c504, %c0_53] : memref<768x128xf32, #tpu.memory_space<vmem>>, vector<120x128xf32>
    tpu.vector_store %arg10[%c504, %c0_53], %62 {strides = array<i32>} : memref<768x128xf32, #tpu.memory_space<vmem>>, vector<120x128xf32>,
    %c600 = arith.constant 600 : index
    %c0_54 = arith.constant 0 : index
    %64 = vector.load %arg1[%c600, %c0_54] : memref<720x32xf32, #tpu.memory_space<vmem>>, vector<120x32xf32>
    %c0_55 = arith.constant 0 : index
    %c0_56 = arith.constant 0 : index
    %65 = vector.load %arg3[%c0_55, %c0_56] : memref<32x128xf32, #tpu.memory_space<vmem>>, vector<32x128xf32>
    %cst_57 = arith.constant dense<0.000000e+00> : vector<120x128xf32>
    %66 = tpu.matmul %64, %65, %cst_57 {dimension_numbers = #tpu.dot_dimension_numbers<[1], [0], [0], [1], [0, 0, 1, 1], [], []>} : vector<120x32xf32>, vector<32x128xf32>, vector<120x128xf32> -> vector<120x128xf32>
    %c0_58 = arith.constant 0 : index
    %c0_59 = arith.constant 0 : index
    %67 = vector.load %arg4[%c0_58, %c0_59] : memref<1x128xf32, #tpu.memory_space<vmem>>, vector<1x128xf32>
    %68 = vector.broadcast %67 : vector<1x128xf32> to vector<120x128xf32>
    %69 = arith.addf %66, %68 : vector<120x128xf32>
    %cst_60 = arith.constant 0.000000e+00 : f32
    %70 = vector.broadcast %cst_60 : f32 to vector<120x128xf32>
    %71 = arith.maximumf %69, %70 : vector<120x128xf32>
    %c240_61 = arith.constant 240 : index
    %c0_62 = arith.constant 0 : index
    %72 = vector.load %arg2[%c240_61, %c0_62] : memref<360x1xf32, #tpu.memory_space<vmem>>, vector<120x1xf32>
    %73 = vector.broadcast %72 : vector<120x1xf32> to vector<120x128xf32>
    %74 = arith.mulf %71, %73 : vector<120x128xf32>
    %c624 = arith.constant 624 : index
    %c0_63 = arith.constant 0 : index
    %75 = vector.load %arg10[%c624, %c0_63] : memref<768x128xf32, #tpu.memory_space<vmem>>, vector<120x128xf32>
    tpu.vector_store %arg10[%c624, %c0_63], %74 {strides = array<i32>} : memref<768x128xf32, #tpu.memory_space<vmem>>, vector<120x128xf32>,
    %cst_64 = arith.constant 0.000000e+00 : f32
    %76 = vector.broadcast %cst_64 : f32 to vector<1x128xf32>
    %cst_65 = arith.constant 0.000000e+00 : f32
    %77 = vector.broadcast %cst_65 : f32 to vector<120x128xf32>
    %c3 = arith.constant 3 : index
    %c0_66 = arith.constant 0 : index
    %78 = vector.load %arg10[%c3, %c0_66] : memref<768x128xf32, #tpu.memory_space<vmem>>, vector<120x128xf32>
    %79 = arith.truncf %78 : vector<120x128xf32> to vector<120x128xbf16>
    %c0_67 = arith.constant 0 : index
    %c0_68 = arith.constant 0 : index
    %80 = vector.load %arg5[%c0_67, %c0_68] : memref<1152x128xbf16, #tpu.memory_space<vmem>>, vector<128x128xbf16>
    %cst_69 = arith.constant dense<0.000000e+00> : vector<120x128xf32>
    %81 = tpu.matmul %79, %80, %cst_69 {dimension_numbers = #tpu.dot_dimension_numbers<[1], [0], [0], [1], [0, 0, 1, 1], [], []>} : vector<120x128xbf16>, vector<128x128xbf16>, vector<120x128xf32> -> vector<120x128xf32>
    %82 = arith.addf %77, %81 : vector<120x128xf32>
    %c4 = arith.constant 4 : index
    %c0_70 = arith.constant 0 : index
    %83 = vector.load %arg10[%c4, %c0_70] : memref<768x128xf32, #tpu.memory_space<vmem>>, vector<120x128xf32>
    %84 = arith.truncf %83 : vector<120x128xf32> to vector<120x128xbf16>
    %c128 = arith.constant 128 : index
    %c0_71 = arith.constant 0 : index
    %85 = vector.load %arg5[%c128, %c0_71] : memref<1152x128xbf16, #tpu.memory_space<vmem>>, vector<128x128xbf16>
    %cst_72 = arith.constant dense<0.000000e+00> : vector<120x128xf32>
    %86 = tpu.matmul %84, %85, %cst_72 {dimension_numbers = #tpu.dot_dimension_numbers<[1], [0], [0], [1], [0, 0, 1, 1], [], []>} : vector<120x128xbf16>, vector<128x128xbf16>, vector<120x128xf32> -> vector<120x128xf32>
    %87 = arith.addf %82, %86 : vector<120x128xf32>
    %c5 = arith.constant 5 : index
    %c0_73 = arith.constant 0 : index
    %88 = vector.load %arg10[%c5, %c0_73] : memref<768x128xf32, #tpu.memory_space<vmem>>, vector<120x128xf32>
    %89 = arith.truncf %88 : vector<120x128xf32> to vector<120x128xbf16>
    %c256 = arith.constant 256 : index
    %c0_74 = arith.constant 0 : index
    %90 = vector.load %arg5[%c256, %c0_74] : memref<1152x128xbf16, #tpu.memory_space<vmem>>, vector<128x128xbf16>
    %cst_75 = arith.constant dense<0.000000e+00> : vector<120x128xf32>
    %91 = tpu.matmul %89, %90, %cst_75 {dimension_numbers = #tpu.dot_dimension_numbers<[1], [0], [0], [1], [0, 0, 1, 1], [], []>} : vector<120x128xbf16>, vector<128x128xbf16>, vector<120x128xf32> -> vector<120x128xf32>
    %92 = arith.addf %87, %91 : vector<120x128xf32>
    %c23 = arith.constant 23 : index
    %c0_76 = arith.constant 0 : index
    %93 = vector.load %arg10[%c23, %c0_76] : memref<768x128xf32, #tpu.memory_space<vmem>>, vector<120x128xf32>
    %94 = arith.truncf %93 : vector<120x128xf32> to vector<120x128xbf16>
    %c384_77 = arith.constant 384 : index
    %c0_78 = arith.constant 0 : index
    %95 = vector.load %arg5[%c384_77, %c0_78] : memref<1152x128xbf16, #tpu.memory_space<vmem>>, vector<128x128xbf16>
    %cst_79 = arith.constant dense<0.000000e+00> : vector<120x128xf32>
    %96 = tpu.matmul %94, %95, %cst_79 {dimension_numbers = #tpu.dot_dimension_numbers<[1], [0], [0], [1], [0, 0, 1, 1], [], []>} : vector<120x128xbf16>, vector<128x128xbf16>, vector<120x128xf32> -> vector<120x128xf32>
    %97 = arith.addf %92, %96 : vector<120x128xf32>
    %c24_80 = arith.constant 24 : index
    %c0_81 = arith.constant 0 : index
    %98 = vector.load %arg10[%c24_80, %c0_81] : memref<768x128xf32, #tpu.memory_space<vmem>>, vector<120x128xf32>
    %99 = arith.truncf %98 : vector<120x128xf32> to vector<120x128xbf16>
    %c512 = arith.constant 512 : index
    %c0_82 = arith.constant 0 : index
    %100 = vector.load %arg5[%c512, %c0_82] : memref<1152x128xbf16, #tpu.memory_space<vmem>>, vector<128x128xbf16>
    %cst_83 = arith.constant dense<0.000000e+00> : vector<120x128xf32>
    %101 = tpu.matmul %99, %100, %cst_83 {dimension_numbers = #tpu.dot_dimension_numbers<[1], [0], [0], [1], [0, 0, 1, 1], [], []>} : vector<120x128xbf16>, vector<128x128xbf16>, vector<120x128xf32> -> vector<120x128xf32>
    %102 = arith.addf %97, %101 : vector<120x128xf32>
    %c25 = arith.constant 25 : index
    %c0_84 = arith.constant 0 : index
    %103 = vector.load %arg10[%c25, %c0_84] : memref<768x128xf32, #tpu.memory_space<vmem>>, vector<120x128xf32>
    %104 = arith.truncf %103 : vector<120x128xf32> to vector<120x128xbf16>
    %c640 = arith.constant 640 : index
    %c0_85 = arith.constant 0 : index
    %105 = vector.load %arg5[%c640, %c0_85] : memref<1152x128xbf16, #tpu.memory_space<vmem>>, vector<128x128xbf16>
    %cst_86 = arith.constant dense<0.000000e+00> : vector<120x128xf32>
    %106 = tpu.matmul %104, %105, %cst_86 {dimension_numbers = #tpu.dot_dimension_numbers<[1], [0], [0], [1], [0, 0, 1, 1], [], []>} : vector<120x128xbf16>, vector<128x128xbf16>, vector<120x128xf32> -> vector<120x128xf32>
    %107 = arith.addf %102, %106 : vector<120x128xf32>
    %c43 = arith.constant 43 : index
    %c0_87 = arith.constant 0 : index
    %108 = vector.load %arg10[%c43, %c0_87] : memref<768x128xf32, #tpu.memory_space<vmem>>, vector<120x128xf32>
    %109 = arith.truncf %108 : vector<120x128xf32> to vector<120x128xbf16>
    %c768 = arith.constant 768 : index
    %c0_88 = arith.constant 0 : index
    %110 = vector.load %arg5[%c768, %c0_88] : memref<1152x128xbf16, #tpu.memory_space<vmem>>, vector<128x128xbf16>
    %cst_89 = arith.constant dense<0.000000e+00> : vector<120x128xf32>
    %111 = tpu.matmul %109, %110, %cst_89 {dimension_numbers = #tpu.dot_dimension_numbers<[1], [0], [0], [1], [0, 0, 1, 1], [], []>} : vector<120x128xbf16>, vector<128x128xbf16>, vector<120x128xf32> -> vector<120x128xf32>
    %112 = arith.addf %107, %111 : vector<120x128xf32>
    %c44 = arith.constant 44 : index
    %c0_90 = arith.constant 0 : index
    %113 = vector.load %arg10[%c44, %c0_90] : memref<768x128xf32, #tpu.memory_space<vmem>>, vector<120x128xf32>
    %114 = arith.truncf %113 : vector<120x128xf32> to vector<120x128xbf16>
    %c896 = arith.constant 896 : index
    %c0_91 = arith.constant 0 : index
    %115 = vector.load %arg5[%c896, %c0_91] : memref<1152x128xbf16, #tpu.memory_space<vmem>>, vector<128x128xbf16>
    %cst_92 = arith.constant dense<0.000000e+00> : vector<120x128xf32>
    %116 = tpu.matmul %114, %115, %cst_92 {dimension_numbers = #tpu.dot_dimension_numbers<[1], [0], [0], [1], [0, 0, 1, 1], [], []>} : vector<120x128xbf16>, vector<128x128xbf16>, vector<120x128xf32> -> vector<120x128xf32>
    %117 = arith.addf %112, %116 : vector<120x128xf32>
    %c45 = arith.constant 45 : index
    %c0_93 = arith.constant 0 : index
    %118 = vector.load %arg10[%c45, %c0_93] : memref<768x128xf32, #tpu.memory_space<vmem>>, vector<120x128xf32>
    %119 = arith.truncf %118 : vector<120x128xf32> to vector<120x128xbf16>
    %c1024 = arith.constant 1024 : index
    %c0_94 = arith.constant 0 : index
    %120 = vector.load %arg5[%c1024, %c0_94] : memref<1152x128xbf16, #tpu.memory_space<vmem>>, vector<128x128xbf16>
    %cst_95 = arith.constant dense<0.000000e+00> : vector<120x128xf32>
    %121 = tpu.matmul %119, %120, %cst_95 {dimension_numbers = #tpu.dot_dimension_numbers<[1], [0], [0], [1], [0, 0, 1, 1], [], []>} : vector<120x128xbf16>, vector<128x128xbf16>, vector<120x128xf32> -> vector<120x128xf32>
    %122 = arith.addf %117, %121 : vector<120x128xf32>
    %c0_96 = arith.constant 0 : index
    %c0_97 = arith.constant 0 : index
    %123 = vector.load %arg6[%c0_96, %c0_97] : memref<1x128xf32, #tpu.memory_space<vmem>>, vector<1x128xf32>
    %124 = vector.broadcast %123 : vector<1x128xf32> to vector<120x128xf32>
    %125 = arith.addf %122, %124 : vector<120x128xf32>
    %cst_98 = arith.constant 0.000000e+00 : f32
    %126 = vector.broadcast %cst_98 : f32 to vector<120x128xf32>
    %127 = arith.maximumf %125, %126 : vector<120x128xf32>
    %c0_99 = arith.constant 0 : index
    %c0_100 = arith.constant 0 : index
    %128 = vector.load %arg2[%c0_99, %c0_100] : memref<360x1xf32, #tpu.memory_space<vmem>>, vector<120x1xf32>
    %129 = vector.broadcast %128 : vector<120x1xf32> to vector<120x128xf32>
    %130 = arith.mulf %127, %129 : vector<120x128xf32>
    %cst_101 = arith.constant dense<0.000000e+00> : vector<128xf32>
    %131 = vector.multi_reduction <add>, %130, %cst_101 [0] : vector<120x128xf32> to vector<128xf32>
    %132 = vector.shape_cast %131 : vector<128xf32> to vector<1x128xf32>
    %cst_102 = arith.constant 3.906250e-03 : f32
    %133 = vector.broadcast %cst_102 : f32 to vector<1x128xf32>
    %134 = arith.mulf %132, %133 : vector<1x128xf32>
    %135 = arith.addf %76, %134 : vector<1x128xf32>
    %cst_103 = arith.constant 0.000000e+00 : f32
    %136 = vector.broadcast %cst_103 : f32 to vector<120x128xf32>
    %c123 = arith.constant 123 : index
    %c0_104 = arith.constant 0 : index
    %137 = vector.load %arg10[%c123, %c0_104] : memref<768x128xf32, #tpu.memory_space<vmem>>, vector<120x128xf32>
    %138 = arith.truncf %137 : vector<120x128xf32> to vector<120x128xbf16>
    %c0_105 = arith.constant 0 : index
    %c0_106 = arith.constant 0 : index
    %139 = vector.load %arg5[%c0_105, %c0_106] : memref<1152x128xbf16, #tpu.memory_space<vmem>>, vector<128x128xbf16>
    %cst_107 = arith.constant dense<0.000000e+00> : vector<120x128xf32>
    %140 = tpu.matmul %138, %139, %cst_107 {dimension_numbers = #tpu.dot_dimension_numbers<[1], [0], [0], [1], [0, 0, 1, 1], [], []>} : vector<120x128xbf16>, vector<128x128xbf16>, vector<120x128xf32> -> vector<120x128xf32>
    %141 = arith.addf %136, %140 : vector<120x128xf32>
    %c124 = arith.constant 124 : index
    %c0_108 = arith.constant 0 : index
    %142 = vector.load %arg10[%c124, %c0_108] : memref<768x128xf32, #tpu.memory_space<vmem>>, vector<120x128xf32>
    %143 = arith.truncf %142 : vector<120x128xf32> to vector<120x128xbf16>
    %c128_109 = arith.constant 128 : index
    %c0_110 = arith.constant 0 : index
    %144 = vector.load %arg5[%c128_109, %c0_110] : memref<1152x128xbf16, #tpu.memory_space<vmem>>, vector<128x128xbf16>
    %cst_111 = arith.constant dense<0.000000e+00> : vector<120x128xf32>
    %145 = tpu.matmul %143, %144, %cst_111 {dimension_numbers = #tpu.dot_dimension_numbers<[1], [0], [0], [1], [0, 0, 1, 1], [], []>} : vector<120x128xbf16>, vector<128x128xbf16>, vector<120x128xf32> -> vector<120x128xf32>
    %146 = arith.addf %141, %145 : vector<120x128xf32>
    %c125 = arith.constant 125 : index
    %c0_112 = arith.constant 0 : index
    %147 = vector.load %arg10[%c125, %c0_112] : memref<768x128xf32, #tpu.memory_space<vmem>>, vector<120x128xf32>
    %148 = arith.truncf %147 : vector<120x128xf32> to vector<120x128xbf16>
    %c256_113 = arith.constant 256 : index
    %c0_114 = arith.constant 0 : index
    %149 = vector.load %arg5[%c256_113, %c0_114] : memref<1152x128xbf16, #tpu.memory_space<vmem>>, vector<128x128xbf16>
    %cst_115 = arith.constant dense<0.000000e+00> : vector<120x128xf32>
    %150 = tpu.matmul %148, %149, %cst_115 {dimension_numbers = #tpu.dot_dimension_numbers<[1], [0], [0], [1], [0, 0, 1, 1], [], []>} : vector<120x128xbf16>, vector<128x128xbf16>, vector<120x128xf32> -> vector<120x128xf32>
    %151 = arith.addf %146, %150 : vector<120x128xf32>
    %c143 = arith.constant 143 : index
    %c0_116 = arith.constant 0 : index
    %152 = vector.load %arg10[%c143, %c0_116] : memref<768x128xf32, #tpu.memory_space<vmem>>, vector<120x128xf32>
    %153 = arith.truncf %152 : vector<120x128xf32> to vector<120x128xbf16>
    %c384_117 = arith.constant 384 : index
    %c0_118 = arith.constant 0 : index
    %154 = vector.load %arg5[%c384_117, %c0_118] : memref<1152x128xbf16, #tpu.memory_space<vmem>>, vector<128x128xbf16>
    %cst_119 = arith.constant dense<0.000000e+00> : vector<120x128xf32>
    %155 = tpu.matmul %153, %154, %cst_119 {dimension_numbers = #tpu.dot_dimension_numbers<[1], [0], [0], [1], [0, 0, 1, 1], [], []>} : vector<120x128xbf16>, vector<128x128xbf16>, vector<120x128xf32> -> vector<120x128xf32>
    %156 = arith.addf %151, %155 : vector<120x128xf32>
    %c144_120 = arith.constant 144 : index
    %c0_121 = arith.constant 0 : index
    %157 = vector.load %arg10[%c144_120, %c0_121] : memref<768x128xf32, #tpu.memory_space<vmem>>, vector<120x128xf32>
    %158 = arith.truncf %157 : vector<120x128xf32> to vector<120x128xbf16>
    %c512_122 = arith.constant 512 : index
    %c0_123 = arith.constant 0 : index
    %159 = vector.load %arg5[%c512_122, %c0_123] : memref<1152x128xbf16, #tpu.memory_space<vmem>>, vector<128x128xbf16>
    %cst_124 = arith.constant dense<0.000000e+00> : vector<120x128xf32>
    %160 = tpu.matmul %158, %159, %cst_124 {dimension_numbers = #tpu.dot_dimension_numbers<[1], [0], [0], [1], [0, 0, 1, 1], [], []>} : vector<120x128xbf16>, vector<128x128xbf16>, vector<120x128xf32> -> vector<120x128xf32>
    %161 = arith.addf %156, %160 : vector<120x128xf32>
    %c145 = arith.constant 145 : index
    %c0_125 = arith.constant 0 : index
    %162 = vector.load %arg10[%c145, %c0_125] : memref<768x128xf32, #tpu.memory_space<vmem>>, vector<120x128xf32>
    %163 = arith.truncf %162 : vector<120x128xf32> to vector<120x128xbf16>
    %c640_126 = arith.constant 640 : index
    %c0_127 = arith.constant 0 : index
    %164 = vector.load %arg5[%c640_126, %c0_127] : memref<1152x128xbf16, #tpu.memory_space<vmem>>, vector<128x128xbf16>
    %cst_128 = arith.constant dense<0.000000e+00> : vector<120x128xf32>
    %165 = tpu.matmul %163, %164, %cst_128 {dimension_numbers = #tpu.dot_dimension_numbers<[1], [0], [0], [1], [0, 0, 1, 1], [], []>} : vector<120x128xbf16>, vector<128x128xbf16>, vector<120x128xf32> -> vector<120x128xf32>
    %166 = arith.addf %161, %165 : vector<120x128xf32>
    %c163 = arith.constant 163 : index
    %c0_129 = arith.constant 0 : index
    %167 = vector.load %arg10[%c163, %c0_129] : memref<768x128xf32, #tpu.memory_space<vmem>>, vector<120x128xf32>
    %168 = arith.truncf %167 : vector<120x128xf32> to vector<120x128xbf16>
    %c768_130 = arith.constant 768 : index
    %c0_131 = arith.constant 0 : index
    %169 = vector.load %arg5[%c768_130, %c0_131] : memref<1152x128xbf16, #tpu.memory_space<vmem>>, vector<128x128xbf16>
    %cst_132 = arith.constant dense<0.000000e+00> : vector<120x128xf32>
    %170 = tpu.matmul %168, %169, %cst_132 {dimension_numbers = #tpu.dot_dimension_numbers<[1], [0], [0], [1], [0, 0, 1, 1], [], []>} : vector<120x128xbf16>, vector<128x128xbf16>, vector<120x128xf32> -> vector<120x128xf32>
    %171 = arith.addf %166, %170 : vector<120x128xf32>
    %c164 = arith.constant 164 : index
    %c0_133 = arith.constant 0 : index
    %172 = vector.load %arg10[%c164, %c0_133] : memref<768x128xf32, #tpu.memory_space<vmem>>, vector<120x128xf32>
    %173 = arith.truncf %172 : vector<120x128xf32> to vector<120x128xbf16>
    %c896_134 = arith.constant 896 : index
    %c0_135 = arith.constant 0 : index
    %174 = vector.load %arg5[%c896_134, %c0_135] : memref<1152x128xbf16, #tpu.memory_space<vmem>>, vector<128x128xbf16>
    %cst_136 = arith.constant dense<0.000000e+00> : vector<120x128xf32>
    %175 = tpu.matmul %173, %174, %cst_136 {dimension_numbers = #tpu.dot_dimension_numbers<[1], [0], [0], [1], [0, 0, 1, 1], [], []>} : vector<120x128xbf16>, vector<128x128xbf16>, vector<120x128xf32> -> vector<120x128xf32>
    %176 = arith.addf %171, %175 : vector<120x128xf32>
    %c165 = arith.constant 165 : index
    %c0_137 = arith.constant 0 : index
    %177 = vector.load %arg10[%c165, %c0_137] : memref<768x128xf32, #tpu.memory_space<vmem>>, vector<120x128xf32>
    %178 = arith.truncf %177 : vector<120x128xf32> to vector<120x128xbf16>
    %c1024_138 = arith.constant 1024 : index
    %c0_139 = arith.constant 0 : index
    %179 = vector.load %arg5[%c1024_138, %c0_139] : memref<1152x128xbf16, #tpu.memory_space<vmem>>, vector<128x128xbf16>
    %cst_140 = arith.constant dense<0.000000e+00> : vector<120x128xf32>
    %180 = tpu.matmul %178, %179, %cst_140 {dimension_numbers = #tpu.dot_dimension_numbers<[1], [0], [0], [1], [0, 0, 1, 1], [], []>} : vector<120x128xbf16>, vector<128x128xbf16>, vector<120x128xf32> -> vector<120x128xf32>
    %181 = arith.addf %176, %180 : vector<120x128xf32>
    %c0_141 = arith.constant 0 : index
    %c0_142 = arith.constant 0 : index
    %182 = vector.load %arg6[%c0_141, %c0_142] : memref<1x128xf32, #tpu.memory_space<vmem>>, vector<1x128xf32>
    %183 = vector.broadcast %182 : vector<1x128xf32> to vector<120x128xf32>
    %184 = arith.addf %181, %183 : vector<120x128xf32>
    %cst_143 = arith.constant 0.000000e+00 : f32
    %185 = vector.broadcast %cst_143 : f32 to vector<120x128xf32>
    %186 = arith.maximumf %184, %185 : vector<120x128xf32>
    %c120_144 = arith.constant 120 : index
    %c0_145 = arith.constant 0 : index
    %187 = vector.load %arg2[%c120_144, %c0_145] : memref<360x1xf32, #tpu.memory_space<vmem>>, vector<120x1xf32>
    %188 = vector.broadcast %187 : vector<120x1xf32> to vector<120x128xf32>
    %189 = arith.mulf %186, %188 : vector<120x128xf32>
    %cst_146 = arith.constant dense<0.000000e+00> : vector<128xf32>
    %190 = vector.multi_reduction <add>, %189, %cst_146 [0] : vector<120x128xf32> to vector<128xf32>
    %191 = vector.shape_cast %190 : vector<128xf32> to vector<1x128xf32>
    %cst_147 = arith.constant 3.906250e-03 : f32
    %192 = vector.broadcast %cst_147 : f32 to vector<1x128xf32>
    %193 = arith.mulf %191, %192 : vector<1x128xf32>
    %194 = arith.addf %135, %193 : vector<1x128xf32>
    %cst_148 = arith.constant 0.000000e+00 : f32
    %195 = vector.broadcast %cst_148 : f32 to vector<120x128xf32>
    %c243 = arith.constant 243 : index
    %c0_149 = arith.constant 0 : index
    %196 = vector.load %arg10[%c243, %c0_149] : memref<768x128xf32, #tpu.memory_space<vmem>>, vector<120x128xf32>
    %197 = arith.truncf %196 : vector<120x128xf32> to vector<120x128xbf16>
    %c0_150 = arith.constant 0 : index
    %c0_151 = arith.constant 0 : index
    %198 = vector.load %arg5[%c0_150, %c0_151] : memref<1152x128xbf16, #tpu.memory_space<vmem>>, vector<128x128xbf16>
    %cst_152 = arith.constant dense<0.000000e+00> : vector<120x128xf32>
    %199 = tpu.matmul %197, %198, %cst_152 {dimension_numbers = #tpu.dot_dimension_numbers<[1], [0], [0], [1], [0, 0, 1, 1], [], []>} : vector<120x128xbf16>, vector<128x128xbf16>, vector<120x128xf32> -> vector<120x128xf32>
    %200 = arith.addf %195, %199 : vector<120x128xf32>
    %c244 = arith.constant 244 : index
    %c0_153 = arith.constant 0 : index
    %201 = vector.load %arg10[%c244, %c0_153] : memref<768x128xf32, #tpu.memory_space<vmem>>, vector<120x128xf32>
    %202 = arith.truncf %201 : vector<120x128xf32> to vector<120x128xbf16>
    %c128_154 = arith.constant 128 : index
    %c0_155 = arith.constant 0 : index
    %203 = vector.load %arg5[%c128_154, %c0_155] : memref<1152x128xbf16, #tpu.memory_space<vmem>>, vector<128x128xbf16>
    %cst_156 = arith.constant dense<0.000000e+00> : vector<120x128xf32>
    %204 = tpu.matmul %202, %203, %cst_156 {dimension_numbers = #tpu.dot_dimension_numbers<[1], [0], [0], [1], [0, 0, 1, 1], [], []>} : vector<120x128xbf16>, vector<128x128xbf16>, vector<120x128xf32> -> vector<120x128xf32>
    %205 = arith.addf %200, %204 : vector<120x128xf32>
    %c245 = arith.constant 245 : index
    %c0_157 = arith.constant 0 : index
    %206 = vector.load %arg10[%c245, %c0_157] : memref<768x128xf32, #tpu.memory_space<vmem>>, vector<120x128xf32>
    %207 = arith.truncf %206 : vector<120x128xf32> to vector<120x128xbf16>
    %c256_158 = arith.constant 256 : index
    %c0_159 = arith.constant 0 : index
    %208 = vector.load %arg5[%c256_158, %c0_159] : memref<1152x128xbf16, #tpu.memory_space<vmem>>, vector<128x128xbf16>
    %cst_160 = arith.constant dense<0.000000e+00> : vector<120x128xf32>
    %209 = tpu.matmul %207, %208, %cst_160 {dimension_numbers = #tpu.dot_dimension_numbers<[1], [0], [0], [1], [0, 0, 1, 1], [], []>} : vector<120x128xbf16>, vector<128x128xbf16>, vector<120x128xf32> -> vector<120x128xf32>
    %210 = arith.addf %205, %209 : vector<120x128xf32>
    %c263 = arith.constant 263 : index
    %c0_161 = arith.constant 0 : index
    %211 = vector.load %arg10[%c263, %c0_161] : memref<768x128xf32, #tpu.memory_space<vmem>>, vector<120x128xf32>
    %212 = arith.truncf %211 : vector<120x128xf32> to vector<120x128xbf16>
    %c384_162 = arith.constant 384 : index
    %c0_163 = arith.constant 0 : index
    %213 = vector.load %arg5[%c384_162, %c0_163] : memref<1152x128xbf16, #tpu.memory_space<vmem>>, vector<128x128xbf16>
    %cst_164 = arith.constant dense<0.000000e+00> : vector<120x128xf32>
    %214 = tpu.matmul %212, %213, %cst_164 {dimension_numbers = #tpu.dot_dimension_numbers<[1], [0], [0], [1], [0, 0, 1, 1], [], []>} : vector<120x128xbf16>, vector<128x128xbf16>, vector<120x128xf32> -> vector<120x128xf32>
    %215 = arith.addf %210, %214 : vector<120x128xf32>
    %c264_165 = arith.constant 264 : index
    %c0_166 = arith.constant 0 : index
    %216 = vector.load %arg10[%c264_165, %c0_166] : memref<768x128xf32, #tpu.memory_space<vmem>>, vector<120x128xf32>
    %217 = arith.truncf %216 : vector<120x128xf32> to vector<120x128xbf16>
    %c512_167 = arith.constant 512 : index
    %c0_168 = arith.constant 0 : index
    %218 = vector.load %arg5[%c512_167, %c0_168] : memref<1152x128xbf16, #tpu.memory_space<vmem>>, vector<128x128xbf16>
    %cst_169 = arith.constant dense<0.000000e+00> : vector<120x128xf32>
    %219 = tpu.matmul %217, %218, %cst_169 {dimension_numbers = #tpu.dot_dimension_numbers<[1], [0], [0], [1], [0, 0, 1, 1], [], []>} : vector<120x128xbf16>, vector<128x128xbf16>, vector<120x128xf32> -> vector<120x128xf32>
    %220 = arith.addf %215, %219 : vector<120x128xf32>
    %c265 = arith.constant 265 : index
    %c0_170 = arith.constant 0 : index
    %221 = vector.load %arg10[%c265, %c0_170] : memref<768x128xf32, #tpu.memory_space<vmem>>, vector<120x128xf32>
    %222 = arith.truncf %221 : vector<120x128xf32> to vector<120x128xbf16>
    %c640_171 = arith.constant 640 : index
    %c0_172 = arith.constant 0 : index
    %223 = vector.load %arg5[%c640_171, %c0_172] : memref<1152x128xbf16, #tpu.memory_space<vmem>>, vector<128x128xbf16>
    %cst_173 = arith.constant dense<0.000000e+00> : vector<120x128xf32>
    %224 = tpu.matmul %222, %223, %cst_173 {dimension_numbers = #tpu.dot_dimension_numbers<[1], [0], [0], [1], [0, 0, 1, 1], [], []>} : vector<120x128xbf16>, vector<128x128xbf16>, vector<120x128xf32> -> vector<120x128xf32>
    %225 = arith.addf %220, %224 : vector<120x128xf32>
    %c283 = arith.constant 283 : index
    %c0_174 = arith.constant 0 : index
    %226 = vector.load %arg10[%c283, %c0_174] : memref<768x128xf32, #tpu.memory_space<vmem>>, vector<120x128xf32>
    %227 = arith.truncf %226 : vector<120x128xf32> to vector<120x128xbf16>
    %c768_175 = arith.constant 768 : index
    %c0_176 = arith.constant 0 : index
    %228 = vector.load %arg5[%c768_175, %c0_176] : memref<1152x128xbf16, #tpu.memory_space<vmem>>, vector<128x128xbf16>
    %cst_177 = arith.constant dense<0.000000e+00> : vector<120x128xf32>
    %229 = tpu.matmul %227, %228, %cst_177 {dimension_numbers = #tpu.dot_dimension_numbers<[1], [0], [0], [1], [0, 0, 1, 1], [], []>} : vector<120x128xbf16>, vector<128x128xbf16>, vector<120x128xf32> -> vector<120x128xf32>
    %230 = arith.addf %225, %229 : vector<120x128xf32>
    %c284 = arith.constant 284 : index
    %c0_178 = arith.constant 0 : index
    %231 = vector.load %arg10[%c284, %c0_178] : memref<768x128xf32, #tpu.memory_space<vmem>>, vector<120x128xf32>
    %232 = arith.truncf %231 : vector<120x128xf32> to vector<120x128xbf16>
    %c896_179 = arith.constant 896 : index
    %c0_180 = arith.constant 0 : index
    %233 = vector.load %arg5[%c896_179, %c0_180] : memref<1152x128xbf16, #tpu.memory_space<vmem>>, vector<128x128xbf16>
    %cst_181 = arith.constant dense<0.000000e+00> : vector<120x128xf32>
    %234 = tpu.matmul %232, %233, %cst_181 {dimension_numbers = #tpu.dot_dimension_numbers<[1], [0], [0], [1], [0, 0, 1, 1], [], []>} : vector<120x128xbf16>, vector<128x128xbf16>, vector<120x128xf32> -> vector<120x128xf32>
    %235 = arith.addf %230, %234 : vector<120x128xf32>
    %c285 = arith.constant 285 : index
    %c0_182 = arith.constant 0 : index
    %236 = vector.load %arg10[%c285, %c0_182] : memref<768x128xf32, #tpu.memory_space<vmem>>, vector<120x128xf32>
    %237 = arith.truncf %236 : vector<120x128xf32> to vector<120x128xbf16>
    %c1024_183 = arith.constant 1024 : index
    %c0_184 = arith.constant 0 : index
    %238 = vector.load %arg5[%c1024_183, %c0_184] : memref<1152x128xbf16, #tpu.memory_space<vmem>>, vector<128x128xbf16>
    %cst_185 = arith.constant dense<0.000000e+00> : vector<120x128xf32>
    %239 = tpu.matmul %237, %238, %cst_185 {dimension_numbers = #tpu.dot_dimension_numbers<[1], [0], [0], [1], [0, 0, 1, 1], [], []>} : vector<120x128xbf16>, vector<128x128xbf16>, vector<120x128xf32> -> vector<120x128xf32>
    %240 = arith.addf %235, %239 : vector<120x128xf32>
    %c0_186 = arith.constant 0 : index
    %c0_187 = arith.constant 0 : index
    %241 = vector.load %arg6[%c0_186, %c0_187] : memref<1x128xf32, #tpu.memory_space<vmem>>, vector<1x128xf32>
    %242 = vector.broadcast %241 : vector<1x128xf32> to vector<120x128xf32>
    %243 = arith.addf %240, %242 : vector<120x128xf32>
    %cst_188 = arith.constant 0.000000e+00 : f32
    %244 = vector.broadcast %cst_188 : f32 to vector<120x128xf32>
    %245 = arith.maximumf %243, %244 : vector<120x128xf32>
    %c240_189 = arith.constant 240 : index
    %c0_190 = arith.constant 0 : index
    %246 = vector.load %arg2[%c240_189, %c0_190] : memref<360x1xf32, #tpu.memory_space<vmem>>, vector<120x1xf32>
    %247 = vector.broadcast %246 : vector<120x1xf32> to vector<120x128xf32>
    %248 = arith.mulf %245, %247 : vector<120x128xf32>
    %cst_191 = arith.constant dense<0.000000e+00> : vector<128xf32>
    %249 = vector.multi_reduction <add>, %248, %cst_191 [0] : vector<120x128xf32> to vector<128xf32>
    %250 = vector.shape_cast %249 : vector<128xf32> to vector<1x128xf32>
    %cst_192 = arith.constant 3.906250e-03 : f32
    %251 = vector.broadcast %cst_192 : f32 to vector<1x128xf32>
    %252 = arith.mulf %250, %251 : vector<1x128xf32>
    %253 = arith.addf %194, %252 : vector<1x128xf32>
    %cst_193 = arith.constant 0.000000e+00 : f32
    %254 = vector.broadcast %cst_193 : f32 to vector<1x128xf32>
    %cst_194 = arith.constant 0.000000e+00 : f32
    %255 = vector.broadcast %cst_194 : f32 to vector<120x128xf32>
    %c363 = arith.constant 363 : index
    %c0_195 = arith.constant 0 : index
    %256 = vector.load %arg10[%c363, %c0_195] : memref<768x128xf32, #tpu.memory_space<vmem>>, vector<120x128xf32>
    %257 = arith.truncf %256 : vector<120x128xf32> to vector<120x128xbf16>
    %c0_196 = arith.constant 0 : index
    %c0_197 = arith.constant 0 : index
    %258 = vector.load %arg5[%c0_196, %c0_197] : memref<1152x128xbf16, #tpu.memory_space<vmem>>, vector<128x128xbf16>
    %cst_198 = arith.constant dense<0.000000e+00> : vector<120x128xf32>
    %259 = tpu.matmul %257, %258, %cst_198 {dimension_numbers = #tpu.dot_dimension_numbers<[1], [0], [0], [1], [0, 0, 1, 1], [], []>} : vector<120x128xbf16>, vector<128x128xbf16>, vector<120x128xf32> -> vector<120x128xf32>
    %260 = arith.addf %255, %259 : vector<120x128xf32>
    %c364 = arith.constant 364 : index
    %c0_199 = arith.constant 0 : index
    %261 = vector.load %arg10[%c364, %c0_199] : memref<768x128xf32, #tpu.memory_space<vmem>>, vector<120x128xf32>
    %262 = arith.truncf %261 : vector<120x128xf32> to vector<120x128xbf16>
    %c128_200 = arith.constant 128 : index
    %c0_201 = arith.constant 0 : index
    %263 = vector.load %arg5[%c128_200, %c0_201] : memref<1152x128xbf16, #tpu.memory_space<vmem>>, vector<128x128xbf16>
    %cst_202 = arith.constant dense<0.000000e+00> : vector<120x128xf32>
    %264 = tpu.matmul %262, %263, %cst_202 {dimension_numbers = #tpu.dot_dimension_numbers<[1], [0], [0], [1], [0, 0, 1, 1], [], []>} : vector<120x128xbf16>, vector<128x128xbf16>, vector<120x128xf32> -> vector<120x128xf32>
    %265 = arith.addf %260, %264 : vector<120x128xf32>
    %c365 = arith.constant 365 : index
    %c0_203 = arith.constant 0 : index
    %266 = vector.load %arg10[%c365, %c0_203] : memref<768x128xf32, #tpu.memory_space<vmem>>, vector<120x128xf32>
    %267 = arith.truncf %266 : vector<120x128xf32> to vector<120x128xbf16>
    %c256_204 = arith.constant 256 : index
    %c0_205 = arith.constant 0 : index
    %268 = vector.load %arg5[%c256_204, %c0_205] : memref<1152x128xbf16, #tpu.memory_space<vmem>>, vector<128x128xbf16>
    %cst_206 = arith.constant dense<0.000000e+00> : vector<120x128xf32>
    %269 = tpu.matmul %267, %268, %cst_206 {dimension_numbers = #tpu.dot_dimension_numbers<[1], [0], [0], [1], [0, 0, 1, 1], [], []>} : vector<120x128xbf16>, vector<128x128xbf16>, vector<120x128xf32> -> vector<120x128xf32>
    %270 = arith.addf %265, %269 : vector<120x128xf32>
    %c383 = arith.constant 383 : index
    %c0_207 = arith.constant 0 : index
    %271 = vector.load %arg10[%c383, %c0_207] : memref<768x128xf32, #tpu.memory_space<vmem>>, vector<120x128xf32>
    %272 = arith.truncf %271 : vector<120x128xf32> to vector<120x128xbf16>
    %c384_208 = arith.constant 384 : index
    %c0_209 = arith.constant 0 : index
    %273 = vector.load %arg5[%c384_208, %c0_209] : memref<1152x128xbf16, #tpu.memory_space<vmem>>, vector<128x128xbf16>
    %cst_210 = arith.constant dense<0.000000e+00> : vector<120x128xf32>
    %274 = tpu.matmul %272, %273, %cst_210 {dimension_numbers = #tpu.dot_dimension_numbers<[1], [0], [0], [1], [0, 0, 1, 1], [], []>} : vector<120x128xbf16>, vector<128x128xbf16>, vector<120x128xf32> -> vector<120x128xf32>
    %275 = arith.addf %270, %274 : vector<120x128xf32>
    %c384_211 = arith.constant 384 : index
    %c0_212 = arith.constant 0 : index
    %276 = vector.load %arg10[%c384_211, %c0_212] : memref<768x128xf32, #tpu.memory_space<vmem>>, vector<120x128xf32>
    %277 = arith.truncf %276 : vector<120x128xf32> to vector<120x128xbf16>
    %c512_213 = arith.constant 512 : index
    %c0_214 = arith.constant 0 : index
    %278 = vector.load %arg5[%c512_213, %c0_214] : memref<1152x128xbf16, #tpu.memory_space<vmem>>, vector<128x128xbf16>
    %cst_215 = arith.constant dense<0.000000e+00> : vector<120x128xf32>
    %279 = tpu.matmul %277, %278, %cst_215 {dimension_numbers = #tpu.dot_dimension_numbers<[1], [0], [0], [1], [0, 0, 1, 1], [], []>} : vector<120x128xbf16>, vector<128x128xbf16>, vector<120x128xf32> -> vector<120x128xf32>
    %280 = arith.addf %275, %279 : vector<120x128xf32>
    %c385 = arith.constant 385 : index
    %c0_216 = arith.constant 0 : index
    %281 = vector.load %arg10[%c385, %c0_216] : memref<768x128xf32, #tpu.memory_space<vmem>>, vector<120x128xf32>
    %282 = arith.truncf %281 : vector<120x128xf32> to vector<120x128xbf16>
    %c640_217 = arith.constant 640 : index
    %c0_218 = arith.constant 0 : index
    %283 = vector.load %arg5[%c640_217, %c0_218] : memref<1152x128xbf16, #tpu.memory_space<vmem>>, vector<128x128xbf16>
    %cst_219 = arith.constant dense<0.000000e+00> : vector<120x128xf32>
    %284 = tpu.matmul %282, %283, %cst_219 {dimension_numbers = #tpu.dot_dimension_numbers<[1], [0], [0], [1], [0, 0, 1, 1], [], []>} : vector<120x128xbf16>, vector<128x128xbf16>, vector<120x128xf32> -> vector<120x128xf32>
    %285 = arith.addf %280, %284 : vector<120x128xf32>
    %c403 = arith.constant 403 : index
    %c0_220 = arith.constant 0 : index
    %286 = vector.load %arg10[%c403, %c0_220] : memref<768x128xf32, #tpu.memory_space<vmem>>, vector<120x128xf32>
    %287 = arith.truncf %286 : vector<120x128xf32> to vector<120x128xbf16>
    %c768_221 = arith.constant 768 : index
    %c0_222 = arith.constant 0 : index
    %288 = vector.load %arg5[%c768_221, %c0_222] : memref<1152x128xbf16, #tpu.memory_space<vmem>>, vector<128x128xbf16>
    %cst_223 = arith.constant dense<0.000000e+00> : vector<120x128xf32>
    %289 = tpu.matmul %287, %288, %cst_223 {dimension_numbers = #tpu.dot_dimension_numbers<[1], [0], [0], [1], [0, 0, 1, 1], [], []>} : vector<120x128xbf16>, vector<128x128xbf16>, vector<120x128xf32> -> vector<120x128xf32>
    %290 = arith.addf %285, %289 : vector<120x128xf32>
    %c404 = arith.constant 404 : index
    %c0_224 = arith.constant 0 : index
    %291 = vector.load %arg10[%c404, %c0_224] : memref<768x128xf32, #tpu.memory_space<vmem>>, vector<120x128xf32>
    %292 = arith.truncf %291 : vector<120x128xf32> to vector<120x128xbf16>
    %c896_225 = arith.constant 896 : index
    %c0_226 = arith.constant 0 : index
    %293 = vector.load %arg5[%c896_225, %c0_226] : memref<1152x128xbf16, #tpu.memory_space<vmem>>, vector<128x128xbf16>
    %cst_227 = arith.constant dense<0.000000e+00> : vector<120x128xf32>
    %294 = tpu.matmul %292, %293, %cst_227 {dimension_numbers = #tpu.dot_dimension_numbers<[1], [0], [0], [1], [0, 0, 1, 1], [], []>} : vector<120x128xbf16>, vector<128x128xbf16>, vector<120x128xf32> -> vector<120x128xf32>
    %295 = arith.addf %290, %294 : vector<120x128xf32>
    %c405 = arith.constant 405 : index
    %c0_228 = arith.constant 0 : index
    %296 = vector.load %arg10[%c405, %c0_228] : memref<768x128xf32, #tpu.memory_space<vmem>>, vector<120x128xf32>
    %297 = arith.truncf %296 : vector<120x128xf32> to vector<120x128xbf16>
    %c1024_229 = arith.constant 1024 : index
    %c0_230 = arith.constant 0 : index
    %298 = vector.load %arg5[%c1024_229, %c0_230] : memref<1152x128xbf16, #tpu.memory_space<vmem>>, vector<128x128xbf16>
    %cst_231 = arith.constant dense<0.000000e+00> : vector<120x128xf32>
    %299 = tpu.matmul %297, %298, %cst_231 {dimension_numbers = #tpu.dot_dimension_numbers<[1], [0], [0], [1], [0, 0, 1, 1], [], []>} : vector<120x128xbf16>, vector<128x128xbf16>, vector<120x128xf32> -> vector<120x128xf32>
    %300 = arith.addf %295, %299 : vector<120x128xf32>
    %c0_232 = arith.constant 0 : index
    %c0_233 = arith.constant 0 : index
    %301 = vector.load %arg6[%c0_232, %c0_233] : memref<1x128xf32, #tpu.memory_space<vmem>>, vector<1x128xf32>
    %302 = vector.broadcast %301 : vector<1x128xf32> to vector<120x128xf32>
    %303 = arith.addf %300, %302 : vector<120x128xf32>
    %cst_234 = arith.constant 0.000000e+00 : f32
    %304 = vector.broadcast %cst_234 : f32 to vector<120x128xf32>
    %305 = arith.maximumf %303, %304 : vector<120x128xf32>
    %c0_235 = arith.constant 0 : index
    %c0_236 = arith.constant 0 : index
    %306 = vector.load %arg2[%c0_235, %c0_236] : memref<360x1xf32, #tpu.memory_space<vmem>>, vector<120x1xf32>
    %307 = vector.broadcast %306 : vector<120x1xf32> to vector<120x128xf32>
    %308 = arith.mulf %305, %307 : vector<120x128xf32>
    %cst_237 = arith.constant dense<0.000000e+00> : vector<128xf32>
    %309 = vector.multi_reduction <add>, %308, %cst_237 [0] : vector<120x128xf32> to vector<128xf32>
    %310 = vector.shape_cast %309 : vector<128xf32> to vector<1x128xf32>
    %cst_238 = arith.constant 3.906250e-03 : f32
    %311 = vector.broadcast %cst_238 : f32 to vector<1x128xf32>
    %312 = arith.mulf %310, %311 : vector<1x128xf32>
    %313 = arith.addf %254, %312 : vector<1x128xf32>
    %cst_239 = arith.constant 0.000000e+00 : f32
    %314 = vector.broadcast %cst_239 : f32 to vector<120x128xf32>
    %c483 = arith.constant 483 : index
    %c0_240 = arith.constant 0 : index
    %315 = vector.load %arg10[%c483, %c0_240] : memref<768x128xf32, #tpu.memory_space<vmem>>, vector<120x128xf32>
    %316 = arith.truncf %315 : vector<120x128xf32> to vector<120x128xbf16>
    %c0_241 = arith.constant 0 : index
    %c0_242 = arith.constant 0 : index
    %317 = vector.load %arg5[%c0_241, %c0_242] : memref<1152x128xbf16, #tpu.memory_space<vmem>>, vector<128x128xbf16>
    %cst_243 = arith.constant dense<0.000000e+00> : vector<120x128xf32>
    %318 = tpu.matmul %316, %317, %cst_243 {dimension_numbers = #tpu.dot_dimension_numbers<[1], [0], [0], [1], [0, 0, 1, 1], [], []>} : vector<120x128xbf16>, vector<128x128xbf16>, vector<120x128xf32> -> vector<120x128xf32>
    %319 = arith.addf %314, %318 : vector<120x128xf32>
    %c484 = arith.constant 484 : index
    %c0_244 = arith.constant 0 : index
    %320 = vector.load %arg10[%c484, %c0_244] : memref<768x128xf32, #tpu.memory_space<vmem>>, vector<120x128xf32>
    %321 = arith.truncf %320 : vector<120x128xf32> to vector<120x128xbf16>
    %c128_245 = arith.constant 128 : index
    %c0_246 = arith.constant 0 : index
    %322 = vector.load %arg5[%c128_245, %c0_246] : memref<1152x128xbf16, #tpu.memory_space<vmem>>, vector<128x128xbf16>
    %cst_247 = arith.constant dense<0.000000e+00> : vector<120x128xf32>
    %323 = tpu.matmul %321, %322, %cst_247 {dimension_numbers = #tpu.dot_dimension_numbers<[1], [0], [0], [1], [0, 0, 1, 1], [], []>} : vector<120x128xbf16>, vector<128x128xbf16>, vector<120x128xf32> -> vector<120x128xf32>
    %324 = arith.addf %319, %323 : vector<120x128xf32>
    %c485 = arith.constant 485 : index
    %c0_248 = arith.constant 0 : index
    %325 = vector.load %arg10[%c485, %c0_248] : memref<768x128xf32, #tpu.memory_space<vmem>>, vector<120x128xf32>
    %326 = arith.truncf %325 : vector<120x128xf32> to vector<120x128xbf16>
    %c256_249 = arith.constant 256 : index
    %c0_250 = arith.constant 0 : index
    %327 = vector.load %arg5[%c256_249, %c0_250] : memref<1152x128xbf16, #tpu.memory_space<vmem>>, vector<128x128xbf16>
    %cst_251 = arith.constant dense<0.000000e+00> : vector<120x128xf32>
    %328 = tpu.matmul %326, %327, %cst_251 {dimension_numbers = #tpu.dot_dimension_numbers<[1], [0], [0], [1], [0, 0, 1, 1], [], []>} : vector<120x128xbf16>, vector<128x128xbf16>, vector<120x128xf32> -> vector<120x128xf32>
    %329 = arith.addf %324, %328 : vector<120x128xf32>
    %c503 = arith.constant 503 : index
    %c0_252 = arith.constant 0 : index
    %330 = vector.load %arg10[%c503, %c0_252] : memref<768x128xf32, #tpu.memory_space<vmem>>, vector<120x128xf32>
    %331 = arith.truncf %330 : vector<120x128xf32> to vector<120x128xbf16>
    %c384_253 = arith.constant 384 : index
    %c0_254 = arith.constant 0 : index
    %332 = vector.load %arg5[%c384_253, %c0_254] : memref<1152x128xbf16, #tpu.memory_space<vmem>>, vector<128x128xbf16>
    %cst_255 = arith.constant dense<0.000000e+00> : vector<120x128xf32>
    %333 = tpu.matmul %331, %332, %cst_255 {dimension_numbers = #tpu.dot_dimension_numbers<[1], [0], [0], [1], [0, 0, 1, 1], [], []>} : vector<120x128xbf16>, vector<128x128xbf16>, vector<120x128xf32> -> vector<120x128xf32>
    %334 = arith.addf %329, %333 : vector<120x128xf32>
    %c504_256 = arith.constant 504 : index
    %c0_257 = arith.constant 0 : index
    %335 = vector.load %arg10[%c504_256, %c0_257] : memref<768x128xf32, #tpu.memory_space<vmem>>, vector<120x128xf32>
    %336 = arith.truncf %335 : vector<120x128xf32> to vector<120x128xbf16>
    %c512_258 = arith.constant 512 : index
    %c0_259 = arith.constant 0 : index
    %337 = vector.load %arg5[%c512_258, %c0_259] : memref<1152x128xbf16, #tpu.memory_space<vmem>>, vector<128x128xbf16>
    %cst_260 = arith.constant dense<0.000000e+00> : vector<120x128xf32>
    %338 = tpu.matmul %336, %337, %cst_260 {dimension_numbers = #tpu.dot_dimension_numbers<[1], [0], [0], [1], [0, 0, 1, 1], [], []>} : vector<120x128xbf16>, vector<128x128xbf16>, vector<120x128xf32> -> vector<120x128xf32>
    %339 = arith.addf %334, %338 : vector<120x128xf32>
    %c505 = arith.constant 505 : index
    %c0_261 = arith.constant 0 : index
    %340 = vector.load %arg10[%c505, %c0_261] : memref<768x128xf32, #tpu.memory_space<vmem>>, vector<120x128xf32>
    %341 = arith.truncf %340 : vector<120x128xf32> to vector<120x128xbf16>
    %c640_262 = arith.constant 640 : index
    %c0_263 = arith.constant 0 : index
    %342 = vector.load %arg5[%c640_262, %c0_263] : memref<1152x128xbf16, #tpu.memory_space<vmem>>, vector<128x128xbf16>
    %cst_264 = arith.constant dense<0.000000e+00> : vector<120x128xf32>
    %343 = tpu.matmul %341, %342, %cst_264 {dimension_numbers = #tpu.dot_dimension_numbers<[1], [0], [0], [1], [0, 0, 1, 1], [], []>} : vector<120x128xbf16>, vector<128x128xbf16>, vector<120x128xf32> -> vector<120x128xf32>
    %344 = arith.addf %339, %343 : vector<120x128xf32>
    %c523 = arith.constant 523 : index
    %c0_265 = arith.constant 0 : index
    %345 = vector.load %arg10[%c523, %c0_265] : memref<768x128xf32, #tpu.memory_space<vmem>>, vector<120x128xf32>
    %346 = arith.truncf %345 : vector<120x128xf32> to vector<120x128xbf16>
    %c768_266 = arith.constant 768 : index
    %c0_267 = arith.constant 0 : index
    %347 = vector.load %arg5[%c768_266, %c0_267] : memref<1152x128xbf16, #tpu.memory_space<vmem>>, vector<128x128xbf16>
    %cst_268 = arith.constant dense<0.000000e+00> : vector<120x128xf32>
    %348 = tpu.matmul %346, %347, %cst_268 {dimension_numbers = #tpu.dot_dimension_numbers<[1], [0], [0], [1], [0, 0, 1, 1], [], []>} : vector<120x128xbf16>, vector<128x128xbf16>, vector<120x128xf32> -> vector<120x128xf32>
    %349 = arith.addf %344, %348 : vector<120x128xf32>
    %c524 = arith.constant 524 : index
    %c0_269 = arith.constant 0 : index
    %350 = vector.load %arg10[%c524, %c0_269] : memref<768x128xf32, #tpu.memory_space<vmem>>, vector<120x128xf32>
    %351 = arith.truncf %350 : vector<120x128xf32> to vector<120x128xbf16>
    %c896_270 = arith.constant 896 : index
    %c0_271 = arith.constant 0 : index
    %352 = vector.load %arg5[%c896_270, %c0_271] : memref<1152x128xbf16, #tpu.memory_space<vmem>>, vector<128x128xbf16>
    %cst_272 = arith.constant dense<0.000000e+00> : vector<120x128xf32>
    %353 = tpu.matmul %351, %352, %cst_272 {dimension_numbers = #tpu.dot_dimension_numbers<[1], [0], [0], [1], [0, 0, 1, 1], [], []>} : vector<120x128xbf16>, vector<128x128xbf16>, vector<120x128xf32> -> vector<120x128xf32>
    %354 = arith.addf %349, %353 : vector<120x128xf32>
    %c525 = arith.constant 525 : index
    %c0_273 = arith.constant 0 : index
    %355 = vector.load %arg10[%c525, %c0_273] : memref<768x128xf32, #tpu.memory_space<vmem>>, vector<120x128xf32>
    %356 = arith.truncf %355 : vector<120x128xf32> to vector<120x128xbf16>
    %c1024_274 = arith.constant 1024 : index
    %c0_275 = arith.constant 0 : index
    %357 = vector.load %arg5[%c1024_274, %c0_275] : memref<1152x128xbf16, #tpu.memory_space<vmem>>, vector<128x128xbf16>
    %cst_276 = arith.constant dense<0.000000e+00> : vector<120x128xf32>
    %358 = tpu.matmul %356, %357, %cst_276 {dimension_numbers = #tpu.dot_dimension_numbers<[1], [0], [0], [1], [0, 0, 1, 1], [], []>} : vector<120x128xbf16>, vector<128x128xbf16>, vector<120x128xf32> -> vector<120x128xf32>
    %359 = arith.addf %354, %358 : vector<120x128xf32>
    %c0_277 = arith.constant 0 : index
    %c0_278 = arith.constant 0 : index
    %360 = vector.load %arg6[%c0_277, %c0_278] : memref<1x128xf32, #tpu.memory_space<vmem>>, vector<1x128xf32>
    %361 = vector.broadcast %360 : vector<1x128xf32> to vector<120x128xf32>
    %362 = arith.addf %359, %361 : vector<120x128xf32>
    %cst_279 = arith.constant 0.000000e+00 : f32
    %363 = vector.broadcast %cst_279 : f32 to vector<120x128xf32>
    %364 = arith.maximumf %362, %363 : vector<120x128xf32>
    %c120_280 = arith.constant 120 : index
    %c0_281 = arith.constant 0 : index
    %365 = vector.load %arg2[%c120_280, %c0_281] : memref<360x1xf32, #tpu.memory_space<vmem>>, vector<120x1xf32>
    %366 = vector.broadcast %365 : vector<120x1xf32> to vector<120x128xf32>
    %367 = arith.mulf %364, %366 : vector<120x128xf32>
    %cst_282 = arith.constant dense<0.000000e+00> : vector<128xf32>
    %368 = vector.multi_reduction <add>, %367, %cst_282 [0] : vector<120x128xf32> to vector<128xf32>
    %369 = vector.shape_cast %368 : vector<128xf32> to vector<1x128xf32>
    %cst_283 = arith.constant 3.906250e-03 : f32
    %370 = vector.broadcast %cst_283 : f32 to vector<1x128xf32>
    %371 = arith.mulf %369, %370 : vector<1x128xf32>
    %372 = arith.addf %313, %371 : vector<1x128xf32>
    %cst_284 = arith.constant 0.000000e+00 : f32
    %373 = vector.broadcast %cst_284 : f32 to vector<120x128xf32>
    %c603 = arith.constant 603 : index
    %c0_285 = arith.constant 0 : index
    %374 = vector.load %arg10[%c603, %c0_285] : memref<768x128xf32, #tpu.memory_space<vmem>>, vector<120x128xf32>
    %375 = arith.truncf %374 : vector<120x128xf32> to vector<120x128xbf16>
    %c0_286 = arith.constant 0 : index
    %c0_287 = arith.constant 0 : index
    %376 = vector.load %arg5[%c0_286, %c0_287] : memref<1152x128xbf16, #tpu.memory_space<vmem>>, vector<128x128xbf16>
    %cst_288 = arith.constant dense<0.000000e+00> : vector<120x128xf32>
    %377 = tpu.matmul %375, %376, %cst_288 {dimension_numbers = #tpu.dot_dimension_numbers<[1], [0], [0], [1], [0, 0, 1, 1], [], []>} : vector<120x128xbf16>, vector<128x128xbf16>, vector<120x128xf32> -> vector<120x128xf32>
    %378 = arith.addf %373, %377 : vector<120x128xf32>
    %c604 = arith.constant 604 : index
    %c0_289 = arith.constant 0 : index
    %379 = vector.load %arg10[%c604, %c0_289] : memref<768x128xf32, #tpu.memory_space<vmem>>, vector<120x128xf32>
    %380 = arith.truncf %379 : vector<120x128xf32> to vector<120x128xbf16>
    %c128_290 = arith.constant 128 : index
    %c0_291 = arith.constant 0 : index
    %381 = vector.load %arg5[%c128_290, %c0_291] : memref<1152x128xbf16, #tpu.memory_space<vmem>>, vector<128x128xbf16>
    %cst_292 = arith.constant dense<0.000000e+00> : vector<120x128xf32>
    %382 = tpu.matmul %380, %381, %cst_292 {dimension_numbers = #tpu.dot_dimension_numbers<[1], [0], [0], [1], [0, 0, 1, 1], [], []>} : vector<120x128xbf16>, vector<128x128xbf16>, vector<120x128xf32> -> vector<120x128xf32>
    %383 = arith.addf %378, %382 : vector<120x128xf32>
    %c605 = arith.constant 605 : index
    %c0_293 = arith.constant 0 : index
    %384 = vector.load %arg10[%c605, %c0_293] : memref<768x128xf32, #tpu.memory_space<vmem>>, vector<120x128xf32>
    %385 = arith.truncf %384 : vector<120x128xf32> to vector<120x128xbf16>
    %c256_294 = arith.constant 256 : index
    %c0_295 = arith.constant 0 : index
    %386 = vector.load %arg5[%c256_294, %c0_295] : memref<1152x128xbf16, #tpu.memory_space<vmem>>, vector<128x128xbf16>
    %cst_296 = arith.constant dense<0.000000e+00> : vector<120x128xf32>
    %387 = tpu.matmul %385, %386, %cst_296 {dimension_numbers = #tpu.dot_dimension_numbers<[1], [0], [0], [1], [0, 0, 1, 1], [], []>} : vector<120x128xbf16>, vector<128x128xbf16>, vector<120x128xf32> -> vector<120x128xf32>
    %388 = arith.addf %383, %387 : vector<120x128xf32>
    %c623 = arith.constant 623 : index
    %c0_297 = arith.constant 0 : index
    %389 = vector.load %arg10[%c623, %c0_297] : memref<768x128xf32, #tpu.memory_space<vmem>>, vector<120x128xf32>
    %390 = arith.truncf %389 : vector<120x128xf32> to vector<120x128xbf16>
    %c384_298 = arith.constant 384 : index
    %c0_299 = arith.constant 0 : index
    %391 = vector.load %arg5[%c384_298, %c0_299] : memref<1152x128xbf16, #tpu.memory_space<vmem>>, vector<128x128xbf16>
    %cst_300 = arith.constant dense<0.000000e+00> : vector<120x128xf32>
    %392 = tpu.matmul %390, %391, %cst_300 {dimension_numbers = #tpu.dot_dimension_numbers<[1], [0], [0], [1], [0, 0, 1, 1], [], []>} : vector<120x128xbf16>, vector<128x128xbf16>, vector<120x128xf32> -> vector<120x128xf32>
    %393 = arith.addf %388, %392 : vector<120x128xf32>
    %c624_301 = arith.constant 624 : index
    %c0_302 = arith.constant 0 : index
    %394 = vector.load %arg10[%c624_301, %c0_302] : memref<768x128xf32, #tpu.memory_space<vmem>>, vector<120x128xf32>
    %395 = arith.truncf %394 : vector<120x128xf32> to vector<120x128xbf16>
    %c512_303 = arith.constant 512 : index
    %c0_304 = arith.constant 0 : index
    %396 = vector.load %arg5[%c512_303, %c0_304] : memref<1152x128xbf16, #tpu.memory_space<vmem>>, vector<128x128xbf16>
    %cst_305 = arith.constant dense<0.000000e+00> : vector<120x128xf32>
    %397 = tpu.matmul %395, %396, %cst_305 {dimension_numbers = #tpu.dot_dimension_numbers<[1], [0], [0], [1], [0, 0, 1, 1], [], []>} : vector<120x128xbf16>, vector<128x128xbf16>, vector<120x128xf32> -> vector<120x128xf32>
    %398 = arith.addf %393, %397 : vector<120x128xf32>
    %c625 = arith.constant 625 : index
    %c0_306 = arith.constant 0 : index
    %399 = vector.load %arg10[%c625, %c0_306] : memref<768x128xf32, #tpu.memory_space<vmem>>, vector<120x128xf32>
    %400 = arith.truncf %399 : vector<120x128xf32> to vector<120x128xbf16>
    %c640_307 = arith.constant 640 : index
    %c0_308 = arith.constant 0 : index
    %401 = vector.load %arg5[%c640_307, %c0_308] : memref<1152x128xbf16, #tpu.memory_space<vmem>>, vector<128x128xbf16>
    %cst_309 = arith.constant dense<0.000000e+00> : vector<120x128xf32>
    %402 = tpu.matmul %400, %401, %cst_309 {dimension_numbers = #tpu.dot_dimension_numbers<[1], [0], [0], [1], [0, 0, 1, 1], [], []>} : vector<120x128xbf16>, vector<128x128xbf16>, vector<120x128xf32> -> vector<120x128xf32>
    %403 = arith.addf %398, %402 : vector<120x128xf32>
    %c643 = arith.constant 643 : index
    %c0_310 = arith.constant 0 : index
    %404 = vector.load %arg10[%c643, %c0_310] : memref<768x128xf32, #tpu.memory_space<vmem>>, vector<120x128xf32>
    %405 = arith.truncf %404 : vector<120x128xf32> to vector<120x128xbf16>
    %c768_311 = arith.constant 768 : index
    %c0_312 = arith.constant 0 : index
    %406 = vector.load %arg5[%c768_311, %c0_312] : memref<1152x128xbf16, #tpu.memory_space<vmem>>, vector<128x128xbf16>
    %cst_313 = arith.constant dense<0.000000e+00> : vector<120x128xf32>
    %407 = tpu.matmul %405, %406, %cst_313 {dimension_numbers = #tpu.dot_dimension_numbers<[1], [0], [0], [1], [0, 0, 1, 1], [], []>} : vector<120x128xbf16>, vector<128x128xbf16>, vector<120x128xf32> -> vector<120x128xf32>
    %408 = arith.addf %403, %407 : vector<120x128xf32>
    %c644 = arith.constant 644 : index
    %c0_314 = arith.constant 0 : index
    %409 = vector.load %arg10[%c644, %c0_314] : memref<768x128xf32, #tpu.memory_space<vmem>>, vector<120x128xf32>
    %410 = arith.truncf %409 : vector<120x128xf32> to vector<120x128xbf16>
    %c896_315 = arith.constant 896 : index
    %c0_316 = arith.constant 0 : index
    %411 = vector.load %arg5[%c896_315, %c0_316] : memref<1152x128xbf16, #tpu.memory_space<vmem>>, vector<128x128xbf16>
    %cst_317 = arith.constant dense<0.000000e+00> : vector<120x128xf32>
    %412 = tpu.matmul %410, %411, %cst_317 {dimension_numbers = #tpu.dot_dimension_numbers<[1], [0], [0], [1], [0, 0, 1, 1], [], []>} : vector<120x128xbf16>, vector<128x128xbf16>, vector<120x128xf32> -> vector<120x128xf32>
    %413 = arith.addf %408, %412 : vector<120x128xf32>
    %c645 = arith.constant 645 : index
    %c0_318 = arith.constant 0 : index
    %414 = vector.load %arg10[%c645, %c0_318] : memref<768x128xf32, #tpu.memory_space<vmem>>, vector<120x128xf32>
    %415 = arith.truncf %414 : vector<120x128xf32> to vector<120x128xbf16>
    %c1024_319 = arith.constant 1024 : index
    %c0_320 = arith.constant 0 : index
    %416 = vector.load %arg5[%c1024_319, %c0_320] : memref<1152x128xbf16, #tpu.memory_space<vmem>>, vector<128x128xbf16>
    %cst_321 = arith.constant dense<0.000000e+00> : vector<120x128xf32>
    %417 = tpu.matmul %415, %416, %cst_321 {dimension_numbers = #tpu.dot_dimension_numbers<[1], [0], [0], [1], [0, 0, 1, 1], [], []>} : vector<120x128xbf16>, vector<128x128xbf16>, vector<120x128xf32> -> vector<120x128xf32>
    %418 = arith.addf %413, %417 : vector<120x128xf32>
    %c0_322 = arith.constant 0 : index
    %c0_323 = arith.constant 0 : index
    %419 = vector.load %arg6[%c0_322, %c0_323] : memref<1x128xf32, #tpu.memory_space<vmem>>, vector<1x128xf32>
    %420 = vector.broadcast %419 : vector<1x128xf32> to vector<120x128xf32>
    %421 = arith.addf %418, %420 : vector<120x128xf32>
    %cst_324 = arith.constant 0.000000e+00 : f32
    %422 = vector.broadcast %cst_324 : f32 to vector<120x128xf32>
    %423 = arith.maximumf %421, %422 : vector<120x128xf32>
    %c240_325 = arith.constant 240 : index
    %c0_326 = arith.constant 0 : index
    %424 = vector.load %arg2[%c240_325, %c0_326] : memref<360x1xf32, #tpu.memory_space<vmem>>, vector<120x1xf32>
    %425 = vector.broadcast %424 : vector<120x1xf32> to vector<120x128xf32>
    %426 = arith.mulf %423, %425 : vector<120x128xf32>
    %cst_327 = arith.constant dense<0.000000e+00> : vector<128xf32>
    %427 = vector.multi_reduction <add>, %426, %cst_327 [0] : vector<120x128xf32> to vector<128xf32>
    %428 = vector.shape_cast %427 : vector<128xf32> to vector<1x128xf32>
    %cst_328 = arith.constant 3.906250e-03 : f32
    %429 = vector.broadcast %cst_328 : f32 to vector<1x128xf32>
    %430 = arith.mulf %428, %429 : vector<1x128xf32>
    %431 = arith.addf %372, %430 : vector<1x128xf32>
    %432 = tpu.concatenate %253, %431 in 0 : vector<1x128xf32>, vector<1x128xf32> -> vector<2x128xf32>
    %c0_329 = arith.constant 0 : index
    %c0_330 = arith.constant 0 : index
    %433 = vector.load %arg7[%c0_329, %c0_330] : memref<128x1024xf32, #tpu.memory_space<vmem>>, vector<128x1024xf32>
    %cst_331 = arith.constant dense<0.000000e+00> : vector<2x1024xf32>
    %434 = tpu.matmul %432, %433, %cst_331 {dimension_numbers = #tpu.dot_dimension_numbers<[1], [0], [0], [1], [0, 0, 1, 1], [], []>} : vector<2x128xf32>, vector<128x1024xf32>, vector<2x1024xf32> -> vector<2x1024xf32>
    %c0_332 = arith.constant 0 : index
    %c0_333 = arith.constant 0 : index
    %435 = vector.load %arg8[%c0_332, %c0_333] : memref<1x1024xf32, #tpu.memory_space<vmem>>, vector<1x1024xf32>
    %436 = vector.broadcast %435 : vector<1x1024xf32> to vector<2x1024xf32>
    %437 = arith.addf %434, %436 : vector<2x1024xf32>
    %c0_334 = arith.constant 0 : index
    %c0_335 = arith.constant 0 : index
    %438 = vector.load %arg9[%c0_334, %c0_335] : memref<2x1024xf32, #tpu.memory_space<vmem>>, vector<2x1024xf32>
    tpu.vector_store %arg9[%c0_334, %c0_335], %437 {strides = array<i32>} : memref<2x1024xf32, #tpu.memory_space<vmem>>, vector<2x1024xf32>,
    return
  }
  func.func @transform_0(%arg0: i32) -> (i32, i32) {
    %c0_i32 = arith.constant 0 : i32
    %c0_i32_0 = arith.constant 0 : i32
    %c0_i32_1 = arith.constant 0 : i32
    return %c0_i32, %c0_i32_0 : i32, i32
  }
  func.func @transform_1(%arg0: i32) -> (i32, i32) {
    %c0_i32 = arith.constant 0 : i32
    %c0_i32_0 = arith.constant 0 : i32
    %c0_i32_1 = arith.constant 0 : i32
    return %c0_i32, %c0_i32_0 : i32, i32
  }
  func.func @transform_2(%arg0: i32) -> (i32, i32) {
    %c0_i32 = arith.constant 0 : i32
    %c0_i32_0 = arith.constant 0 : i32
    %c0_i32_1 = arith.constant 0 : i32
    return %c0_i32, %c0_i32_0 : i32, i32
  }
  func.func @transform_3(%arg0: i32) -> (i32, i32) {
    %c0_i32 = arith.constant 0 : i32
    %c0_i32_0 = arith.constant 0 : i32
    %c0_i32_1 = arith.constant 0 : i32
    return %c0_i32, %c0_i32_0 : i32, i32
  }
  func.func @transform_4(%arg0: i32) -> (i32, i32) {
    %c0_i32 = arith.constant 0 : i32
    %c0_i32_0 = arith.constant 0 : i32
    %c0_i32_1 = arith.constant 0 : i32
    return %c0_i32, %c0_i32_0 : i32, i32
  }
  func.func @transform_5(%arg0: i32) -> (i32, i32) {
    %c0_i32 = arith.constant 0 : i32
    %c0_i32_0 = arith.constant 0 : i32
    %c0_i32_1 = arith.constant 0 : i32
    return %c0_i32, %c0_i32_0 : i32, i32
  }
  func.func @transform_6(%arg0: i32) -> (i32, i32) {
    %c0_i32 = arith.constant 0 : i32
    %c0_i32_0 = arith.constant 0 : i32
    %c0_i32_1 = arith.constant 0 : i32
    return %c0_i32, %c0_i32_0 : i32, i32
  }
  func.func @transform_7(%arg0: i32) -> (i32, i32) {
    %c0_i32 = arith.constant 0 : i32
    %c0_i32_0 = arith.constant 0 : i32
    %c0_i32_1 = arith.constant 0 : i32
    return %c0_i32, %c0_i32_0 : i32, i32
  }
  func.func @transform_8(%arg0: i32) -> (i32, i32) {
    %c0_i32 = arith.constant 0 : i32
    %c0_i32_0 = arith.constant 0 : i32
    %c0_i32_1 = arith.constant 0 : i32
    return %c0_i32, %c0_i32_0 : i32, i32
  }
}

</mosaic_0001>

<llo_original>
// kernel: simple_cnn_forward.1
$region0: #{simple_cnn_forward.1}
  #allocation0 [shape = 'u32[]', space=smem, size = 0x4, offset = 0x4, fixed_abs, tag = 'smem constant byte address 0x4 - core index']
  #allocation1 [shape = 'u32[144,128]{1,0:T(1,128)}', space=vmem, size = 0x12000, scoped, tag = 'internal scratch']
  #allocation2 [shape = 'f32[768,128]{1,0:T(8,128)}', space=vmem, size = 0x60000, scoped, tag = 'scratch operand']
  %s0 = inlined_call_operand.vmem [shape: f32[720,32], index: 0, kind: input, shape index: {}]
  %s1 = inlined_call_operand.vmem [shape: f32[360,1], index: 1, kind: input, shape index: {}]
  %s2 = inlined_call_operand.vmem [shape: f32[32,128], index: 2, kind: input, shape index: {}]
  %s3 = inlined_call_operand.vmem [shape: f32[1,128], index: 3, kind: input, shape index: {}]
  %s4 = inlined_call_operand.vmem [shape: bf16[1152,128], index: 4, kind: input, shape index: {}]
  %s5 = inlined_call_operand.vmem [shape: f32[1,128], index: 5, kind: input, shape index: {}]
  %s6 = inlined_call_operand.vmem [shape: f32[128,1024], index: 6, kind: input, shape index: {}]
  %s7 = inlined_call_operand.vmem [shape: f32[1,1024], index: 7, kind: input, shape index: {}]
  %s8 = inlined_call_operand.hbm [shape: f32[2,1024], index: 8, kind: output, shape index: {}]
  %s9 = sld [smem:[#allocation0]]
  $region42: #{simple_cnn_forward.1} parent=0
    _
  %s11 = ssub.s32 1, %s9
  %s12 = scalar_select 0, %s11, %s9
  $region1: #{simple_cnn_forward.1} parent=0
    #allocation3 [shape = 'u8[8192]{0}', space=vmem, size = 0x2000, scoped, tag = 'output window, operand 0, single buffered']
    #allocation4 [shape = 's32[1]{0}', space=sflag, size = 0x4, scoped, tag = 'scoped memory for simple_cnn_forward.1']
    %13 = vsyncpa [#allocation4], 0
    // Predicated region
    $region2: #{simple_cnn_forward.1} parent=1 // pred_check
      _
    $region3: #{simple_cnn_forward.1} parent=1 // pred_check_branch
      %15 = sbr.rel (0) target = $region5
    $region4: #{simple_cnn_forward.1} parent=1 // pred_region
      _
    $region5: #{simple_cnn_forward.1} parent=1 // pred_fallthru
      _
    // Predicated region
    $region6: #{simple_cnn_forward.1} parent=1 // pred_check
      _
    $region7: #{simple_cnn_forward.1} parent=1 // pred_check_branch
      %17 = sbr.rel (0) target = $region9
    $region8: #{simple_cnn_forward.1} parent=1 // pred_region
      _
    $region9: #{simple_cnn_forward.1} parent=1 // pred_fallthru
      _
    // Predicated region
    $region10: #{simple_cnn_forward.1} parent=1 // pred_check
      _
    $region11: #{simple_cnn_forward.1} parent=1 // pred_check_branch
      %19 = sbr.rel (0) target = $region13
    $region12: #{simple_cnn_forward.1} parent=1 // pred_region
      _
    $region13: #{simple_cnn_forward.1} parent=1 // pred_fallthru
      _
    // Predicated region
    $region14: #{simple_cnn_forward.1} parent=1 // pred_check
      _
    $region15: #{simple_cnn_forward.1} parent=1 // pred_check_branch
      %21 = sbr.rel (0) target = $region17
    $region16: #{simple_cnn_forward.1} parent=1 // pred_region
      _
    $region17: #{simple_cnn_forward.1} parent=1 // pred_fallthru
      _
    // Predicated region
    $region18: #{simple_cnn_forward.1} parent=1 // pred_check
      _
    $region19: #{simple_cnn_forward.1} parent=1 // pred_check_branch
      %23 = sbr.rel (0) target = $region21
    $region20: #{simple_cnn_forward.1} parent=1 // pred_region
      _
    $region21: #{simple_cnn_forward.1} parent=1 // pred_fallthru
      _
    // Predicated region
    $region22: #{simple_cnn_forward.1} parent=1 // pred_check
      _
    $region23: #{simple_cnn_forward.1} parent=1 // pred_check_branch
      %25 = sbr.rel (0) target = $region25
    $region24: #{simple_cnn_forward.1} parent=1 // pred_region
      _
    $region25: #{simple_cnn_forward.1} parent=1 // pred_fallthru
      _
    // Predicated region
    $region26: #{simple_cnn_forward.1} parent=1 // pred_check
      _
    $region27: #{simple_cnn_forward.1} parent=1 // pred_check_branch
      %27 = sbr.rel (0) target = $region29
    $region28: #{simple_cnn_forward.1} parent=1 // pred_region
      _
    $region29: #{simple_cnn_forward.1} parent=1 // pred_fallthru
      _
    // Predicated region
    $region30: #{simple_cnn_forward.1} parent=1 // pred_check
      _
    $region31: #{simple_cnn_forward.1} parent=1 // pred_check_branch
      %29 = sbr.rel (0) target = $region33
    $region32: #{simple_cnn_forward.1} parent=1 // pred_region
      _
    $region33: #{simple_cnn_forward.1} parent=1 // pred_fallthru
      _
    %31 = vst [vmem:[#allocation2] sm:$0xff] 0.0
    %32 = vst [vmem:[#allocation2 + $0x8] sm:$0xff] 0.0
    %33 = vst [vmem:[#allocation2 + $0x10] sm:$0xff] 0.0
    %34 = vst [vmem:[#allocation2 + $0x2e8] sm:$0xff] 0.0
    %35 = vst [vmem:[#allocation2 + $0x2f0] sm:$0xff] 0.0
    %36 = vst [vmem:[#allocation2 + $0x2f8] sm:$0xff] 0.0
    %v37 = vld [vmem:[%s0] sm:$0xff]
    %v38 = vld [vmem:[%s0 + $0x8] sm:$0xff]
    %v39 = vld [vmem:[%s0 + $0x10] sm:$0xff]
    %v40 = vld [vmem:[%s0 + $0x18] sm:$0xff]
    %v41 = vld [vmem:[%s0 + $0x20] sm:$0xff]
    %v42 = vld [vmem:[%s0 + $0x28] sm:$0xff]
    %v43 = vld [vmem:[%s0 + $0x30] sm:$0xff]
    %v44 = vld [vmem:[%s0 + $0x38] sm:$0xff]
    %v45 = vld [vmem:[%s0 + $0x40] sm:$0xff]
    %v46 = vld [vmem:[%s0 + $0x48] sm:$0xff]
    %v47 = vld [vmem:[%s0 + $0x50] sm:$0xff]
    %v48 = vld [vmem:[%s0 + $0x58] sm:$0xff]
    %v49 = vld [vmem:[%s0 + $0x60] sm:$0xff]
    %v50 = vld [vmem:[%s0 + $0x68] sm:$0xff]
    %v51 = vld [vmem:[%s0 + $0x70] sm:$0xff]
    %v52 = vld [vmem:[%s2] sm:$0xff]
    %v53 = vld [vmem:[%s2 + $0x8] sm:$0xff]
    %v54 = vld [vmem:[%s2 + $0x10] sm:$0xff]
    %v55 = vld [vmem:[%s2 + $0x18] sm:$0xff]
    %v56 = vld [vmem:[%s3] sm:$0x1]
    %v58 = vlaneseq
    %v59 = vshrl.u32 %v58, 7
    %v60 = vsub.s32 0, %v59
    %v61 = vrot.slane %v56, %v60
    %vm63 = vcmask 261120
    %v65 = vsel %vm63, %v37, 0
    %v68 = vsel %vm63, %v38, 0
    %v71 = vsel %vm63, %v39, 0
    %v74 = vsel %vm63, %v40, 0
    %v77 = vsel %vm63, %v41, 0
    %v80 = vsel %vm63, %v42, 0
    %v83 = vsel %vm63, %v43, 0
    %v86 = vsel %vm63, %v44, 0
    %v89 = vsel %vm63, %v45, 0
    %v92 = vsel %vm63, %v46, 0
    %v95 = vsel %vm63, %v47, 0
    %v98 = vsel %vm63, %v48, 0
    %v101 = vsel %vm63, %v49, 0
    %v104 = vsel %vm63, %v50, 0
    %v107 = vsel %vm63, %v51, 0
    %109 = vmatprep.subr.mxu0 0.0
    %110 = vmatpush1.msra.mxu0 0.0
    %111 = vmatprep.subr.mxu0 0.0
    %112 = vmatpush1.msra.mxu0 0.0
    %113 = vmatprep.subr.mxu0 0.0
    %114 = vmatpush1.msra.mxu0 0.0
    %115 = vmatprep.subr.mxu0 0.0
    %116 = vmatpush1.msra.mxu0 0.0
    %117 = vmatprep.subr.mxu0 0.0
    %118 = vmatpush1.msra.mxu0 0.0
    %119 = vmatprep.subr.mxu0 0.0
    %120 = vmatpush1.msra.mxu0 0.0
    %121 = vmatprep.subr.mxu0 0.0
    %122 = vmatpush1.msra.mxu0 0.0
    %123 = vmatprep.subr.mxu0 0.0
    %124 = vmatpush1.msra.mxu0 0.0
    %125 = vmatprep.subr.mxu0 0.0
    %126 = vmatpush1.msra.mxu0 0.0
    %127 = vmatprep.subr.mxu0 0.0
    %128 = vmatpush1.msra.mxu0 0.0
    %129 = vmatprep.subr.mxu0 0.0
    %130 = vmatpush1.msra.mxu0 0.0
    %131 = vmatprep.subr.mxu0 0.0
    %132 = vmatpush1.msra.mxu0 0.0
    %133 = vmatprep.subr.mxu0 0.0
    %134 = vmatpush1.msra.mxu0 %v55
    %135 = vmatprep.subr.mxu0 0.0
    %136 = vmatpush1.msra.mxu0 %v54
    %137 = vmatprep.subr.mxu0 0.0
    %138 = vmatpush1.msra.mxu0 %v53
    %139 = vmatprep.subr.mxu0 0.0
    %140 = vmatpush1.msra.mxu0 %v52
    %141 = vmatprep.subr.mxu0 0.0
    %142 = vmatpush2.msra.mxu0 0.0
    %143 = vmatprep.subr.mxu0 0.0
    %144 = vmatpush2.msra.mxu0 0.0
    %145 = vmatprep.subr.mxu0 0.0
    %146 = vmatpush2.msra.mxu0 0.0
    %147 = vmatprep.subr.mxu0 0.0
    %148 = vmatpush2.msra.mxu0 0.0
    %149 = vmatprep.subr.mxu0 0.0
    %150 = vmatpush2.msra.mxu0 0.0
    %151 = vmatprep.subr.mxu0 0.0
    %152 = vmatpush2.msra.mxu0 0.0
    %153 = vmatprep.subr.mxu0 0.0
    %154 = vmatpush2.msra.mxu0 0.0
    %155 = vmatprep.subr.mxu0 0.0
    %156 = vmatpush2.msra.mxu0 0.0
    %157 = vmatprep.subr.mxu0 0.0
    %158 = vmatpush2.msra.mxu0 0.0
    %159 = vmatprep.subr.mxu0 0.0
    %160 = vmatpush2.msra.mxu0 0.0
    %161 = vmatprep.subr.mxu0 0.0
    %162 = vmatpush2.msra.mxu0 0.0
    %163 = vmatprep.subr.mxu0 0.0
    %164 = vmatpush2.msra.mxu0 0.0
    %165 = vmatprep.subr.mxu0 0.0
    %166 = vmatpush2.msra.mxu0 0.0
    %167 = vmatprep.subr.mxu0 0.0
    %168 = vmatpush2.msra.mxu0 0.0
    %169 = vmatprep.subr.mxu0 0.0
    %170 = vmatpush2.msra.mxu0 0.0
    %171 = vmatprep.subr.mxu0 0.0
    %172 = vmatpush2.msra.mxu0 0.0
    %173 = vmatprep.mubr.f32.mxu0 0.0
    %174 = vmatmul.mubr.f32.gmra.mxu0 %v65
    %v175 = vpop.f32.mrf.mxu0
    %v176 = vadd.f32 %v61, %v175
    %v177 = vpop.f32.mrf.mxu0
    %178 = vmatprep.mubr.f32.mxu0 0.0
    %179 = vmatmul.mubr.f32.gmra.mxu0 %v68
    %v180 = vpop.f32.mrf.mxu0
    %v181 = vadd.f32 %v61, %v180
    %v182 = vpop.f32.mrf.mxu0
    %183 = vmatprep.mubr.f32.mxu0 0.0
    %184 = vmatmul.mubr.f32.gmra.mxu0 %v71
    %v185 = vpop.f32.mrf.mxu0
    %v186 = vadd.f32 %v61, %v185
    %v187 = vpop.f32.mrf.mxu0
    %188 = vmatprep.mubr.f32.mxu0 0.0
    %189 = vmatmul.mubr.f32.gmra.mxu0 %v74
    %v190 = vpop.f32.mrf.mxu0
    %v191 = vadd.f32 %v61, %v190
    %v192 = vpop.f32.mrf.mxu0
    %193 = vmatprep.mubr.f32.mxu0 0.0
    %194 = vmatmul.mubr.f32.gmra.mxu0 %v77
    %v195 = vpop.f32.mrf.mxu0
    %v196 = vadd.f32 %v61, %v195
    %v197 = vpop.f32.mrf.mxu0
    %198 = vmatprep.mubr.f32.mxu0 0.0
    %199 = vmatmul.mubr.f32.gmra.mxu0 %v80
    %v200 = vpop.f32.mrf.mxu0
    %v201 = vadd.f32 %v61, %v200
    %v202 = vpop.f32.mrf.mxu0
    %203 = vmatprep.mubr.f32.mxu0 0.0
    %204 = vmatmul.mubr.f32.gmra.mxu0 %v83
    %v205 = vpop.f32.mrf.mxu0
    %v206 = vadd.f32 %v61, %v205
    %v207 = vpop.f32.mrf.mxu0
    %208 = vmatprep.mubr.f32.mxu0 0.0
    %209 = vmatmul.mubr.f32.gmra.mxu0 %v86
    %v210 = vpop.f32.mrf.mxu0
    %v211 = vadd.f32 %v61, %v210
    %v212 = vpop.f32.mrf.mxu0
    %213 = vmatprep.mubr.f32.mxu0 0.0
    %214 = vmatmul.mubr.f32.gmra.mxu0 %v89
    %v215 = vpop.f32.mrf.mxu0
    %v216 = vadd.f32 %v61, %v215
    %v217 = vpop.f32.mrf.mxu0
    %218 = vmatprep.mubr.f32.mxu0 0.0
    %219 = vmatmul.mubr.f32.gmra.mxu0 %v92
    %v220 = vpop.f32.mrf.mxu0
    %v221 = vadd.f32 %v61, %v220
    %v222 = vpop.f32.mrf.mxu0
    %223 = vmatprep.mubr.f32.mxu0 0.0
    %224 = vmatmul.mubr.f32.gmra.mxu0 %v95
    %v225 = vpop.f32.mrf.mxu0
    %v226 = vadd.f32 %v61, %v225
    %v227 = vpop.f32.mrf.mxu0
    %228 = vmatprep.mubr.f32.mxu0 0.0
    %229 = vmatmul.mubr.f32.gmra.mxu0 %v98
    %v230 = vpop.f32.mrf.mxu0
    %v231 = vadd.f32 %v61, %v230
    %v232 = vpop.f32.mrf.mxu0
    %233 = vmatprep.mubr.f32.mxu0 0.0
    %234 = vmatmul.mubr.f32.gmra.mxu0 %v101
    %v235 = vpop.f32.mrf.mxu0
    %v236 = vadd.f32 %v61, %v235
    %v237 = vpop.f32.mrf.mxu0
    %238 = vmatprep.mubr.f32.mxu0 0.0
    %239 = vmatmul.mubr.f32.gmra.mxu0 %v104
    %v240 = vpop.f32.mrf.mxu0
    %v241 = vadd.f32 %v61, %v240
    %v242 = vpop.f32.mrf.mxu0
    %243 = vmatprep.mubr.f32.mxu0 0.0
    %244 = vmatmul.mubr.f32.gmra.mxu0 %v107
    %v245 = vpop.f32.mrf.mxu0
    %v246 = vadd.f32 %v61, %v245
    %v247 = vpop.f32.mrf.mxu0
    %248 = vdwg.mxu0
    %v249 = vmax.f32 %v176, 0.0
    %v250 = vmax.f32 %v181, 0.0
    %v251 = vmax.f32 %v186, 0.0
    %v252 = vmax.f32 %v191, 0.0
    %v253 = vmax.f32 %v196, 0.0
    %v254 = vmax.f32 %v201, 0.0
    %v255 = vmax.f32 %v206, 0.0
    %v256 = vmax.f32 %v211, 0.0
    %v257 = vmax.f32 %v216, 0.0
    %v258 = vmax.f32 %v221, 0.0
    %v259 = vmax.f32 %v226, 0.0
    %v260 = vmax.f32 %v231, 0.0
    %v261 = vmax.f32 %v236, 0.0
    %v262 = vmax.f32 %v241, 0.0
    %v263 = vmax.f32 %v246, 0.0
    %v264 = vld [vmem:[%s1] sm:$0xff]
    %v265 = vld [vmem:[%s1 + $0x8] sm:$0xff]
    %v266 = vld [vmem:[%s1 + $0x10] sm:$0xff]
    %v267 = vld [vmem:[%s1 + $0x18] sm:$0xff]
    %v268 = vld [vmem:[%s1 + $0x20] sm:$0xff]
    %v269 = vld [vmem:[%s1 + $0x28] sm:$0xff]
    %v270 = vld [vmem:[%s1 + $0x30] sm:$0xff]
    %v271 = vld [vmem:[%s1 + $0x38] sm:$0xff]
    %v272 = vld [vmem:[%s1 + $0x40] sm:$0xff]
    %v273 = vld [vmem:[%s1 + $0x48] sm:$0xff]
    %v274 = vld [vmem:[%s1 + $0x50] sm:$0xff]
    %v275 = vld [vmem:[%s1 + $0x58] sm:$0xff]
    %v276 = vld [vmem:[%s1 + $0x60] sm:$0xff]
    %v277 = vld [vmem:[%s1 + $0x68] sm:$0xff]
    %v278 = vld [vmem:[%s1 + $0x70] sm:$0xff]
    %280 = vset.pattern.permute.xlu0 0
    %281 = vperm.xlu0 %280, %v264
    %v282 = vpop.permute.xlu0 %281
    %285 = vset.pattern.permute.xlu0 0
    %286 = vperm.xlu0 %285, %v265
    %v287 = vpop.permute.xlu0 %286
    %290 = vset.pattern.permute.xlu0 0
    %291 = vperm.xlu0 %290, %v266
    %v292 = vpop.permute.xlu0 %291
    %295 = vset.pattern.permute.xlu0 0
    %296 = vperm.xlu0 %295, %v267
    %v297 = vpop.permute.xlu0 %296
    %300 = vset.pattern.permute.xlu0 0
    %301 = vperm.xlu0 %300, %v268
    %v302 = vpop.permute.xlu0 %301
    %305 = vset.pattern.permute.xlu0 0
    %306 = vperm.xlu0 %305, %v269
    %v307 = vpop.permute.xlu0 %306
    %310 = vset.pattern.permute.xlu0 0
    %311 = vperm.xlu0 %310, %v270
    %v312 = vpop.permute.xlu0 %311
    %315 = vset.pattern.permute.xlu0 0
    %316 = vperm.xlu0 %315, %v271
    %v317 = vpop.permute.xlu0 %316
    %320 = vset.pattern.permute.xlu0 0
    %321 = vperm.xlu0 %320, %v272
    %v322 = vpop.permute.xlu0 %321
    %325 = vset.pattern.permute.xlu0 0
    %326 = vperm.xlu0 %325, %v273
    %v327 = vpop.permute.xlu0 %326
    %330 = vset.pattern.permute.xlu0 0
    %331 = vperm.xlu0 %330, %v274
    %v332 = vpop.permute.xlu0 %331
    %335 = vset.pattern.permute.xlu0 0
    %336 = vperm.xlu0 %335, %v275
    %v337 = vpop.permute.xlu0 %336
    %340 = vset.pattern.permute.xlu0 0
    %341 = vperm.xlu0 %340, %v276
    %v342 = vpop.permute.xlu0 %341
    %345 = vset.pattern.permute.xlu0 0
    %346 = vperm.xlu0 %345, %v277
    %v347 = vpop.permute.xlu0 %346
    %350 = vset.pattern.permute.xlu0 0
    %351 = vperm.xlu0 %350, %v278
    %v352 = vpop.permute.xlu0 %351
    %v354 = vmul.f32 %v249, %v282
    %v355 = vmul.f32 %v250, %v287
    %v356 = vmul.f32 %v251, %v292
    %v357 = vmul.f32 %v252, %v297
    %v358 = vmul.f32 %v253, %v302
    %v359 = vmul.f32 %v254, %v307
    %v360 = vmul.f32 %v255, %v312
    %v361 = vmul.f32 %v256, %v317
    %v362 = vmul.f32 %v257, %v322
    %v363 = vmul.f32 %v258, %v327
    %v364 = vmul.f32 %v259, %v332
    %v365 = vmul.f32 %v260, %v337
    %v366 = vmul.f32 %v261, %v342
    %v367 = vmul.f32 %v262, %v347
    %v368 = vmul.f32 %v263, %v352
    %369 = vst [vmem:[#allocation2 + $0x18] sm:$0xff] %v354
    %370 = vst [vmem:[#allocation2 + $0x20] sm:$0xff] %v355
    %371 = vst [vmem:[#allocation2 + $0x28] sm:$0xff] %v356
    %372 = vst [vmem:[#allocation2 + $0x30] sm:$0xff] %v357
    %373 = vst [vmem:[#allocation2 + $0x38] sm:$0xff] %v358
    %374 = vst [vmem:[#allocation2 + $0x40] sm:$0xff] %v359
    %375 = vst [vmem:[#allocation2 + $0x48] sm:$0xff] %v360
    %376 = vst [vmem:[#allocation2 + $0x50] sm:$0xff] %v361
    %377 = vst [vmem:[#allocation2 + $0x58] sm:$0xff] %v362
    %378 = vst [vmem:[#allocation2 + $0x60] sm:$0xff] %v363
    %379 = vst [vmem:[#allocation2 + $0x68] sm:$0xff] %v364
    %380 = vst [vmem:[#allocation2 + $0x70] sm:$0xff] %v365
    %381 = vst [vmem:[#allocation2 + $0x78] sm:$0xff] %v366
    %382 = vst [vmem:[#allocation2 + $0x80] sm:$0xff] %v367
    %383 = vst [vmem:[#allocation2 + $0x88] sm:$0xff] %v368
    %v384 = vld [vmem:[%s0 + $0x78] sm:$0xff]
    %v385 = vld [vmem:[%s0 + $0x80] sm:$0xff]
    %v386 = vld [vmem:[%s0 + $0x88] sm:$0xff]
    %v387 = vld [vmem:[%s0 + $0x90] sm:$0xff]
    %v388 = vld [vmem:[%s0 + $0x98] sm:$0xff]
    %v389 = vld [vmem:[%s0 + $0xa0] sm:$0xff]
    %v390 = vld [vmem:[%s0 + $0xa8] sm:$0xff]
    %v391 = vld [vmem:[%s0 + $0xb0] sm:$0xff]
    %v392 = vld [vmem:[%s0 + $0xb8] sm:$0xff]
    %v393 = vld [vmem:[%s0 + $0xc0] sm:$0xff]
    %v394 = vld [vmem:[%s0 + $0xc8] sm:$0xff]
    %v395 = vld [vmem:[%s0 + $0xd0] sm:$0xff]
    %v396 = vld [vmem:[%s0 + $0xd8] sm:$0xff]
    %v397 = vld [vmem:[%s0 + $0xe0] sm:$0xff]
    %v398 = vld [vmem:[%s0 + $0xe8] sm:$0xff]
    %v399 = vld [vmem:[%s2] sm:$0xff]
    %v400 = vld [vmem:[%s2 + $0x8] sm:$0xff]
    %v401 = vld [vmem:[%s2 + $0x10] sm:$0xff]
    %v402 = vld [vmem:[%s2 + $0x18] sm:$0xff]
    %v403 = vld [vmem:[%s3] sm:$0x1]
    %v405 = vlaneseq
    %v406 = vshrl.u32 %v405, 7
    %v407 = vsub.s32 0, %v406
    %v408 = vrot.slane %v403, %v407
    %v411 = vsel %vm63, %v384, 0
    %v414 = vsel %vm63, %v385, 0
    %v417 = vsel %vm63, %v386, 0
    %v420 = vsel %vm63, %v387, 0
    %v423 = vsel %vm63, %v388, 0
    %v426 = vsel %vm63, %v389, 0
    %v429 = vsel %vm63, %v390, 0
    %v432 = vsel %vm63, %v391, 0
    %v435 = vsel %vm63, %v392, 0
    %v438 = vsel %vm63, %v393, 0
    %v441 = vsel %vm63, %v394, 0
    %v444 = vsel %vm63, %v395, 0
    %v447 = vsel %vm63, %v396, 0
    %v450 = vsel %vm63, %v397, 0
    %v453 = vsel %vm63, %v398, 0
    %455 = vmatprep.subr.mxu0 0.0
    %456 = vmatpush1.msra.mxu0 0.0
    %457 = vmatprep.subr.mxu0 0.0
    %458 = vmatpush1.msra.mxu0 0.0
    %459 = vmatprep.subr.mxu0 0.0
    %460 = vmatpush1.msra.mxu0 0.0
    %461 = vmatprep.subr.mxu0 0.0
    %462 = vmatpush1.msra.mxu0 0.0
    %463 = vmatprep.subr.mxu0 0.0
    %464 = vmatpush1.msra.mxu0 0.0
    %465 = vmatprep.subr.mxu0 0.0
    %466 = vmatpush1.msra.mxu0 0.0
    %467 = vmatprep.subr.mxu0 0.0
    %468 = vmatpush1.msra.mxu0 0.0
    %469 = vmatprep.subr.mxu0 0.0
    %470 = vmatpush1.msra.mxu0 0.0
    %471 = vmatprep.subr.mxu0 0.0
    %472 = vmatpush1.msra.mxu0 0.0
    %473 = vmatprep.subr.mxu0 0.0
    %474 = vmatpush1.msra.mxu0 0.0
    %475 = vmatprep.subr.mxu0 0.0
    %476 = vmatpush1.msra.mxu0 0.0
    %477 = vmatprep.subr.mxu0 0.0
    %478 = vmatpush1.msra.mxu0 0.0
    %479 = vmatprep.subr.mxu0 0.0
    %480 = vmatpush1.msra.mxu0 %v402
    %481 = vmatprep.subr.mxu0 0.0
    %482 = vmatpush1.msra.mxu0 %v401
    %483 = vmatprep.subr.mxu0 0.0
    %484 = vmatpush1.msra.mxu0 %v400
    %485 = vmatprep.subr.mxu0 0.0
    %486 = vmatpush1.msra.mxu0 %v399
    %487 = vmatprep.subr.mxu0 0.0
    %488 = vmatpush2.msra.mxu0 0.0
    %489 = vmatprep.subr.mxu0 0.0
    %490 = vmatpush2.msra.mxu0 0.0
    %491 = vmatprep.subr.mxu0 0.0
    %492 = vmatpush2.msra.mxu0 0.0
    %493 = vmatprep.subr.mxu0 0.0
    %494 = vmatpush2.msra.mxu0 0.0
    %495 = vmatprep.subr.mxu0 0.0
    %496 = vmatpush2.msra.mxu0 0.0
    %497 = vmatprep.subr.mxu0 0.0
    %498 = vmatpush2.msra.mxu0 0.0
    %499 = vmatprep.subr.mxu0 0.0
    %500 = vmatpush2.msra.mxu0 0.0
    %501 = vmatprep.subr.mxu0 0.0
    %502 = vmatpush2.msra.mxu0 0.0
    %503 = vmatprep.subr.mxu0 0.0
    %504 = vmatpush2.msra.mxu0 0.0
    %505 = vmatprep.subr.mxu0 0.0
    %506 = vmatpush2.msra.mxu0 0.0
    %507 = vmatprep.subr.mxu0 0.0
    %508 = vmatpush2.msra.mxu0 0.0
    %509 = vmatprep.subr.mxu0 0.0
    %510 = vmatpush2.msra.mxu0 0.0
    %511 = vmatprep.subr.mxu0 0.0
    %512 = vmatpush2.msra.mxu0 0.0
    %513 = vmatprep.subr.mxu0 0.0
    %514 = vmatpush2.msra.mxu0 0.0
    %515 = vmatprep.subr.mxu0 0.0
    %516 = vmatpush2.msra.mxu0 0.0
    %517 = vmatprep.subr.mxu0 0.0
    %518 = vmatpush2.msra.mxu0 0.0
    %519 = vmatprep.mubr.f32.mxu0 0.0
    %520 = vmatmul.mubr.f32.gmra.mxu0 %v411
    %v521 = vpop.f32.mrf.mxu0
    %v522 = vadd.f32 %v408, %v521
    %v523 = vpop.f32.mrf.mxu0
    %524 = vmatprep.mubr.f32.mxu0 0.0
    %525 = vmatmul.mubr.f32.gmra.mxu0 %v414
    %v526 = vpop.f32.mrf.mxu0
    %v527 = vadd.f32 %v408, %v526
    %v528 = vpop.f32.mrf.mxu0
    %529 = vmatprep.mubr.f32.mxu0 0.0
    %530 = vmatmul.mubr.f32.gmra.mxu0 %v417
    %v531 = vpop.f32.mrf.mxu0
    %v532 = vadd.f32 %v408, %v531
    %v533 = vpop.f32.mrf.mxu0
    %534 = vmatprep.mubr.f32.mxu0 0.0
    %535 = vmatmul.mubr.f32.gmra.mxu0 %v420
    %v536 = vpop.f32.mrf.mxu0
    %v537 = vadd.f32 %v408, %v536
    %v538 = vpop.f32.mrf.mxu0
    %539 = vmatprep.mubr.f32.mxu0 0.0
    %540 = vmatmul.mubr.f32.gmra.mxu0 %v423
    %v541 = vpop.f32.mrf.mxu0
    %v542 = vadd.f32 %v408, %v541
    %v543 = vpop.f32.mrf.mxu0
    %544 = vmatprep.mubr.f32.mxu0 0.0
    %545 = vmatmul.mubr.f32.gmra.mxu0 %v426
    %v546 = vpop.f32.mrf.mxu0
    %v547 = vadd.f32 %v408, %v546
    %v548 = vpop.f32.mrf.mxu0
    %549 = vmatprep.mubr.f32.mxu0 0.0
    %550 = vmatmul.mubr.f32.gmra.mxu0 %v429
    %v551 = vpop.f32.mrf.mxu0
    %v552 = vadd.f32 %v408, %v551
    %v553 = vpop.f32.mrf.mxu0
    %554 = vmatprep.mubr.f32.mxu0 0.0
    %555 = vmatmul.mubr.f32.gmra.mxu0 %v432
    %v556 = vpop.f32.mrf.mxu0
    %v557 = vadd.f32 %v408, %v556
    %v558 = vpop.f32.mrf.mxu0
    %559 = vmatprep.mubr.f32.mxu0 0.0
    %560 = vmatmul.mubr.f32.gmra.mxu0 %v435
    %v561 = vpop.f32.mrf.mxu0
    %v562 = vadd.f32 %v408, %v561
    %v563 = vpop.f32.mrf.mxu0
    %564 = vmatprep.mubr.f32.mxu0 0.0
    %565 = vmatmul.mubr.f32.gmra.mxu0 %v438
    %v566 = vpop.f32.mrf.mxu0
    %v567 = vadd.f32 %v408, %v566
    %v568 = vpop.f32.mrf.mxu0
    %569 = vmatprep.mubr.f32.mxu0 0.0
    %570 = vmatmul.mubr.f32.gmra.mxu0 %v441
    %v571 = vpop.f32.mrf.mxu0
    %v572 = vadd.f32 %v408, %v571
    %v573 = vpop.f32.mrf.mxu0
    %574 = vmatprep.mubr.f32.mxu0 0.0
    %575 = vmatmul.mubr.f32.gmra.mxu0 %v444
    %v576 = vpop.f32.mrf.mxu0
    %v577 = vadd.f32 %v408, %v576
    %v578 = vpop.f32.mrf.mxu0
    %579 = vmatprep.mubr.f32.mxu0 0.0
    %580 = vmatmul.mubr.f32.gmra.mxu0 %v447
    %v581 = vpop.f32.mrf.mxu0
    %v582 = vadd.f32 %v408, %v581
    %v583 = vpop.f32.mrf.mxu0
    %584 = vmatprep.mubr.f32.mxu0 0.0
    %585 = vmatmul.mubr.f32.gmra.mxu0 %v450
    %v586 = vpop.f32.mrf.mxu0
    %v587 = vadd.f32 %v408, %v586
    %v588 = vpop.f32.mrf.mxu0
    %589 = vmatprep.mubr.f32.mxu0 0.0
    %590 = vmatmul.mubr.f32.gmra.mxu0 %v453
    %v591 = vpop.f32.mrf.mxu0
    %v592 = vadd.f32 %v408, %v591
    %v593 = vpop.f32.mrf.mxu0
    %594 = vdwg.mxu0
    %v595 = vmax.f32 %v522, 0.0
    %v596 = vmax.f32 %v527, 0.0
    %v597 = vmax.f32 %v532, 0.0
    %v598 = vmax.f32 %v537, 0.0
    %v599 = vmax.f32 %v542, 0.0
    %v600 = vmax.f32 %v547, 0.0
    %v601 = vmax.f32 %v552, 0.0
    %v602 = vmax.f32 %v557, 0.0
    %v603 = vmax.f32 %v562, 0.0
    %v604 = vmax.f32 %v567, 0.0
    %v605 = vmax.f32 %v572, 0.0
    %v606 = vmax.f32 %v577, 0.0
    %v607 = vmax.f32 %v582, 0.0
    %v608 = vmax.f32 %v587, 0.0
    %v609 = vmax.f32 %v592, 0.0
    %v610 = vld [vmem:[%s1 + $0x78] sm:$0xff]
    %v611 = vld [vmem:[%s1 + $0x80] sm:$0xff]
    %v612 = vld [vmem:[%s1 + $0x88] sm:$0xff]
    %v613 = vld [vmem:[%s1 + $0x90] sm:$0xff]
    %v614 = vld [vmem:[%s1 + $0x98] sm:$0xff]
    %v615 = vld [vmem:[%s1 + $0xa0] sm:$0xff]
    %v616 = vld [vmem:[%s1 + $0xa8] sm:$0xff]
    %v617 = vld [vmem:[%s1 + $0xb0] sm:$0xff]
    %v618 = vld [vmem:[%s1 + $0xb8] sm:$0xff]
    %v619 = vld [vmem:[%s1 + $0xc0] sm:$0xff]
    %v620 = vld [vmem:[%s1 + $0xc8] sm:$0xff]
    %v621 = vld [vmem:[%s1 + $0xd0] sm:$0xff]
    %v622 = vld [vmem:[%s1 + $0xd8] sm:$0xff]
    %v623 = vld [vmem:[%s1 + $0xe0] sm:$0xff]
    %v624 = vld [vmem:[%s1 + $0xe8] sm:$0xff]
    %626 = vset.pattern.permute.xlu0 0
    %627 = vperm.xlu0 %626, %v610
    %v628 = vpop.permute.xlu0 %627
    %631 = vset.pattern.permute.xlu0 0
    %632 = vperm.xlu0 %631, %v611
    %v633 = vpop.permute.xlu0 %632
    %636 = vset.pattern.permute.xlu0 0
    %637 = vperm.xlu0 %636, %v612
    %v638 = vpop.permute.xlu0 %637
    %641 = vset.pattern.permute.xlu0 0
    %642 = vperm.xlu0 %641, %v613
    %v643 = vpop.permute.xlu0 %642
    %646 = vset.pattern.permute.xlu0 0
    %647 = vperm.xlu0 %646, %v614
    %v648 = vpop.permute.xlu0 %647
    %651 = vset.pattern.permute.xlu0 0
    %652 = vperm.xlu0 %651, %v615
    %v653 = vpop.permute.xlu0 %652
    %656 = vset.pattern.permute.xlu0 0
    %657 = vperm.xlu0 %656, %v616
    %v658 = vpop.permute.xlu0 %657
    %661 = vset.pattern.permute.xlu0 0
    %662 = vperm.xlu0 %661, %v617
    %v663 = vpop.permute.xlu0 %662
    %666 = vset.pattern.permute.xlu0 0
    %667 = vperm.xlu0 %666, %v618
    %v668 = vpop.permute.xlu0 %667
    %671 = vset.pattern.permute.xlu0 0
    %672 = vperm.xlu0 %671, %v619
    %v673 = vpop.permute.xlu0 %672
    %676 = vset.pattern.permute.xlu0 0
    %677 = vperm.xlu0 %676, %v620
    %v678 = vpop.permute.xlu0 %677
    %681 = vset.pattern.permute.xlu0 0
    %682 = vperm.xlu0 %681, %v621
    %v683 = vpop.permute.xlu0 %682
    %686 = vset.pattern.permute.xlu0 0
    %687 = vperm.xlu0 %686, %v622
    %v688 = vpop.permute.xlu0 %687
    %691 = vset.pattern.permute.xlu0 0
    %692 = vperm.xlu0 %691, %v623
    %v693 = vpop.permute.xlu0 %692
    %696 = vset.pattern.permute.xlu0 0
    %697 = vperm.xlu0 %696, %v624
    %v698 = vpop.permute.xlu0 %697
    %v700 = vmul.f32 %v595, %v628
    %v701 = vmul.f32 %v596, %v633
    %v702 = vmul.f32 %v597, %v638
    %v703 = vmul.f32 %v598, %v643
    %v704 = vmul.f32 %v599, %v648
    %v705 = vmul.f32 %v600, %v653
    %v706 = vmul.f32 %v601, %v658
    %v707 = vmul.f32 %v602, %v663
    %v708 = vmul.f32 %v603, %v668
    %v709 = vmul.f32 %v604, %v673
    %v710 = vmul.f32 %v605, %v678
    %v711 = vmul.f32 %v606, %v683
    %v712 = vmul.f32 %v607, %v688
    %v713 = vmul.f32 %v608, %v693
    %v714 = vmul.f32 %v609, %v698
    %715 = vst [vmem:[#allocation2 + $0x90] sm:$0xff] %v700
    %716 = vst [vmem:[#allocation2 + $0x98] sm:$0xff] %v701
    %717 = vst [vmem:[#allocation2 + $0xa0] sm:$0xff] %v702
    %718 = vst [vmem:[#allocation2 + $0xa8] sm:$0xff] %v703
    %719 = vst [vmem:[#allocation2 + $0xb0] sm:$0xff] %v704
    %720 = vst [vmem:[#allocation2 + $0xb8] sm:$0xff] %v705
    %721 = vst [vmem:[#allocation2 + $0xc0] sm:$0xff] %v706
    %722 = vst [vmem:[#allocation2 + $0xc8] sm:$0xff] %v707
    %723 = vst [vmem:[#allocation2 + $0xd0] sm:$0xff] %v708
    %724 = vst [vmem:[#allocation2 + $0xd8] sm:$0xff] %v709
    %725 = vst [vmem:[#allocation2 + $0xe0] sm:$0xff] %v710
    %726 = vst [vmem:[#allocation2 + $0xe8] sm:$0xff] %v711
    %727 = vst [vmem:[#allocation2 + $0xf0] sm:$0xff] %v712
    %728 = vst [vmem:[#allocation2 + $0xf8] sm:$0xff] %v713
    %729 = vst [vmem:[#allocation2 + $0x100] sm:$0xff] %v714
    %v730 = vld [vmem:[%s0 + $0xf0] sm:$0xff]
    %v731 = vld [vmem:[%s0 + $0xf8] sm:$0xff]
    %v732 = vld [vmem:[%s0 + $0x100] sm:$0xff]
    %v733 = vld [vmem:[%s0 + $0x108] sm:$0xff]
    %v734 = vld [vmem:[%s0 + $0x110] sm:$0xff]
    %v735 = vld [vmem:[%s0 + $0x118] sm:$0xff]
    %v736 = vld [vmem:[%s0 + $0x120] sm:$0xff]
    %v737 = vld [vmem:[%s0 + $0x128] sm:$0xff]
    %v738 = vld [vmem:[%s0 + $0x130] sm:$0xff]
    %v739 = vld [vmem:[%s0 + $0x138] sm:$0xff]
    %v740 = vld [vmem:[%s0 + $0x140] sm:$0xff]
    %v741 = vld [vmem:[%s0 + $0x148] sm:$0xff]
    %v742 = vld [vmem:[%s0 + $0x150] sm:$0xff]
    %v743 = vld [vmem:[%s0 + $0x158] sm:$0xff]
    %v744 = vld [vmem:[%s0 + $0x160] sm:$0xff]
    %v745 = vld [vmem:[%s2] sm:$0xff]
    %v746 = vld [vmem:[%s2 + $0x8] sm:$0xff]
    %v747 = vld [vmem:[%s2 + $0x10] sm:$0xff]
    %v748 = vld [vmem:[%s2 + $0x18] sm:$0xff]
    %v749 = vld [vmem:[%s3] sm:$0x1]
    %v751 = vlaneseq
    %v752 = vshrl.u32 %v751, 7
    %v753 = vsub.s32 0, %v752
    %v754 = vrot.slane %v749, %v753
    %v757 = vsel %vm63, %v730, 0
    %v760 = vsel %vm63, %v731, 0
    %v763 = vsel %vm63, %v732, 0
    %v766 = vsel %vm63, %v733, 0
    %v769 = vsel %vm63, %v734, 0
    %v772 = vsel %vm63, %v735, 0
    %v775 = vsel %vm63, %v736, 0
    %v778 = vsel %vm63, %v737, 0
    %v781 = vsel %vm63, %v738, 0
    %v784 = vsel %vm63, %v739, 0
    %v787 = vsel %vm63, %v740, 0
    %v790 = vsel %vm63, %v741, 0
    %v793 = vsel %vm63, %v742, 0
    %v796 = vsel %vm63, %v743, 0
    %v799 = vsel %vm63, %v744, 0
    %801 = vmatprep.subr.mxu0 0.0
    %802 = vmatpush1.msra.mxu0 0.0
    %803 = vmatprep.subr.mxu0 0.0
    %804 = vmatpush1.msra.mxu0 0.0
    %805 = vmatprep.subr.mxu0 0.0
    %806 = vmatpush1.msra.mxu0 0.0
    %807 = vmatprep.subr.mxu0 0.0
    %808 = vmatpush1.msra.mxu0 0.0
    %809 = vmatprep.subr.mxu0 0.0
    %810 = vmatpush1.msra.mxu0 0.0
    %811 = vmatprep.subr.mxu0 0.0
    %812 = vmatpush1.msra.mxu0 0.0
    %813 = vmatprep.subr.mxu0 0.0
    %814 = vmatpush1.msra.mxu0 0.0
    %815 = vmatprep.subr.mxu0 0.0
    %816 = vmatpush1.msra.mxu0 0.0
    %817 = vmatprep.subr.mxu0 0.0
    %818 = vmatpush1.msra.mxu0 0.0
    %819 = vmatprep.subr.mxu0 0.0
    %820 = vmatpush1.msra.mxu0 0.0
    %821 = vmatprep.subr.mxu0 0.0
    %822 = vmatpush1.msra.mxu0 0.0
    %823 = vmatprep.subr.mxu0 0.0
    %824 = vmatpush1.msra.mxu0 0.0
    %825 = vmatprep.subr.mxu0 0.0
    %826 = vmatpush1.msra.mxu0 %v748
    %827 = vmatprep.subr.mxu0 0.0
    %828 = vmatpush1.msra.mxu0 %v747
    %829 = vmatprep.subr.mxu0 0.0
    %830 = vmatpush1.msra.mxu0 %v746
    %831 = vmatprep.subr.mxu0 0.0
    %832 = vmatpush1.msra.mxu0 %v745
    %833 = vmatprep.subr.mxu0 0.0
    %834 = vmatpush2.msra.mxu0 0.0
    %835 = vmatprep.subr.mxu0 0.0
    %836 = vmatpush2.msra.mxu0 0.0
    %837 = vmatprep.subr.mxu0 0.0
    %838 = vmatpush2.msra.mxu0 0.0
    %839 = vmatprep.subr.mxu0 0.0
    %840 = vmatpush2.msra.mxu0 0.0
    %841 = vmatprep.subr.mxu0 0.0
    %842 = vmatpush2.msra.mxu0 0.0
    %843 = vmatprep.subr.mxu0 0.0
    %844 = vmatpush2.msra.mxu0 0.0
    %845 = vmatprep.subr.mxu0 0.0
    %846 = vmatpush2.msra.mxu0 0.0
    %847 = vmatprep.subr.mxu0 0.0
    %848 = vmatpush2.msra.mxu0 0.0
    %849 = vmatprep.subr.mxu0 0.0
    %850 = vmatpush2.msra.mxu0 0.0
    %851 = vmatprep.subr.mxu0 0.0
    %852 = vmatpush2.msra.mxu0 0.0
    %853 = vmatprep.subr.mxu0 0.0
    %854 = vmatpush2.msra.mxu0 0.0
    %855 = vmatprep.subr.mxu0 0.0
    %856 = vmatpush2.msra.mxu0 0.0
    %857 = vmatprep.subr.mxu0 0.0
    %858 = vmatpush2.msra.mxu0 0.0
    %859 = vmatprep.subr.mxu0 0.0
    %860 = vmatpush2.msra.mxu0 0.0
    %861 = vmatprep.subr.mxu0 0.0
    %862 = vmatpush2.msra.mxu0 0.0
    %863 = vmatprep.subr.mxu0 0.0
    %864 = vmatpush2.msra.mxu0 0.0
    %865 = vmatprep.mubr.f32.mxu0 0.0
    %866 = vmatmul.mubr.f32.gmra.mxu0 %v757
    %v867 = vpop.f32.mrf.mxu0
    %v868 = vadd.f32 %v754, %v867
    %v869 = vpop.f32.mrf.mxu0
    %870 = vmatprep.mubr.f32.mxu0 0.0
    %871 = vmatmul.mubr.f32.gmra.mxu0 %v760
    %v872 = vpop.f32.mrf.mxu0
    %v873 = vadd.f32 %v754, %v872
    %v874 = vpop.f32.mrf.mxu0
    %875 = vmatprep.mubr.f32.mxu0 0.0
    %876 = vmatmul.mubr.f32.gmra.mxu0 %v763
    %v877 = vpop.f32.mrf.mxu0
    %v878 = vadd.f32 %v754, %v877
    %v879 = vpop.f32.mrf.mxu0
    %880 = vmatprep.mubr.f32.mxu0 0.0
    %881 = vmatmul.mubr.f32.gmra.mxu0 %v766
    %v882 = vpop.f32.mrf.mxu0
    %v883 = vadd.f32 %v754, %v882
    %v884 = vpop.f32.mrf.mxu0
    %885 = vmatprep.mubr.f32.mxu0 0.0
    %886 = vmatmul.mubr.f32.gmra.mxu0 %v769
    %v887 = vpop.f32.mrf.mxu0
    %v888 = vadd.f32 %v754, %v887
    %v889 = vpop.f32.mrf.mxu0
    %890 = vmatprep.mubr.f32.mxu0 0.0
    %891 = vmatmul.mubr.f32.gmra.mxu0 %v772
    %v892 = vpop.f32.mrf.mxu0
    %v893 = vadd.f32 %v754, %v892
    %v894 = vpop.f32.mrf.mxu0
    %895 = vmatprep.mubr.f32.mxu0 0.0
    %896 = vmatmul.mubr.f32.gmra.mxu0 %v775
    %v897 = vpop.f32.mrf.mxu0
    %v898 = vadd.f32 %v754, %v897
    %v899 = vpop.f32.mrf.mxu0
    %900 = vmatprep.mubr.f32.mxu0 0.0
    %901 = vmatmul.mubr.f32.gmra.mxu0 %v778
    %v902 = vpop.f32.mrf.mxu0
    %v903 = vadd.f32 %v754, %v902
    %v904 = vpop.f32.mrf.mxu0
    %905 = vmatprep.mubr.f32.mxu0 0.0
    %906 = vmatmul.mubr.f32.gmra.mxu0 %v781
    %v907 = vpop.f32.mrf.mxu0
    %v908 = vadd.f32 %v754, %v907
    %v909 = vpop.f32.mrf.mxu0
    %910 = vmatprep.mubr.f32.mxu0 0.0
    %911 = vmatmul.mubr.f32.gmra.mxu0 %v784
    %v912 = vpop.f32.mrf.mxu0
    %v913 = vadd.f32 %v754, %v912
    %v914 = vpop.f32.mrf.mxu0
    %915 = vmatprep.mubr.f32.mxu0 0.0
    %916 = vmatmul.mubr.f32.gmra.mxu0 %v787
    %v917 = vpop.f32.mrf.mxu0
    %v918 = vadd.f32 %v754, %v917
    %v919 = vpop.f32.mrf.mxu0
    %920 = vmatprep.mubr.f32.mxu0 0.0
    %921 = vmatmul.mubr.f32.gmra.mxu0 %v790
    %v922 = vpop.f32.mrf.mxu0
    %v923 = vadd.f32 %v754, %v922
    %v924 = vpop.f32.mrf.mxu0
    %925 = vmatprep.mubr.f32.mxu0 0.0
    %926 = vmatmul.mubr.f32.gmra.mxu0 %v793
    %v927 = vpop.f32.mrf.mxu0
    %v928 = vadd.f32 %v754, %v927
    %v929 = vpop.f32.mrf.mxu0
    %930 = vmatprep.mubr.f32.mxu0 0.0
    %931 = vmatmul.mubr.f32.gmra.mxu0 %v796
    %v932 = vpop.f32.mrf.mxu0
    %v933 = vadd.f32 %v754, %v932
    %v934 = vpop.f32.mrf.mxu0
    %935 = vmatprep.mubr.f32.mxu0 0.0
    %936 = vmatmul.mubr.f32.gmra.mxu0 %v799
    %v937 = vpop.f32.mrf.mxu0
    %v938 = vadd.f32 %v754, %v937
    %v939 = vpop.f32.mrf.mxu0
    %940 = vdwg.mxu0
    %v941 = vmax.f32 %v868, 0.0
    %v942 = vmax.f32 %v873, 0.0
    %v943 = vmax.f32 %v878, 0.0
    %v944 = vmax.f32 %v883, 0.0
    %v945 = vmax.f32 %v888, 0.0
    %v946 = vmax.f32 %v893, 0.0
    %v947 = vmax.f32 %v898, 0.0
    %v948 = vmax.f32 %v903, 0.0
    %v949 = vmax.f32 %v908, 0.0
    %v950 = vmax.f32 %v913, 0.0
    %v951 = vmax.f32 %v918, 0.0
    %v952 = vmax.f32 %v923, 0.0
    %v953 = vmax.f32 %v928, 0.0
    %v954 = vmax.f32 %v933, 0.0
    %v955 = vmax.f32 %v938, 0.0
    %v956 = vld [vmem:[%s1 + $0xf0] sm:$0xff]
    %v957 = vld [vmem:[%s1 + $0xf8] sm:$0xff]
    %v958 = vld [vmem:[%s1 + $0x100] sm:$0xff]
    %v959 = vld [vmem:[%s1 + $0x108] sm:$0xff]
    %v960 = vld [vmem:[%s1 + $0x110] sm:$0xff]
    %v961 = vld [vmem:[%s1 + $0x118] sm:$0xff]
    %v962 = vld [vmem:[%s1 + $0x120] sm:$0xff]
    %v963 = vld [vmem:[%s1 + $0x128] sm:$0xff]
    %v964 = vld [vmem:[%s1 + $0x130] sm:$0xff]
    %v965 = vld [vmem:[%s1 + $0x138] sm:$0xff]
    %v966 = vld [vmem:[%s1 + $0x140] sm:$0xff]
    %v967 = vld [vmem:[%s1 + $0x148] sm:$0xff]
    %v968 = vld [vmem:[%s1 + $0x150] sm:$0xff]
    %v969 = vld [vmem:[%s1 + $0x158] sm:$0xff]
    %v970 = vld [vmem:[%s1 + $0x160] sm:$0xff]
    %972 = vset.pattern.permute.xlu0 0
    %973 = vperm.xlu0 %972, %v956
    %v974 = vpop.permute.xlu0 %973
    %977 = vset.pattern.permute.xlu0 0
    %978 = vperm.xlu0 %977, %v957
    %v979 = vpop.permute.xlu0 %978
    %982 = vset.pattern.permute.xlu0 0
    %983 = vperm.xlu0 %982, %v958
    %v984 = vpop.permute.xlu0 %983
    %987 = vset.pattern.permute.xlu0 0
    %988 = vperm.xlu0 %987, %v959
    %v989 = vpop.permute.xlu0 %988
    %992 = vset.pattern.permute.xlu0 0
    %993 = vperm.xlu0 %992, %v960
    %v994 = vpop.permute.xlu0 %993
    %997 = vset.pattern.permute.xlu0 0
    %998 = vperm.xlu0 %997, %v961
    %v999 = vpop.permute.xlu0 %998
    %1002 = vset.pattern.permute.xlu0 0
    %1003 = vperm.xlu0 %1002, %v962
    %v1004 = vpop.permute.xlu0 %1003
    %1007 = vset.pattern.permute.xlu0 0
    %1008 = vperm.xlu0 %1007, %v963
    %v1009 = vpop.permute.xlu0 %1008
    %1012 = vset.pattern.permute.xlu0 0
    %1013 = vperm.xlu0 %1012, %v964
    %v1014 = vpop.permute.xlu0 %1013
    %1017 = vset.pattern.permute.xlu0 0
    %1018 = vperm.xlu0 %1017, %v965
    %v1019 = vpop.permute.xlu0 %1018
    %1022 = vset.pattern.permute.xlu0 0
    %1023 = vperm.xlu0 %1022, %v966
    %v1024 = vpop.permute.xlu0 %1023
    %1027 = vset.pattern.permute.xlu0 0
    %1028 = vperm.xlu0 %1027, %v967
    %v1029 = vpop.permute.xlu0 %1028
    %1032 = vset.pattern.permute.xlu0 0
    %1033 = vperm.xlu0 %1032, %v968
    %v1034 = vpop.permute.xlu0 %1033
    %1037 = vset.pattern.permute.xlu0 0
    %1038 = vperm.xlu0 %1037, %v969
    %v1039 = vpop.permute.xlu0 %1038
    %1042 = vset.pattern.permute.xlu0 0
    %1043 = vperm.xlu0 %1042, %v970
    %v1044 = vpop.permute.xlu0 %1043
    %v1046 = vmul.f32 %v941, %v974
    %v1047 = vmul.f32 %v942, %v979
    %v1048 = vmul.f32 %v943, %v984
    %v1049 = vmul.f32 %v944, %v989
    %v1050 = vmul.f32 %v945, %v994
    %v1051 = vmul.f32 %v946, %v999
    %v1052 = vmul.f32 %v947, %v1004
    %v1053 = vmul.f32 %v948, %v1009
    %v1054 = vmul.f32 %v949, %v1014
    %v1055 = vmul.f32 %v950, %v1019
    %v1056 = vmul.f32 %v951, %v1024
    %v1057 = vmul.f32 %v952, %v1029
    %v1058 = vmul.f32 %v953, %v1034
    %v1059 = vmul.f32 %v954, %v1039
    %v1060 = vmul.f32 %v955, %v1044
    %1061 = vst [vmem:[#allocation2 + $0x108] sm:$0xff] %v1046
    %1062 = vst [vmem:[#allocation2 + $0x110] sm:$0xff] %v1047
    %1063 = vst [vmem:[#allocation2 + $0x118] sm:$0xff] %v1048
    %1064 = vst [vmem:[#allocation2 + $0x120] sm:$0xff] %v1049
    %1065 = vst [vmem:[#allocation2 + $0x128] sm:$0xff] %v1050
    %1066 = vst [vmem:[#allocation2 + $0x130] sm:$0xff] %v1051
    %1067 = vst [vmem:[#allocation2 + $0x138] sm:$0xff] %v1052
    %1068 = vst [vmem:[#allocation2 + $0x140] sm:$0xff] %v1053
    %1069 = vst [vmem:[#allocation2 + $0x148] sm:$0xff] %v1054
    %1070 = vst [vmem:[#allocation2 + $0x150] sm:$0xff] %v1055
    %1071 = vst [vmem:[#allocation2 + $0x158] sm:$0xff] %v1056
    %1072 = vst [vmem:[#allocation2 + $0x160] sm:$0xff] %v1057
    %1073 = vst [vmem:[#allocation2 + $0x168] sm:$0xff] %v1058
    %1074 = vst [vmem:[#allocation2 + $0x170] sm:$0xff] %v1059
    %1075 = vst [vmem:[#allocation2 + $0x178] sm:$0xff] %v1060
    %v1076 = vld [vmem:[%s0 + $0x168] sm:$0xff]
    %v1077 = vld [vmem:[%s0 + $0x170] sm:$0xff]
    %v1078 = vld [vmem:[%s0 + $0x178] sm:$0xff]
    %v1079 = vld [vmem:[%s0 + $0x180] sm:$0xff]
    %v1080 = vld [vmem:[%s0 + $0x188] sm:$0xff]
    %v1081 = vld [vmem:[%s0 + $0x190] sm:$0xff]
    %v1082 = vld [vmem:[%s0 + $0x198] sm:$0xff]
    %v1083 = vld [vmem:[%s0 + $0x1a0] sm:$0xff]
    %v1084 = vld [vmem:[%s0 + $0x1a8] sm:$0xff]
    %v1085 = vld [vmem:[%s0 + $0x1b0] sm:$0xff]
    %v1086 = vld [vmem:[%s0 + $0x1b8] sm:$0xff]
    %v1087 = vld [vmem:[%s0 + $0x1c0] sm:$0xff]
    %v1088 = vld [vmem:[%s0 + $0x1c8] sm:$0xff]
    %v1089 = vld [vmem:[%s0 + $0x1d0] sm:$0xff]
    %v1090 = vld [vmem:[%s0 + $0x1d8] sm:$0xff]
    %v1091 = vld [vmem:[%s2] sm:$0xff]
    %v1092 = vld [vmem:[%s2 + $0x8] sm:$0xff]
    %v1093 = vld [vmem:[%s2 + $0x10] sm:$0xff]
    %v1094 = vld [vmem:[%s2 + $0x18] sm:$0xff]
    %v1095 = vld [vmem:[%s3] sm:$0x1]
    %v1097 = vlaneseq
    %v1098 = vshrl.u32 %v1097, 7
    %v1099 = vsub.s32 0, %v1098
    %v1100 = vrot.slane %v1095, %v1099
    %v1103 = vsel %vm63, %v1076, 0
    %v1106 = vsel %vm63, %v1077, 0
    %v1109 = vsel %vm63, %v1078, 0
    %v1112 = vsel %vm63, %v1079, 0
    %v1115 = vsel %vm63, %v1080, 0
    %v1118 = vsel %vm63, %v1081, 0
    %v1121 = vsel %vm63, %v1082, 0
    %v1124 = vsel %vm63, %v1083, 0
    %v1127 = vsel %vm63, %v1084, 0
    %v1130 = vsel %vm63, %v1085, 0
    %v1133 = vsel %vm63, %v1086, 0
    %v1136 = vsel %vm63, %v1087, 0
    %v1139 = vsel %vm63, %v1088, 0
    %v1142 = vsel %vm63, %v1089, 0
    %v1145 = vsel %vm63, %v1090, 0
    %1147 = vmatprep.subr.mxu0 0.0
    %1148 = vmatpush1.msra.mxu0 0.0
    %1149 = vmatprep.subr.mxu0 0.0
    %1150 = vmatpush1.msra.mxu0 0.0
    %1151 = vmatprep.subr.mxu0 0.0
    %1152 = vmatpush1.msra.mxu0 0.0
    %1153 = vmatprep.subr.mxu0 0.0
    %1154 = vmatpush1.msra.mxu0 0.0
    %1155 = vmatprep.subr.mxu0 0.0
    %1156 = vmatpush1.msra.mxu0 0.0
    %1157 = vmatprep.subr.mxu0 0.0
    %1158 = vmatpush1.msra.mxu0 0.0
    %1159 = vmatprep.subr.mxu0 0.0
    %1160 = vmatpush1.msra.mxu0 0.0
    %1161 = vmatprep.subr.mxu0 0.0
    %1162 = vmatpush1.msra.mxu0 0.0
    %1163 = vmatprep.subr.mxu0 0.0
    %1164 = vmatpush1.msra.mxu0 0.0
    %1165 = vmatprep.subr.mxu0 0.0
    %1166 = vmatpush1.msra.mxu0 0.0
    %1167 = vmatprep.subr.mxu0 0.0
    %1168 = vmatpush1.msra.mxu0 0.0
    %1169 = vmatprep.subr.mxu0 0.0
    %1170 = vmatpush1.msra.mxu0 0.0
    %1171 = vmatprep.subr.mxu0 0.0
    %1172 = vmatpush1.msra.mxu0 %v1094
    %1173 = vmatprep.subr.mxu0 0.0
    %1174 = vmatpush1.msra.mxu0 %v1093
    %1175 = vmatprep.subr.mxu0 0.0
    %1176 = vmatpush1.msra.mxu0 %v1092
    %1177 = vmatprep.subr.mxu0 0.0
    %1178 = vmatpush1.msra.mxu0 %v1091
    %1179 = vmatprep.subr.mxu0 0.0
    %1180 = vmatpush2.msra.mxu0 0.0
    %1181 = vmatprep.subr.mxu0 0.0
    %1182 = vmatpush2.msra.mxu0 0.0
    %1183 = vmatprep.subr.mxu0 0.0
    %1184 = vmatpush2.msra.mxu0 0.0
    %1185 = vmatprep.subr.mxu0 0.0
    %1186 = vmatpush2.msra.mxu0 0.0
    %1187 = vmatprep.subr.mxu0 0.0
    %1188 = vmatpush2.msra.mxu0 0.0
    %1189 = vmatprep.subr.mxu0 0.0
    %1190 = vmatpush2.msra.mxu0 0.0
    %1191 = vmatprep.subr.mxu0 0.0
    %1192 = vmatpush2.msra.mxu0 0.0
    %1193 = vmatprep.subr.mxu0 0.0
    %1194 = vmatpush2.msra.mxu0 0.0
    %1195 = vmatprep.subr.mxu0 0.0
    %1196 = vmatpush2.msra.mxu0 0.0
    %1197 = vmatprep.subr.mxu0 0.0
    %1198 = vmatpush2.msra.mxu0 0.0
    %1199 = vmatprep.subr.mxu0 0.0
    %1200 = vmatpush2.msra.mxu0 0.0
    %1201 = vmatprep.subr.mxu0 0.0
    %1202 = vmatpush2.msra.mxu0 0.0
    %1203 = vmatprep.subr.mxu0 0.0
    %1204 = vmatpush2.msra.mxu0 0.0
    %1205 = vmatprep.subr.mxu0 0.0
    %1206 = vmatpush2.msra.mxu0 0.0
    %1207 = vmatprep.subr.mxu0 0.0
    %1208 = vmatpush2.msra.mxu0 0.0
    %1209 = vmatprep.subr.mxu0 0.0
    %1210 = vmatpush2.msra.mxu0 0.0
    %1211 = vmatprep.mubr.f32.mxu0 0.0
    %1212 = vmatmul.mubr.f32.gmra.mxu0 %v1103
    %v1213 = vpop.f32.mrf.mxu0
    %v1214 = vadd.f32 %v1100, %v1213
    %v1215 = vpop.f32.mrf.mxu0
    %1216 = vmatprep.mubr.f32.mxu0 0.0
    %1217 = vmatmul.mubr.f32.gmra.mxu0 %v1106
    %v1218 = vpop.f32.mrf.mxu0
    %v1219 = vadd.f32 %v1100, %v1218
    %v1220 = vpop.f32.mrf.mxu0
    %1221 = vmatprep.mubr.f32.mxu0 0.0
    %1222 = vmatmul.mubr.f32.gmra.mxu0 %v1109
    %v1223 = vpop.f32.mrf.mxu0
    %v1224 = vadd.f32 %v1100, %v1223
    %v1225 = vpop.f32.mrf.mxu0
    %1226 = vmatprep.mubr.f32.mxu0 0.0
    %1227 = vmatmul.mubr.f32.gmra.mxu0 %v1112
    %v1228 = vpop.f32.mrf.mxu0
    %v1229 = vadd.f32 %v1100, %v1228
    %v1230 = vpop.f32.mrf.mxu0
    %1231 = vmatprep.mubr.f32.mxu0 0.0
    %1232 = vmatmul.mubr.f32.gmra.mxu0 %v1115
    %v1233 = vpop.f32.mrf.mxu0
    %v1234 = vadd.f32 %v1100, %v1233
    %v1235 = vpop.f32.mrf.mxu0
    %1236 = vmatprep.mubr.f32.mxu0 0.0
    %1237 = vmatmul.mubr.f32.gmra.mxu0 %v1118
    %v1238 = vpop.f32.mrf.mxu0
    %v1239 = vadd.f32 %v1100, %v1238
    %v1240 = vpop.f32.mrf.mxu0
    %1241 = vmatprep.mubr.f32.mxu0 0.0
    %1242 = vmatmul.mubr.f32.gmra.mxu0 %v1121
    %v1243 = vpop.f32.mrf.mxu0
    %v1244 = vadd.f32 %v1100, %v1243
    %v1245 = vpop.f32.mrf.mxu0
    %1246 = vmatprep.mubr.f32.mxu0 0.0
    %1247 = vmatmul.mubr.f32.gmra.mxu0 %v1124
    %v1248 = vpop.f32.mrf.mxu0
    %v1249 = vadd.f32 %v1100, %v1248
    %v1250 = vpop.f32.mrf.mxu0
    %1251 = vmatprep.mubr.f32.mxu0 0.0
    %1252 = vmatmul.mubr.f32.gmra.mxu0 %v1127
    %v1253 = vpop.f32.mrf.mxu0
    %v1254 = vadd.f32 %v1100, %v1253
    %v1255 = vpop.f32.mrf.mxu0
    %1256 = vmatprep.mubr.f32.mxu0 0.0
    %1257 = vmatmul.mubr.f32.gmra.mxu0 %v1130
    %v1258 = vpop.f32.mrf.mxu0
    %v1259 = vadd.f32 %v1100, %v1258
    %v1260 = vpop.f32.mrf.mxu0
    %1261 = vmatprep.mubr.f32.mxu0 0.0
    %1262 = vmatmul.mubr.f32.gmra.mxu0 %v1133
    %v1263 = vpop.f32.mrf.mxu0
    %v1264 = vadd.f32 %v1100, %v1263
    %v1265 = vpop.f32.mrf.mxu0
    %1266 = vmatprep.mubr.f32.mxu0 0.0
    %1267 = vmatmul.mubr.f32.gmra.mxu0 %v1136
    %v1268 = vpop.f32.mrf.mxu0
    %v1269 = vadd.f32 %v1100, %v1268
    %v1270 = vpop.f32.mrf.mxu0
    %1271 = vmatprep.mubr.f32.mxu0 0.0
    %1272 = vmatmul.mubr.f32.gmra.mxu0 %v1139
    %v1273 = vpop.f32.mrf.mxu0
    %v1274 = vadd.f32 %v1100, %v1273
    %v1275 = vpop.f32.mrf.mxu0
    %1276 = vmatprep.mubr.f32.mxu0 0.0
    %1277 = vmatmul.mubr.f32.gmra.mxu0 %v1142
    %v1278 = vpop.f32.mrf.mxu0
    %v1279 = vadd.f32 %v1100, %v1278
    %v1280 = vpop.f32.mrf.mxu0
    %1281 = vmatprep.mubr.f32.mxu0 0.0
    %1282 = vmatmul.mubr.f32.gmra.mxu0 %v1145
    %v1283 = vpop.f32.mrf.mxu0
    %v1284 = vadd.f32 %v1100, %v1283
    %v1285 = vpop.f32.mrf.mxu0
    %1286 = vdwg.mxu0
    %v1287 = vmax.f32 %v1214, 0.0
    %v1288 = vmax.f32 %v1219, 0.0
    %v1289 = vmax.f32 %v1224, 0.0
    %v1290 = vmax.f32 %v1229, 0.0
    %v1291 = vmax.f32 %v1234, 0.0
    %v1292 = vmax.f32 %v1239, 0.0
    %v1293 = vmax.f32 %v1244, 0.0
    %v1294 = vmax.f32 %v1249, 0.0
    %v1295 = vmax.f32 %v1254, 0.0
    %v1296 = vmax.f32 %v1259, 0.0
    %v1297 = vmax.f32 %v1264, 0.0
    %v1298 = vmax.f32 %v1269, 0.0
    %v1299 = vmax.f32 %v1274, 0.0
    %v1300 = vmax.f32 %v1279, 0.0
    %v1301 = vmax.f32 %v1284, 0.0
    %v1302 = vld [vmem:[%s1] sm:$0xff]
    %v1303 = vld [vmem:[%s1 + $0x8] sm:$0xff]
    %v1304 = vld [vmem:[%s1 + $0x10] sm:$0xff]
    %v1305 = vld [vmem:[%s1 + $0x18] sm:$0xff]
    %v1306 = vld [vmem:[%s1 + $0x20] sm:$0xff]
    %v1307 = vld [vmem:[%s1 + $0x28] sm:$0xff]
    %v1308 = vld [vmem:[%s1 + $0x30] sm:$0xff]
    %v1309 = vld [vmem:[%s1 + $0x38] sm:$0xff]
    %v1310 = vld [vmem:[%s1 + $0x40] sm:$0xff]
    %v1311 = vld [vmem:[%s1 + $0x48] sm:$0xff]
    %v1312 = vld [vmem:[%s1 + $0x50] sm:$0xff]
    %v1313 = vld [vmem:[%s1 + $0x58] sm:$0xff]
    %v1314 = vld [vmem:[%s1 + $0x60] sm:$0xff]
    %v1315 = vld [vmem:[%s1 + $0x68] sm:$0xff]
    %v1316 = vld [vmem:[%s1 + $0x70] sm:$0xff]
    %1318 = vset.pattern.permute.xlu0 0
    %1319 = vperm.xlu0 %1318, %v1302
    %v1320 = vpop.permute.xlu0 %1319
    %1323 = vset.pattern.permute.xlu0 0
    %1324 = vperm.xlu0 %1323, %v1303
    %v1325 = vpop.permute.xlu0 %1324
    %1328 = vset.pattern.permute.xlu0 0
    %1329 = vperm.xlu0 %1328, %v1304
    %v1330 = vpop.permute.xlu0 %1329
    %1333 = vset.pattern.permute.xlu0 0
    %1334 = vperm.xlu0 %1333, %v1305
    %v1335 = vpop.permute.xlu0 %1334
    %1338 = vset.pattern.permute.xlu0 0
    %1339 = vperm.xlu0 %1338, %v1306
    %v1340 = vpop.permute.xlu0 %1339
    %1343 = vset.pattern.permute.xlu0 0
    %1344 = vperm.xlu0 %1343, %v1307
    %v1345 = vpop.permute.xlu0 %1344
    %1348 = vset.pattern.permute.xlu0 0
    %1349 = vperm.xlu0 %1348, %v1308
    %v1350 = vpop.permute.xlu0 %1349
    %1353 = vset.pattern.permute.xlu0 0
    %1354 = vperm.xlu0 %1353, %v1309
    %v1355 = vpop.permute.xlu0 %1354
    %1358 = vset.pattern.permute.xlu0 0
    %1359 = vperm.xlu0 %1358, %v1310
    %v1360 = vpop.permute.xlu0 %1359
    %1363 = vset.pattern.permute.xlu0 0
    %1364 = vperm.xlu0 %1363, %v1311
    %v1365 = vpop.permute.xlu0 %1364
    %1368 = vset.pattern.permute.xlu0 0
    %1369 = vperm.xlu0 %1368, %v1312
    %v1370 = vpop.permute.xlu0 %1369
    %1373 = vset.pattern.permute.xlu0 0
    %1374 = vperm.xlu0 %1373, %v1313
    %v1375 = vpop.permute.xlu0 %1374
    %1378 = vset.pattern.permute.xlu0 0
    %1379 = vperm.xlu0 %1378, %v1314
    %v1380 = vpop.permute.xlu0 %1379
    %1383 = vset.pattern.permute.xlu0 0
    %1384 = vperm.xlu0 %1383, %v1315
    %v1385 = vpop.permute.xlu0 %1384
    %1388 = vset.pattern.permute.xlu0 0
    %1389 = vperm.xlu0 %1388, %v1316
    %v1390 = vpop.permute.xlu0 %1389
    %v1392 = vmul.f32 %v1287, %v1320
    %v1393 = vmul.f32 %v1288, %v1325
    %v1394 = vmul.f32 %v1289, %v1330
    %v1395 = vmul.f32 %v1290, %v1335
    %v1396 = vmul.f32 %v1291, %v1340
    %v1397 = vmul.f32 %v1292, %v1345
    %v1398 = vmul.f32 %v1293, %v1350
    %v1399 = vmul.f32 %v1294, %v1355
    %v1400 = vmul.f32 %v1295, %v1360
    %v1401 = vmul.f32 %v1296, %v1365
    %v1402 = vmul.f32 %v1297, %v1370
    %v1403 = vmul.f32 %v1298, %v1375
    %v1404 = vmul.f32 %v1299, %v1380
    %v1405 = vmul.f32 %v1300, %v1385
    %v1406 = vmul.f32 %v1301, %v1390
    %1407 = vst [vmem:[#allocation2 + $0x180] sm:$0xff] %v1392
    %1408 = vst [vmem:[#allocation2 + $0x188] sm:$0xff] %v1393
    %1409 = vst [vmem:[#allocation2 + $0x190] sm:$0xff] %v1394
    %1410 = vst [vmem:[#allocation2 + $0x198] sm:$0xff] %v1395
    %1411 = vst [vmem:[#allocation2 + $0x1a0] sm:$0xff] %v1396
    %1412 = vst [vmem:[#allocation2 + $0x1a8] sm:$0xff] %v1397
    %1413 = vst [vmem:[#allocation2 + $0x1b0] sm:$0xff] %v1398
    %1414 = vst [vmem:[#allocation2 + $0x1b8] sm:$0xff] %v1399
    %1415 = vst [vmem:[#allocation2 + $0x1c0] sm:$0xff] %v1400
    %1416 = vst [vmem:[#allocation2 + $0x1c8] sm:$0xff] %v1401
    %1417 = vst [vmem:[#allocation2 + $0x1d0] sm:$0xff] %v1402
    %1418 = vst [vmem:[#allocation2 + $0x1d8] sm:$0xff] %v1403
    %1419 = vst [vmem:[#allocation2 + $0x1e0] sm:$0xff] %v1404
    %1420 = vst [vmem:[#allocation2 + $0x1e8] sm:$0xff] %v1405
    %1421 = vst [vmem:[#allocation2 + $0x1f0] sm:$0xff] %v1406
    %v1422 = vld [vmem:[%s0 + $0x1e0] sm:$0xff]
    %v1423 = vld [vmem:[%s0 + $0x1e8] sm:$0xff]
    %v1424 = vld [vmem:[%s0 + $0x1f0] sm:$0xff]
    %v1425 = vld [vmem:[%s0 + $0x1f8] sm:$0xff]
    %v1426 = vld [vmem:[%s0 + $0x200] sm:$0xff]
    %v1427 = vld [vmem:[%s0 + $0x208] sm:$0xff]
    %v1428 = vld [vmem:[%s0 + $0x210] sm:$0xff]
    %v1429 = vld [vmem:[%s0 + $0x218] sm:$0xff]
    %v1430 = vld [vmem:[%s0 + $0x220] sm:$0xff]
    %v1431 = vld [vmem:[%s0 + $0x228] sm:$0xff]
    %v1432 = vld [vmem:[%s0 + $0x230] sm:$0xff]
    %v1433 = vld [vmem:[%s0 + $0x238] sm:$0xff]
    %v1434 = vld [vmem:[%s0 + $0x240] sm:$0xff]
    %v1435 = vld [vmem:[%s0 + $0x248] sm:$0xff]
    %v1436 = vld [vmem:[%s0 + $0x250] sm:$0xff]
    %v1437 = vld [vmem:[%s2] sm:$0xff]
    %v1438 = vld [vmem:[%s2 + $0x8] sm:$0xff]
    %v1439 = vld [vmem:[%s2 + $0x10] sm:$0xff]
    %v1440 = vld [vmem:[%s2 + $0x18] sm:$0xff]
    %v1441 = vld [vmem:[%s3] sm:$0x1]
    %v1443 = vlaneseq
    %v1444 = vshrl.u32 %v1443, 7
    %v1445 = vsub.s32 0, %v1444
    %v1446 = vrot.slane %v1441, %v1445
    %v1449 = vsel %vm63, %v1422, 0
    %v1452 = vsel %vm63, %v1423, 0
    %v1455 = vsel %vm63, %v1424, 0
    %v1458 = vsel %vm63, %v1425, 0
    %v1461 = vsel %vm63, %v1426, 0
    %v1464 = vsel %vm63, %v1427, 0
    %v1467 = vsel %vm63, %v1428, 0
    %v1470 = vsel %vm63, %v1429, 0
    %v1473 = vsel %vm63, %v1430, 0
    %v1476 = vsel %vm63, %v1431, 0
    %v1479 = vsel %vm63, %v1432, 0
    %v1482 = vsel %vm63, %v1433, 0
    %v1485 = vsel %vm63, %v1434, 0
    %v1488 = vsel %vm63, %v1435, 0
    %v1491 = vsel %vm63, %v1436, 0
    %1493 = vmatprep.subr.mxu0 0.0
    %1494 = vmatpush1.msra.mxu0 0.0
    %1495 = vmatprep.subr.mxu0 0.0
    %1496 = vmatpush1.msra.mxu0 0.0
    %1497 = vmatprep.subr.mxu0 0.0
    %1498 = vmatpush1.msra.mxu0 0.0
    %1499 = vmatprep.subr.mxu0 0.0
    %1500 = vmatpush1.msra.mxu0 0.0
    %1501 = vmatprep.subr.mxu0 0.0
    %1502 = vmatpush1.msra.mxu0 0.0
    %1503 = vmatprep.subr.mxu0 0.0
    %1504 = vmatpush1.msra.mxu0 0.0
    %1505 = vmatprep.subr.mxu0 0.0
    %1506 = vmatpush1.msra.mxu0 0.0
    %1507 = vmatprep.subr.mxu0 0.0
    %1508 = vmatpush1.msra.mxu0 0.0
    %1509 = vmatprep.subr.mxu0 0.0
    %1510 = vmatpush1.msra.mxu0 0.0
    %1511 = vmatprep.subr.mxu0 0.0
    %1512 = vmatpush1.msra.mxu0 0.0
    %1513 = vmatprep.subr.mxu0 0.0
    %1514 = vmatpush1.msra.mxu0 0.0
    %1515 = vmatprep.subr.mxu0 0.0
    %1516 = vmatpush1.msra.mxu0 0.0
    %1517 = vmatprep.subr.mxu0 0.0
    %1518 = vmatpush1.msra.mxu0 %v1440
    %1519 = vmatprep.subr.mxu0 0.0
    %1520 = vmatpush1.msra.mxu0 %v1439
    %1521 = vmatprep.subr.mxu0 0.0
    %1522 = vmatpush1.msra.mxu0 %v1438
    %1523 = vmatprep.subr.mxu0 0.0
    %1524 = vmatpush1.msra.mxu0 %v1437
    %1525 = vmatprep.subr.mxu0 0.0
    %1526 = vmatpush2.msra.mxu0 0.0
    %1527 = vmatprep.subr.mxu0 0.0
    %1528 = vmatpush2.msra.mxu0 0.0
    %1529 = vmatprep.subr.mxu0 0.0
    %1530 = vmatpush2.msra.mxu0 0.0
    %1531 = vmatprep.subr.mxu0 0.0
    %1532 = vmatpush2.msra.mxu0 0.0
    %1533 = vmatprep.subr.mxu0 0.0
    %1534 = vmatpush2.msra.mxu0 0.0
    %1535 = vmatprep.subr.mxu0 0.0
    %1536 = vmatpush2.msra.mxu0 0.0
    %1537 = vmatprep.subr.mxu0 0.0
    %1538 = vmatpush2.msra.mxu0 0.0
    %1539 = vmatprep.subr.mxu0 0.0
    %1540 = vmatpush2.msra.mxu0 0.0
    %1541 = vmatprep.subr.mxu0 0.0
    %1542 = vmatpush2.msra.mxu0 0.0
    %1543 = vmatprep.subr.mxu0 0.0
    %1544 = vmatpush2.msra.mxu0 0.0
    %1545 = vmatprep.subr.mxu0 0.0
    %1546 = vmatpush2.msra.mxu0 0.0
    %1547 = vmatprep.subr.mxu0 0.0
    %1548 = vmatpush2.msra.mxu0 0.0
    %1549 = vmatprep.subr.mxu0 0.0
    %1550 = vmatpush2.msra.mxu0 0.0
    %1551 = vmatprep.subr.mxu0 0.0
    %1552 = vmatpush2.msra.mxu0 0.0
    %1553 = vmatprep.subr.mxu0 0.0
    %1554 = vmatpush2.msra.mxu0 0.0
    %1555 = vmatprep.subr.mxu0 0.0
    %1556 = vmatpush2.msra.mxu0 0.0
    %1557 = vmatprep.mubr.f32.mxu0 0.0
    %1558 = vmatmul.mubr.f32.gmra.mxu0 %v1449
    %v1559 = vpop.f32.mrf.mxu0
    %v1560 = vadd.f32 %v1446, %v1559
    %v1561 = vpop.f32.mrf.mxu0
    %1562 = vmatprep.mubr.f32.mxu0 0.0
    %1563 = vmatmul.mubr.f32.gmra.mxu0 %v1452
    %v1564 = vpop.f32.mrf.mxu0
    %v1565 = vadd.f32 %v1446, %v1564
    %v1566 = vpop.f32.mrf.mxu0
    %1567 = vmatprep.mubr.f32.mxu0 0.0
    %1568 = vmatmul.mubr.f32.gmra.mxu0 %v1455
    %v1569 = vpop.f32.mrf.mxu0
    %v1570 = vadd.f32 %v1446, %v1569
    %v1571 = vpop.f32.mrf.mxu0
    %1572 = vmatprep.mubr.f32.mxu0 0.0
    %1573 = vmatmul.mubr.f32.gmra.mxu0 %v1458
    %v1574 = vpop.f32.mrf.mxu0
    %v1575 = vadd.f32 %v1446, %v1574
    %v1576 = vpop.f32.mrf.mxu0
    %1577 = vmatprep.mubr.f32.mxu0 0.0
    %1578 = vmatmul.mubr.f32.gmra.mxu0 %v1461
    %v1579 = vpop.f32.mrf.mxu0
    %v1580 = vadd.f32 %v1446, %v1579
    %v1581 = vpop.f32.mrf.mxu0
    %1582 = vmatprep.mubr.f32.mxu0 0.0
    %1583 = vmatmul.mubr.f32.gmra.mxu0 %v1464
    %v1584 = vpop.f32.mrf.mxu0
    %v1585 = vadd.f32 %v1446, %v1584
    %v1586 = vpop.f32.mrf.mxu0
    %1587 = vmatprep.mubr.f32.mxu0 0.0
    %1588 = vmatmul.mubr.f32.gmra.mxu0 %v1467
    %v1589 = vpop.f32.mrf.mxu0
    %v1590 = vadd.f32 %v1446, %v1589
    %v1591 = vpop.f32.mrf.mxu0
    %1592 = vmatprep.mubr.f32.mxu0 0.0
    %1593 = vmatmul.mubr.f32.gmra.mxu0 %v1470
    %v1594 = vpop.f32.mrf.mxu0
    %v1595 = vadd.f32 %v1446, %v1594
    %v1596 = vpop.f32.mrf.mxu0
    %1597 = vmatprep.mubr.f32.mxu0 0.0
    %1598 = vmatmul.mubr.f32.gmra.mxu0 %v1473
    %v1599 = vpop.f32.mrf.mxu0
    %v1600 = vadd.f32 %v1446, %v1599
    %v1601 = vpop.f32.mrf.mxu0
    %1602 = vmatprep.mubr.f32.mxu0 0.0
    %1603 = vmatmul.mubr.f32.gmra.mxu0 %v1476
    %v1604 = vpop.f32.mrf.mxu0
    %v1605 = vadd.f32 %v1446, %v1604
    %v1606 = vpop.f32.mrf.mxu0
    %1607 = vmatprep.mubr.f32.mxu0 0.0
    %1608 = vmatmul.mubr.f32.gmra.mxu0 %v1479
    %v1609 = vpop.f32.mrf.mxu0
    %v1610 = vadd.f32 %v1446, %v1609
    %v1611 = vpop.f32.mrf.mxu0
    %1612 = vmatprep.mubr.f32.mxu0 0.0
    %1613 = vmatmul.mubr.f32.gmra.mxu0 %v1482
    %v1614 = vpop.f32.mrf.mxu0
    %v1615 = vadd.f32 %v1446, %v1614
    %v1616 = vpop.f32.mrf.mxu0
    %1617 = vmatprep.mubr.f32.mxu0 0.0
    %1618 = vmatmul.mubr.f32.gmra.mxu0 %v1485
    %v1619 = vpop.f32.mrf.mxu0
    %v1620 = vadd.f32 %v1446, %v1619
    %v1621 = vpop.f32.mrf.mxu0
    %1622 = vmatprep.mubr.f32.mxu0 0.0
    %1623 = vmatmul.mubr.f32.gmra.mxu0 %v1488
    %v1624 = vpop.f32.mrf.mxu0
    %v1625 = vadd.f32 %v1446, %v1624
    %v1626 = vpop.f32.mrf.mxu0
    %1627 = vmatprep.mubr.f32.mxu0 0.0
    %1628 = vmatmul.mubr.f32.gmra.mxu0 %v1491
    %v1629 = vpop.f32.mrf.mxu0
    %v1630 = vadd.f32 %v1446, %v1629
    %v1631 = vpop.f32.mrf.mxu0
    %1632 = vdwg.mxu0
    %v1633 = vmax.f32 %v1560, 0.0
    %v1634 = vmax.f32 %v1565, 0.0
    %v1635 = vmax.f32 %v1570, 0.0
    %v1636 = vmax.f32 %v1575, 0.0
    %v1637 = vmax.f32 %v1580, 0.0
    %v1638 = vmax.f32 %v1585, 0.0
    %v1639 = vmax.f32 %v1590, 0.0
    %v1640 = vmax.f32 %v1595, 0.0
    %v1641 = vmax.f32 %v1600, 0.0
    %v1642 = vmax.f32 %v1605, 0.0
    %v1643 = vmax.f32 %v1610, 0.0
    %v1644 = vmax.f32 %v1615, 0.0
    %v1645 = vmax.f32 %v1620, 0.0
    %v1646 = vmax.f32 %v1625, 0.0
    %v1647 = vmax.f32 %v1630, 0.0
    %v1648 = vld [vmem:[%s1 + $0x78] sm:$0xff]
    %v1649 = vld [vmem:[%s1 + $0x80] sm:$0xff]
    %v1650 = vld [vmem:[%s1 + $0x88] sm:$0xff]
    %v1651 = vld [vmem:[%s1 + $0x90] sm:$0xff]
    %v1652 = vld [vmem:[%s1 + $0x98] sm:$0xff]
    %v1653 = vld [vmem:[%s1 + $0xa0] sm:$0xff]
    %v1654 = vld [vmem:[%s1 + $0xa8] sm:$0xff]
    %v1655 = vld [vmem:[%s1 + $0xb0] sm:$0xff]
    %v1656 = vld [vmem:[%s1 + $0xb8] sm:$0xff]
    %v1657 = vld [vmem:[%s1 + $0xc0] sm:$0xff]
    %v1658 = vld [vmem:[%s1 + $0xc8] sm:$0xff]
    %v1659 = vld [vmem:[%s1 + $0xd0] sm:$0xff]
    %v1660 = vld [vmem:[%s1 + $0xd8] sm:$0xff]
    %v1661 = vld [vmem:[%s1 + $0xe0] sm:$0xff]
    %v1662 = vld [vmem:[%s1 + $0xe8] sm:$0xff]
    %1664 = vset.pattern.permute.xlu0 0
    %1665 = vperm.xlu0 %1664, %v1648
    %v1666 = vpop.permute.xlu0 %1665
    %1669 = vset.pattern.permute.xlu0 0
    %1670 = vperm.xlu0 %1669, %v1649
    %v1671 = vpop.permute.xlu0 %1670
    %1674 = vset.pattern.permute.xlu0 0
    %1675 = vperm.xlu0 %1674, %v1650
    %v1676 = vpop.permute.xlu0 %1675
    %1679 = vset.pattern.permute.xlu0 0
    %1680 = vperm.xlu0 %1679, %v1651
    %v1681 = vpop.permute.xlu0 %1680
    %1684 = vset.pattern.permute.xlu0 0
    %1685 = vperm.xlu0 %1684, %v1652
    %v1686 = vpop.permute.xlu0 %1685
    %1689 = vset.pattern.permute.xlu0 0
    %1690 = vperm.xlu0 %1689, %v1653
    %v1691 = vpop.permute.xlu0 %1690
    %1694 = vset.pattern.permute.xlu0 0
    %1695 = vperm.xlu0 %1694, %v1654
    %v1696 = vpop.permute.xlu0 %1695
    %1699 = vset.pattern.permute.xlu0 0
    %1700 = vperm.xlu0 %1699, %v1655
    %v1701 = vpop.permute.xlu0 %1700
    %1704 = vset.pattern.permute.xlu0 0
    %1705 = vperm.xlu0 %1704, %v1656
    %v1706 = vpop.permute.xlu0 %1705
    %1709 = vset.pattern.permute.xlu0 0
    %1710 = vperm.xlu0 %1709, %v1657
    %v1711 = vpop.permute.xlu0 %1710
    %1714 = vset.pattern.permute.xlu0 0
    %1715 = vperm.xlu0 %1714, %v1658
    %v1716 = vpop.permute.xlu0 %1715
    %1719 = vset.pattern.permute.xlu0 0
    %1720 = vperm.xlu0 %1719, %v1659
    %v1721 = vpop.permute.xlu0 %1720
    %1724 = vset.pattern.permute.xlu0 0
    %1725 = vperm.xlu0 %1724, %v1660
    %v1726 = vpop.permute.xlu0 %1725
    %1729 = vset.pattern.permute.xlu0 0
    %1730 = vperm.xlu0 %1729, %v1661
    %v1731 = vpop.permute.xlu0 %1730
    %1734 = vset.pattern.permute.xlu0 0
    %1735 = vperm.xlu0 %1734, %v1662
    %v1736 = vpop.permute.xlu0 %1735
    %v1738 = vmul.f32 %v1633, %v1666
    %v1739 = vmul.f32 %v1634, %v1671
    %v1740 = vmul.f32 %v1635, %v1676
    %v1741 = vmul.f32 %v1636, %v1681
    %v1742 = vmul.f32 %v1637, %v1686
    %v1743 = vmul.f32 %v1638, %v1691
    %v1744 = vmul.f32 %v1639, %v1696
    %v1745 = vmul.f32 %v1640, %v1701
    %v1746 = vmul.f32 %v1641, %v1706
    %v1747 = vmul.f32 %v1642, %v1711
    %v1748 = vmul.f32 %v1643, %v1716
    %v1749 = vmul.f32 %v1644, %v1721
    %v1750 = vmul.f32 %v1645, %v1726
    %v1751 = vmul.f32 %v1646, %v1731
    %v1752 = vmul.f32 %v1647, %v1736
    %1753 = vst [vmem:[#allocation2 + $0x1f8] sm:$0xff] %v1738
    %1754 = vst [vmem:[#allocation2 + $0x200] sm:$0xff] %v1739
    %1755 = vst [vmem:[#allocation2 + $0x208] sm:$0xff] %v1740
    %1756 = vst [vmem:[#allocation2 + $0x210] sm:$0xff] %v1741
    %1757 = vst [vmem:[#allocation2 + $0x218] sm:$0xff] %v1742
    %1758 = vst [vmem:[#allocation2 + $0x220] sm:$0xff] %v1743
    %1759 = vst [vmem:[#allocation2 + $0x228] sm:$0xff] %v1744
    %1760 = vst [vmem:[#allocation2 + $0x230] sm:$0xff] %v1745
    %1761 = vst [vmem:[#allocation2 + $0x238] sm:$0xff] %v1746
    %1762 = vst [vmem:[#allocation2 + $0x240] sm:$0xff] %v1747
    %1763 = vst [vmem:[#allocation2 + $0x248] sm:$0xff] %v1748
    %1764 = vst [vmem:[#allocation2 + $0x250] sm:$0xff] %v1749
    %1765 = vst [vmem:[#allocation2 + $0x258] sm:$0xff] %v1750
    %1766 = vst [vmem:[#allocation2 + $0x260] sm:$0xff] %v1751
    %1767 = vst [vmem:[#allocation2 + $0x268] sm:$0xff] %v1752
    %v1768 = vld [vmem:[%s0 + $0x258] sm:$0xff]
    %v1769 = vld [vmem:[%s0 + $0x260] sm:$0xff]
    %v1770 = vld [vmem:[%s0 + $0x268] sm:$0xff]
    %v1771 = vld [vmem:[%s0 + $0x270] sm:$0xff]
    %v1772 = vld [vmem:[%s0 + $0x278] sm:$0xff]
    %v1773 = vld [vmem:[%s0 + $0x280] sm:$0xff]
    %v1774 = vld [vmem:[%s0 + $0x288] sm:$0xff]
    %v1775 = vld [vmem:[%s0 + $0x290] sm:$0xff]
    %v1776 = vld [vmem:[%s0 + $0x298] sm:$0xff]
    %v1777 = vld [vmem:[%s0 + $0x2a0] sm:$0xff]
    %v1778 = vld [vmem:[%s0 + $0x2a8] sm:$0xff]
    %v1779 = vld [vmem:[%s0 + $0x2b0] sm:$0xff]
    %v1780 = vld [vmem:[%s0 + $0x2b8] sm:$0xff]
    %v1781 = vld [vmem:[%s0 + $0x2c0] sm:$0xff]
    %v1782 = vld [vmem:[%s0 + $0x2c8] sm:$0xff]
    %v1783 = vld [vmem:[%s2] sm:$0xff]
    %v1784 = vld [vmem:[%s2 + $0x8] sm:$0xff]
    %v1785 = vld [vmem:[%s2 + $0x10] sm:$0xff]
    %v1786 = vld [vmem:[%s2 + $0x18] sm:$0xff]
    %v1787 = vld [vmem:[%s3] sm:$0x1]
    %v1789 = vlaneseq
    %v1790 = vshrl.u32 %v1789, 7
    %v1791 = vsub.s32 0, %v1790
    %v1792 = vrot.slane %v1787, %v1791
    %v1795 = vsel %vm63, %v1768, 0
    %v1798 = vsel %vm63, %v1769, 0
    %v1801 = vsel %vm63, %v1770, 0
    %v1804 = vsel %vm63, %v1771, 0
    %v1807 = vsel %vm63, %v1772, 0
    %v1810 = vsel %vm63, %v1773, 0
    %v1813 = vsel %vm63, %v1774, 0
    %v1816 = vsel %vm63, %v1775, 0
    %v1819 = vsel %vm63, %v1776, 0
    %v1822 = vsel %vm63, %v1777, 0
    %v1825 = vsel %vm63, %v1778, 0
    %v1828 = vsel %vm63, %v1779, 0
    %v1831 = vsel %vm63, %v1780, 0
    %v1834 = vsel %vm63, %v1781, 0
    %v1837 = vsel %vm63, %v1782, 0
    %1839 = vmatprep.subr.mxu0 0.0
    %1840 = vmatpush1.msra.mxu0 0.0
    %1841 = vmatprep.subr.mxu0 0.0
    %1842 = vmatpush1.msra.mxu0 0.0
    %1843 = vmatprep.subr.mxu0 0.0
    %1844 = vmatpush1.msra.mxu0 0.0
    %1845 = vmatprep.subr.mxu0 0.0
    %1846 = vmatpush1.msra.mxu0 0.0
    %1847 = vmatprep.subr.mxu0 0.0
    %1848 = vmatpush1.msra.mxu0 0.0
    %1849 = vmatprep.subr.mxu0 0.0
    %1850 = vmatpush1.msra.mxu0 0.0
    %1851 = vmatprep.subr.mxu0 0.0
    %1852 = vmatpush1.msra.mxu0 0.0
    %1853 = vmatprep.subr.mxu0 0.0
    %1854 = vmatpush1.msra.mxu0 0.0
    %1855 = vmatprep.subr.mxu0 0.0
    %1856 = vmatpush1.msra.mxu0 0.0
    %1857 = vmatprep.subr.mxu0 0.0
    %1858 = vmatpush1.msra.mxu0 0.0
    %1859 = vmatprep.subr.mxu0 0.0
    %1860 = vmatpush1.msra.mxu0 0.0
    %1861 = vmatprep.subr.mxu0 0.0
    %1862 = vmatpush1.msra.mxu0 0.0
    %1863 = vmatprep.subr.mxu0 0.0
    %1864 = vmatpush1.msra.mxu0 %v1786
    %1865 = vmatprep.subr.mxu0 0.0
    %1866 = vmatpush1.msra.mxu0 %v1785
    %1867 = vmatprep.subr.mxu0 0.0
    %1868 = vmatpush1.msra.mxu0 %v1784
    %1869 = vmatprep.subr.mxu0 0.0
    %1870 = vmatpush1.msra.mxu0 %v1783
    %1871 = vmatprep.subr.mxu0 0.0
    %1872 = vmatpush2.msra.mxu0 0.0
    %1873 = vmatprep.subr.mxu0 0.0
    %1874 = vmatpush2.msra.mxu0 0.0
    %1875 = vmatprep.subr.mxu0 0.0
    %1876 = vmatpush2.msra.mxu0 0.0
    %1877 = vmatprep.subr.mxu0 0.0
    %1878 = vmatpush2.msra.mxu0 0.0
    %1879 = vmatprep.subr.mxu0 0.0
    %1880 = vmatpush2.msra.mxu0 0.0
    %1881 = vmatprep.subr.mxu0 0.0
    %1882 = vmatpush2.msra.mxu0 0.0
    %1883 = vmatprep.subr.mxu0 0.0
    %1884 = vmatpush2.msra.mxu0 0.0
    %1885 = vmatprep.subr.mxu0 0.0
    %1886 = vmatpush2.msra.mxu0 0.0
    %1887 = vmatprep.subr.mxu0 0.0
    %1888 = vmatpush2.msra.mxu0 0.0
    %1889 = vmatprep.subr.mxu0 0.0
    %1890 = vmatpush2.msra.mxu0 0.0
    %1891 = vmatprep.subr.mxu0 0.0
    %1892 = vmatpush2.msra.mxu0 0.0
    %1893 = vmatprep.subr.mxu0 0.0
    %1894 = vmatpush2.msra.mxu0 0.0
    %1895 = vmatprep.subr.mxu0 0.0
    %1896 = vmatpush2.msra.mxu0 0.0
    %1897 = vmatprep.subr.mxu0 0.0
    %1898 = vmatpush2.msra.mxu0 0.0
    %1899 = vmatprep.subr.mxu0 0.0
    %1900 = vmatpush2.msra.mxu0 0.0
    %1901 = vmatprep.subr.mxu0 0.0
    %1902 = vmatpush2.msra.mxu0 0.0
    %1903 = vmatprep.mubr.f32.mxu0 0.0
    %1904 = vmatmul.mubr.f32.gmra.mxu0 %v1795
    %v1905 = vpop.f32.mrf.mxu0
    %v1906 = vadd.f32 %v1792, %v1905
    %v1907 = vpop.f32.mrf.mxu0
    %1908 = vmatprep.mubr.f32.mxu0 0.0
    %1909 = vmatmul.mubr.f32.gmra.mxu0 %v1798
    %v1910 = vpop.f32.mrf.mxu0
    %v1911 = vadd.f32 %v1792, %v1910
    %v1912 = vpop.f32.mrf.mxu0
    %1913 = vmatprep.mubr.f32.mxu0 0.0
    %1914 = vmatmul.mubr.f32.gmra.mxu0 %v1801
    %v1915 = vpop.f32.mrf.mxu0
    %v1916 = vadd.f32 %v1792, %v1915
    %v1917 = vpop.f32.mrf.mxu0
    %1918 = vmatprep.mubr.f32.mxu0 0.0
    %1919 = vmatmul.mubr.f32.gmra.mxu0 %v1804
    %v1920 = vpop.f32.mrf.mxu0
    %v1921 = vadd.f32 %v1792, %v1920
    %v1922 = vpop.f32.mrf.mxu0
    %1923 = vmatprep.mubr.f32.mxu0 0.0
    %1924 = vmatmul.mubr.f32.gmra.mxu0 %v1807
    %v1925 = vpop.f32.mrf.mxu0
    %v1926 = vadd.f32 %v1792, %v1925
    %v1927 = vpop.f32.mrf.mxu0
    %1928 = vmatprep.mubr.f32.mxu0 0.0
    %1929 = vmatmul.mubr.f32.gmra.mxu0 %v1810
    %v1930 = vpop.f32.mrf.mxu0
    %v1931 = vadd.f32 %v1792, %v1930
    %v1932 = vpop.f32.mrf.mxu0
    %1933 = vmatprep.mubr.f32.mxu0 0.0
    %1934 = vmatmul.mubr.f32.gmra.mxu0 %v1813
    %v1935 = vpop.f32.mrf.mxu0
    %v1936 = vadd.f32 %v1792, %v1935
    %v1937 = vpop.f32.mrf.mxu0
    %1938 = vmatprep.mubr.f32.mxu0 0.0
    %1939 = vmatmul.mubr.f32.gmra.mxu0 %v1816
    %v1940 = vpop.f32.mrf.mxu0
    %v1941 = vadd.f32 %v1792, %v1940
    %v1942 = vpop.f32.mrf.mxu0
    %1943 = vmatprep.mubr.f32.mxu0 0.0
    %1944 = vmatmul.mubr.f32.gmra.mxu0 %v1819
    %v1945 = vpop.f32.mrf.mxu0
    %v1946 = vadd.f32 %v1792, %v1945
    %v1947 = vpop.f32.mrf.mxu0
    %1948 = vmatprep.mubr.f32.mxu0 0.0
    %1949 = vmatmul.mubr.f32.gmra.mxu0 %v1822
    %v1950 = vpop.f32.mrf.mxu0
    %v1951 = vadd.f32 %v1792, %v1950
    %v1952 = vpop.f32.mrf.mxu0
    %1953 = vmatprep.mubr.f32.mxu0 0.0
    %1954 = vmatmul.mubr.f32.gmra.mxu0 %v1825
    %v1955 = vpop.f32.mrf.mxu0
    %v1956 = vadd.f32 %v1792, %v1955
    %v1957 = vpop.f32.mrf.mxu0
    %1958 = vmatprep.mubr.f32.mxu0 0.0
    %1959 = vmatmul.mubr.f32.gmra.mxu0 %v1828
    %v1960 = vpop.f32.mrf.mxu0
    %v1961 = vadd.f32 %v1792, %v1960
    %v1962 = vpop.f32.mrf.mxu0
    %1963 = vmatprep.mubr.f32.mxu0 0.0
    %1964 = vmatmul.mubr.f32.gmra.mxu0 %v1831
    %v1965 = vpop.f32.mrf.mxu0
    %v1966 = vadd.f32 %v1792, %v1965
    %v1967 = vpop.f32.mrf.mxu0
    %1968 = vmatprep.mubr.f32.mxu0 0.0
    %1969 = vmatmul.mubr.f32.gmra.mxu0 %v1834
    %v1970 = vpop.f32.mrf.mxu0
    %v1971 = vadd.f32 %v1792, %v1970
    %v1972 = vpop.f32.mrf.mxu0
    %1973 = vmatprep.mubr.f32.mxu0 0.0
    %1974 = vmatmul.mubr.f32.gmra.mxu0 %v1837
    %v1975 = vpop.f32.mrf.mxu0
    %v1976 = vadd.f32 %v1792, %v1975
    %v1977 = vpop.f32.mrf.mxu0
    %1978 = vdwg.mxu0
    %v1979 = vmax.f32 %v1906, 0.0
    %v1980 = vmax.f32 %v1911, 0.0
    %v1981 = vmax.f32 %v1916, 0.0
    %v1982 = vmax.f32 %v1921, 0.0
    %v1983 = vmax.f32 %v1926, 0.0
    %v1984 = vmax.f32 %v1931, 0.0
    %v1985 = vmax.f32 %v1936, 0.0
    %v1986 = vmax.f32 %v1941, 0.0
    %v1987 = vmax.f32 %v1946, 0.0
    %v1988 = vmax.f32 %v1951, 0.0
    %v1989 = vmax.f32 %v1956, 0.0
    %v1990 = vmax.f32 %v1961, 0.0
    %v1991 = vmax.f32 %v1966, 0.0
    %v1992 = vmax.f32 %v1971, 0.0
    %v1993 = vmax.f32 %v1976, 0.0
    %v1994 = vld [vmem:[%s1 + $0xf0] sm:$0xff]
    %v1995 = vld [vmem:[%s1 + $0xf8] sm:$0xff]
    %v1996 = vld [vmem:[%s1 + $0x100] sm:$0xff]
    %v1997 = vld [vmem:[%s1 + $0x108] sm:$0xff]
    %v1998 = vld [vmem:[%s1 + $0x110] sm:$0xff]
    %v1999 = vld [vmem:[%s1 + $0x118] sm:$0xff]
    %v2000 = vld [vmem:[%s1 + $0x120] sm:$0xff]
    %v2001 = vld [vmem:[%s1 + $0x128] sm:$0xff]
    %v2002 = vld [vmem:[%s1 + $0x130] sm:$0xff]
    %v2003 = vld [vmem:[%s1 + $0x138] sm:$0xff]
    %v2004 = vld [vmem:[%s1 + $0x140] sm:$0xff]
    %v2005 = vld [vmem:[%s1 + $0x148] sm:$0xff]
    %v2006 = vld [vmem:[%s1 + $0x150] sm:$0xff]
    %v2007 = vld [vmem:[%s1 + $0x158] sm:$0xff]
    %v2008 = vld [vmem:[%s1 + $0x160] sm:$0xff]
    %2010 = vset.pattern.permute.xlu0 0
    %2011 = vperm.xlu0 %2010, %v1994
    %v2012 = vpop.permute.xlu0 %2011
    %2015 = vset.pattern.permute.xlu0 0
    %2016 = vperm.xlu0 %2015, %v1995
    %v2017 = vpop.permute.xlu0 %2016
    %2020 = vset.pattern.permute.xlu0 0
    %2021 = vperm.xlu0 %2020, %v1996
    %v2022 = vpop.permute.xlu0 %2021
    %2025 = vset.pattern.permute.xlu0 0
    %2026 = vperm.xlu0 %2025, %v1997
    %v2027 = vpop.permute.xlu0 %2026
    %2030 = vset.pattern.permute.xlu0 0
    %2031 = vperm.xlu0 %2030, %v1998
    %v2032 = vpop.permute.xlu0 %2031
    %2035 = vset.pattern.permute.xlu0 0
    %2036 = vperm.xlu0 %2035, %v1999
    %v2037 = vpop.permute.xlu0 %2036
    %2040 = vset.pattern.permute.xlu0 0
    %2041 = vperm.xlu0 %2040, %v2000
    %v2042 = vpop.permute.xlu0 %2041
    %2045 = vset.pattern.permute.xlu0 0
    %2046 = vperm.xlu0 %2045, %v2001
    %v2047 = vpop.permute.xlu0 %2046
    %2050 = vset.pattern.permute.xlu0 0
    %2051 = vperm.xlu0 %2050, %v2002
    %v2052 = vpop.permute.xlu0 %2051
    %2055 = vset.pattern.permute.xlu0 0
    %2056 = vperm.xlu0 %2055, %v2003
    %v2057 = vpop.permute.xlu0 %2056
    %2060 = vset.pattern.permute.xlu0 0
    %2061 = vperm.xlu0 %2060, %v2004
    %v2062 = vpop.permute.xlu0 %2061
    %2065 = vset.pattern.permute.xlu0 0
    %2066 = vperm.xlu0 %2065, %v2005
    %v2067 = vpop.permute.xlu0 %2066
    %2070 = vset.pattern.permute.xlu0 0
    %2071 = vperm.xlu0 %2070, %v2006
    %v2072 = vpop.permute.xlu0 %2071
    %2075 = vset.pattern.permute.xlu0 0
    %2076 = vperm.xlu0 %2075, %v2007
    %v2077 = vpop.permute.xlu0 %2076
    %2080 = vset.pattern.permute.xlu0 0
    %2081 = vperm.xlu0 %2080, %v2008
    %v2082 = vpop.permute.xlu0 %2081
    %v2084 = vmul.f32 %v1979, %v2012
    %v2085 = vmul.f32 %v1980, %v2017
    %v2086 = vmul.f32 %v1981, %v2022
    %v2087 = vmul.f32 %v1982, %v2027
    %v2088 = vmul.f32 %v1983, %v2032
    %v2089 = vmul.f32 %v1984, %v2037
    %v2090 = vmul.f32 %v1985, %v2042
    %v2091 = vmul.f32 %v1986, %v2047
    %v2092 = vmul.f32 %v1987, %v2052
    %v2093 = vmul.f32 %v1988, %v2057
    %v2094 = vmul.f32 %v1989, %v2062
    %v2095 = vmul.f32 %v1990, %v2067
    %v2096 = vmul.f32 %v1991, %v2072
    %v2097 = vmul.f32 %v1992, %v2077
    %v2098 = vmul.f32 %v1993, %v2082
    %2099 = vst [vmem:[#allocation2 + $0x270] sm:$0xff] %v2084
    %2100 = vst [vmem:[#allocation2 + $0x278] sm:$0xff] %v2085
    %2101 = vst [vmem:[#allocation2 + $0x280] sm:$0xff] %v2086
    %2102 = vst [vmem:[#allocation2 + $0x288] sm:$0xff] %v2087
    %2103 = vst [vmem:[#allocation2 + $0x290] sm:$0xff] %v2088
    %2104 = vst [vmem:[#allocation2 + $0x298] sm:$0xff] %v2089
    %2105 = vst [vmem:[#allocation2 + $0x2a0] sm:$0xff] %v2090
    %2106 = vst [vmem:[#allocation2 + $0x2a8] sm:$0xff] %v2091
    %2107 = vst [vmem:[#allocation2 + $0x2b0] sm:$0xff] %v2092
    %2108 = vst [vmem:[#allocation2 + $0x2b8] sm:$0xff] %v2093
    %2109 = vst [vmem:[#allocation2 + $0x2c0] sm:$0xff] %v2094
    %2110 = vst [vmem:[#allocation2 + $0x2c8] sm:$0xff] %v2095
    %2111 = vst [vmem:[#allocation2 + $0x2d0] sm:$0xff] %v2096
    %2112 = vst [vmem:[#allocation2 + $0x2d8] sm:$0xff] %v2097
    %2113 = vst [vmem:[#allocation2 + $0x2e0] sm:$0xff] %v2098
    %v2114 = vld [vmem:[#allocation2 + $0x3] sm:$0xff]
    %v2115 = vld [vmem:[#allocation2 + $0xb] sm:$0xff]
    %v2116 = vld [vmem:[#allocation2 + $0x13] sm:$0xff]
    %v2117 = vld [vmem:[#allocation2 + $0x1b] sm:$0xff]
    %v2118 = vld [vmem:[#allocation2 + $0x23] sm:$0xff]
    %v2119 = vld [vmem:[#allocation2 + $0x2b] sm:$0xff]
    %v2120 = vld [vmem:[#allocation2 + $0x33] sm:$0xff]
    %v2121 = vld [vmem:[#allocation2 + $0x3b] sm:$0xff]
    %v2122 = vld [vmem:[#allocation2 + $0x43] sm:$0xff]
    %v2123 = vld [vmem:[#allocation2 + $0x4b] sm:$0xff]
    %v2124 = vld [vmem:[#allocation2 + $0x53] sm:$0xff]
    %v2125 = vld [vmem:[#allocation2 + $0x5b] sm:$0xff]
    %v2126 = vld [vmem:[#allocation2 + $0x63] sm:$0xff]
    %v2127 = vld [vmem:[#allocation2 + $0x6b] sm:$0xff]
    %v2128 = vld [vmem:[#allocation2 + $0x73] sm:$0xff]
    %v2129 = vpack.c.bf16 %v2115, %v2114
    %v2130 = vpack.c.bf16 %v2117, %v2116
    %v2131 = vpack.c.bf16 %v2119, %v2118
    %v2132 = vpack.c.bf16 %v2121, %v2120
    %v2133 = vpack.c.bf16 %v2123, %v2122
    %v2134 = vpack.c.bf16 %v2125, %v2124
    %v2135 = vpack.c.bf16 %v2127, %v2126
    %v2136 = vpack.c.bf16 %v2128, %v2128
    %v2137 = vld [vmem:[%s4] sm:$0xf]
    %v2138 = vld [vmem:[%s4 + $0x4] sm:$0xf]
    %v2139 = vld [vmem:[%s4 + $0x8] sm:$0xf]
    %v2140 = vld [vmem:[%s4 + $0xc] sm:$0xf]
    %v2141 = vld [vmem:[%s4 + $0x10] sm:$0xf]
    %v2142 = vld [vmem:[%s4 + $0x14] sm:$0xf]
    %v2143 = vld [vmem:[%s4 + $0x18] sm:$0xf]
    %v2144 = vld [vmem:[%s4 + $0x1c] sm:$0xf]
    %v2145 = vld [vmem:[%s4 + $0x20] sm:$0xf]
    %v2146 = vld [vmem:[%s4 + $0x24] sm:$0xf]
    %v2147 = vld [vmem:[%s4 + $0x28] sm:$0xf]
    %v2148 = vld [vmem:[%s4 + $0x2c] sm:$0xf]
    %v2149 = vld [vmem:[%s4 + $0x30] sm:$0xf]
    %v2150 = vld [vmem:[%s4 + $0x34] sm:$0xf]
    %v2151 = vld [vmem:[%s4 + $0x38] sm:$0xf]
    %v2152 = vld [vmem:[%s4 + $0x3c] sm:$0xf]
    %v2153 = vld [vmem:[#allocation2 + $0x4] sm:$0xff]
    %v2154 = vld [vmem:[#allocation2 + $0xc] sm:$0xff]
    %v2155 = vld [vmem:[#allocation2 + $0x14] sm:$0xff]
    %v2156 = vld [vmem:[#allocation2 + $0x1c] sm:$0xff]
    %v2157 = vld [vmem:[#allocation2 + $0x24] sm:$0xff]
    %v2158 = vld [vmem:[#allocation2 + $0x2c] sm:$0xff]
    %v2159 = vld [vmem:[#allocation2 + $0x34] sm:$0xff]
    %v2160 = vld [vmem:[#allocation2 + $0x3c] sm:$0xff]
    %v2161 = vld [vmem:[#allocation2 + $0x44] sm:$0xff]
    %v2162 = vld [vmem:[#allocation2 + $0x4c] sm:$0xff]
    %v2163 = vld [vmem:[#allocation2 + $0x54] sm:$0xff]
    %v2164 = vld [vmem:[#allocation2 + $0x5c] sm:$0xff]
    %v2165 = vld [vmem:[#allocation2 + $0x64] sm:$0xff]
    %v2166 = vld [vmem:[#allocation2 + $0x6c] sm:$0xff]
    %v2167 = vld [vmem:[#allocation2 + $0x74] sm:$0xff]
    %v2168 = vpack.c.bf16 %v2154, %v2153
    %v2169 = vpack.c.bf16 %v2156, %v2155
    %v2170 = vpack.c.bf16 %v2158, %v2157
    %v2171 = vpack.c.bf16 %v2160, %v2159
    %v2172 = vpack.c.bf16 %v2162, %v2161
    %v2173 = vpack.c.bf16 %v2164, %v2163
    %v2174 = vpack.c.bf16 %v2166, %v2165
    %v2175 = vpack.c.bf16 %v2167, %v2167
    %v2176 = vld [vmem:[%s4 + $0x40] sm:$0xf]
    %v2177 = vld [vmem:[%s4 + $0x44] sm:$0xf]
    %v2178 = vld [vmem:[%s4 + $0x48] sm:$0xf]
    %v2179 = vld [vmem:[%s4 + $0x4c] sm:$0xf]
    %v2180 = vld [vmem:[%s4 + $0x50] sm:$0xf]
    %v2181 = vld [vmem:[%s4 + $0x54] sm:$0xf]
    %v2182 = vld [vmem:[%s4 + $0x58] sm:$0xf]
    %v2183 = vld [vmem:[%s4 + $0x5c] sm:$0xf]
    %v2184 = vld [vmem:[%s4 + $0x60] sm:$0xf]
    %v2185 = vld [vmem:[%s4 + $0x64] sm:$0xf]
    %v2186 = vld [vmem:[%s4 + $0x68] sm:$0xf]
    %v2187 = vld [vmem:[%s4 + $0x6c] sm:$0xf]
    %v2188 = vld [vmem:[%s4 + $0x70] sm:$0xf]
    %v2189 = vld [vmem:[%s4 + $0x74] sm:$0xf]
    %v2190 = vld [vmem:[%s4 + $0x78] sm:$0xf]
    %v2191 = vld [vmem:[%s4 + $0x7c] sm:$0xf]
    %v2208 = vunpack.c.l.b16 %v2176
    %v2209 = vunpack.c.l.b16 %v2177
    %v2210 = vunpack.c.l.b16 %v2178
    %v2211 = vunpack.c.l.b16 %v2179
    %v2212 = vunpack.c.l.b16 %v2180
    %v2213 = vunpack.c.l.b16 %v2181
    %v2214 = vunpack.c.l.b16 %v2182
    %v2215 = vunpack.c.l.b16 %v2183
    %v2216 = vunpack.c.l.b16 %v2184
    %v2217 = vunpack.c.l.b16 %v2185
    %v2218 = vunpack.c.l.b16 %v2186
    %v2219 = vunpack.c.l.b16 %v2187
    %v2220 = vunpack.c.l.b16 %v2188
    %v2221 = vunpack.c.l.b16 %v2189
    %v2222 = vunpack.c.l.b16 %v2190
    %v2223 = vunpack.c.l.b16 %v2191
    %v2224 = vpack.c.b16 %v2209, %v2208
    %v2225 = vpack.c.b16 %v2211, %v2210
    %v2226 = vpack.c.b16 %v2213, %v2212
    %v2227 = vpack.c.b16 %v2215, %v2214
    %v2228 = vpack.c.b16 %v2217, %v2216
    %v2229 = vpack.c.b16 %v2219, %v2218
    %v2230 = vpack.c.b16 %v2221, %v2220
    %v2231 = vpack.c.b16 %v2223, %v2222
    %2240 = vmatprep.subr.bf16.mxu0 0
    %2241 = vmatpush1.bf16.msra.mxu0 %v2231
    %2242 = vmatprep.subr.bf16.mxu0 0
    %2243 = vmatpush1.bf16.msra.mxu0 %v2230
    %2244 = vmatprep.subr.bf16.mxu0 0
    %2245 = vmatpush1.bf16.msra.mxu0 %v2229
    %2246 = vmatprep.subr.bf16.mxu0 0
    %2247 = vmatpush1.bf16.msra.mxu0 %v2228
    %2248 = vmatprep.subr.bf16.mxu0 0
    %2249 = vmatpush1.bf16.msra.mxu0 %v2227
    %2250 = vmatprep.subr.bf16.mxu0 0
    %2251 = vmatpush1.bf16.msra.mxu0 %v2226
    %2252 = vmatprep.subr.bf16.mxu0 0
    %2253 = vmatpush1.bf16.msra.mxu0 %v2225
    %2254 = vmatprep.subr.bf16.mxu0 0
    %2255 = vmatpush1.bf16.msra.mxu0 %v2224
    %2256 = vmatprep.subr.bf16.mxu0 0
    %2257 = vmatpush2.bf16.msra.mxu0 0
    %2258 = vmatprep.subr.bf16.mxu0 0
    %2259 = vmatpush2.bf16.msra.mxu0 0
    %2260 = vmatprep.subr.bf16.mxu0 0
    %2261 = vmatpush2.bf16.msra.mxu0 0
    %2262 = vmatprep.subr.bf16.mxu0 0
    %2263 = vmatpush2.bf16.msra.mxu0 0
    %2264 = vmatprep.subr.bf16.mxu0 0
    %2265 = vmatpush2.bf16.msra.mxu0 0
    %2266 = vmatprep.subr.bf16.mxu0 0
    %2267 = vmatpush2.bf16.msra.mxu0 0
    %2268 = vmatprep.subr.bf16.mxu0 0
    %2269 = vmatpush2.bf16.msra.mxu0 0
    %2270 = vmatprep.subr.bf16.mxu0 0
    %2271 = vmatpush2.bf16.msra.mxu0 0
    %2272 = vmatprep.mubr.bf16.mxu0 0
    %2273 = vmatmul.mubr.bf16.gmra.mxu0 %v2168
    %v2274 = vpop.f32.mrf.mxu0
    %v2275 = vadd.f32 0.0, %v2274
    %v2276 = vpop.f32.mrf.mxu0
    %v2277 = vpop.f32.mrf.mxu0
    %v2278 = vadd.f32 0.0, %v2277
    %v2279 = vpop.f32.mrf.mxu0
    %2280 = vmatprep.mubr.bf16.mxu0 0
    %2281 = vmatmul.mubr.bf16.gmra.mxu0 %v2169
    %v2282 = vpop.f32.mrf.mxu0
    %v2283 = vadd.f32 0.0, %v2282
    %v2284 = vpop.f32.mrf.mxu0
    %v2285 = vpop.f32.mrf.mxu0
    %v2286 = vadd.f32 0.0, %v2285
    %v2287 = vpop.f32.mrf.mxu0
    %2288 = vmatprep.mubr.bf16.mxu0 0
    %2289 = vmatmul.mubr.bf16.gmra.mxu0 %v2170
    %v2290 = vpop.f32.mrf.mxu0
    %v2291 = vadd.f32 0.0, %v2290
    %v2292 = vpop.f32.mrf.mxu0
    %v2293 = vpop.f32.mrf.mxu0
    %v2294 = vadd.f32 0.0, %v2293
    %v2295 = vpop.f32.mrf.mxu0
    %2296 = vmatprep.mubr.bf16.mxu0 0
    %2297 = vmatmul.mubr.bf16.gmra.mxu0 %v2171
    %v2298 = vpop.f32.mrf.mxu0
    %v2299 = vadd.f32 0.0, %v2298
    %v2300 = vpop.f32.mrf.mxu0
    %v2301 = vpop.f32.mrf.mxu0
    %v2302 = vadd.f32 0.0, %v2301
    %v2303 = vpop.f32.mrf.mxu0
    %2304 = vmatprep.mubr.bf16.mxu0 0
    %2305 = vmatmul.mubr.bf16.gmra.mxu0 %v2172
    %v2306 = vpop.f32.mrf.mxu0
    %v2307 = vadd.f32 0.0, %v2306
    %v2308 = vpop.f32.mrf.mxu0
    %v2309 = vpop.f32.mrf.mxu0
    %v2310 = vadd.f32 0.0, %v2309
    %v2311 = vpop.f32.mrf.mxu0
    %2312 = vmatprep.mubr.bf16.mxu0 0
    %2313 = vmatmul.mubr.bf16.gmra.mxu0 %v2173
    %v2314 = vpop.f32.mrf.mxu0
    %v2315 = vadd.f32 0.0, %v2314
    %v2316 = vpop.f32.mrf.mxu0
    %v2317 = vpop.f32.mrf.mxu0
    %v2318 = vadd.f32 0.0, %v2317
    %v2319 = vpop.f32.mrf.mxu0
    %2320 = vmatprep.mubr.bf16.mxu0 0
    %2321 = vmatmul.mubr.bf16.gmra.mxu0 %v2174
    %v2322 = vpop.f32.mrf.mxu0
    %v2323 = vadd.f32 0.0, %v2322
    %v2324 = vpop.f32.mrf.mxu0
    %v2325 = vpop.f32.mrf.mxu0
    %v2326 = vadd.f32 0.0, %v2325
    %v2327 = vpop.f32.mrf.mxu0
    %2328 = vmatprep.mubr.bf16.mxu0 0
    %2329 = vmatmul.mubr.bf16.gmra.mxu0 %v2175
    %v2330 = vpop.f32.mrf.mxu0
    %v2331 = vadd.f32 0.0, %v2330
    %v2332 = vpop.f32.mrf.mxu0
    %v2333 = vpop.f32.mrf.mxu0
    %v2334 = vpop.f32.mrf.mxu0
    %2335 = vdwg.mxu0
    %v2352 = vunpack.c.l.b16 %v2137
    %v2353 = vunpack.c.l.b16 %v2138
    %v2354 = vunpack.c.l.b16 %v2139
    %v2355 = vunpack.c.l.b16 %v2140
    %v2356 = vunpack.c.l.b16 %v2141
    %v2357 = vunpack.c.l.b16 %v2142
    %v2358 = vunpack.c.l.b16 %v2143
    %v2359 = vunpack.c.l.b16 %v2144
    %v2360 = vunpack.c.l.b16 %v2145
    %v2361 = vunpack.c.l.b16 %v2146
    %v2362 = vunpack.c.l.b16 %v2147
    %v2363 = vunpack.c.l.b16 %v2148
    %v2364 = vunpack.c.l.b16 %v2149
    %v2365 = vunpack.c.l.b16 %v2150
    %v2366 = vunpack.c.l.b16 %v2151
    %v2367 = vunpack.c.l.b16 %v2152
    %v2368 = vpack.c.b16 %v2353, %v2352
    %v2369 = vpack.c.b16 %v2355, %v2354
    %v2370 = vpack.c.b16 %v2357, %v2356
    %v2371 = vpack.c.b16 %v2359, %v2358
    %v2372 = vpack.c.b16 %v2361, %v2360
    %v2373 = vpack.c.b16 %v2363, %v2362
    %v2374 = vpack.c.b16 %v2365, %v2364
    %v2375 = vpack.c.b16 %v2367, %v2366
    %2384 = vmatprep.subr.bf16.mxu0 0
    %2385 = vmatpush1.bf16.msra.mxu0 %v2375
    %2386 = vmatprep.subr.bf16.mxu0 0
    %2387 = vmatpush1.bf16.msra.mxu0 %v2374
    %2388 = vmatprep.subr.bf16.mxu0 0
    %2389 = vmatpush1.bf16.msra.mxu0 %v2373
    %2390 = vmatprep.subr.bf16.mxu0 0
    %2391 = vmatpush1.bf16.msra.mxu0 %v2372
    %2392 = vmatprep.subr.bf16.mxu0 0
    %2393 = vmatpush1.bf16.msra.mxu0 %v2371
    %2394 = vmatprep.subr.bf16.mxu0 0
    %2395 = vmatpush1.bf16.msra.mxu0 %v2370
    %2396 = vmatprep.subr.bf16.mxu0 0
    %2397 = vmatpush1.bf16.msra.mxu0 %v2369
    %2398 = vmatprep.subr.bf16.mxu0 0
    %2399 = vmatpush1.bf16.msra.mxu0 %v2368
    %2400 = vmatprep.subr.bf16.mxu0 0
    %2401 = vmatpush2.bf16.msra.mxu0 0
    %2402 = vmatprep.subr.bf16.mxu0 0
    %2403 = vmatpush2.bf16.msra.mxu0 0
    %2404 = vmatprep.subr.bf16.mxu0 0
    %2405 = vmatpush2.bf16.msra.mxu0 0
    %2406 = vmatprep.subr.bf16.mxu0 0
    %2407 = vmatpush2.bf16.msra.mxu0 0
    %2408 = vmatprep.subr.bf16.mxu0 0
    %2409 = vmatpush2.bf16.msra.mxu0 0
    %2410 = vmatprep.subr.bf16.mxu0 0
    %2411 = vmatpush2.bf16.msra.mxu0 0
    %2412 = vmatprep.subr.bf16.mxu0 0
    %2413 = vmatpush2.bf16.msra.mxu0 0
    %2414 = vmatprep.subr.bf16.mxu0 0
    %2415 = vmatpush2.bf16.msra.mxu0 0
    %2416 = vmatprep.mubr.bf16.mxu0 0
    %2417 = vmatmul.mubr.bf16.gmra.mxu0 %v2129
    %v2418 = vpop.f32.mrf.mxu0
    %v2419 = vadd.f32 %v2275, %v2418
    %v2420 = vpop.f32.mrf.mxu0
    %v2421 = vpop.f32.mrf.mxu0
    %v2422 = vadd.f32 %v2278, %v2421
    %v2423 = vpop.f32.mrf.mxu0
    %2424 = vmatprep.mubr.bf16.mxu0 0
    %2425 = vmatmul.mubr.bf16.gmra.mxu0 %v2130
    %v2426 = vpop.f32.mrf.mxu0
    %v2427 = vadd.f32 %v2283, %v2426
    %v2428 = vpop.f32.mrf.mxu0
    %v2429 = vpop.f32.mrf.mxu0
    %v2430 = vadd.f32 %v2286, %v2429
    %v2431 = vpop.f32.mrf.mxu0
    %2432 = vmatprep.mubr.bf16.mxu0 0
    %2433 = vmatmul.mubr.bf16.gmra.mxu0 %v2131
    %v2434 = vpop.f32.mrf.mxu0
    %v2435 = vadd.f32 %v2291, %v2434
    %v2436 = vpop.f32.mrf.mxu0
    %v2437 = vpop.f32.mrf.mxu0
    %v2438 = vadd.f32 %v2294, %v2437
    %v2439 = vpop.f32.mrf.mxu0
    %2440 = vmatprep.mubr.bf16.mxu0 0
    %2441 = vmatmul.mubr.bf16.gmra.mxu0 %v2132
    %v2442 = vpop.f32.mrf.mxu0
    %v2443 = vadd.f32 %v2299, %v2442
    %v2444 = vpop.f32.mrf.mxu0
    %v2445 = vpop.f32.mrf.mxu0
    %v2446 = vadd.f32 %v2302, %v2445
    %v2447 = vpop.f32.mrf.mxu0
    %2448 = vmatprep.mubr.bf16.mxu0 0
    %2449 = vmatmul.mubr.bf16.gmra.mxu0 %v2133
    %v2450 = vpop.f32.mrf.mxu0
    %v2451 = vadd.f32 %v2307, %v2450
    %v2452 = vpop.f32.mrf.mxu0
    %v2453 = vpop.f32.mrf.mxu0
    %v2454 = vadd.f32 %v2310, %v2453
    %v2455 = vpop.f32.mrf.mxu0
    %2456 = vmatprep.mubr.bf16.mxu0 0
    %2457 = vmatmul.mubr.bf16.gmra.mxu0 %v2134
    %v2458 = vpop.f32.mrf.mxu0
    %v2459 = vadd.f32 %v2315, %v2458
    %v2460 = vpop.f32.mrf.mxu0
    %v2461 = vpop.f32.mrf.mxu0
    %v2462 = vadd.f32 %v2318, %v2461
    %v2463 = vpop.f32.mrf.mxu0
    %2464 = vmatprep.mubr.bf16.mxu0 0
    %2465 = vmatmul.mubr.bf16.gmra.mxu0 %v2135
    %v2466 = vpop.f32.mrf.mxu0
    %v2467 = vadd.f32 %v2323, %v2466
    %v2468 = vpop.f32.mrf.mxu0
    %v2469 = vpop.f32.mrf.mxu0
    %v2470 = vadd.f32 %v2326, %v2469
    %v2471 = vpop.f32.mrf.mxu0
    %2472 = vmatprep.mubr.bf16.mxu0 0
    %2473 = vmatmul.mubr.bf16.gmra.mxu0 %v2136
    %v2474 = vpop.f32.mrf.mxu0
    %v2475 = vadd.f32 %v2331, %v2474
    %v2476 = vpop.f32.mrf.mxu0
    %v2477 = vpop.f32.mrf.mxu0
    %v2478 = vpop.f32.mrf.mxu0
    %2479 = vdwg.mxu0
    %v2480 = vld [vmem:[#allocation2 + $0x5] sm:$0xff]
    %v2481 = vld [vmem:[#allocation2 + $0xd] sm:$0xff]
    %v2482 = vld [vmem:[#allocation2 + $0x15] sm:$0xff]
    %v2483 = vld [vmem:[#allocation2 + $0x1d] sm:$0xff]
    %v2484 = vld [vmem:[#allocation2 + $0x25] sm:$0xff]
    %v2485 = vld [vmem:[#allocation2 + $0x2d] sm:$0xff]
    %v2486 = vld [vmem:[#allocation2 + $0x35] sm:$0xff]
    %v2487 = vld [vmem:[#allocation2 + $0x3d] sm:$0xff]
    %v2488 = vld [vmem:[#allocation2 + $0x45] sm:$0xff]
    %v2489 = vld [vmem:[#allocation2 + $0x4d] sm:$0xff]
    %v2490 = vld [vmem:[#allocation2 + $0x55] sm:$0xff]
    %v2491 = vld [vmem:[#allocation2 + $0x5d] sm:$0xff]
    %v2492 = vld [vmem:[#allocation2 + $0x65] sm:$0xff]
    %v2493 = vld [vmem:[#allocation2 + $0x6d] sm:$0xff]
    %v2494 = vld [vmem:[#allocation2 + $0x75] sm:$0xff]
    %v2495 = vpack.c.bf16 %v2481, %v2480
    %v2496 = vpack.c.bf16 %v2483, %v2482
    %v2497 = vpack.c.bf16 %v2485, %v2484
    %v2498 = vpack.c.bf16 %v2487, %v2486
    %v2499 = vpack.c.bf16 %v2489, %v2488
    %v2500 = vpack.c.bf16 %v2491, %v2490
    %v2501 = vpack.c.bf16 %v2493, %v2492
    %v2502 = vpack.c.bf16 %v2494, %v2494
    %v2503 = vld [vmem:[%s4 + $0x80] sm:$0xf]
    %v2504 = vld [vmem:[%s4 + $0x84] sm:$0xf]
    %v2505 = vld [vmem:[%s4 + $0x88] sm:$0xf]
    %v2506 = vld [vmem:[%s4 + $0x8c] sm:$0xf]
    %v2507 = vld [vmem:[%s4 + $0x90] sm:$0xf]
    %v2508 = vld [vmem:[%s4 + $0x94] sm:$0xf]
    %v2509 = vld [vmem:[%s4 + $0x98] sm:$0xf]
    %v2510 = vld [vmem:[%s4 + $0x9c] sm:$0xf]
    %v2511 = vld [vmem:[%s4 + $0xa0] sm:$0xf]
    %v2512 = vld [vmem:[%s4 + $0xa4] sm:$0xf]
    %v2513 = vld [vmem:[%s4 + $0xa8] sm:$0xf]
    %v2514 = vld [vmem:[%s4 + $0xac] sm:$0xf]
    %v2515 = vld [vmem:[%s4 + $0xb0] sm:$0xf]
    %v2516 = vld [vmem:[%s4 + $0xb4] sm:$0xf]
    %v2517 = vld [vmem:[%s4 + $0xb8] sm:$0xf]
    %v2518 = vld [vmem:[%s4 + $0xbc] sm:$0xf]
    %v2535 = vunpack.c.l.b16 %v2503
    %v2536 = vunpack.c.l.b16 %v2504
    %v2537 = vunpack.c.l.b16 %v2505
    %v2538 = vunpack.c.l.b16 %v2506
    %v2539 = vunpack.c.l.b16 %v2507
    %v2540 = vunpack.c.l.b16 %v2508
    %v2541 = vunpack.c.l.b16 %v2509
    %v2542 = vunpack.c.l.b16 %v2510
    %v2543 = vunpack.c.l.b16 %v2511
    %v2544 = vunpack.c.l.b16 %v2512
    %v2545 = vunpack.c.l.b16 %v2513
    %v2546 = vunpack.c.l.b16 %v2514
    %v2547 = vunpack.c.l.b16 %v2515
    %v2548 = vunpack.c.l.b16 %v2516
    %v2549 = vunpack.c.l.b16 %v2517
    %v2550 = vunpack.c.l.b16 %v2518
    %v2551 = vpack.c.b16 %v2536, %v2535
    %v2552 = vpack.c.b16 %v2538, %v2537
    %v2553 = vpack.c.b16 %v2540, %v2539
    %v2554 = vpack.c.b16 %v2542, %v2541
    %v2555 = vpack.c.b16 %v2544, %v2543
    %v2556 = vpack.c.b16 %v2546, %v2545
    %v2557 = vpack.c.b16 %v2548, %v2547
    %v2558 = vpack.c.b16 %v2550, %v2549
    %2567 = vmatprep.subr.bf16.mxu0 0
    %2568 = vmatpush1.bf16.msra.mxu0 %v2558
    %2569 = vmatprep.subr.bf16.mxu0 0
    %2570 = vmatpush1.bf16.msra.mxu0 %v2557
    %2571 = vmatprep.subr.bf16.mxu0 0
    %2572 = vmatpush1.bf16.msra.mxu0 %v2556
    %2573 = vmatprep.subr.bf16.mxu0 0
    %2574 = vmatpush1.bf16.msra.mxu0 %v2555
    %2575 = vmatprep.subr.bf16.mxu0 0
    %2576 = vmatpush1.bf16.msra.mxu0 %v2554
    %2577 = vmatprep.subr.bf16.mxu0 0
    %2578 = vmatpush1.bf16.msra.mxu0 %v2553
    %2579 = vmatprep.subr.bf16.mxu0 0
    %2580 = vmatpush1.bf16.msra.mxu0 %v2552
    %2581 = vmatprep.subr.bf16.mxu0 0
    %2582 = vmatpush1.bf16.msra.mxu0 %v2551
    %2583 = vmatprep.subr.bf16.mxu0 0
    %2584 = vmatpush2.bf16.msra.mxu0 0
    %2585 = vmatprep.subr.bf16.mxu0 0
    %2586 = vmatpush2.bf16.msra.mxu0 0
    %2587 = vmatprep.subr.bf16.mxu0 0
    %2588 = vmatpush2.bf16.msra.mxu0 0
    %2589 = vmatprep.subr.bf16.mxu0 0
    %2590 = vmatpush2.bf16.msra.mxu0 0
    %2591 = vmatprep.subr.bf16.mxu0 0
    %2592 = vmatpush2.bf16.msra.mxu0 0
    %2593 = vmatprep.subr.bf16.mxu0 0
    %2594 = vmatpush2.bf16.msra.mxu0 0
    %2595 = vmatprep.subr.bf16.mxu0 0
    %2596 = vmatpush2.bf16.msra.mxu0 0
    %2597 = vmatprep.subr.bf16.mxu0 0
    %2598 = vmatpush2.bf16.msra.mxu0 0
    %2599 = vmatprep.mubr.bf16.mxu0 0
    %2600 = vmatmul.mubr.bf16.gmra.mxu0 %v2495
    %v2601 = vpop.f32.mrf.mxu0
    %v2602 = vadd.f32 0.0, %v2601
    %v2603 = vpop.f32.mrf.mxu0
    %v2604 = vpop.f32.mrf.mxu0
    %v2605 = vadd.f32 0.0, %v2604
    %v2606 = vpop.f32.mrf.mxu0
    %2607 = vmatprep.mubr.bf16.mxu0 0
    %2608 = vmatmul.mubr.bf16.gmra.mxu0 %v2496
    %v2609 = vpop.f32.mrf.mxu0
    %v2610 = vadd.f32 0.0, %v2609
    %v2611 = vpop.f32.mrf.mxu0
    %v2612 = vpop.f32.mrf.mxu0
    %v2613 = vadd.f32 0.0, %v2612
    %v2614 = vpop.f32.mrf.mxu0
    %2615 = vmatprep.mubr.bf16.mxu0 0
    %2616 = vmatmul.mubr.bf16.gmra.mxu0 %v2497
    %v2617 = vpop.f32.mrf.mxu0
    %v2618 = vadd.f32 0.0, %v2617
    %v2619 = vpop.f32.mrf.mxu0
    %v2620 = vpop.f32.mrf.mxu0
    %v2621 = vadd.f32 0.0, %v2620
    %v2622 = vpop.f32.mrf.mxu0
    %2623 = vmatprep.mubr.bf16.mxu0 0
    %2624 = vmatmul.mubr.bf16.gmra.mxu0 %v2498
    %v2625 = vpop.f32.mrf.mxu0
    %v2626 = vadd.f32 0.0, %v2625
    %v2627 = vpop.f32.mrf.mxu0
    %v2628 = vpop.f32.mrf.mxu0
    %v2629 = vadd.f32 0.0, %v2628
    %v2630 = vpop.f32.mrf.mxu0
    %2631 = vmatprep.mubr.bf16.mxu0 0
    %2632 = vmatmul.mubr.bf16.gmra.mxu0 %v2499
    %v2633 = vpop.f32.mrf.mxu0
    %v2634 = vadd.f32 0.0, %v2633
    %v2635 = vpop.f32.mrf.mxu0
    %v2636 = vpop.f32.mrf.mxu0
    %v2637 = vadd.f32 0.0, %v2636
    %v2638 = vpop.f32.mrf.mxu0
    %2639 = vmatprep.mubr.bf16.mxu0 0
    %2640 = vmatmul.mubr.bf16.gmra.mxu0 %v2500
    %v2641 = vpop.f32.mrf.mxu0
    %v2642 = vadd.f32 0.0, %v2641
    %v2643 = vpop.f32.mrf.mxu0
    %v2644 = vpop.f32.mrf.mxu0
    %v2645 = vadd.f32 0.0, %v2644
    %v2646 = vpop.f32.mrf.mxu0
    %2647 = vmatprep.mubr.bf16.mxu0 0
    %2648 = vmatmul.mubr.bf16.gmra.mxu0 %v2501
    %v2649 = vpop.f32.mrf.mxu0
    %v2650 = vadd.f32 0.0, %v2649
    %v2651 = vpop.f32.mrf.mxu0
    %v2652 = vpop.f32.mrf.mxu0
    %v2653 = vadd.f32 0.0, %v2652
    %v2654 = vpop.f32.mrf.mxu0
    %2655 = vmatprep.mubr.bf16.mxu0 0
    %2656 = vmatmul.mubr.bf16.gmra.mxu0 %v2502
    %v2657 = vpop.f32.mrf.mxu0
    %v2658 = vadd.f32 0.0, %v2657
    %v2659 = vpop.f32.mrf.mxu0
    %v2660 = vpop.f32.mrf.mxu0
    %v2661 = vpop.f32.mrf.mxu0
    %2662 = vdwg.mxu0
    %v2663 = vadd.f32 %v2419, %v2602
    %v2664 = vadd.f32 %v2422, %v2605
    %v2665 = vadd.f32 %v2427, %v2610
    %v2666 = vadd.f32 %v2430, %v2613
    %v2667 = vadd.f32 %v2435, %v2618
    %v2668 = vadd.f32 %v2438, %v2621
    %v2669 = vadd.f32 %v2443, %v2626
    %v2670 = vadd.f32 %v2446, %v2629
    %v2671 = vadd.f32 %v2451, %v2634
    %v2672 = vadd.f32 %v2454, %v2637
    %v2673 = vadd.f32 %v2459, %v2642
    %v2674 = vadd.f32 %v2462, %v2645
    %v2675 = vadd.f32 %v2467, %v2650
    %v2676 = vadd.f32 %v2470, %v2653
    %v2677 = vadd.f32 %v2475, %v2658
    %v2678 = vld [vmem:[#allocation2 + $0x17] sm:$0xff]
    %v2679 = vld [vmem:[#allocation2 + $0x1f] sm:$0xff]
    %v2680 = vld [vmem:[#allocation2 + $0x27] sm:$0xff]
    %v2681 = vld [vmem:[#allocation2 + $0x2f] sm:$0xff]
    %v2682 = vld [vmem:[#allocation2 + $0x37] sm:$0xff]
    %v2683 = vld [vmem:[#allocation2 + $0x3f] sm:$0xff]
    %v2684 = vld [vmem:[#allocation2 + $0x47] sm:$0xff]
    %v2685 = vld [vmem:[#allocation2 + $0x4f] sm:$0xff]
    %v2686 = vld [vmem:[#allocation2 + $0x57] sm:$0xff]
    %v2687 = vld [vmem:[#allocation2 + $0x5f] sm:$0xff]
    %v2688 = vld [vmem:[#allocation2 + $0x67] sm:$0xff]
    %v2689 = vld [vmem:[#allocation2 + $0x6f] sm:$0xff]
    %v2690 = vld [vmem:[#allocation2 + $0x77] sm:$0xff]
    %v2691 = vld [vmem:[#allocation2 + $0x7f] sm:$0xff]
    %v2692 = vld [vmem:[#allocation2 + $0x87] sm:$0xff]
    %v2693 = vpack.c.bf16 %v2679, %v2678
    %v2694 = vpack.c.bf16 %v2681, %v2680
    %v2695 = vpack.c.bf16 %v2683, %v2682
    %v2696 = vpack.c.bf16 %v2685, %v2684
    %v2697 = vpack.c.bf16 %v2687, %v2686
    %v2698 = vpack.c.bf16 %v2689, %v2688
    %v2699 = vpack.c.bf16 %v2691, %v2690
    %v2700 = vpack.c.bf16 %v2692, %v2692
    %v2701 = vld [vmem:[%s4 + $0xc0] sm:$0xf]
    %v2702 = vld [vmem:[%s4 + $0xc4] sm:$0xf]
    %v2703 = vld [vmem:[%s4 + $0xc8] sm:$0xf]
    %v2704 = vld [vmem:[%s4 + $0xcc] sm:$0xf]
    %v2705 = vld [vmem:[%s4 + $0xd0] sm:$0xf]
    %v2706 = vld [vmem:[%s4 + $0xd4] sm:$0xf]
    %v2707 = vld [vmem:[%s4 + $0xd8] sm:$0xf]
    %v2708 = vld [vmem:[%s4 + $0xdc] sm:$0xf]
    %v2709 = vld [vmem:[%s4 + $0xe0] sm:$0xf]
    %v2710 = vld [vmem:[%s4 + $0xe4] sm:$0xf]
    %v2711 = vld [vmem:[%s4 + $0xe8] sm:$0xf]
    %v2712 = vld [vmem:[%s4 + $0xec] sm:$0xf]
    %v2713 = vld [vmem:[%s4 + $0xf0] sm:$0xf]
    %v2714 = vld [vmem:[%s4 + $0xf4] sm:$0xf]
    %v2715 = vld [vmem:[%s4 + $0xf8] sm:$0xf]
    %v2716 = vld [vmem:[%s4 + $0xfc] sm:$0xf]
    %v2733 = vunpack.c.l.b16 %v2701
    %v2734 = vunpack.c.l.b16 %v2702
    %v2735 = vunpack.c.l.b16 %v2703
    %v2736 = vunpack.c.l.b16 %v2704
    %v2737 = vunpack.c.l.b16 %v2705
    %v2738 = vunpack.c.l.b16 %v2706
    %v2739 = vunpack.c.l.b16 %v2707
    %v2740 = vunpack.c.l.b16 %v2708
    %v2741 = vunpack.c.l.b16 %v2709
    %v2742 = vunpack.c.l.b16 %v2710
    %v2743 = vunpack.c.l.b16 %v2711
    %v2744 = vunpack.c.l.b16 %v2712
    %v2745 = vunpack.c.l.b16 %v2713
    %v2746 = vunpack.c.l.b16 %v2714
    %v2747 = vunpack.c.l.b16 %v2715
    %v2748 = vunpack.c.l.b16 %v2716
    %v2749 = vpack.c.b16 %v2734, %v2733
    %v2750 = vpack.c.b16 %v2736, %v2735
    %v2751 = vpack.c.b16 %v2738, %v2737
    %v2752 = vpack.c.b16 %v2740, %v2739
    %v2753 = vpack.c.b16 %v2742, %v2741
    %v2754 = vpack.c.b16 %v2744, %v2743
    %v2755 = vpack.c.b16 %v2746, %v2745
    %v2756 = vpack.c.b16 %v2748, %v2747
    %2765 = vmatprep.subr.bf16.mxu0 0
    %2766 = vmatpush1.bf16.msra.mxu0 %v2756
    %2767 = vmatprep.subr.bf16.mxu0 0
    %2768 = vmatpush1.bf16.msra.mxu0 %v2755
    %2769 = vmatprep.subr.bf16.mxu0 0
    %2770 = vmatpush1.bf16.msra.mxu0 %v2754
    %2771 = vmatprep.subr.bf16.mxu0 0
    %2772 = vmatpush1.bf16.msra.mxu0 %v2753
    %2773 = vmatprep.subr.bf16.mxu0 0
    %2774 = vmatpush1.bf16.msra.mxu0 %v2752
    %2775 = vmatprep.subr.bf16.mxu0 0
    %2776 = vmatpush1.bf16.msra.mxu0 %v2751
    %2777 = vmatprep.subr.bf16.mxu0 0
    %2778 = vmatpush1.bf16.msra.mxu0 %v2750
    %2779 = vmatprep.subr.bf16.mxu0 0
    %2780 = vmatpush1.bf16.msra.mxu0 %v2749
    %2781 = vmatprep.subr.bf16.mxu0 0
    %2782 = vmatpush2.bf16.msra.mxu0 0
    %2783 = vmatprep.subr.bf16.mxu0 0
    %2784 = vmatpush2.bf16.msra.mxu0 0
    %2785 = vmatprep.subr.bf16.mxu0 0
    %2786 = vmatpush2.bf16.msra.mxu0 0
    %2787 = vmatprep.subr.bf16.mxu0 0
    %2788 = vmatpush2.bf16.msra.mxu0 0
    %2789 = vmatprep.subr.bf16.mxu0 0
    %2790 = vmatpush2.bf16.msra.mxu0 0
    %2791 = vmatprep.subr.bf16.mxu0 0
    %2792 = vmatpush2.bf16.msra.mxu0 0
    %2793 = vmatprep.subr.bf16.mxu0 0
    %2794 = vmatpush2.bf16.msra.mxu0 0
    %2795 = vmatprep.subr.bf16.mxu0 0
    %2796 = vmatpush2.bf16.msra.mxu0 0
    %2797 = vmatprep.mubr.bf16.mxu0 0
    %2798 = vmatmul.mubr.bf16.gmra.mxu0 %v2693
    %v2799 = vpop.f32.mrf.mxu0
    %v2800 = vadd.f32 0.0, %v2799
    %v2801 = vpop.f32.mrf.mxu0
    %v2802 = vpop.f32.mrf.mxu0
    %v2803 = vadd.f32 0.0, %v2802
    %v2804 = vpop.f32.mrf.mxu0
    %2805 = vmatprep.mubr.bf16.mxu0 0
    %2806 = vmatmul.mubr.bf16.gmra.mxu0 %v2694
    %v2807 = vpop.f32.mrf.mxu0
    %v2808 = vadd.f32 0.0, %v2807
    %v2809 = vpop.f32.mrf.mxu0
    %v2810 = vpop.f32.mrf.mxu0
    %v2811 = vadd.f32 0.0, %v2810
    %v2812 = vpop.f32.mrf.mxu0
    %2813 = vmatprep.mubr.bf16.mxu0 0
    %2814 = vmatmul.mubr.bf16.gmra.mxu0 %v2695
    %v2815 = vpop.f32.mrf.mxu0
    %v2816 = vadd.f32 0.0, %v2815
    %v2817 = vpop.f32.mrf.mxu0
    %v2818 = vpop.f32.mrf.mxu0
    %v2819 = vadd.f32 0.0, %v2818
    %v2820 = vpop.f32.mrf.mxu0
    %2821 = vmatprep.mubr.bf16.mxu0 0
    %2822 = vmatmul.mubr.bf16.gmra.mxu0 %v2696
    %v2823 = vpop.f32.mrf.mxu0
    %v2824 = vadd.f32 0.0, %v2823
    %v2825 = vpop.f32.mrf.mxu0
    %v2826 = vpop.f32.mrf.mxu0
    %v2827 = vadd.f32 0.0, %v2826
    %v2828 = vpop.f32.mrf.mxu0
    %2829 = vmatprep.mubr.bf16.mxu0 0
    %2830 = vmatmul.mubr.bf16.gmra.mxu0 %v2697
    %v2831 = vpop.f32.mrf.mxu0
    %v2832 = vadd.f32 0.0, %v2831
    %v2833 = vpop.f32.mrf.mxu0
    %v2834 = vpop.f32.mrf.mxu0
    %v2835 = vadd.f32 0.0, %v2834
    %v2836 = vpop.f32.mrf.mxu0
    %2837 = vmatprep.mubr.bf16.mxu0 0
    %2838 = vmatmul.mubr.bf16.gmra.mxu0 %v2698
    %v2839 = vpop.f32.mrf.mxu0
    %v2840 = vadd.f32 0.0, %v2839
    %v2841 = vpop.f32.mrf.mxu0
    %v2842 = vpop.f32.mrf.mxu0
    %v2843 = vadd.f32 0.0, %v2842
    %v2844 = vpop.f32.mrf.mxu0
    %2845 = vmatprep.mubr.bf16.mxu0 0
    %2846 = vmatmul.mubr.bf16.gmra.mxu0 %v2699
    %v2847 = vpop.f32.mrf.mxu0
    %v2848 = vadd.f32 0.0, %v2847
    %v2849 = vpop.f32.mrf.mxu0
    %v2850 = vpop.f32.mrf.mxu0
    %v2851 = vadd.f32 0.0, %v2850
    %v2852 = vpop.f32.mrf.mxu0
    %2853 = vmatprep.mubr.bf16.mxu0 0
    %2854 = vmatmul.mubr.bf16.gmra.mxu0 %v2700
    %v2855 = vpop.f32.mrf.mxu0
    %v2856 = vadd.f32 0.0, %v2855
    %v2857 = vpop.f32.mrf.mxu0
    %v2858 = vpop.f32.mrf.mxu0
    %v2859 = vpop.f32.mrf.mxu0
    %2860 = vdwg.mxu0
    %v2861 = vadd.f32 %v2663, %v2800
    %v2862 = vadd.f32 %v2664, %v2803
    %v2863 = vadd.f32 %v2665, %v2808
    %v2864 = vadd.f32 %v2666, %v2811
    %v2865 = vadd.f32 %v2667, %v2816
    %v2866 = vadd.f32 %v2668, %v2819
    %v2867 = vadd.f32 %v2669, %v2824
    %v2868 = vadd.f32 %v2670, %v2827
    %v2869 = vadd.f32 %v2671, %v2832
    %v2870 = vadd.f32 %v2672, %v2835
    %v2871 = vadd.f32 %v2673, %v2840
    %v2872 = vadd.f32 %v2674, %v2843
    %v2873 = vadd.f32 %v2675, %v2848
    %v2874 = vadd.f32 %v2676, %v2851
    %v2875 = vadd.f32 %v2677, %v2856
    %v2876 = vld [vmem:[#allocation2 + $0x18] sm:$0xff]
    %v2877 = vld [vmem:[#allocation2 + $0x20] sm:$0xff]
    %v2878 = vld [vmem:[#allocation2 + $0x28] sm:$0xff]
    %v2879 = vld [vmem:[#allocation2 + $0x30] sm:$0xff]
    %v2880 = vld [vmem:[#allocation2 + $0x38] sm:$0xff]
    %v2881 = vld [vmem:[#allocation2 + $0x40] sm:$0xff]
    %v2882 = vld [vmem:[#allocation2 + $0x48] sm:$0xff]
    %v2883 = vld [vmem:[#allocation2 + $0x50] sm:$0xff]
    %v2884 = vld [vmem:[#allocation2 + $0x58] sm:$0xff]
    %v2885 = vld [vmem:[#allocation2 + $0x60] sm:$0xff]
    %v2886 = vld [vmem:[#allocation2 + $0x68] sm:$0xff]
    %v2887 = vld [vmem:[#allocation2 + $0x70] sm:$0xff]
    %v2888 = vld [vmem:[#allocation2 + $0x78] sm:$0xff]
    %v2889 = vld [vmem:[#allocation2 + $0x80] sm:$0xff]
    %v2890 = vld [vmem:[#allocation2 + $0x88] sm:$0xff]
    %v2891 = vpack.c.bf16 %v2877, %v2876
    %v2892 = vpack.c.bf16 %v2879, %v2878
    %v2893 = vpack.c.bf16 %v2881, %v2880
    %v2894 = vpack.c.bf16 %v2883, %v2882
    %v2895 = vpack.c.bf16 %v2885, %v2884
    %v2896 = vpack.c.bf16 %v2887, %v2886
    %v2897 = vpack.c.bf16 %v2889, %v2888
    %v2898 = vpack.c.bf16 %v2890, %v2890
    %v2899 = vld [vmem:[%s4 + $0x100] sm:$0xf]
    %v2900 = vld [vmem:[%s4 + $0x104] sm:$0xf]
    %v2901 = vld [vmem:[%s4 + $0x108] sm:$0xf]
    %v2902 = vld [vmem:[%s4 + $0x10c] sm:$0xf]
    %v2903 = vld [vmem:[%s4 + $0x110] sm:$0xf]
    %v2904 = vld [vmem:[%s4 + $0x114] sm:$0xf]
    %v2905 = vld [vmem:[%s4 + $0x118] sm:$0xf]
    %v2906 = vld [vmem:[%s4 + $0x11c] sm:$0xf]
    %v2907 = vld [vmem:[%s4 + $0x120] sm:$0xf]
    %v2908 = vld [vmem:[%s4 + $0x124] sm:$0xf]
    %v2909 = vld [vmem:[%s4 + $0x128] sm:$0xf]
    %v2910 = vld [vmem:[%s4 + $0x12c] sm:$0xf]
    %v2911 = vld [vmem:[%s4 + $0x130] sm:$0xf]
    %v2912 = vld [vmem:[%s4 + $0x134] sm:$0xf]
    %v2913 = vld [vmem:[%s4 + $0x138] sm:$0xf]
    %v2914 = vld [vmem:[%s4 + $0x13c] sm:$0xf]
    %v2931 = vunpack.c.l.b16 %v2899
    %v2932 = vunpack.c.l.b16 %v2900
    %v2933 = vunpack.c.l.b16 %v2901
    %v2934 = vunpack.c.l.b16 %v2902
    %v2935 = vunpack.c.l.b16 %v2903
    %v2936 = vunpack.c.l.b16 %v2904
    %v2937 = vunpack.c.l.b16 %v2905
    %v2938 = vunpack.c.l.b16 %v2906
    %v2939 = vunpack.c.l.b16 %v2907
    %v2940 = vunpack.c.l.b16 %v2908
    %v2941 = vunpack.c.l.b16 %v2909
    %v2942 = vunpack.c.l.b16 %v2910
    %v2943 = vunpack.c.l.b16 %v2911
    %v2944 = vunpack.c.l.b16 %v2912
    %v2945 = vunpack.c.l.b16 %v2913
    %v2946 = vunpack.c.l.b16 %v2914
    %v2947 = vpack.c.b16 %v2932, %v2931
    %v2948 = vpack.c.b16 %v2934, %v2933
    %v2949 = vpack.c.b16 %v2936, %v2935
    %v2950 = vpack.c.b16 %v2938, %v2937
    %v2951 = vpack.c.b16 %v2940, %v2939
    %v2952 = vpack.c.b16 %v2942, %v2941
    %v2953 = vpack.c.b16 %v2944, %v2943
    %v2954 = vpack.c.b16 %v2946, %v2945
    %2963 = vmatprep.subr.bf16.mxu0 0
    %2964 = vmatpush1.bf16.msra.mxu0 %v2954
    %2965 = vmatprep.subr.bf16.mxu0 0
    %2966 = vmatpush1.bf16.msra.mxu0 %v2953
    %2967 = vmatprep.subr.bf16.mxu0 0
    %2968 = vmatpush1.bf16.msra.mxu0 %v2952
    %2969 = vmatprep.subr.bf16.mxu0 0
    %2970 = vmatpush1.bf16.msra.mxu0 %v2951
    %2971 = vmatprep.subr.bf16.mxu0 0
    %2972 = vmatpush1.bf16.msra.mxu0 %v2950
    %2973 = vmatprep.subr.bf16.mxu0 0
    %2974 = vmatpush1.bf16.msra.mxu0 %v2949
    %2975 = vmatprep.subr.bf16.mxu0 0
    %2976 = vmatpush1.bf16.msra.mxu0 %v2948
    %2977 = vmatprep.subr.bf16.mxu0 0
    %2978 = vmatpush1.bf16.msra.mxu0 %v2947
    %2979 = vmatprep.subr.bf16.mxu0 0
    %2980 = vmatpush2.bf16.msra.mxu0 0
    %2981 = vmatprep.subr.bf16.mxu0 0
    %2982 = vmatpush2.bf16.msra.mxu0 0
    %2983 = vmatprep.subr.bf16.mxu0 0
    %2984 = vmatpush2.bf16.msra.mxu0 0
    %2985 = vmatprep.subr.bf16.mxu0 0
    %2986 = vmatpush2.bf16.msra.mxu0 0
    %2987 = vmatprep.subr.bf16.mxu0 0
    %2988 = vmatpush2.bf16.msra.mxu0 0
    %2989 = vmatprep.subr.bf16.mxu0 0
    %2990 = vmatpush2.bf16.msra.mxu0 0
    %2991 = vmatprep.subr.bf16.mxu0 0
    %2992 = vmatpush2.bf16.msra.mxu0 0
    %2993 = vmatprep.subr.bf16.mxu0 0
    %2994 = vmatpush2.bf16.msra.mxu0 0
    %2995 = vmatprep.mubr.bf16.mxu0 0
    %2996 = vmatmul.mubr.bf16.gmra.mxu0 %v2891
    %v2997 = vpop.f32.mrf.mxu0
    %v2998 = vadd.f32 0.0, %v2997
    %v2999 = vpop.f32.mrf.mxu0
    %v3000 = vpop.f32.mrf.mxu0
    %v3001 = vadd.f32 0.0, %v3000
    %v3002 = vpop.f32.mrf.mxu0
    %3003 = vmatprep.mubr.bf16.mxu0 0
    %3004 = vmatmul.mubr.bf16.gmra.mxu0 %v2892
    %v3005 = vpop.f32.mrf.mxu0
    %v3006 = vadd.f32 0.0, %v3005
    %v3007 = vpop.f32.mrf.mxu0
    %v3008 = vpop.f32.mrf.mxu0
    %v3009 = vadd.f32 0.0, %v3008
    %v3010 = vpop.f32.mrf.mxu0
    %3011 = vmatprep.mubr.bf16.mxu0 0
    %3012 = vmatmul.mubr.bf16.gmra.mxu0 %v2893
    %v3013 = vpop.f32.mrf.mxu0
    %v3014 = vadd.f32 0.0, %v3013
    %v3015 = vpop.f32.mrf.mxu0
    %v3016 = vpop.f32.mrf.mxu0
    %v3017 = vadd.f32 0.0, %v3016
    %v3018 = vpop.f32.mrf.mxu0
    %3019 = vmatprep.mubr.bf16.mxu0 0
    %3020 = vmatmul.mubr.bf16.gmra.mxu0 %v2894
    %v3021 = vpop.f32.mrf.mxu0
    %v3022 = vadd.f32 0.0, %v3021
    %v3023 = vpop.f32.mrf.mxu0
    %v3024 = vpop.f32.mrf.mxu0
    %v3025 = vadd.f32 0.0, %v3024
    %v3026 = vpop.f32.mrf.mxu0
    %3027 = vmatprep.mubr.bf16.mxu0 0
    %3028 = vmatmul.mubr.bf16.gmra.mxu0 %v2895
    %v3029 = vpop.f32.mrf.mxu0
    %v3030 = vadd.f32 0.0, %v3029
    %v3031 = vpop.f32.mrf.mxu0
    %v3032 = vpop.f32.mrf.mxu0
    %v3033 = vadd.f32 0.0, %v3032
    %v3034 = vpop.f32.mrf.mxu0
    %3035 = vmatprep.mubr.bf16.mxu0 0
    %3036 = vmatmul.mubr.bf16.gmra.mxu0 %v2896
    %v3037 = vpop.f32.mrf.mxu0
    %v3038 = vadd.f32 0.0, %v3037
    %v3039 = vpop.f32.mrf.mxu0
    %v3040 = vpop.f32.mrf.mxu0
    %v3041 = vadd.f32 0.0, %v3040
    %v3042 = vpop.f32.mrf.mxu0
    %3043 = vmatprep.mubr.bf16.mxu0 0
    %3044 = vmatmul.mubr.bf16.gmra.mxu0 %v2897
    %v3045 = vpop.f32.mrf.mxu0
    %v3046 = vadd.f32 0.0, %v3045
    %v3047 = vpop.f32.mrf.mxu0
    %v3048 = vpop.f32.mrf.mxu0
    %v3049 = vadd.f32 0.0, %v3048
    %v3050 = vpop.f32.mrf.mxu0
    %3051 = vmatprep.mubr.bf16.mxu0 0
    %3052 = vmatmul.mubr.bf16.gmra.mxu0 %v2898
    %v3053 = vpop.f32.mrf.mxu0
    %v3054 = vadd.f32 0.0, %v3053
    %v3055 = vpop.f32.mrf.mxu0
    %v3056 = vpop.f32.mrf.mxu0
    %v3057 = vpop.f32.mrf.mxu0
    %3058 = vdwg.mxu0
    %v3059 = vadd.f32 %v2861, %v2998
    %v3060 = vadd.f32 %v2862, %v3001
    %v3061 = vadd.f32 %v2863, %v3006
    %v3062 = vadd.f32 %v2864, %v3009
    %v3063 = vadd.f32 %v2865, %v3014
    %v3064 = vadd.f32 %v2866, %v3017
    %v3065 = vadd.f32 %v2867, %v3022
    %v3066 = vadd.f32 %v2868, %v3025
    %v3067 = vadd.f32 %v2869, %v3030
    %v3068 = vadd.f32 %v2870, %v3033
    %v3069 = vadd.f32 %v2871, %v3038
    %v3070 = vadd.f32 %v2872, %v3041
    %v3071 = vadd.f32 %v2873, %v3046
    %v3072 = vadd.f32 %v2874, %v3049
    %v3073 = vadd.f32 %v2875, %v3054
    %v3074 = vld [vmem:[#allocation2 + $0x19] sm:$0xff]
    %v3075 = vld [vmem:[#allocation2 + $0x21] sm:$0xff]
    %v3076 = vld [vmem:[#allocation2 + $0x29] sm:$0xff]
    %v3077 = vld [vmem:[#allocation2 + $0x31] sm:$0xff]
    %v3078 = vld [vmem:[#allocation2 + $0x39] sm:$0xff]
    %v3079 = vld [vmem:[#allocation2 + $0x41] sm:$0xff]
    %v3080 = vld [vmem:[#allocation2 + $0x49] sm:$0xff]
    %v3081 = vld [vmem:[#allocation2 + $0x51] sm:$0xff]
    %v3082 = vld [vmem:[#allocation2 + $0x59] sm:$0xff]
    %v3083 = vld [vmem:[#allocation2 + $0x61] sm:$0xff]
    %v3084 = vld [vmem:[#allocation2 + $0x69] sm:$0xff]
    %v3085 = vld [vmem:[#allocation2 + $0x71] sm:$0xff]
    %v3086 = vld [vmem:[#allocation2 + $0x79] sm:$0xff]
    %v3087 = vld [vmem:[#allocation2 + $0x81] sm:$0xff]
    %v3088 = vld [vmem:[#allocation2 + $0x89] sm:$0xff]
    %v3089 = vpack.c.bf16 %v3075, %v3074
    %v3090 = vpack.c.bf16 %v3077, %v3076
    %v3091 = vpack.c.bf16 %v3079, %v3078
    %v3092 = vpack.c.bf16 %v3081, %v3080
    %v3093 = vpack.c.bf16 %v3083, %v3082
    %v3094 = vpack.c.bf16 %v3085, %v3084
    %v3095 = vpack.c.bf16 %v3087, %v3086
    %v3096 = vpack.c.bf16 %v3088, %v3088
    %v3097 = vld [vmem:[%s4 + $0x140] sm:$0xf]
    %v3098 = vld [vmem:[%s4 + $0x144] sm:$0xf]
    %v3099 = vld [vmem:[%s4 + $0x148] sm:$0xf]
    %v3100 = vld [vmem:[%s4 + $0x14c] sm:$0xf]
    %v3101 = vld [vmem:[%s4 + $0x150] sm:$0xf]
    %v3102 = vld [vmem:[%s4 + $0x154] sm:$0xf]
    %v3103 = vld [vmem:[%s4 + $0x158] sm:$0xf]
    %v3104 = vld [vmem:[%s4 + $0x15c] sm:$0xf]
    %v3105 = vld [vmem:[%s4 + $0x160] sm:$0xf]
    %v3106 = vld [vmem:[%s4 + $0x164] sm:$0xf]
    %v3107 = vld [vmem:[%s4 + $0x168] sm:$0xf]
    %v3108 = vld [vmem:[%s4 + $0x16c] sm:$0xf]
    %v3109 = vld [vmem:[%s4 + $0x170] sm:$0xf]
    %v3110 = vld [vmem:[%s4 + $0x174] sm:$0xf]
    %v3111 = vld [vmem:[%s4 + $0x178] sm:$0xf]
    %v3112 = vld [vmem:[%s4 + $0x17c] sm:$0xf]
    %v3129 = vunpack.c.l.b16 %v3097
    %v3130 = vunpack.c.l.b16 %v3098
    %v3131 = vunpack.c.l.b16 %v3099
    %v3132 = vunpack.c.l.b16 %v3100
    %v3133 = vunpack.c.l.b16 %v3101
    %v3134 = vunpack.c.l.b16 %v3102
    %v3135 = vunpack.c.l.b16 %v3103
    %v3136 = vunpack.c.l.b16 %v3104
    %v3137 = vunpack.c.l.b16 %v3105
    %v3138 = vunpack.c.l.b16 %v3106
    %v3139 = vunpack.c.l.b16 %v3107
    %v3140 = vunpack.c.l.b16 %v3108
    %v3141 = vunpack.c.l.b16 %v3109
    %v3142 = vunpack.c.l.b16 %v3110
    %v3143 = vunpack.c.l.b16 %v3111
    %v3144 = vunpack.c.l.b16 %v3112
    %v3145 = vpack.c.b16 %v3130, %v3129
    %v3146 = vpack.c.b16 %v3132, %v3131
    %v3147 = vpack.c.b16 %v3134, %v3133
    %v3148 = vpack.c.b16 %v3136, %v3135
    %v3149 = vpack.c.b16 %v3138, %v3137
    %v3150 = vpack.c.b16 %v3140, %v3139
    %v3151 = vpack.c.b16 %v3142, %v3141
    %v3152 = vpack.c.b16 %v3144, %v3143
    %3161 = vmatprep.subr.bf16.mxu0 0
    %3162 = vmatpush1.bf16.msra.mxu0 %v3152
    %3163 = vmatprep.subr.bf16.mxu0 0
    %3164 = vmatpush1.bf16.msra.mxu0 %v3151
    %3165 = vmatprep.subr.bf16.mxu0 0
    %3166 = vmatpush1.bf16.msra.mxu0 %v3150
    %3167 = vmatprep.subr.bf16.mxu0 0
    %3168 = vmatpush1.bf16.msra.mxu0 %v3149
    %3169 = vmatprep.subr.bf16.mxu0 0
    %3170 = vmatpush1.bf16.msra.mxu0 %v3148
    %3171 = vmatprep.subr.bf16.mxu0 0
    %3172 = vmatpush1.bf16.msra.mxu0 %v3147
    %3173 = vmatprep.subr.bf16.mxu0 0
    %3174 = vmatpush1.bf16.msra.mxu0 %v3146
    %3175 = vmatprep.subr.bf16.mxu0 0
    %3176 = vmatpush1.bf16.msra.mxu0 %v3145
    %3177 = vmatprep.subr.bf16.mxu0 0
    %3178 = vmatpush2.bf16.msra.mxu0 0
    %3179 = vmatprep.subr.bf16.mxu0 0
    %3180 = vmatpush2.bf16.msra.mxu0 0
    %3181 = vmatprep.subr.bf16.mxu0 0
    %3182 = vmatpush2.bf16.msra.mxu0 0
    %3183 = vmatprep.subr.bf16.mxu0 0
    %3184 = vmatpush2.bf16.msra.mxu0 0
    %3185 = vmatprep.subr.bf16.mxu0 0
    %3186 = vmatpush2.bf16.msra.mxu0 0
    %3187 = vmatprep.subr.bf16.mxu0 0
    %3188 = vmatpush2.bf16.msra.mxu0 0
    %3189 = vmatprep.subr.bf16.mxu0 0
    %3190 = vmatpush2.bf16.msra.mxu0 0
    %3191 = vmatprep.subr.bf16.mxu0 0
    %3192 = vmatpush2.bf16.msra.mxu0 0
    %3193 = vmatprep.mubr.bf16.mxu0 0
    %3194 = vmatmul.mubr.bf16.gmra.mxu0 %v3089
    %v3195 = vpop.f32.mrf.mxu0
    %v3196 = vadd.f32 0.0, %v3195
    %v3197 = vpop.f32.mrf.mxu0
    %v3198 = vpop.f32.mrf.mxu0
    %v3199 = vadd.f32 0.0, %v3198
    %v3200 = vpop.f32.mrf.mxu0
    %3201 = vmatprep.mubr.bf16.mxu0 0
    %3202 = vmatmul.mubr.bf16.gmra.mxu0 %v3090
    %v3203 = vpop.f32.mrf.mxu0
    %v3204 = vadd.f32 0.0, %v3203
    %v3205 = vpop.f32.mrf.mxu0
    %v3206 = vpop.f32.mrf.mxu0
    %v3207 = vadd.f32 0.0, %v3206
    %v3208 = vpop.f32.mrf.mxu0
    %3209 = vmatprep.mubr.bf16.mxu0 0
    %3210 = vmatmul.mubr.bf16.gmra.mxu0 %v3091
    %v3211 = vpop.f32.mrf.mxu0
    %v3212 = vadd.f32 0.0, %v3211
    %v3213 = vpop.f32.mrf.mxu0
    %v3214 = vpop.f32.mrf.mxu0
    %v3215 = vadd.f32 0.0, %v3214
    %v3216 = vpop.f32.mrf.mxu0
    %3217 = vmatprep.mubr.bf16.mxu0 0
    %3218 = vmatmul.mubr.bf16.gmra.mxu0 %v3092
    %v3219 = vpop.f32.mrf.mxu0
    %v3220 = vadd.f32 0.0, %v3219
    %v3221 = vpop.f32.mrf.mxu0
    %v3222 = vpop.f32.mrf.mxu0
    %v3223 = vadd.f32 0.0, %v3222
    %v3224 = vpop.f32.mrf.mxu0
    %3225 = vmatprep.mubr.bf16.mxu0 0
    %3226 = vmatmul.mubr.bf16.gmra.mxu0 %v3093
    %v3227 = vpop.f32.mrf.mxu0
    %v3228 = vadd.f32 0.0, %v3227
    %v3229 = vpop.f32.mrf.mxu0
    %v3230 = vpop.f32.mrf.mxu0
    %v3231 = vadd.f32 0.0, %v3230
    %v3232 = vpop.f32.mrf.mxu0
    %3233 = vmatprep.mubr.bf16.mxu0 0
    %3234 = vmatmul.mubr.bf16.gmra.mxu0 %v3094
    %v3235 = vpop.f32.mrf.mxu0
    %v3236 = vadd.f32 0.0, %v3235
    %v3237 = vpop.f32.mrf.mxu0
    %v3238 = vpop.f32.mrf.mxu0
    %v3239 = vadd.f32 0.0, %v3238
    %v3240 = vpop.f32.mrf.mxu0
    %3241 = vmatprep.mubr.bf16.mxu0 0
    %3242 = vmatmul.mubr.bf16.gmra.mxu0 %v3095
    %v3243 = vpop.f32.mrf.mxu0
    %v3244 = vadd.f32 0.0, %v3243
    %v3245 = vpop.f32.mrf.mxu0
    %v3246 = vpop.f32.mrf.mxu0
    %v3247 = vadd.f32 0.0, %v3246
    %v3248 = vpop.f32.mrf.mxu0
    %3249 = vmatprep.mubr.bf16.mxu0 0
    %3250 = vmatmul.mubr.bf16.gmra.mxu0 %v3096
    %v3251 = vpop.f32.mrf.mxu0
    %v3252 = vadd.f32 0.0, %v3251
    %v3253 = vpop.f32.mrf.mxu0
    %v3254 = vpop.f32.mrf.mxu0
    %v3255 = vpop.f32.mrf.mxu0
    %3256 = vdwg.mxu0
    %v3257 = vadd.f32 %v3059, %v3196
    %v3258 = vadd.f32 %v3060, %v3199
    %v3259 = vadd.f32 %v3061, %v3204
    %v3260 = vadd.f32 %v3062, %v3207
    %v3261 = vadd.f32 %v3063, %v3212
    %v3262 = vadd.f32 %v3064, %v3215
    %v3263 = vadd.f32 %v3065, %v3220
    %v3264 = vadd.f32 %v3066, %v3223
    %v3265 = vadd.f32 %v3067, %v3228
    %v3266 = vadd.f32 %v3068, %v3231
    %v3267 = vadd.f32 %v3069, %v3236
    %v3268 = vadd.f32 %v3070, %v3239
    %v3269 = vadd.f32 %v3071, %v3244
    %v3270 = vadd.f32 %v3072, %v3247
    %v3271 = vadd.f32 %v3073, %v3252
    %v3272 = vld [vmem:[#allocation2 + $0x2b] sm:$0xff]
    %v3273 = vld [vmem:[#allocation2 + $0x33] sm:$0xff]
    %v3274 = vld [vmem:[#allocation2 + $0x3b] sm:$0xff]
    %v3275 = vld [vmem:[#allocation2 + $0x43] sm:$0xff]
    %v3276 = vld [vmem:[#allocation2 + $0x4b] sm:$0xff]
    %v3277 = vld [vmem:[#allocation2 + $0x53] sm:$0xff]
    %v3278 = vld [vmem:[#allocation2 + $0x5b] sm:$0xff]
    %v3279 = vld [vmem:[#allocation2 + $0x63] sm:$0xff]
    %v3280 = vld [vmem:[#allocation2 + $0x6b] sm:$0xff]
    %v3281 = vld [vmem:[#allocation2 + $0x73] sm:$0xff]
    %v3282 = vld [vmem:[#allocation2 + $0x7b] sm:$0xff]
    %v3283 = vld [vmem:[#allocation2 + $0x83] sm:$0xff]
    %v3284 = vld [vmem:[#allocation2 + $0x8b] sm:$0xff]
    %v3285 = vld [vmem:[#allocation2 + $0x93] sm:$0xff]
    %v3286 = vld [vmem:[#allocation2 + $0x9b] sm:$0xff]
    %v3287 = vpack.c.bf16 %v3273, %v3272
    %v3288 = vpack.c.bf16 %v3275, %v3274
    %v3289 = vpack.c.bf16 %v3277, %v3276
    %v3290 = vpack.c.bf16 %v3279, %v3278
    %v3291 = vpack.c.bf16 %v3281, %v3280
    %v3292 = vpack.c.bf16 %v3283, %v3282
    %v3293 = vpack.c.bf16 %v3285, %v3284
    %v3294 = vpack.c.bf16 %v3286, %v3286
    %v3295 = vld [vmem:[%s4 + $0x180] sm:$0xf]
    %v3296 = vld [vmem:[%s4 + $0x184] sm:$0xf]
    %v3297 = vld [vmem:[%s4 + $0x188] sm:$0xf]
    %v3298 = vld [vmem:[%s4 + $0x18c] sm:$0xf]
    %v3299 = vld [vmem:[%s4 + $0x190] sm:$0xf]
    %v3300 = vld [vmem:[%s4 + $0x194] sm:$0xf]
    %v3301 = vld [vmem:[%s4 + $0x198] sm:$0xf]
    %v3302 = vld [vmem:[%s4 + $0x19c] sm:$0xf]
    %v3303 = vld [vmem:[%s4 + $0x1a0] sm:$0xf]
    %v3304 = vld [vmem:[%s4 + $0x1a4] sm:$0xf]
    %v3305 = vld [vmem:[%s4 + $0x1a8] sm:$0xf]
    %v3306 = vld [vmem:[%s4 + $0x1ac] sm:$0xf]
    %v3307 = vld [vmem:[%s4 + $0x1b0] sm:$0xf]
    %v3308 = vld [vmem:[%s4 + $0x1b4] sm:$0xf]
    %v3309 = vld [vmem:[%s4 + $0x1b8] sm:$0xf]
    %v3310 = vld [vmem:[%s4 + $0x1bc] sm:$0xf]
    %v3327 = vunpack.c.l.b16 %v3295
    %v3328 = vunpack.c.l.b16 %v3296
    %v3329 = vunpack.c.l.b16 %v3297
    %v3330 = vunpack.c.l.b16 %v3298
    %v3331 = vunpack.c.l.b16 %v3299
    %v3332 = vunpack.c.l.b16 %v3300
    %v3333 = vunpack.c.l.b16 %v3301
    %v3334 = vunpack.c.l.b16 %v3302
    %v3335 = vunpack.c.l.b16 %v3303
    %v3336 = vunpack.c.l.b16 %v3304
    %v3337 = vunpack.c.l.b16 %v3305
    %v3338 = vunpack.c.l.b16 %v3306
    %v3339 = vunpack.c.l.b16 %v3307
    %v3340 = vunpack.c.l.b16 %v3308
    %v3341 = vunpack.c.l.b16 %v3309
    %v3342 = vunpack.c.l.b16 %v3310
    %v3343 = vpack.c.b16 %v3328, %v3327
    %v3344 = vpack.c.b16 %v3330, %v3329
    %v3345 = vpack.c.b16 %v3332, %v3331
    %v3346 = vpack.c.b16 %v3334, %v3333
    %v3347 = vpack.c.b16 %v3336, %v3335
    %v3348 = vpack.c.b16 %v3338, %v3337
    %v3349 = vpack.c.b16 %v3340, %v3339
    %v3350 = vpack.c.b16 %v3342, %v3341
    %3359 = vmatprep.subr.bf16.mxu0 0
    %3360 = vmatpush1.bf16.msra.mxu0 %v3350
    %3361 = vmatprep.subr.bf16.mxu0 0
    %3362 = vmatpush1.bf16.msra.mxu0 %v3349
    %3363 = vmatprep.subr.bf16.mxu0 0
    %3364 = vmatpush1.bf16.msra.mxu0 %v3348
    %3365 = vmatprep.subr.bf16.mxu0 0
    %3366 = vmatpush1.bf16.msra.mxu0 %v3347
    %3367 = vmatprep.subr.bf16.mxu0 0
    %3368 = vmatpush1.bf16.msra.mxu0 %v3346
    %3369 = vmatprep.subr.bf16.mxu0 0
    %3370 = vmatpush1.bf16.msra.mxu0 %v3345
    %3371 = vmatprep.subr.bf16.mxu0 0
    %3372 = vmatpush1.bf16.msra.mxu0 %v3344
    %3373 = vmatprep.subr.bf16.mxu0 0
    %3374 = vmatpush1.bf16.msra.mxu0 %v3343
    %3375 = vmatprep.subr.bf16.mxu0 0
    %3376 = vmatpush2.bf16.msra.mxu0 0
    %3377 = vmatprep.subr.bf16.mxu0 0
    %3378 = vmatpush2.bf16.msra.mxu0 0
    %3379 = vmatprep.subr.bf16.mxu0 0
    %3380 = vmatpush2.bf16.msra.mxu0 0
    %3381 = vmatprep.subr.bf16.mxu0 0
    %3382 = vmatpush2.bf16.msra.mxu0 0
    %3383 = vmatprep.subr.bf16.mxu0 0
    %3384 = vmatpush2.bf16.msra.mxu0 0
    %3385 = vmatprep.subr.bf16.mxu0 0
    %3386 = vmatpush2.bf16.msra.mxu0 0
    %3387 = vmatprep.subr.bf16.mxu0 0
    %3388 = vmatpush2.bf16.msra.mxu0 0
    %3389 = vmatprep.subr.bf16.mxu0 0
    %3390 = vmatpush2.bf16.msra.mxu0 0
    %3391 = vmatprep.mubr.bf16.mxu0 0
    %3392 = vmatmul.mubr.bf16.gmra.mxu0 %v3287
    %v3393 = vpop.f32.mrf.mxu0
    %v3394 = vadd.f32 0.0, %v3393
    %v3395 = vpop.f32.mrf.mxu0
    %v3396 = vpop.f32.mrf.mxu0
    %v3397 = vadd.f32 0.0, %v3396
    %v3398 = vpop.f32.mrf.mxu0
    %3399 = vmatprep.mubr.bf16.mxu0 0
    %3400 = vmatmul.mubr.bf16.gmra.mxu0 %v3288
    %v3401 = vpop.f32.mrf.mxu0
    %v3402 = vadd.f32 0.0, %v3401
    %v3403 = vpop.f32.mrf.mxu0
    %v3404 = vpop.f32.mrf.mxu0
    %v3405 = vadd.f32 0.0, %v3404
    %v3406 = vpop.f32.mrf.mxu0
    %3407 = vmatprep.mubr.bf16.mxu0 0
    %3408 = vmatmul.mubr.bf16.gmra.mxu0 %v3289
    %v3409 = vpop.f32.mrf.mxu0
    %v3410 = vadd.f32 0.0, %v3409
    %v3411 = vpop.f32.mrf.mxu0
    %v3412 = vpop.f32.mrf.mxu0
    %v3413 = vadd.f32 0.0, %v3412
    %v3414 = vpop.f32.mrf.mxu0
    %3415 = vmatprep.mubr.bf16.mxu0 0
    %3416 = vmatmul.mubr.bf16.gmra.mxu0 %v3290
    %v3417 = vpop.f32.mrf.mxu0
    %v3418 = vadd.f32 0.0, %v3417
    %v3419 = vpop.f32.mrf.mxu0
    %v3420 = vpop.f32.mrf.mxu0
    %v3421 = vadd.f32 0.0, %v3420
    %v3422 = vpop.f32.mrf.mxu0
    %3423 = vmatprep.mubr.bf16.mxu0 0
    %3424 = vmatmul.mubr.bf16.gmra.mxu0 %v3291
    %v3425 = vpop.f32.mrf.mxu0
    %v3426 = vadd.f32 0.0, %v3425
    %v3427 = vpop.f32.mrf.mxu0
    %v3428 = vpop.f32.mrf.mxu0
    %v3429 = vadd.f32 0.0, %v3428
    %v3430 = vpop.f32.mrf.mxu0
    %3431 = vmatprep.mubr.bf16.mxu0 0
    %3432 = vmatmul.mubr.bf16.gmra.mxu0 %v3292
    %v3433 = vpop.f32.mrf.mxu0
    %v3434 = vadd.f32 0.0, %v3433
    %v3435 = vpop.f32.mrf.mxu0
    %v3436 = vpop.f32.mrf.mxu0
    %v3437 = vadd.f32 0.0, %v3436
    %v3438 = vpop.f32.mrf.mxu0
    %3439 = vmatprep.mubr.bf16.mxu0 0
    %3440 = vmatmul.mubr.bf16.gmra.mxu0 %v3293
    %v3441 = vpop.f32.mrf.mxu0
    %v3442 = vadd.f32 0.0, %v3441
    %v3443 = vpop.f32.mrf.mxu0
    %v3444 = vpop.f32.mrf.mxu0
    %v3445 = vadd.f32 0.0, %v3444
    %v3446 = vpop.f32.mrf.mxu0
    %3447 = vmatprep.mubr.bf16.mxu0 0
    %3448 = vmatmul.mubr.bf16.gmra.mxu0 %v3294
    %v3449 = vpop.f32.mrf.mxu0
    %v3450 = vadd.f32 0.0, %v3449
    %v3451 = vpop.f32.mrf.mxu0
    %v3452 = vpop.f32.mrf.mxu0
    %v3453 = vpop.f32.mrf.mxu0
    %3454 = vdwg.mxu0
    %v3455 = vadd.f32 %v3257, %v3394
    %v3456 = vadd.f32 %v3258, %v3397
    %v3457 = vadd.f32 %v3259, %v3402
    %v3458 = vadd.f32 %v3260, %v3405
    %v3459 = vadd.f32 %v3261, %v3410
    %v3460 = vadd.f32 %v3262, %v3413
    %v3461 = vadd.f32 %v3263, %v3418
    %v3462 = vadd.f32 %v3264, %v3421
    %v3463 = vadd.f32 %v3265, %v3426
    %v3464 = vadd.f32 %v3266, %v3429
    %v3465 = vadd.f32 %v3267, %v3434
    %v3466 = vadd.f32 %v3268, %v3437
    %v3467 = vadd.f32 %v3269, %v3442
    %v3468 = vadd.f32 %v3270, %v3445
    %v3469 = vadd.f32 %v3271, %v3450
    %v3470 = vld [vmem:[#allocation2 + $0x2c] sm:$0xff]
    %v3471 = vld [vmem:[#allocation2 + $0x34] sm:$0xff]
    %v3472 = vld [vmem:[#allocation2 + $0x3c] sm:$0xff]
    %v3473 = vld [vmem:[#allocation2 + $0x44] sm:$0xff]
    %v3474 = vld [vmem:[#allocation2 + $0x4c] sm:$0xff]
    %v3475 = vld [vmem:[#allocation2 + $0x54] sm:$0xff]
    %v3476 = vld [vmem:[#allocation2 + $0x5c] sm:$0xff]
    %v3477 = vld [vmem:[#allocation2 + $0x64] sm:$0xff]
    %v3478 = vld [vmem:[#allocation2 + $0x6c] sm:$0xff]
    %v3479 = vld [vmem:[#allocation2 + $0x74] sm:$0xff]
    %v3480 = vld [vmem:[#allocation2 + $0x7c] sm:$0xff]
    %v3481 = vld [vmem:[#allocation2 + $0x84] sm:$0xff]
    %v3482 = vld [vmem:[#allocation2 + $0x8c] sm:$0xff]
    %v3483 = vld [vmem:[#allocation2 + $0x94] sm:$0xff]
    %v3484 = vld [vmem:[#allocation2 + $0x9c] sm:$0xff]
    %v3485 = vpack.c.bf16 %v3471, %v3470
    %v3486 = vpack.c.bf16 %v3473, %v3472
    %v3487 = vpack.c.bf16 %v3475, %v3474
    %v3488 = vpack.c.bf16 %v3477, %v3476
    %v3489 = vpack.c.bf16 %v3479, %v3478
    %v3490 = vpack.c.bf16 %v3481, %v3480
    %v3491 = vpack.c.bf16 %v3483, %v3482
    %v3492 = vpack.c.bf16 %v3484, %v3484
    %v3493 = vld [vmem:[%s4 + $0x1c0] sm:$0xf]
    %v3494 = vld [vmem:[%s4 + $0x1c4] sm:$0xf]
    %v3495 = vld [vmem:[%s4 + $0x1c8] sm:$0xf]
    %v3496 = vld [vmem:[%s4 + $0x1cc] sm:$0xf]
    %v3497 = vld [vmem:[%s4 + $0x1d0] sm:$0xf]
    %v3498 = vld [vmem:[%s4 + $0x1d4] sm:$0xf]
    %v3499 = vld [vmem:[%s4 + $0x1d8] sm:$0xf]
    %v3500 = vld [vmem:[%s4 + $0x1dc] sm:$0xf]
    %v3501 = vld [vmem:[%s4 + $0x1e0] sm:$0xf]
    %v3502 = vld [vmem:[%s4 + $0x1e4] sm:$0xf]
    %v3503 = vld [vmem:[%s4 + $0x1e8] sm:$0xf]
    %v3504 = vld [vmem:[%s4 + $0x1ec] sm:$0xf]
    %v3505 = vld [vmem:[%s4 + $0x1f0] sm:$0xf]
    %v3506 = vld [vmem:[%s4 + $0x1f4] sm:$0xf]
    %v3507 = vld [vmem:[%s4 + $0x1f8] sm:$0xf]
    %v3508 = vld [vmem:[%s4 + $0x1fc] sm:$0xf]
    %v3525 = vunpack.c.l.b16 %v3493
    %v3526 = vunpack.c.l.b16 %v3494
    %v3527 = vunpack.c.l.b16 %v3495
    %v3528 = vunpack.c.l.b16 %v3496
    %v3529 = vunpack.c.l.b16 %v3497
    %v3530 = vunpack.c.l.b16 %v3498
    %v3531 = vunpack.c.l.b16 %v3499
    %v3532 = vunpack.c.l.b16 %v3500
    %v3533 = vunpack.c.l.b16 %v3501
    %v3534 = vunpack.c.l.b16 %v3502
    %v3535 = vunpack.c.l.b16 %v3503
    %v3536 = vunpack.c.l.b16 %v3504
    %v3537 = vunpack.c.l.b16 %v3505
    %v3538 = vunpack.c.l.b16 %v3506
    %v3539 = vunpack.c.l.b16 %v3507
    %v3540 = vunpack.c.l.b16 %v3508
    %v3541 = vpack.c.b16 %v3526, %v3525
    %v3542 = vpack.c.b16 %v3528, %v3527
    %v3543 = vpack.c.b16 %v3530, %v3529
    %v3544 = vpack.c.b16 %v3532, %v3531
    %v3545 = vpack.c.b16 %v3534, %v3533
    %v3546 = vpack.c.b16 %v3536, %v3535
    %v3547 = vpack.c.b16 %v3538, %v3537
    %v3548 = vpack.c.b16 %v3540, %v3539
    %3557 = vmatprep.subr.bf16.mxu0 0
    %3558 = vmatpush1.bf16.msra.mxu0 %v3548
    %3559 = vmatprep.subr.bf16.mxu0 0
    %3560 = vmatpush1.bf16.msra.mxu0 %v3547
    %3561 = vmatprep.subr.bf16.mxu0 0
    %3562 = vmatpush1.bf16.msra.mxu0 %v3546
    %3563 = vmatprep.subr.bf16.mxu0 0
    %3564 = vmatpush1.bf16.msra.mxu0 %v3545
    %3565 = vmatprep.subr.bf16.mxu0 0
    %3566 = vmatpush1.bf16.msra.mxu0 %v3544
    %3567 = vmatprep.subr.bf16.mxu0 0
    %3568 = vmatpush1.bf16.msra.mxu0 %v3543
    %3569 = vmatprep.subr.bf16.mxu0 0
    %3570 = vmatpush1.bf16.msra.mxu0 %v3542
    %3571 = vmatprep.subr.bf16.mxu0 0
    %3572 = vmatpush1.bf16.msra.mxu0 %v3541
    %3573 = vmatprep.subr.bf16.mxu0 0
    %3574 = vmatpush2.bf16.msra.mxu0 0
    %3575 = vmatprep.subr.bf16.mxu0 0
    %3576 = vmatpush2.bf16.msra.mxu0 0
    %3577 = vmatprep.subr.bf16.mxu0 0
    %3578 = vmatpush2.bf16.msra.mxu0 0
    %3579 = vmatprep.subr.bf16.mxu0 0
    %3580 = vmatpush2.bf16.msra.mxu0 0
    %3581 = vmatprep.subr.bf16.mxu0 0
    %3582 = vmatpush2.bf16.msra.mxu0 0
    %3583 = vmatprep.subr.bf16.mxu0 0
    %3584 = vmatpush2.bf16.msra.mxu0 0
    %3585 = vmatprep.subr.bf16.mxu0 0
    %3586 = vmatpush2.bf16.msra.mxu0 0
    %3587 = vmatprep.subr.bf16.mxu0 0
    %3588 = vmatpush2.bf16.msra.mxu0 0
    %3589 = vmatprep.mubr.bf16.mxu0 0
    %3590 = vmatmul.mubr.bf16.gmra.mxu0 %v3485
    %v3591 = vpop.f32.mrf.mxu0
    %v3592 = vadd.f32 0.0, %v3591
    %v3593 = vpop.f32.mrf.mxu0
    %v3594 = vpop.f32.mrf.mxu0
    %v3595 = vadd.f32 0.0, %v3594
    %v3596 = vpop.f32.mrf.mxu0
    %3597 = vmatprep.mubr.bf16.mxu0 0
    %3598 = vmatmul.mubr.bf16.gmra.mxu0 %v3486
    %v3599 = vpop.f32.mrf.mxu0
    %v3600 = vadd.f32 0.0, %v3599
    %v3601 = vpop.f32.mrf.mxu0
    %v3602 = vpop.f32.mrf.mxu0
    %v3603 = vadd.f32 0.0, %v3602
    %v3604 = vpop.f32.mrf.mxu0
    %3605 = vmatprep.mubr.bf16.mxu0 0
    %3606 = vmatmul.mubr.bf16.gmra.mxu0 %v3487
    %v3607 = vpop.f32.mrf.mxu0
    %v3608 = vadd.f32 0.0, %v3607
    %v3609 = vpop.f32.mrf.mxu0
    %v3610 = vpop.f32.mrf.mxu0
    %v3611 = vadd.f32 0.0, %v3610
    %v3612 = vpop.f32.mrf.mxu0
    %3613 = vmatprep.mubr.bf16.mxu0 0
    %3614 = vmatmul.mubr.bf16.gmra.mxu0 %v3488
    %v3615 = vpop.f32.mrf.mxu0
    %v3616 = vadd.f32 0.0, %v3615
    %v3617 = vpop.f32.mrf.mxu0
    %v3618 = vpop.f32.mrf.mxu0
    %v3619 = vadd.f32 0.0, %v3618
    %v3620 = vpop.f32.mrf.mxu0
    %3621 = vmatprep.mubr.bf16.mxu0 0
    %3622 = vmatmul.mubr.bf16.gmra.mxu0 %v3489
    %v3623 = vpop.f32.mrf.mxu0
    %v3624 = vadd.f32 0.0, %v3623
    %v3625 = vpop.f32.mrf.mxu0
    %v3626 = vpop.f32.mrf.mxu0
    %v3627 = vadd.f32 0.0, %v3626
    %v3628 = vpop.f32.mrf.mxu0
    %3629 = vmatprep.mubr.bf16.mxu0 0
    %3630 = vmatmul.mubr.bf16.gmra.mxu0 %v3490
    %v3631 = vpop.f32.mrf.mxu0
    %v3632 = vadd.f32 0.0, %v3631
    %v3633 = vpop.f32.mrf.mxu0
    %v3634 = vpop.f32.mrf.mxu0
    %v3635 = vadd.f32 0.0, %v3634
    %v3636 = vpop.f32.mrf.mxu0
    %3637 = vmatprep.mubr.bf16.mxu0 0
    %3638 = vmatmul.mubr.bf16.gmra.mxu0 %v3491
    %v3639 = vpop.f32.mrf.mxu0
    %v3640 = vadd.f32 0.0, %v3639
    %v3641 = vpop.f32.mrf.mxu0
    %v3642 = vpop.f32.mrf.mxu0
    %v3643 = vadd.f32 0.0, %v3642
    %v3644 = vpop.f32.mrf.mxu0
    %3645 = vmatprep.mubr.bf16.mxu0 0
    %3646 = vmatmul.mubr.bf16.gmra.mxu0 %v3492
    %v3647 = vpop.f32.mrf.mxu0
    %v3648 = vadd.f32 0.0, %v3647
    %v3649 = vpop.f32.mrf.mxu0
    %v3650 = vpop.f32.mrf.mxu0
    %v3651 = vpop.f32.mrf.mxu0
    %3652 = vdwg.mxu0
    %v3653 = vadd.f32 %v3455, %v3592
    %v3654 = vadd.f32 %v3456, %v3595
    %v3655 = vadd.f32 %v3457, %v3600
    %v3656 = vadd.f32 %v3458, %v3603
    %v3657 = vadd.f32 %v3459, %v3608
    %v3658 = vadd.f32 %v3460, %v3611
    %v3659 = vadd.f32 %v3461, %v3616
    %v3660 = vadd.f32 %v3462, %v3619
    %v3661 = vadd.f32 %v3463, %v3624
    %v3662 = vadd.f32 %v3464, %v3627
    %v3663 = vadd.f32 %v3465, %v3632
    %v3664 = vadd.f32 %v3466, %v3635
    %v3665 = vadd.f32 %v3467, %v3640
    %v3666 = vadd.f32 %v3468, %v3643
    %v3667 = vadd.f32 %v3469, %v3648
    %v3668 = vld [vmem:[#allocation2 + $0x2d] sm:$0xff]
    %v3669 = vld [vmem:[#allocation2 + $0x35] sm:$0xff]
    %v3670 = vld [vmem:[#allocation2 + $0x3d] sm:$0xff]
    %v3671 = vld [vmem:[#allocation2 + $0x45] sm:$0xff]
    %v3672 = vld [vmem:[#allocation2 + $0x4d] sm:$0xff]
    %v3673 = vld [vmem:[#allocation2 + $0x55] sm:$0xff]
    %v3674 = vld [vmem:[#allocation2 + $0x5d] sm:$0xff]
    %v3675 = vld [vmem:[#allocation2 + $0x65] sm:$0xff]
    %v3676 = vld [vmem:[#allocation2 + $0x6d] sm:$0xff]
    %v3677 = vld [vmem:[#allocation2 + $0x75] sm:$0xff]
    %v3678 = vld [vmem:[#allocation2 + $0x7d] sm:$0xff]
    %v3679 = vld [vmem:[#allocation2 + $0x85] sm:$0xff]
    %v3680 = vld [vmem:[#allocation2 + $0x8d] sm:$0xff]
    %v3681 = vld [vmem:[#allocation2 + $0x95] sm:$0xff]
    %v3682 = vld [vmem:[#allocation2 + $0x9d] sm:$0xff]
    %v3683 = vpack.c.bf16 %v3669, %v3668
    %v3684 = vpack.c.bf16 %v3671, %v3670
    %v3685 = vpack.c.bf16 %v3673, %v3672
    %v3686 = vpack.c.bf16 %v3675, %v3674
    %v3687 = vpack.c.bf16 %v3677, %v3676
    %v3688 = vpack.c.bf16 %v3679, %v3678
    %v3689 = vpack.c.bf16 %v3681, %v3680
    %v3690 = vpack.c.bf16 %v3682, %v3682
    %v3691 = vld [vmem:[%s4 + $0x200] sm:$0xf]
    %v3692 = vld [vmem:[%s4 + $0x204] sm:$0xf]
    %v3693 = vld [vmem:[%s4 + $0x208] sm:$0xf]
    %v3694 = vld [vmem:[%s4 + $0x20c] sm:$0xf]
    %v3695 = vld [vmem:[%s4 + $0x210] sm:$0xf]
    %v3696 = vld [vmem:[%s4 + $0x214] sm:$0xf]
    %v3697 = vld [vmem:[%s4 + $0x218] sm:$0xf]
    %v3698 = vld [vmem:[%s4 + $0x21c] sm:$0xf]
    %v3699 = vld [vmem:[%s4 + $0x220] sm:$0xf]
    %v3700 = vld [vmem:[%s4 + $0x224] sm:$0xf]
    %v3701 = vld [vmem:[%s4 + $0x228] sm:$0xf]
    %v3702 = vld [vmem:[%s4 + $0x22c] sm:$0xf]
    %v3703 = vld [vmem:[%s4 + $0x230] sm:$0xf]
    %v3704 = vld [vmem:[%s4 + $0x234] sm:$0xf]
    %v3705 = vld [vmem:[%s4 + $0x238] sm:$0xf]
    %v3706 = vld [vmem:[%s4 + $0x23c] sm:$0xf]
    %v3723 = vunpack.c.l.b16 %v3691
    %v3724 = vunpack.c.l.b16 %v3692
    %v3725 = vunpack.c.l.b16 %v3693
    %v3726 = vunpack.c.l.b16 %v3694
    %v3727 = vunpack.c.l.b16 %v3695
    %v3728 = vunpack.c.l.b16 %v3696
    %v3729 = vunpack.c.l.b16 %v3697
    %v3730 = vunpack.c.l.b16 %v3698
    %v3731 = vunpack.c.l.b16 %v3699
    %v3732 = vunpack.c.l.b16 %v3700
    %v3733 = vunpack.c.l.b16 %v3701
    %v3734 = vunpack.c.l.b16 %v3702
    %v3735 = vunpack.c.l.b16 %v3703
    %v3736 = vunpack.c.l.b16 %v3704
    %v3737 = vunpack.c.l.b16 %v3705
    %v3738 = vunpack.c.l.b16 %v3706
    %v3739 = vpack.c.b16 %v3724, %v3723
    %v3740 = vpack.c.b16 %v3726, %v3725
    %v3741 = vpack.c.b16 %v3728, %v3727
    %v3742 = vpack.c.b16 %v3730, %v3729
    %v3743 = vpack.c.b16 %v3732, %v3731
    %v3744 = vpack.c.b16 %v3734, %v3733
    %v3745 = vpack.c.b16 %v3736, %v3735
    %v3746 = vpack.c.b16 %v3738, %v3737
    %3755 = vmatprep.subr.bf16.mxu0 0
    %3756 = vmatpush1.bf16.msra.mxu0 %v3746
    %3757 = vmatprep.subr.bf16.mxu0 0
    %3758 = vmatpush1.bf16.msra.mxu0 %v3745
    %3759 = vmatprep.subr.bf16.mxu0 0
    %3760 = vmatpush1.bf16.msra.mxu0 %v3744
    %3761 = vmatprep.subr.bf16.mxu0 0
    %3762 = vmatpush1.bf16.msra.mxu0 %v3743
    %3763 = vmatprep.subr.bf16.mxu0 0
    %3764 = vmatpush1.bf16.msra.mxu0 %v3742
    %3765 = vmatprep.subr.bf16.mxu0 0
    %3766 = vmatpush1.bf16.msra.mxu0 %v3741
    %3767 = vmatprep.subr.bf16.mxu0 0
    %3768 = vmatpush1.bf16.msra.mxu0 %v3740
    %3769 = vmatprep.subr.bf16.mxu0 0
    %3770 = vmatpush1.bf16.msra.mxu0 %v3739
    %3771 = vmatprep.subr.bf16.mxu0 0
    %3772 = vmatpush2.bf16.msra.mxu0 0
    %3773 = vmatprep.subr.bf16.mxu0 0
    %3774 = vmatpush2.bf16.msra.mxu0 0
    %3775 = vmatprep.subr.bf16.mxu0 0
    %3776 = vmatpush2.bf16.msra.mxu0 0
    %3777 = vmatprep.subr.bf16.mxu0 0
    %3778 = vmatpush2.bf16.msra.mxu0 0
    %3779 = vmatprep.subr.bf16.mxu0 0
    %3780 = vmatpush2.bf16.msra.mxu0 0
    %3781 = vmatprep.subr.bf16.mxu0 0
    %3782 = vmatpush2.bf16.msra.mxu0 0
    %3783 = vmatprep.subr.bf16.mxu0 0
    %3784 = vmatpush2.bf16.msra.mxu0 0
    %3785 = vmatprep.subr.bf16.mxu0 0
    %3786 = vmatpush2.bf16.msra.mxu0 0
    %3787 = vmatprep.mubr.bf16.mxu0 0
    %3788 = vmatmul.mubr.bf16.gmra.mxu0 %v3683
    %v3789 = vpop.f32.mrf.mxu0
    %v3790 = vadd.f32 0.0, %v3789
    %v3791 = vpop.f32.mrf.mxu0
    %v3792 = vpop.f32.mrf.mxu0
    %v3793 = vadd.f32 0.0, %v3792
    %v3794 = vpop.f32.mrf.mxu0
    %3795 = vmatprep.mubr.bf16.mxu0 0
    %3796 = vmatmul.mubr.bf16.gmra.mxu0 %v3684
    %v3797 = vpop.f32.mrf.mxu0
    %v3798 = vadd.f32 0.0, %v3797
    %v3799 = vpop.f32.mrf.mxu0
    %v3800 = vpop.f32.mrf.mxu0
    %v3801 = vadd.f32 0.0, %v3800
    %v3802 = vpop.f32.mrf.mxu0
    %3803 = vmatprep.mubr.bf16.mxu0 0
    %3804 = vmatmul.mubr.bf16.gmra.mxu0 %v3685
    %v3805 = vpop.f32.mrf.mxu0
    %v3806 = vadd.f32 0.0, %v3805
    %v3807 = vpop.f32.mrf.mxu0
    %v3808 = vpop.f32.mrf.mxu0
    %v3809 = vadd.f32 0.0, %v3808
    %v3810 = vpop.f32.mrf.mxu0
    %3811 = vmatprep.mubr.bf16.mxu0 0
    %3812 = vmatmul.mubr.bf16.gmra.mxu0 %v3686
    %v3813 = vpop.f32.mrf.mxu0
    %v3814 = vadd.f32 0.0, %v3813
    %v3815 = vpop.f32.mrf.mxu0
    %v3816 = vpop.f32.mrf.mxu0
    %v3817 = vadd.f32 0.0, %v3816
    %v3818 = vpop.f32.mrf.mxu0
    %3819 = vmatprep.mubr.bf16.mxu0 0
    %3820 = vmatmul.mubr.bf16.gmra.mxu0 %v3687
    %v3821 = vpop.f32.mrf.mxu0
    %v3822 = vadd.f32 0.0, %v3821
    %v3823 = vpop.f32.mrf.mxu0
    %v3824 = vpop.f32.mrf.mxu0
    %v3825 = vadd.f32 0.0, %v3824
    %v3826 = vpop.f32.mrf.mxu0
    %3827 = vmatprep.mubr.bf16.mxu0 0
    %3828 = vmatmul.mubr.bf16.gmra.mxu0 %v3688
    %v3829 = vpop.f32.mrf.mxu0
    %v3830 = vadd.f32 0.0, %v3829
    %v3831 = vpop.f32.mrf.mxu0
    %v3832 = vpop.f32.mrf.mxu0
    %v3833 = vadd.f32 0.0, %v3832
    %v3834 = vpop.f32.mrf.mxu0
    %3835 = vmatprep.mubr.bf16.mxu0 0
    %3836 = vmatmul.mubr.bf16.gmra.mxu0 %v3689
    %v3837 = vpop.f32.mrf.mxu0
    %v3838 = vadd.f32 0.0, %v3837
    %v3839 = vpop.f32.mrf.mxu0
    %v3840 = vpop.f32.mrf.mxu0
    %v3841 = vadd.f32 0.0, %v3840
    %v3842 = vpop.f32.mrf.mxu0
    %3843 = vmatprep.mubr.bf16.mxu0 0
    %3844 = vmatmul.mubr.bf16.gmra.mxu0 %v3690
    %v3845 = vpop.f32.mrf.mxu0
    %v3846 = vadd.f32 0.0, %v3845
    %v3847 = vpop.f32.mrf.mxu0
    %v3848 = vpop.f32.mrf.mxu0
    %v3849 = vpop.f32.mrf.mxu0
    %3850 = vdwg.mxu0
    %v3851 = vadd.f32 %v3653, %v3790
    %v3852 = vadd.f32 %v3654, %v3793
    %v3853 = vadd.f32 %v3655, %v3798
    %v3854 = vadd.f32 %v3656, %v3801
    %v3855 = vadd.f32 %v3657, %v3806
    %v3856 = vadd.f32 %v3658, %v3809
    %v3857 = vadd.f32 %v3659, %v3814
    %v3858 = vadd.f32 %v3660, %v3817
    %v3859 = vadd.f32 %v3661, %v3822
    %v3860 = vadd.f32 %v3662, %v3825
    %v3861 = vadd.f32 %v3663, %v3830
    %v3862 = vadd.f32 %v3664, %v3833
    %v3863 = vadd.f32 %v3665, %v3838
    %v3864 = vadd.f32 %v3666, %v3841
    %v3865 = vadd.f32 %v3667, %v3846
    %v3866 = vld [vmem:[%s5] sm:$0x1]
    %v3868 = vlaneseq
    %v3869 = vshrl.u32 %v3868, 7
    %v3870 = vsub.s32 0, %v3869
    %v3871 = vrot.slane %v3866, %v3870
    %v3873 = vadd.f32 %v3851, %v3871
    %v3874 = vadd.f32 %v3852, %v3871
    %v3875 = vadd.f32 %v3853, %v3871
    %v3876 = vadd.f32 %v3854, %v3871
    %v3877 = vadd.f32 %v3855, %v3871
    %v3878 = vadd.f32 %v3856, %v3871
    %v3879 = vadd.f32 %v3857, %v3871
    %v3880 = vadd.f32 %v3858, %v3871
    %v3881 = vadd.f32 %v3859, %v3871
    %v3882 = vadd.f32 %v3860, %v3871
    %v3883 = vadd.f32 %v3861, %v3871
    %v3884 = vadd.f32 %v3862, %v3871
    %v3885 = vadd.f32 %v3863, %v3871
    %v3886 = vadd.f32 %v3864, %v3871
    %v3887 = vadd.f32 %v3865, %v3871
    %v3888 = vmax.f32 %v3873, 0.0
    %v3889 = vmax.f32 %v3874, 0.0
    %v3890 = vmax.f32 %v3875, 0.0
    %v3891 = vmax.f32 %v3876, 0.0
    %v3892 = vmax.f32 %v3877, 0.0
    %v3893 = vmax.f32 %v3878, 0.0
    %v3894 = vmax.f32 %v3879, 0.0
    %v3895 = vmax.f32 %v3880, 0.0
    %v3896 = vmax.f32 %v3881, 0.0
    %v3897 = vmax.f32 %v3882, 0.0
    %v3898 = vmax.f32 %v3883, 0.0
    %v3899 = vmax.f32 %v3884, 0.0
    %v3900 = vmax.f32 %v3885, 0.0
    %v3901 = vmax.f32 %v3886, 0.0
    %v3902 = vmax.f32 %v3887, 0.0
    %v3903 = vld [vmem:[%s1] sm:$0xff]
    %v3904 = vld [vmem:[%s1 + $0x8] sm:$0xff]
    %v3905 = vld [vmem:[%s1 + $0x10] sm:$0xff]
    %v3906 = vld [vmem:[%s1 + $0x18] sm:$0xff]
    %v3907 = vld [vmem:[%s1 + $0x20] sm:$0xff]
    %v3908 = vld [vmem:[%s1 + $0x28] sm:$0xff]
    %v3909 = vld [vmem:[%s1 + $0x30] sm:$0xff]
    %v3910 = vld [vmem:[%s1 + $0x38] sm:$0xff]
    %v3911 = vld [vmem:[%s1 + $0x40] sm:$0xff]
    %v3912 = vld [vmem:[%s1 + $0x48] sm:$0xff]
    %v3913 = vld [vmem:[%s1 + $0x50] sm:$0xff]
    %v3914 = vld [vmem:[%s1 + $0x58] sm:$0xff]
    %v3915 = vld [vmem:[%s1 + $0x60] sm:$0xff]
    %v3916 = vld [vmem:[%s1 + $0x68] sm:$0xff]
    %v3917 = vld [vmem:[%s1 + $0x70] sm:$0xff]
    %3919 = vset.pattern.permute.xlu0 0
    %3920 = vperm.xlu0 %3919, %v3903
    %v3921 = vpop.permute.xlu0 %3920
    %3924 = vset.pattern.permute.xlu0 0
    %3925 = vperm.xlu0 %3924, %v3904
    %v3926 = vpop.permute.xlu0 %3925
    %3929 = vset.pattern.permute.xlu0 0
    %3930 = vperm.xlu0 %3929, %v3905
    %v3931 = vpop.permute.xlu0 %3930
    %3934 = vset.pattern.permute.xlu0 0
    %3935 = vperm.xlu0 %3934, %v3906
    %v3936 = vpop.permute.xlu0 %3935
    %3939 = vset.pattern.permute.xlu0 0
    %3940 = vperm.xlu0 %3939, %v3907
    %v3941 = vpop.permute.xlu0 %3940
    %3944 = vset.pattern.permute.xlu0 0
    %3945 = vperm.xlu0 %3944, %v3908
    %v3946 = vpop.permute.xlu0 %3945
    %3949 = vset.pattern.permute.xlu0 0
    %3950 = vperm.xlu0 %3949, %v3909
    %v3951 = vpop.permute.xlu0 %3950
    %3954 = vset.pattern.permute.xlu0 0
    %3955 = vperm.xlu0 %3954, %v3910
    %v3956 = vpop.permute.xlu0 %3955
    %3959 = vset.pattern.permute.xlu0 0
    %3960 = vperm.xlu0 %3959, %v3911
    %v3961 = vpop.permute.xlu0 %3960
    %3964 = vset.pattern.permute.xlu0 0
    %3965 = vperm.xlu0 %3964, %v3912
    %v3966 = vpop.permute.xlu0 %3965
    %3969 = vset.pattern.permute.xlu0 0
    %3970 = vperm.xlu0 %3969, %v3913
    %v3971 = vpop.permute.xlu0 %3970
    %3974 = vset.pattern.permute.xlu0 0
    %3975 = vperm.xlu0 %3974, %v3914
    %v3976 = vpop.permute.xlu0 %3975
    %3979 = vset.pattern.permute.xlu0 0
    %3980 = vperm.xlu0 %3979, %v3915
    %v3981 = vpop.permute.xlu0 %3980
    %3984 = vset.pattern.permute.xlu0 0
    %3985 = vperm.xlu0 %3984, %v3916
    %v3986 = vpop.permute.xlu0 %3985
    %3989 = vset.pattern.permute.xlu0 0
    %3990 = vperm.xlu0 %3989, %v3917
    %v3991 = vpop.permute.xlu0 %3990
    %v3993 = vmul.f32 %v3888, %v3921
    %v3994 = vmul.f32 %v3889, %v3926
    %v3995 = vmul.f32 %v3890, %v3931
    %v3996 = vmul.f32 %v3891, %v3936
    %v3997 = vmul.f32 %v3892, %v3941
    %v3998 = vmul.f32 %v3893, %v3946
    %v3999 = vmul.f32 %v3894, %v3951
    %v4000 = vmul.f32 %v3895, %v3956
    %v4001 = vmul.f32 %v3896, %v3961
    %v4002 = vmul.f32 %v3897, %v3966
    %v4003 = vmul.f32 %v3898, %v3971
    %v4004 = vmul.f32 %v3899, %v3976
    %v4005 = vmul.f32 %v3900, %v3981
    %v4006 = vmul.f32 %v3901, %v3986
    %v4007 = vmul.f32 %v3902, %v3991
    %v4008 = vadd.f32 %v3993, %v3994
    %v4009 = vadd.f32 %v4008, %v3995
    %v4010 = vadd.f32 %v4009, %v3996
    %v4011 = vadd.f32 %v4010, %v3997
    %v4012 = vadd.f32 %v4011, %v3998
    %v4013 = vadd.f32 %v4012, %v3999
    %v4014 = vadd.f32 %v4013, %v4000
    %v4015 = vadd.f32 %v4014, %v4001
    %v4016 = vadd.f32 %v4015, %v4002
    %v4017 = vadd.f32 %v4016, %v4003
    %v4018 = vadd.f32 %v4017, %v4004
    %v4019 = vadd.f32 %v4018, %v4005
    %v4020 = vadd.f32 %v4019, %v4006
    %v4021 = vadd.f32 %v4020, %v4007
    %v4022 = vrot.slane %v4021, 4
    %v4023 = vadd.f32 %v4021, %v4022
    %v4024 = vrot.slane %v4023, 2
    %v4025 = vadd.f32 %v4023, %v4024
    %v4026 = vrot.slane %v4025, 1
    %v4027 = vadd.f32 %v4025, %v4026
    %v4028 = vmul.f32 %v4027, 0.00390625
    %v4029 = vadd.f32 %v4028, 0.0
    %v4030 = vld [vmem:[#allocation2 + $0x7b] sm:$0xff]
    %v4031 = vld [vmem:[#allocation2 + $0x83] sm:$0xff]
    %v4032 = vld [vmem:[#allocation2 + $0x8b] sm:$0xff]
    %v4033 = vld [vmem:[#allocation2 + $0x93] sm:$0xff]
    %v4034 = vld [vmem:[#allocation2 + $0x9b] sm:$0xff]
    %v4035 = vld [vmem:[#allocation2 + $0xa3] sm:$0xff]
    %v4036 = vld [vmem:[#allocation2 + $0xab] sm:$0xff]
    %v4037 = vld [vmem:[#allocation2 + $0xb3] sm:$0xff]
    %v4038 = vld [vmem:[#allocation2 + $0xbb] sm:$0xff]
    %v4039 = vld [vmem:[#allocation2 + $0xc3] sm:$0xff]
    %v4040 = vld [vmem:[#allocation2 + $0xcb] sm:$0xff]
    %v4041 = vld [vmem:[#allocation2 + $0xd3] sm:$0xff]
    %v4042 = vld [vmem:[#allocation2 + $0xdb] sm:$0xff]
    %v4043 = vld [vmem:[#allocation2 + $0xe3] sm:$0xff]
    %v4044 = vld [vmem:[#allocation2 + $0xeb] sm:$0xff]
    %v4045 = vpack.c.bf16 %v4031, %v4030
    %v4046 = vpack.c.bf16 %v4033, %v4032
    %v4047 = vpack.c.bf16 %v4035, %v4034
    %v4048 = vpack.c.bf16 %v4037, %v4036
    %v4049 = vpack.c.bf16 %v4039, %v4038
    %v4050 = vpack.c.bf16 %v4041, %v4040
    %v4051 = vpack.c.bf16 %v4043, %v4042
    %v4052 = vpack.c.bf16 %v4044, %v4044
    %v4053 = vld [vmem:[#allocation2 + $0x7c] sm:$0xff]
    %v4054 = vld [vmem:[#allocation2 + $0x84] sm:$0xff]
    %v4055 = vld [vmem:[#allocation2 + $0x8c] sm:$0xff]
    %v4056 = vld [vmem:[#allocation2 + $0x94] sm:$0xff]
    %v4057 = vld [vmem:[#allocation2 + $0x9c] sm:$0xff]
    %v4058 = vld [vmem:[#allocation2 + $0xa4] sm:$0xff]
    %v4059 = vld [vmem:[#allocation2 + $0xac] sm:$0xff]
    %v4060 = vld [vmem:[#allocation2 + $0xb4] sm:$0xff]
    %v4061 = vld [vmem:[#allocation2 + $0xbc] sm:$0xff]
    %v4062 = vld [vmem:[#allocation2 + $0xc4] sm:$0xff]
    %v4063 = vld [vmem:[#allocation2 + $0xcc] sm:$0xff]
    %v4064 = vld [vmem:[#allocation2 + $0xd4] sm:$0xff]
    %v4065 = vld [vmem:[#allocation2 + $0xdc] sm:$0xff]
    %v4066 = vld [vmem:[#allocation2 + $0xe4] sm:$0xff]
    %v4067 = vld [vmem:[#allocation2 + $0xec] sm:$0xff]
    %v4068 = vpack.c.bf16 %v4054, %v4053
    %v4069 = vpack.c.bf16 %v4056, %v4055
    %v4070 = vpack.c.bf16 %v4058, %v4057
    %v4071 = vpack.c.bf16 %v4060, %v4059
    %v4072 = vpack.c.bf16 %v4062, %v4061
    %v4073 = vpack.c.bf16 %v4064, %v4063
    %v4074 = vpack.c.bf16 %v4066, %v4065
    %v4075 = vpack.c.bf16 %v4067, %v4067
    %4076 = vmatprep.subr.bf16.mxu0 0
    %4077 = vmatpush1.bf16.msra.mxu0 %v2231
    %4078 = vmatprep.subr.bf16.mxu0 0
    %4079 = vmatpush1.bf16.msra.mxu0 %v2230
    %4080 = vmatprep.subr.bf16.mxu0 0
    %4081 = vmatpush1.bf16.msra.mxu0 %v2229
    %4082 = vmatprep.subr.bf16.mxu0 0
    %4083 = vmatpush1.bf16.msra.mxu0 %v2228
    %4084 = vmatprep.subr.bf16.mxu0 0
    %4085 = vmatpush1.bf16.msra.mxu0 %v2227
    %4086 = vmatprep.subr.bf16.mxu0 0
    %4087 = vmatpush1.bf16.msra.mxu0 %v2226
    %4088 = vmatprep.subr.bf16.mxu0 0
    %4089 = vmatpush1.bf16.msra.mxu0 %v2225
    %4090 = vmatprep.subr.bf16.mxu0 0
    %4091 = vmatpush1.bf16.msra.mxu0 %v2224
    %4092 = vmatprep.subr.bf16.mxu0 0
    %4093 = vmatpush2.bf16.msra.mxu0 0
    %4094 = vmatprep.subr.bf16.mxu0 0
    %4095 = vmatpush2.bf16.msra.mxu0 0
    %4096 = vmatprep.subr.bf16.mxu0 0
    %4097 = vmatpush2.bf16.msra.mxu0 0
    %4098 = vmatprep.subr.bf16.mxu0 0
    %4099 = vmatpush2.bf16.msra.mxu0 0
    %4100 = vmatprep.subr.bf16.mxu0 0
    %4101 = vmatpush2.bf16.msra.mxu0 0
    %4102 = vmatprep.subr.bf16.mxu0 0
    %4103 = vmatpush2.bf16.msra.mxu0 0
    %4104 = vmatprep.subr.bf16.mxu0 0
    %4105 = vmatpush2.bf16.msra.mxu0 0
    %4106 = vmatprep.subr.bf16.mxu0 0
    %4107 = vmatpush2.bf16.msra.mxu0 0
    %4108 = vmatprep.mubr.bf16.mxu0 0
    %4109 = vmatmul.mubr.bf16.gmra.mxu0 %v4068
    %v4110 = vpop.f32.mrf.mxu0
    %v4111 = vadd.f32 0.0, %v4110
    %v4112 = vpop.f32.mrf.mxu0
    %v4113 = vpop.f32.mrf.mxu0
    %v4114 = vadd.f32 0.0, %v4113
    %v4115 = vpop.f32.mrf.mxu0
    %4116 = vmatprep.mubr.bf16.mxu0 0
    %4117 = vmatmul.mubr.bf16.gmra.mxu0 %v4069
    %v4118 = vpop.f32.mrf.mxu0
    %v4119 = vadd.f32 0.0, %v4118
    %v4120 = vpop.f32.mrf.mxu0
    %v4121 = vpop.f32.mrf.mxu0
    %v4122 = vadd.f32 0.0, %v4121
    %v4123 = vpop.f32.mrf.mxu0
    %4124 = vmatprep.mubr.bf16.mxu0 0
    %4125 = vmatmul.mubr.bf16.gmra.mxu0 %v4070
    %v4126 = vpop.f32.mrf.mxu0
    %v4127 = vadd.f32 0.0, %v4126
    %v4128 = vpop.f32.mrf.mxu0
    %v4129 = vpop.f32.mrf.mxu0
    %v4130 = vadd.f32 0.0, %v4129
    %v4131 = vpop.f32.mrf.mxu0
    %4132 = vmatprep.mubr.bf16.mxu0 0
    %4133 = vmatmul.mubr.bf16.gmra.mxu0 %v4071
    %v4134 = vpop.f32.mrf.mxu0
    %v4135 = vadd.f32 0.0, %v4134
    %v4136 = vpop.f32.mrf.mxu0
    %v4137 = vpop.f32.mrf.mxu0
    %v4138 = vadd.f32 0.0, %v4137
    %v4139 = vpop.f32.mrf.mxu0
    %4140 = vmatprep.mubr.bf16.mxu0 0
    %4141 = vmatmul.mubr.bf16.gmra.mxu0 %v4072
    %v4142 = vpop.f32.mrf.mxu0
    %v4143 = vadd.f32 0.0, %v4142
    %v4144 = vpop.f32.mrf.mxu0
    %v4145 = vpop.f32.mrf.mxu0
    %v4146 = vadd.f32 0.0, %v4145
    %v4147 = vpop.f32.mrf.mxu0
    %4148 = vmatprep.mubr.bf16.mxu0 0
    %4149 = vmatmul.mubr.bf16.gmra.mxu0 %v4073
    %v4150 = vpop.f32.mrf.mxu0
    %v4151 = vadd.f32 0.0, %v4150
    %v4152 = vpop.f32.mrf.mxu0
    %v4153 = vpop.f32.mrf.mxu0
    %v4154 = vadd.f32 0.0, %v4153
    %v4155 = vpop.f32.mrf.mxu0
    %4156 = vmatprep.mubr.bf16.mxu0 0
    %4157 = vmatmul.mubr.bf16.gmra.mxu0 %v4074
    %v4158 = vpop.f32.mrf.mxu0
    %v4159 = vadd.f32 0.0, %v4158
    %v4160 = vpop.f32.mrf.mxu0
    %v4161 = vpop.f32.mrf.mxu0
    %v4162 = vadd.f32 0.0, %v4161
    %v4163 = vpop.f32.mrf.mxu0
    %4164 = vmatprep.mubr.bf16.mxu0 0
    %4165 = vmatmul.mubr.bf16.gmra.mxu0 %v4075
    %v4166 = vpop.f32.mrf.mxu0
    %v4167 = vadd.f32 0.0, %v4166
    %v4168 = vpop.f32.mrf.mxu0
    %v4169 = vpop.f32.mrf.mxu0
    %v4170 = vpop.f32.mrf.mxu0
    %4171 = vdwg.mxu0
    %4172 = vmatprep.subr.bf16.mxu0 0
    %4173 = vmatpush1.bf16.msra.mxu0 %v2375
    %4174 = vmatprep.subr.bf16.mxu0 0
    %4175 = vmatpush1.bf16.msra.mxu0 %v2374
    %4176 = vmatprep.subr.bf16.mxu0 0
    %4177 = vmatpush1.bf16.msra.mxu0 %v2373
    %4178 = vmatprep.subr.bf16.mxu0 0
    %4179 = vmatpush1.bf16.msra.mxu0 %v2372
    %4180 = vmatprep.subr.bf16.mxu0 0
    %4181 = vmatpush1.bf16.msra.mxu0 %v2371
    %4182 = vmatprep.subr.bf16.mxu0 0
    %4183 = vmatpush1.bf16.msra.mxu0 %v2370
    %4184 = vmatprep.subr.bf16.mxu0 0
    %4185 = vmatpush1.bf16.msra.mxu0 %v2369
    %4186 = vmatprep.subr.bf16.mxu0 0
    %4187 = vmatpush1.bf16.msra.mxu0 %v2368
    %4188 = vmatprep.subr.bf16.mxu0 0
    %4189 = vmatpush2.bf16.msra.mxu0 0
    %4190 = vmatprep.subr.bf16.mxu0 0
    %4191 = vmatpush2.bf16.msra.mxu0 0
    %4192 = vmatprep.subr.bf16.mxu0 0
    %4193 = vmatpush2.bf16.msra.mxu0 0
    %4194 = vmatprep.subr.bf16.mxu0 0
    %4195 = vmatpush2.bf16.msra.mxu0 0
    %4196 = vmatprep.subr.bf16.mxu0 0
    %4197 = vmatpush2.bf16.msra.mxu0 0
    %4198 = vmatprep.subr.bf16.mxu0 0
    %4199 = vmatpush2.bf16.msra.mxu0 0
    %4200 = vmatprep.subr.bf16.mxu0 0
    %4201 = vmatpush2.bf16.msra.mxu0 0
    %4202 = vmatprep.subr.bf16.mxu0 0
    %4203 = vmatpush2.bf16.msra.mxu0 0
    %4204 = vmatprep.mubr.bf16.mxu0 0
    %4205 = vmatmul.mubr.bf16.gmra.mxu0 %v4045
    %v4206 = vpop.f32.mrf.mxu0
    %v4207 = vadd.f32 %v4111, %v4206
    %v4208 = vpop.f32.mrf.mxu0
    %v4209 = vpop.f32.mrf.mxu0
    %v4210 = vadd.f32 %v4114, %v4209
    %v4211 = vpop.f32.mrf.mxu0
    %4212 = vmatprep.mubr.bf16.mxu0 0
    %4213 = vmatmul.mubr.bf16.gmra.mxu0 %v4046
    %v4214 = vpop.f32.mrf.mxu0
    %v4215 = vadd.f32 %v4119, %v4214
    %v4216 = vpop.f32.mrf.mxu0
    %v4217 = vpop.f32.mrf.mxu0
    %v4218 = vadd.f32 %v4122, %v4217
    %v4219 = vpop.f32.mrf.mxu0
    %4220 = vmatprep.mubr.bf16.mxu0 0
    %4221 = vmatmul.mubr.bf16.gmra.mxu0 %v4047
    %v4222 = vpop.f32.mrf.mxu0
    %v4223 = vadd.f32 %v4127, %v4222
    %v4224 = vpop.f32.mrf.mxu0
    %v4225 = vpop.f32.mrf.mxu0
    %v4226 = vadd.f32 %v4130, %v4225
    %v4227 = vpop.f32.mrf.mxu0
    %4228 = vmatprep.mubr.bf16.mxu0 0
    %4229 = vmatmul.mubr.bf16.gmra.mxu0 %v4048
    %v4230 = vpop.f32.mrf.mxu0
    %v4231 = vadd.f32 %v4135, %v4230
    %v4232 = vpop.f32.mrf.mxu0
    %v4233 = vpop.f32.mrf.mxu0
    %v4234 = vadd.f32 %v4138, %v4233
    %v4235 = vpop.f32.mrf.mxu0
    %4236 = vmatprep.mubr.bf16.mxu0 0
    %4237 = vmatmul.mubr.bf16.gmra.mxu0 %v4049
    %v4238 = vpop.f32.mrf.mxu0
    %v4239 = vadd.f32 %v4143, %v4238
    %v4240 = vpop.f32.mrf.mxu0
    %v4241 = vpop.f32.mrf.mxu0
    %v4242 = vadd.f32 %v4146, %v4241
    %v4243 = vpop.f32.mrf.mxu0
    %4244 = vmatprep.mubr.bf16.mxu0 0
    %4245 = vmatmul.mubr.bf16.gmra.mxu0 %v4050
    %v4246 = vpop.f32.mrf.mxu0
    %v4247 = vadd.f32 %v4151, %v4246
    %v4248 = vpop.f32.mrf.mxu0
    %v4249 = vpop.f32.mrf.mxu0
    %v4250 = vadd.f32 %v4154, %v4249
    %v4251 = vpop.f32.mrf.mxu0
    %4252 = vmatprep.mubr.bf16.mxu0 0
    %4253 = vmatmul.mubr.bf16.gmra.mxu0 %v4051
    %v4254 = vpop.f32.mrf.mxu0
    %v4255 = vadd.f32 %v4159, %v4254
    %v4256 = vpop.f32.mrf.mxu0
    %v4257 = vpop.f32.mrf.mxu0
    %v4258 = vadd.f32 %v4162, %v4257
    %v4259 = vpop.f32.mrf.mxu0
    %4260 = vmatprep.mubr.bf16.mxu0 0
    %4261 = vmatmul.mubr.bf16.gmra.mxu0 %v4052
    %v4262 = vpop.f32.mrf.mxu0
    %v4263 = vadd.f32 %v4167, %v4262
    %v4264 = vpop.f32.mrf.mxu0
    %v4265 = vpop.f32.mrf.mxu0
    %v4266 = vpop.f32.mrf.mxu0
    %4267 = vdwg.mxu0
    %v4268 = vld [vmem:[#allocation2 + $0x7d] sm:$0xff]
    %v4269 = vld [vmem:[#allocation2 + $0x85] sm:$0xff]
    %v4270 = vld [vmem:[#allocation2 + $0x8d] sm:$0xff]
    %v4271 = vld [vmem:[#allocation2 + $0x95] sm:$0xff]
    %v4272 = vld [vmem:[#allocation2 + $0x9d] sm:$0xff]
    %v4273 = vld [vmem:[#allocation2 + $0xa5] sm:$0xff]
    %v4274 = vld [vmem:[#allocation2 + $0xad] sm:$0xff]
    %v4275 = vld [vmem:[#allocation2 + $0xb5] sm:$0xff]
    %v4276 = vld [vmem:[#allocation2 + $0xbd] sm:$0xff]
    %v4277 = vld [vmem:[#allocation2 + $0xc5] sm:$0xff]
    %v4278 = vld [vmem:[#allocation2 + $0xcd] sm:$0xff]
    %v4279 = vld [vmem:[#allocation2 + $0xd5] sm:$0xff]
    %v4280 = vld [vmem:[#allocation2 + $0xdd] sm:$0xff]
    %v4281 = vld [vmem:[#allocation2 + $0xe5] sm:$0xff]
    %v4282 = vld [vmem:[#allocation2 + $0xed] sm:$0xff]
    %v4283 = vpack.c.bf16 %v4269, %v4268
    %v4284 = vpack.c.bf16 %v4271, %v4270
    %v4285 = vpack.c.bf16 %v4273, %v4272
    %v4286 = vpack.c.bf16 %v4275, %v4274
    %v4287 = vpack.c.bf16 %v4277, %v4276
    %v4288 = vpack.c.bf16 %v4279, %v4278
    %v4289 = vpack.c.bf16 %v4281, %v4280
    %v4290 = vpack.c.bf16 %v4282, %v4282
    %4291 = vmatprep.subr.bf16.mxu0 0
    %4292 = vmatpush1.bf16.msra.mxu0 %v2558
    %4293 = vmatprep.subr.bf16.mxu0 0
    %4294 = vmatpush1.bf16.msra.mxu0 %v2557
    %4295 = vmatprep.subr.bf16.mxu0 0
    %4296 = vmatpush1.bf16.msra.mxu0 %v2556
    %4297 = vmatprep.subr.bf16.mxu0 0
    %4298 = vmatpush1.bf16.msra.mxu0 %v2555
    %4299 = vmatprep.subr.bf16.mxu0 0
    %4300 = vmatpush1.bf16.msra.mxu0 %v2554
    %4301 = vmatprep.subr.bf16.mxu0 0
    %4302 = vmatpush1.bf16.msra.mxu0 %v2553
    %4303 = vmatprep.subr.bf16.mxu0 0
    %4304 = vmatpush1.bf16.msra.mxu0 %v2552
    %4305 = vmatprep.subr.bf16.mxu0 0
    %4306 = vmatpush1.bf16.msra.mxu0 %v2551
    %4307 = vmatprep.subr.bf16.mxu0 0
    %4308 = vmatpush2.bf16.msra.mxu0 0
    %4309 = vmatprep.subr.bf16.mxu0 0
    %4310 = vmatpush2.bf16.msra.mxu0 0
    %4311 = vmatprep.subr.bf16.mxu0 0
    %4312 = vmatpush2.bf16.msra.mxu0 0
    %4313 = vmatprep.subr.bf16.mxu0 0
    %4314 = vmatpush2.bf16.msra.mxu0 0
    %4315 = vmatprep.subr.bf16.mxu0 0
    %4316 = vmatpush2.bf16.msra.mxu0 0
    %4317 = vmatprep.subr.bf16.mxu0 0
    %4318 = vmatpush2.bf16.msra.mxu0 0
    %4319 = vmatprep.subr.bf16.mxu0 0
    %4320 = vmatpush2.bf16.msra.mxu0 0
    %4321 = vmatprep.subr.bf16.mxu0 0
    %4322 = vmatpush2.bf16.msra.mxu0 0
    %4323 = vmatprep.mubr.bf16.mxu0 0
    %4324 = vmatmul.mubr.bf16.gmra.mxu0 %v4283
    %v4325 = vpop.f32.mrf.mxu0
    %v4326 = vadd.f32 0.0, %v4325
    %v4327 = vpop.f32.mrf.mxu0
    %v4328 = vpop.f32.mrf.mxu0
    %v4329 = vadd.f32 0.0, %v4328
    %v4330 = vpop.f32.mrf.mxu0
    %4331 = vmatprep.mubr.bf16.mxu0 0
    %4332 = vmatmul.mubr.bf16.gmra.mxu0 %v4284
    %v4333 = vpop.f32.mrf.mxu0
    %v4334 = vadd.f32 0.0, %v4333
    %v4335 = vpop.f32.mrf.mxu0
    %v4336 = vpop.f32.mrf.mxu0
    %v4337 = vadd.f32 0.0, %v4336
    %v4338 = vpop.f32.mrf.mxu0
    %4339 = vmatprep.mubr.bf16.mxu0 0
    %4340 = vmatmul.mubr.bf16.gmra.mxu0 %v4285
    %v4341 = vpop.f32.mrf.mxu0
    %v4342 = vadd.f32 0.0, %v4341
    %v4343 = vpop.f32.mrf.mxu0
    %v4344 = vpop.f32.mrf.mxu0
    %v4345 = vadd.f32 0.0, %v4344
    %v4346 = vpop.f32.mrf.mxu0
    %4347 = vmatprep.mubr.bf16.mxu0 0
    %4348 = vmatmul.mubr.bf16.gmra.mxu0 %v4286
    %v4349 = vpop.f32.mrf.mxu0
    %v4350 = vadd.f32 0.0, %v4349
    %v4351 = vpop.f32.mrf.mxu0
    %v4352 = vpop.f32.mrf.mxu0
    %v4353 = vadd.f32 0.0, %v4352
    %v4354 = vpop.f32.mrf.mxu0
    %4355 = vmatprep.mubr.bf16.mxu0 0
    %4356 = vmatmul.mubr.bf16.gmra.mxu0 %v4287
    %v4357 = vpop.f32.mrf.mxu0
    %v4358 = vadd.f32 0.0, %v4357
    %v4359 = vpop.f32.mrf.mxu0
    %v4360 = vpop.f32.mrf.mxu0
    %v4361 = vadd.f32 0.0, %v4360
    %v4362 = vpop.f32.mrf.mxu0
    %4363 = vmatprep.mubr.bf16.mxu0 0
    %4364 = vmatmul.mubr.bf16.gmra.mxu0 %v4288
    %v4365 = vpop.f32.mrf.mxu0
    %v4366 = vadd.f32 0.0, %v4365
    %v4367 = vpop.f32.mrf.mxu0
    %v4368 = vpop.f32.mrf.mxu0
    %v4369 = vadd.f32 0.0, %v4368
    %v4370 = vpop.f32.mrf.mxu0
    %4371 = vmatprep.mubr.bf16.mxu0 0
    %4372 = vmatmul.mubr.bf16.gmra.mxu0 %v4289
    %v4373 = vpop.f32.mrf.mxu0
    %v4374 = vadd.f32 0.0, %v4373
    %v4375 = vpop.f32.mrf.mxu0
    %v4376 = vpop.f32.mrf.mxu0
    %v4377 = vadd.f32 0.0, %v4376
    %v4378 = vpop.f32.mrf.mxu0
    %4379 = vmatprep.mubr.bf16.mxu0 0
    %4380 = vmatmul.mubr.bf16.gmra.mxu0 %v4290
    %v4381 = vpop.f32.mrf.mxu0
    %v4382 = vadd.f32 0.0, %v4381
    %v4383 = vpop.f32.mrf.mxu0
    %v4384 = vpop.f32.mrf.mxu0
    %v4385 = vpop.f32.mrf.mxu0
    %4386 = vdwg.mxu0
    %v4387 = vadd.f32 %v4207, %v4326
    %v4388 = vadd.f32 %v4210, %v4329
    %v4389 = vadd.f32 %v4215, %v4334
    %v4390 = vadd.f32 %v4218, %v4337
    %v4391 = vadd.f32 %v4223, %v4342
    %v4392 = vadd.f32 %v4226, %v4345
    %v4393 = vadd.f32 %v4231, %v4350
    %v4394 = vadd.f32 %v4234, %v4353
    %v4395 = vadd.f32 %v4239, %v4358
    %v4396 = vadd.f32 %v4242, %v4361
    %v4397 = vadd.f32 %v4247, %v4366
    %v4398 = vadd.f32 %v4250, %v4369
    %v4399 = vadd.f32 %v4255, %v4374
    %v4400 = vadd.f32 %v4258, %v4377
    %v4401 = vadd.f32 %v4263, %v4382
    %v4402 = vld [vmem:[#allocation2 + $0x8f] sm:$0xff]
    %v4403 = vld [vmem:[#allocation2 + $0x97] sm:$0xff]
    %v4404 = vld [vmem:[#allocation2 + $0x9f] sm:$0xff]
    %v4405 = vld [vmem:[#allocation2 + $0xa7] sm:$0xff]
    %v4406 = vld [vmem:[#allocation2 + $0xaf] sm:$0xff]
    %v4407 = vld [vmem:[#allocation2 + $0xb7] sm:$0xff]
    %v4408 = vld [vmem:[#allocation2 + $0xbf] sm:$0xff]
    %v4409 = vld [vmem:[#allocation2 + $0xc7] sm:$0xff]
    %v4410 = vld [vmem:[#allocation2 + $0xcf] sm:$0xff]
    %v4411 = vld [vmem:[#allocation2 + $0xd7] sm:$0xff]
    %v4412 = vld [vmem:[#allocation2 + $0xdf] sm:$0xff]
    %v4413 = vld [vmem:[#allocation2 + $0xe7] sm:$0xff]
    %v4414 = vld [vmem:[#allocation2 + $0xef] sm:$0xff]
    %v4415 = vld [vmem:[#allocation2 + $0xf7] sm:$0xff]
    %v4416 = vld [vmem:[#allocation2 + $0xff] sm:$0xff]
    %v4417 = vpack.c.bf16 %v4403, %v4402
    %v4418 = vpack.c.bf16 %v4405, %v4404
    %v4419 = vpack.c.bf16 %v4407, %v4406
    %v4420 = vpack.c.bf16 %v4409, %v4408
    %v4421 = vpack.c.bf16 %v4411, %v4410
    %v4422 = vpack.c.bf16 %v4413, %v4412
    %v4423 = vpack.c.bf16 %v4415, %v4414
    %v4424 = vpack.c.bf16 %v4416, %v4416
    %4425 = vmatprep.subr.bf16.mxu0 0
    %4426 = vmatpush1.bf16.msra.mxu0 %v2756
    %4427 = vmatprep.subr.bf16.mxu0 0
    %4428 = vmatpush1.bf16.msra.mxu0 %v2755
    %4429 = vmatprep.subr.bf16.mxu0 0
    %4430 = vmatpush1.bf16.msra.mxu0 %v2754
    %4431 = vmatprep.subr.bf16.mxu0 0
    %4432 = vmatpush1.bf16.msra.mxu0 %v2753
    %4433 = vmatprep.subr.bf16.mxu0 0
    %4434 = vmatpush1.bf16.msra.mxu0 %v2752
    %4435 = vmatprep.subr.bf16.mxu0 0
    %4436 = vmatpush1.bf16.msra.mxu0 %v2751
    %4437 = vmatprep.subr.bf16.mxu0 0
    %4438 = vmatpush1.bf16.msra.mxu0 %v2750
    %4439 = vmatprep.subr.bf16.mxu0 0
    %4440 = vmatpush1.bf16.msra.mxu0 %v2749
    %4441 = vmatprep.subr.bf16.mxu0 0
    %4442 = vmatpush2.bf16.msra.mxu0 0
    %4443 = vmatprep.subr.bf16.mxu0 0
    %4444 = vmatpush2.bf16.msra.mxu0 0
    %4445 = vmatprep.subr.bf16.mxu0 0
    %4446 = vmatpush2.bf16.msra.mxu0 0
    %4447 = vmatprep.subr.bf16.mxu0 0
    %4448 = vmatpush2.bf16.msra.mxu0 0
    %4449 = vmatprep.subr.bf16.mxu0 0
    %4450 = vmatpush2.bf16.msra.mxu0 0
    %4451 = vmatprep.subr.bf16.mxu0 0
    %4452 = vmatpush2.bf16.msra.mxu0 0
    %4453 = vmatprep.subr.bf16.mxu0 0
    %4454 = vmatpush2.bf16.msra.mxu0 0
    %4455 = vmatprep.subr.bf16.mxu0 0
    %4456 = vmatpush2.bf16.msra.mxu0 0
    %4457 = vmatprep.mubr.bf16.mxu0 0
    %4458 = vmatmul.mubr.bf16.gmra.mxu0 %v4417
    %v4459 = vpop.f32.mrf.mxu0
    %v4460 = vadd.f32 0.0, %v4459
    %v4461 = vpop.f32.mrf.mxu0
    %v4462 = vpop.f32.mrf.mxu0
    %v4463 = vadd.f32 0.0, %v4462
    %v4464 = vpop.f32.mrf.mxu0
    %4465 = vmatprep.mubr.bf16.mxu0 0
    %4466 = vmatmul.mubr.bf16.gmra.mxu0 %v4418
    %v4467 = vpop.f32.mrf.mxu0
    %v4468 = vadd.f32 0.0, %v4467
    %v4469 = vpop.f32.mrf.mxu0
    %v4470 = vpop.f32.mrf.mxu0
    %v4471 = vadd.f32 0.0, %v4470
    %v4472 = vpop.f32.mrf.mxu0
    %4473 = vmatprep.mubr.bf16.mxu0 0
    %4474 = vmatmul.mubr.bf16.gmra.mxu0 %v4419
    %v4475 = vpop.f32.mrf.mxu0
    %v4476 = vadd.f32 0.0, %v4475
    %v4477 = vpop.f32.mrf.mxu0
    %v4478 = vpop.f32.mrf.mxu0
    %v4479 = vadd.f32 0.0, %v4478
    %v4480 = vpop.f32.mrf.mxu0
    %4481 = vmatprep.mubr.bf16.mxu0 0
    %4482 = vmatmul.mubr.bf16.gmra.mxu0 %v4420
    %v4483 = vpop.f32.mrf.mxu0
    %v4484 = vadd.f32 0.0, %v4483
    %v4485 = vpop.f32.mrf.mxu0
    %v4486 = vpop.f32.mrf.mxu0
    %v4487 = vadd.f32 0.0, %v4486
    %v4488 = vpop.f32.mrf.mxu0
    %4489 = vmatprep.mubr.bf16.mxu0 0
    %4490 = vmatmul.mubr.bf16.gmra.mxu0 %v4421
    %v4491 = vpop.f32.mrf.mxu0
    %v4492 = vadd.f32 0.0, %v4491
    %v4493 = vpop.f32.mrf.mxu0
    %v4494 = vpop.f32.mrf.mxu0
    %v4495 = vadd.f32 0.0, %v4494
    %v4496 = vpop.f32.mrf.mxu0
    %4497 = vmatprep.mubr.bf16.mxu0 0
    %4498 = vmatmul.mubr.bf16.gmra.mxu0 %v4422
    %v4499 = vpop.f32.mrf.mxu0
    %v4500 = vadd.f32 0.0, %v4499
    %v4501 = vpop.f32.mrf.mxu0
    %v4502 = vpop.f32.mrf.mxu0
    %v4503 = vadd.f32 0.0, %v4502
    %v4504 = vpop.f32.mrf.mxu0
    %4505 = vmatprep.mubr.bf16.mxu0 0
    %4506 = vmatmul.mubr.bf16.gmra.mxu0 %v4423
    %v4507 = vpop.f32.mrf.mxu0
    %v4508 = vadd.f32 0.0, %v4507
    %v4509 = vpop.f32.mrf.mxu0
    %v4510 = vpop.f32.mrf.mxu0
    %v4511 = vadd.f32 0.0, %v4510
    %v4512 = vpop.f32.mrf.mxu0
    %4513 = vmatprep.mubr.bf16.mxu0 0
    %4514 = vmatmul.mubr.bf16.gmra.mxu0 %v4424
    %v4515 = vpop.f32.mrf.mxu0
    %v4516 = vadd.f32 0.0, %v4515
    %v4517 = vpop.f32.mrf.mxu0
    %v4518 = vpop.f32.mrf.mxu0
    %v4519 = vpop.f32.mrf.mxu0
    %4520 = vdwg.mxu0
    %v4521 = vadd.f32 %v4387, %v4460
    %v4522 = vadd.f32 %v4388, %v4463
    %v4523 = vadd.f32 %v4389, %v4468
    %v4524 = vadd.f32 %v4390, %v4471
    %v4525 = vadd.f32 %v4391, %v4476
    %v4526 = vadd.f32 %v4392, %v4479
    %v4527 = vadd.f32 %v4393, %v4484
    %v4528 = vadd.f32 %v4394, %v4487
    %v4529 = vadd.f32 %v4395, %v4492
    %v4530 = vadd.f32 %v4396, %v4495
    %v4531 = vadd.f32 %v4397, %v4500
    %v4532 = vadd.f32 %v4398, %v4503
    %v4533 = vadd.f32 %v4399, %v4508
    %v4534 = vadd.f32 %v4400, %v4511
    %v4535 = vadd.f32 %v4401, %v4516
    %v4536 = vld [vmem:[#allocation2 + $0x90] sm:$0xff]
    %v4537 = vld [vmem:[#allocation2 + $0x98] sm:$0xff]
    %v4538 = vld [vmem:[#allocation2 + $0xa0] sm:$0xff]
    %v4539 = vld [vmem:[#allocation2 + $0xa8] sm:$0xff]
    %v4540 = vld [vmem:[#allocation2 + $0xb0] sm:$0xff]
    %v4541 = vld [vmem:[#allocation2 + $0xb8] sm:$0xff]
    %v4542 = vld [vmem:[#allocation2 + $0xc0] sm:$0xff]
    %v4543 = vld [vmem:[#allocation2 + $0xc8] sm:$0xff]
    %v4544 = vld [vmem:[#allocation2 + $0xd0] sm:$0xff]
    %v4545 = vld [vmem:[#allocation2 + $0xd8] sm:$0xff]
    %v4546 = vld [vmem:[#allocation2 + $0xe0] sm:$0xff]
    %v4547 = vld [vmem:[#allocation2 + $0xe8] sm:$0xff]
    %v4548 = vld [vmem:[#allocation2 + $0xf0] sm:$0xff]
    %v4549 = vld [vmem:[#allocation2 + $0xf8] sm:$0xff]
    %v4550 = vld [vmem:[#allocation2 + $0x100] sm:$0xff]
    %v4551 = vpack.c.bf16 %v4537, %v4536
    %v4552 = vpack.c.bf16 %v4539, %v4538
    %v4553 = vpack.c.bf16 %v4541, %v4540
    %v4554 = vpack.c.bf16 %v4543, %v4542
    %v4555 = vpack.c.bf16 %v4545, %v4544
    %v4556 = vpack.c.bf16 %v4547, %v4546
    %v4557 = vpack.c.bf16 %v4549, %v4548
    %v4558 = vpack.c.bf16 %v4550, %v4550
    %4559 = vmatprep.subr.bf16.mxu0 0
    %4560 = vmatpush1.bf16.msra.mxu0 %v2954
    %4561 = vmatprep.subr.bf16.mxu0 0
    %4562 = vmatpush1.bf16.msra.mxu0 %v2953
    %4563 = vmatprep.subr.bf16.mxu0 0
    %4564 = vmatpush1.bf16.msra.mxu0 %v2952
    %4565 = vmatprep.subr.bf16.mxu0 0
    %4566 = vmatpush1.bf16.msra.mxu0 %v2951
    %4567 = vmatprep.subr.bf16.mxu0 0
    %4568 = vmatpush1.bf16.msra.mxu0 %v2950
    %4569 = vmatprep.subr.bf16.mxu0 0
    %4570 = vmatpush1.bf16.msra.mxu0 %v2949
    %4571 = vmatprep.subr.bf16.mxu0 0
    %4572 = vmatpush1.bf16.msra.mxu0 %v2948
    %4573 = vmatprep.subr.bf16.mxu0 0
    %4574 = vmatpush1.bf16.msra.mxu0 %v2947
    %4575 = vmatprep.subr.bf16.mxu0 0
    %4576 = vmatpush2.bf16.msra.mxu0 0
    %4577 = vmatprep.subr.bf16.mxu0 0
    %4578 = vmatpush2.bf16.msra.mxu0 0
    %4579 = vmatprep.subr.bf16.mxu0 0
    %4580 = vmatpush2.bf16.msra.mxu0 0
    %4581 = vmatprep.subr.bf16.mxu0 0
    %4582 = vmatpush2.bf16.msra.mxu0 0
    %4583 = vmatprep.subr.bf16.mxu0 0
    %4584 = vmatpush2.bf16.msra.mxu0 0
    %4585 = vmatprep.subr.bf16.mxu0 0
    %4586 = vmatpush2.bf16.msra.mxu0 0
    %4587 = vmatprep.subr.bf16.mxu0 0
    %4588 = vmatpush2.bf16.msra.mxu0 0
    %4589 = vmatprep.subr.bf16.mxu0 0
    %4590 = vmatpush2.bf16.msra.mxu0 0
    %4591 = vmatprep.mubr.bf16.mxu0 0
    %4592 = vmatmul.mubr.bf16.gmra.mxu0 %v4551
    %v4593 = vpop.f32.mrf.mxu0
    %v4594 = vadd.f32 0.0, %v4593
    %v4595 = vpop.f32.mrf.mxu0
    %v4596 = vpop.f32.mrf.mxu0
    %v4597 = vadd.f32 0.0, %v4596
    %v4598 = vpop.f32.mrf.mxu0
    %4599 = vmatprep.mubr.bf16.mxu0 0
    %4600 = vmatmul.mubr.bf16.gmra.mxu0 %v4552
    %v4601 = vpop.f32.mrf.mxu0
    %v4602 = vadd.f32 0.0, %v4601
    %v4603 = vpop.f32.mrf.mxu0
    %v4604 = vpop.f32.mrf.mxu0
    %v4605 = vadd.f32 0.0, %v4604
    %v4606 = vpop.f32.mrf.mxu0
    %4607 = vmatprep.mubr.bf16.mxu0 0
    %4608 = vmatmul.mubr.bf16.gmra.mxu0 %v4553
    %v4609 = vpop.f32.mrf.mxu0
    %v4610 = vadd.f32 0.0, %v4609
    %v4611 = vpop.f32.mrf.mxu0
    %v4612 = vpop.f32.mrf.mxu0
    %v4613 = vadd.f32 0.0, %v4612
    %v4614 = vpop.f32.mrf.mxu0
    %4615 = vmatprep.mubr.bf16.mxu0 0
    %4616 = vmatmul.mubr.bf16.gmra.mxu0 %v4554
    %v4617 = vpop.f32.mrf.mxu0
    %v4618 = vadd.f32 0.0, %v4617
    %v4619 = vpop.f32.mrf.mxu0
    %v4620 = vpop.f32.mrf.mxu0
    %v4621 = vadd.f32 0.0, %v4620
    %v4622 = vpop.f32.mrf.mxu0
    %4623 = vmatprep.mubr.bf16.mxu0 0
    %4624 = vmatmul.mubr.bf16.gmra.mxu0 %v4555
    %v4625 = vpop.f32.mrf.mxu0
    %v4626 = vadd.f32 0.0, %v4625
    %v4627 = vpop.f32.mrf.mxu0
    %v4628 = vpop.f32.mrf.mxu0
    %v4629 = vadd.f32 0.0, %v4628
    %v4630 = vpop.f32.mrf.mxu0
    %4631 = vmatprep.mubr.bf16.mxu0 0
    %4632 = vmatmul.mubr.bf16.gmra.mxu0 %v4556
    %v4633 = vpop.f32.mrf.mxu0
    %v4634 = vadd.f32 0.0, %v4633
    %v4635 = vpop.f32.mrf.mxu0
    %v4636 = vpop.f32.mrf.mxu0
    %v4637 = vadd.f32 0.0, %v4636
    %v4638 = vpop.f32.mrf.mxu0
    %4639 = vmatprep.mubr.bf16.mxu0 0
    %4640 = vmatmul.mubr.bf16.gmra.mxu0 %v4557
    %v4641 = vpop.f32.mrf.mxu0
    %v4642 = vadd.f32 0.0, %v4641
    %v4643 = vpop.f32.mrf.mxu0
    %v4644 = vpop.f32.mrf.mxu0
    %v4645 = vadd.f32 0.0, %v4644
    %v4646 = vpop.f32.mrf.mxu0
    %4647 = vmatprep.mubr.bf16.mxu0 0
    %4648 = vmatmul.mubr.bf16.gmra.mxu0 %v4558
    %v4649 = vpop.f32.mrf.mxu0
    %v4650 = vadd.f32 0.0, %v4649
    %v4651 = vpop.f32.mrf.mxu0
    %v4652 = vpop.f32.mrf.mxu0
    %v4653 = vpop.f32.mrf.mxu0
    %4654 = vdwg.mxu0
    %v4655 = vadd.f32 %v4521, %v4594
    %v4656 = vadd.f32 %v4522, %v4597
    %v4657 = vadd.f32 %v4523, %v4602
    %v4658 = vadd.f32 %v4524, %v4605
    %v4659 = vadd.f32 %v4525, %v4610
    %v4660 = vadd.f32 %v4526, %v4613
    %v4661 = vadd.f32 %v4527, %v4618
    %v4662 = vadd.f32 %v4528, %v4621
    %v4663 = vadd.f32 %v4529, %v4626
    %v4664 = vadd.f32 %v4530, %v4629
    %v4665 = vadd.f32 %v4531, %v4634
    %v4666 = vadd.f32 %v4532, %v4637
    %v4667 = vadd.f32 %v4533, %v4642
    %v4668 = vadd.f32 %v4534, %v4645
    %v4669 = vadd.f32 %v4535, %v4650
    %v4670 = vld [vmem:[#allocation2 + $0x91] sm:$0xff]
    %v4671 = vld [vmem:[#allocation2 + $0x99] sm:$0xff]
    %v4672 = vld [vmem:[#allocation2 + $0xa1] sm:$0xff]
    %v4673 = vld [vmem:[#allocation2 + $0xa9] sm:$0xff]
    %v4674 = vld [vmem:[#allocation2 + $0xb1] sm:$0xff]
    %v4675 = vld [vmem:[#allocation2 + $0xb9] sm:$0xff]
    %v4676 = vld [vmem:[#allocation2 + $0xc1] sm:$0xff]
    %v4677 = vld [vmem:[#allocation2 + $0xc9] sm:$0xff]
    %v4678 = vld [vmem:[#allocation2 + $0xd1] sm:$0xff]
    %v4679 = vld [vmem:[#allocation2 + $0xd9] sm:$0xff]
    %v4680 = vld [vmem:[#allocation2 + $0xe1] sm:$0xff]
    %v4681 = vld [vmem:[#allocation2 + $0xe9] sm:$0xff]
    %v4682 = vld [vmem:[#allocation2 + $0xf1] sm:$0xff]
    %v4683 = vld [vmem:[#allocation2 + $0xf9] sm:$0xff]
    %v4684 = vld [vmem:[#allocation2 + $0x101] sm:$0xff]
    %v4685 = vpack.c.bf16 %v4671, %v4670
    %v4686 = vpack.c.bf16 %v4673, %v4672
    %v4687 = vpack.c.bf16 %v4675, %v4674
    %v4688 = vpack.c.bf16 %v4677, %v4676
    %v4689 = vpack.c.bf16 %v4679, %v4678
    %v4690 = vpack.c.bf16 %v4681, %v4680
    %v4691 = vpack.c.bf16 %v4683, %v4682
    %v4692 = vpack.c.bf16 %v4684, %v4684
    %4693 = vmatprep.subr.bf16.mxu0 0
    %4694 = vmatpush1.bf16.msra.mxu0 %v3152
    %4695 = vmatprep.subr.bf16.mxu0 0
    %4696 = vmatpush1.bf16.msra.mxu0 %v3151
    %4697 = vmatprep.subr.bf16.mxu0 0
    %4698 = vmatpush1.bf16.msra.mxu0 %v3150
    %4699 = vmatprep.subr.bf16.mxu0 0
    %4700 = vmatpush1.bf16.msra.mxu0 %v3149
    %4701 = vmatprep.subr.bf16.mxu0 0
    %4702 = vmatpush1.bf16.msra.mxu0 %v3148
    %4703 = vmatprep.subr.bf16.mxu0 0
    %4704 = vmatpush1.bf16.msra.mxu0 %v3147
    %4705 = vmatprep.subr.bf16.mxu0 0
    %4706 = vmatpush1.bf16.msra.mxu0 %v3146
    %4707 = vmatprep.subr.bf16.mxu0 0
    %4708 = vmatpush1.bf16.msra.mxu0 %v3145
    %4709 = vmatprep.subr.bf16.mxu0 0
    %4710 = vmatpush2.bf16.msra.mxu0 0
    %4711 = vmatprep.subr.bf16.mxu0 0
    %4712 = vmatpush2.bf16.msra.mxu0 0
    %4713 = vmatprep.subr.bf16.mxu0 0
    %4714 = vmatpush2.bf16.msra.mxu0 0
    %4715 = vmatprep.subr.bf16.mxu0 0
    %4716 = vmatpush2.bf16.msra.mxu0 0
    %4717 = vmatprep.subr.bf16.mxu0 0
    %4718 = vmatpush2.bf16.msra.mxu0 0
    %4719 = vmatprep.subr.bf16.mxu0 0
    %4720 = vmatpush2.bf16.msra.mxu0 0
    %4721 = vmatprep.subr.bf16.mxu0 0
    %4722 = vmatpush2.bf16.msra.mxu0 0
    %4723 = vmatprep.subr.bf16.mxu0 0
    %4724 = vmatpush2.bf16.msra.mxu0 0
    %4725 = vmatprep.mubr.bf16.mxu0 0
    %4726 = vmatmul.mubr.bf16.gmra.mxu0 %v4685
    %v4727 = vpop.f32.mrf.mxu0
    %v4728 = vadd.f32 0.0, %v4727
    %v4729 = vpop.f32.mrf.mxu0
    %v4730 = vpop.f32.mrf.mxu0
    %v4731 = vadd.f32 0.0, %v4730
    %v4732 = vpop.f32.mrf.mxu0
    %4733 = vmatprep.mubr.bf16.mxu0 0
    %4734 = vmatmul.mubr.bf16.gmra.mxu0 %v4686
    %v4735 = vpop.f32.mrf.mxu0
    %v4736 = vadd.f32 0.0, %v4735
    %v4737 = vpop.f32.mrf.mxu0
    %v4738 = vpop.f32.mrf.mxu0
    %v4739 = vadd.f32 0.0, %v4738
    %v4740 = vpop.f32.mrf.mxu0
    %4741 = vmatprep.mubr.bf16.mxu0 0
    %4742 = vmatmul.mubr.bf16.gmra.mxu0 %v4687
    %v4743 = vpop.f32.mrf.mxu0
    %v4744 = vadd.f32 0.0, %v4743
    %v4745 = vpop.f32.mrf.mxu0
    %v4746 = vpop.f32.mrf.mxu0
    %v4747 = vadd.f32 0.0, %v4746
    %v4748 = vpop.f32.mrf.mxu0
    %4749 = vmatprep.mubr.bf16.mxu0 0
    %4750 = vmatmul.mubr.bf16.gmra.mxu0 %v4688
    %v4751 = vpop.f32.mrf.mxu0
    %v4752 = vadd.f32 0.0, %v4751
    %v4753 = vpop.f32.mrf.mxu0
    %v4754 = vpop.f32.mrf.mxu0
    %v4755 = vadd.f32 0.0, %v4754
    %v4756 = vpop.f32.mrf.mxu0
    %4757 = vmatprep.mubr.bf16.mxu0 0
    %4758 = vmatmul.mubr.bf16.gmra.mxu0 %v4689
    %v4759 = vpop.f32.mrf.mxu0
    %v4760 = vadd.f32 0.0, %v4759
    %v4761 = vpop.f32.mrf.mxu0
    %v4762 = vpop.f32.mrf.mxu0
    %v4763 = vadd.f32 0.0, %v4762
    %v4764 = vpop.f32.mrf.mxu0
    %4765 = vmatprep.mubr.bf16.mxu0 0
    %4766 = vmatmul.mubr.bf16.gmra.mxu0 %v4690
    %v4767 = vpop.f32.mrf.mxu0
    %v4768 = vadd.f32 0.0, %v4767
    %v4769 = vpop.f32.mrf.mxu0
    %v4770 = vpop.f32.mrf.mxu0
    %v4771 = vadd.f32 0.0, %v4770
    %v4772 = vpop.f32.mrf.mxu0
    %4773 = vmatprep.mubr.bf16.mxu0 0
    %4774 = vmatmul.mubr.bf16.gmra.mxu0 %v4691
    %v4775 = vpop.f32.mrf.mxu0
    %v4776 = vadd.f32 0.0, %v4775
    %v4777 = vpop.f32.mrf.mxu0
    %v4778 = vpop.f32.mrf.mxu0
    %v4779 = vadd.f32 0.0, %v4778
    %v4780 = vpop.f32.mrf.mxu0
    %4781 = vmatprep.mubr.bf16.mxu0 0
    %4782 = vmatmul.mubr.bf16.gmra.mxu0 %v4692
    %v4783 = vpop.f32.mrf.mxu0
    %v4784 = vadd.f32 0.0, %v4783
    %v4785 = vpop.f32.mrf.mxu0
    %v4786 = vpop.f32.mrf.mxu0
    %v4787 = vpop.f32.mrf.mxu0
    %4788 = vdwg.mxu0
    %v4789 = vadd.f32 %v4655, %v4728
    %v4790 = vadd.f32 %v4656, %v4731
    %v4791 = vadd.f32 %v4657, %v4736
    %v4792 = vadd.f32 %v4658, %v4739
    %v4793 = vadd.f32 %v4659, %v4744
    %v4794 = vadd.f32 %v4660, %v4747
    %v4795 = vadd.f32 %v4661, %v4752
    %v4796 = vadd.f32 %v4662, %v4755
    %v4797 = vadd.f32 %v4663, %v4760
    %v4798 = vadd.f32 %v4664, %v4763
    %v4799 = vadd.f32 %v4665, %v4768
    %v4800 = vadd.f32 %v4666, %v4771
    %v4801 = vadd.f32 %v4667, %v4776
    %v4802 = vadd.f32 %v4668, %v4779
    %v4803 = vadd.f32 %v4669, %v4784
    %v4804 = vld [vmem:[#allocation2 + $0xa3] sm:$0xff]
    %v4805 = vld [vmem:[#allocation2 + $0xab] sm:$0xff]
    %v4806 = vld [vmem:[#allocation2 + $0xb3] sm:$0xff]
    %v4807 = vld [vmem:[#allocation2 + $0xbb] sm:$0xff]
    %v4808 = vld [vmem:[#allocation2 + $0xc3] sm:$0xff]
    %v4809 = vld [vmem:[#allocation2 + $0xcb] sm:$0xff]
    %v4810 = vld [vmem:[#allocation2 + $0xd3] sm:$0xff]
    %v4811 = vld [vmem:[#allocation2 + $0xdb] sm:$0xff]
    %v4812 = vld [vmem:[#allocation2 + $0xe3] sm:$0xff]
    %v4813 = vld [vmem:[#allocation2 + $0xeb] sm:$0xff]
    %v4814 = vld [vmem:[#allocation2 + $0xf3] sm:$0xff]
    %v4815 = vld [vmem:[#allocation2 + $0xfb] sm:$0xff]
    %v4816 = vld [vmem:[#allocation2 + $0x103] sm:$0xff]
    %v4817 = vld [vmem:[#allocation2 + $0x10b] sm:$0xff]
    %v4818 = vld [vmem:[#allocation2 + $0x113] sm:$0xff]
    %v4819 = vpack.c.bf16 %v4805, %v4804
    %v4820 = vpack.c.bf16 %v4807, %v4806
    %v4821 = vpack.c.bf16 %v4809, %v4808
    %v4822 = vpack.c.bf16 %v4811, %v4810
    %v4823 = vpack.c.bf16 %v4813, %v4812
    %v4824 = vpack.c.bf16 %v4815, %v4814
    %v4825 = vpack.c.bf16 %v4817, %v4816
    %v4826 = vpack.c.bf16 %v4818, %v4818
    %4827 = vmatprep.subr.bf16.mxu0 0
    %4828 = vmatpush1.bf16.msra.mxu0 %v3350
    %4829 = vmatprep.subr.bf16.mxu0 0
    %4830 = vmatpush1.bf16.msra.mxu0 %v3349
    %4831 = vmatprep.subr.bf16.mxu0 0
    %4832 = vmatpush1.bf16.msra.mxu0 %v3348
    %4833 = vmatprep.subr.bf16.mxu0 0
    %4834 = vmatpush1.bf16.msra.mxu0 %v3347
    %4835 = vmatprep.subr.bf16.mxu0 0
    %4836 = vmatpush1.bf16.msra.mxu0 %v3346
    %4837 = vmatprep.subr.bf16.mxu0 0
    %4838 = vmatpush1.bf16.msra.mxu0 %v3345
    %4839 = vmatprep.subr.bf16.mxu0 0
    %4840 = vmatpush1.bf16.msra.mxu0 %v3344
    %4841 = vmatprep.subr.bf16.mxu0 0
    %4842 = vmatpush1.bf16.msra.mxu0 %v3343
    %4843 = vmatprep.subr.bf16.mxu0 0
    %4844 = vmatpush2.bf16.msra.mxu0 0
    %4845 = vmatprep.subr.bf16.mxu0 0
    %4846 = vmatpush2.bf16.msra.mxu0 0
    %4847 = vmatprep.subr.bf16.mxu0 0
    %4848 = vmatpush2.bf16.msra.mxu0 0
    %4849 = vmatprep.subr.bf16.mxu0 0
    %4850 = vmatpush2.bf16.msra.mxu0 0
    %4851 = vmatprep.subr.bf16.mxu0 0
    %4852 = vmatpush2.bf16.msra.mxu0 0
    %4853 = vmatprep.subr.bf16.mxu0 0
    %4854 = vmatpush2.bf16.msra.mxu0 0
    %4855 = vmatprep.subr.bf16.mxu0 0
    %4856 = vmatpush2.bf16.msra.mxu0 0
    %4857 = vmatprep.subr.bf16.mxu0 0
    %4858 = vmatpush2.bf16.msra.mxu0 0
    %4859 = vmatprep.mubr.bf16.mxu0 0
    %4860 = vmatmul.mubr.bf16.gmra.mxu0 %v4819
    %v4861 = vpop.f32.mrf.mxu0
    %v4862 = vadd.f32 0.0, %v4861
    %v4863 = vpop.f32.mrf.mxu0
    %v4864 = vpop.f32.mrf.mxu0
    %v4865 = vadd.f32 0.0, %v4864
    %v4866 = vpop.f32.mrf.mxu0
    %4867 = vmatprep.mubr.bf16.mxu0 0
    %4868 = vmatmul.mubr.bf16.gmra.mxu0 %v4820
    %v4869 = vpop.f32.mrf.mxu0
    %v4870 = vadd.f32 0.0, %v4869
    %v4871 = vpop.f32.mrf.mxu0
    %v4872 = vpop.f32.mrf.mxu0
    %v4873 = vadd.f32 0.0, %v4872
    %v4874 = vpop.f32.mrf.mxu0
    %4875 = vmatprep.mubr.bf16.mxu0 0
    %4876 = vmatmul.mubr.bf16.gmra.mxu0 %v4821
    %v4877 = vpop.f32.mrf.mxu0
    %v4878 = vadd.f32 0.0, %v4877
    %v4879 = vpop.f32.mrf.mxu0
    %v4880 = vpop.f32.mrf.mxu0
    %v4881 = vadd.f32 0.0, %v4880
    %v4882 = vpop.f32.mrf.mxu0
    %4883 = vmatprep.mubr.bf16.mxu0 0
    %4884 = vmatmul.mubr.bf16.gmra.mxu0 %v4822
    %v4885 = vpop.f32.mrf.mxu0
    %v4886 = vadd.f32 0.0, %v4885
    %v4887 = vpop.f32.mrf.mxu0
    %v4888 = vpop.f32.mrf.mxu0
    %v4889 = vadd.f32 0.0, %v4888
    %v4890 = vpop.f32.mrf.mxu0
    %4891 = vmatprep.mubr.bf16.mxu0 0
    %4892 = vmatmul.mubr.bf16.gmra.mxu0 %v4823
    %v4893 = vpop.f32.mrf.mxu0
    %v4894 = vadd.f32 0.0, %v4893
    %v4895 = vpop.f32.mrf.mxu0
    %v4896 = vpop.f32.mrf.mxu0
    %v4897 = vadd.f32 0.0, %v4896
    %v4898 = vpop.f32.mrf.mxu0
    %4899 = vmatprep.mubr.bf16.mxu0 0
    %4900 = vmatmul.mubr.bf16.gmra.mxu0 %v4824
    %v4901 = vpop.f32.mrf.mxu0
    %v4902 = vadd.f32 0.0, %v4901
    %v4903 = vpop.f32.mrf.mxu0
    %v4904 = vpop.f32.mrf.mxu0
    %v4905 = vadd.f32 0.0, %v4904
    %v4906 = vpop.f32.mrf.mxu0
    %4907 = vmatprep.mubr.bf16.mxu0 0
    %4908 = vmatmul.mubr.bf16.gmra.mxu0 %v4825
    %v4909 = vpop.f32.mrf.mxu0
    %v4910 = vadd.f32 0.0, %v4909
    %v4911 = vpop.f32.mrf.mxu0
    %v4912 = vpop.f32.mrf.mxu0
    %v4913 = vadd.f32 0.0, %v4912
    %v4914 = vpop.f32.mrf.mxu0
    %4915 = vmatprep.mubr.bf16.mxu0 0
    %4916 = vmatmul.mubr.bf16.gmra.mxu0 %v4826
    %v4917 = vpop.f32.mrf.mxu0
    %v4918 = vadd.f32 0.0, %v4917
    %v4919 = vpop.f32.mrf.mxu0
    %v4920 = vpop.f32.mrf.mxu0
    %v4921 = vpop.f32.mrf.mxu0
    %4922 = vdwg.mxu0
    %v4923 = vadd.f32 %v4789, %v4862
    %v4924 = vadd.f32 %v4790, %v4865
    %v4925 = vadd.f32 %v4791, %v4870
    %v4926 = vadd.f32 %v4792, %v4873
    %v4927 = vadd.f32 %v4793, %v4878
    %v4928 = vadd.f32 %v4794, %v4881
    %v4929 = vadd.f32 %v4795, %v4886
    %v4930 = vadd.f32 %v4796, %v4889
    %v4931 = vadd.f32 %v4797, %v4894
    %v4932 = vadd.f32 %v4798, %v4897
    %v4933 = vadd.f32 %v4799, %v4902
    %v4934 = vadd.f32 %v4800, %v4905
    %v4935 = vadd.f32 %v4801, %v4910
    %v4936 = vadd.f32 %v4802, %v4913
    %v4937 = vadd.f32 %v4803, %v4918
    %v4938 = vld [vmem:[#allocation2 + $0xa4] sm:$0xff]
    %v4939 = vld [vmem:[#allocation2 + $0xac] sm:$0xff]
    %v4940 = vld [vmem:[#allocation2 + $0xb4] sm:$0xff]
    %v4941 = vld [vmem:[#allocation2 + $0xbc] sm:$0xff]
    %v4942 = vld [vmem:[#allocation2 + $0xc4] sm:$0xff]
    %v4943 = vld [vmem:[#allocation2 + $0xcc] sm:$0xff]
    %v4944 = vld [vmem:[#allocation2 + $0xd4] sm:$0xff]
    %v4945 = vld [vmem:[#allocation2 + $0xdc] sm:$0xff]
    %v4946 = vld [vmem:[#allocation2 + $0xe4] sm:$0xff]
    %v4947 = vld [vmem:[#allocation2 + $0xec] sm:$0xff]
    %v4948 = vld [vmem:[#allocation2 + $0xf4] sm:$0xff]
    %v4949 = vld [vmem:[#allocation2 + $0xfc] sm:$0xff]
    %v4950 = vld [vmem:[#allocation2 + $0x104] sm:$0xff]
    %v4951 = vld [vmem:[#allocation2 + $0x10c] sm:$0xff]
    %v4952 = vld [vmem:[#allocation2 + $0x114] sm:$0xff]
    %v4953 = vpack.c.bf16 %v4939, %v4938
    %v4954 = vpack.c.bf16 %v4941, %v4940
    %v4955 = vpack.c.bf16 %v4943, %v4942
    %v4956 = vpack.c.bf16 %v4945, %v4944
    %v4957 = vpack.c.bf16 %v4947, %v4946
    %v4958 = vpack.c.bf16 %v4949, %v4948
    %v4959 = vpack.c.bf16 %v4951, %v4950
    %v4960 = vpack.c.bf16 %v4952, %v4952
    %4961 = vmatprep.subr.bf16.mxu0 0
    %4962 = vmatpush1.bf16.msra.mxu0 %v3548
    %4963 = vmatprep.subr.bf16.mxu0 0
    %4964 = vmatpush1.bf16.msra.mxu0 %v3547
    %4965 = vmatprep.subr.bf16.mxu0 0
    %4966 = vmatpush1.bf16.msra.mxu0 %v3546
    %4967 = vmatprep.subr.bf16.mxu0 0
    %4968 = vmatpush1.bf16.msra.mxu0 %v3545
    %4969 = vmatprep.subr.bf16.mxu0 0
    %4970 = vmatpush1.bf16.msra.mxu0 %v3544
    %4971 = vmatprep.subr.bf16.mxu0 0
    %4972 = vmatpush1.bf16.msra.mxu0 %v3543
    %4973 = vmatprep.subr.bf16.mxu0 0
    %4974 = vmatpush1.bf16.msra.mxu0 %v3542
    %4975 = vmatprep.subr.bf16.mxu0 0
    %4976 = vmatpush1.bf16.msra.mxu0 %v3541
    %4977 = vmatprep.subr.bf16.mxu0 0
    %4978 = vmatpush2.bf16.msra.mxu0 0
    %4979 = vmatprep.subr.bf16.mxu0 0
    %4980 = vmatpush2.bf16.msra.mxu0 0
    %4981 = vmatprep.subr.bf16.mxu0 0
    %4982 = vmatpush2.bf16.msra.mxu0 0
    %4983 = vmatprep.subr.bf16.mxu0 0
    %4984 = vmatpush2.bf16.msra.mxu0 0
    %4985 = vmatprep.subr.bf16.mxu0 0
    %4986 = vmatpush2.bf16.msra.mxu0 0
    %4987 = vmatprep.subr.bf16.mxu0 0
    %4988 = vmatpush2.bf16.msra.mxu0 0
    %4989 = vmatprep.subr.bf16.mxu0 0
    %4990 = vmatpush2.bf16.msra.mxu0 0
    %4991 = vmatprep.subr.bf16.mxu0 0
    %4992 = vmatpush2.bf16.msra.mxu0 0
    %4993 = vmatprep.mubr.bf16.mxu0 0
    %4994 = vmatmul.mubr.bf16.gmra.mxu0 %v4953
    %v4995 = vpop.f32.mrf.mxu0
    %v4996 = vadd.f32 0.0, %v4995
    %v4997 = vpop.f32.mrf.mxu0
    %v4998 = vpop.f32.mrf.mxu0
    %v4999 = vadd.f32 0.0, %v4998
    %v5000 = vpop.f32.mrf.mxu0
    %5001 = vmatprep.mubr.bf16.mxu0 0
    %5002 = vmatmul.mubr.bf16.gmra.mxu0 %v4954
    %v5003 = vpop.f32.mrf.mxu0
    %v5004 = vadd.f32 0.0, %v5003
    %v5005 = vpop.f32.mrf.mxu0
    %v5006 = vpop.f32.mrf.mxu0
    %v5007 = vadd.f32 0.0, %v5006
    %v5008 = vpop.f32.mrf.mxu0
    %5009 = vmatprep.mubr.bf16.mxu0 0
    %5010 = vmatmul.mubr.bf16.gmra.mxu0 %v4955
    %v5011 = vpop.f32.mrf.mxu0
    %v5012 = vadd.f32 0.0, %v5011
    %v5013 = vpop.f32.mrf.mxu0
    %v5014 = vpop.f32.mrf.mxu0
    %v5015 = vadd.f32 0.0, %v5014
    %v5016 = vpop.f32.mrf.mxu0
    %5017 = vmatprep.mubr.bf16.mxu0 0
    %5018 = vmatmul.mubr.bf16.gmra.mxu0 %v4956
    %v5019 = vpop.f32.mrf.mxu0
    %v5020 = vadd.f32 0.0, %v5019
    %v5021 = vpop.f32.mrf.mxu0
    %v5022 = vpop.f32.mrf.mxu0
    %v5023 = vadd.f32 0.0, %v5022
    %v5024 = vpop.f32.mrf.mxu0
    %5025 = vmatprep.mubr.bf16.mxu0 0
    %5026 = vmatmul.mubr.bf16.gmra.mxu0 %v4957
    %v5027 = vpop.f32.mrf.mxu0
    %v5028 = vadd.f32 0.0, %v5027
    %v5029 = vpop.f32.mrf.mxu0
    %v5030 = vpop.f32.mrf.mxu0
    %v5031 = vadd.f32 0.0, %v5030
    %v5032 = vpop.f32.mrf.mxu0
    %5033 = vmatprep.mubr.bf16.mxu0 0
    %5034 = vmatmul.mubr.bf16.gmra.mxu0 %v4958
    %v5035 = vpop.f32.mrf.mxu0
    %v5036 = vadd.f32 0.0, %v5035
    %v5037 = vpop.f32.mrf.mxu0
    %v5038 = vpop.f32.mrf.mxu0
    %v5039 = vadd.f32 0.0, %v5038
    %v5040 = vpop.f32.mrf.mxu0
    %5041 = vmatprep.mubr.bf16.mxu0 0
    %5042 = vmatmul.mubr.bf16.gmra.mxu0 %v4959
    %v5043 = vpop.f32.mrf.mxu0
    %v5044 = vadd.f32 0.0, %v5043
    %v5045 = vpop.f32.mrf.mxu0
    %v5046 = vpop.f32.mrf.mxu0
    %v5047 = vadd.f32 0.0, %v5046
    %v5048 = vpop.f32.mrf.mxu0
    %5049 = vmatprep.mubr.bf16.mxu0 0
    %5050 = vmatmul.mubr.bf16.gmra.mxu0 %v4960
    %v5051 = vpop.f32.mrf.mxu0
    %v5052 = vadd.f32 0.0, %v5051
    %v5053 = vpop.f32.mrf.mxu0
    %v5054 = vpop.f32.mrf.mxu0
    %v5055 = vpop.f32.mrf.mxu0
    %5056 = vdwg.mxu0
    %v5057 = vadd.f32 %v4923, %v4996
    %v5058 = vadd.f32 %v4924, %v4999
    %v5059 = vadd.f32 %v4925, %v5004
    %v5060 = vadd.f32 %v4926, %v5007
    %v5061 = vadd.f32 %v4927, %v5012
    %v5062 = vadd.f32 %v4928, %v5015
    %v5063 = vadd.f32 %v4929, %v5020
    %v5064 = vadd.f32 %v4930, %v5023
    %v5065 = vadd.f32 %v4931, %v5028
    %v5066 = vadd.f32 %v4932, %v5031
    %v5067 = vadd.f32 %v4933, %v5036
    %v5068 = vadd.f32 %v4934, %v5039
    %v5069 = vadd.f32 %v4935, %v5044
    %v5070 = vadd.f32 %v4936, %v5047
    %v5071 = vadd.f32 %v4937, %v5052
    %v5072 = vld [vmem:[#allocation2 + $0xa5] sm:$0xff]
    %v5073 = vld [vmem:[#allocation2 + $0xad] sm:$0xff]
    %v5074 = vld [vmem:[#allocation2 + $0xb5] sm:$0xff]
    %v5075 = vld [vmem:[#allocation2 + $0xbd] sm:$0xff]
    %v5076 = vld [vmem:[#allocation2 + $0xc5] sm:$0xff]
    %v5077 = vld [vmem:[#allocation2 + $0xcd] sm:$0xff]
    %v5078 = vld [vmem:[#allocation2 + $0xd5] sm:$0xff]
    %v5079 = vld [vmem:[#allocation2 + $0xdd] sm:$0xff]
    %v5080 = vld [vmem:[#allocation2 + $0xe5] sm:$0xff]
    %v5081 = vld [vmem:[#allocation2 + $0xed] sm:$0xff]
    %v5082 = vld [vmem:[#allocation2 + $0xf5] sm:$0xff]
    %v5083 = vld [vmem:[#allocation2 + $0xfd] sm:$0xff]
    %v5084 = vld [vmem:[#allocation2 + $0x105] sm:$0xff]
    %v5085 = vld [vmem:[#allocation2 + $0x10d] sm:$0xff]
    %v5086 = vld [vmem:[#allocation2 + $0x115] sm:$0xff]
    %v5087 = vpack.c.bf16 %v5073, %v5072
    %v5088 = vpack.c.bf16 %v5075, %v5074
    %v5089 = vpack.c.bf16 %v5077, %v5076
    %v5090 = vpack.c.bf16 %v5079, %v5078
    %v5091 = vpack.c.bf16 %v5081, %v5080
    %v5092 = vpack.c.bf16 %v5083, %v5082
    %v5093 = vpack.c.bf16 %v5085, %v5084
    %v5094 = vpack.c.bf16 %v5086, %v5086
    %5095 = vmatprep.subr.bf16.mxu0 0
    %5096 = vmatpush1.bf16.msra.mxu0 %v3746
    %5097 = vmatprep.subr.bf16.mxu0 0
    %5098 = vmatpush1.bf16.msra.mxu0 %v3745
    %5099 = vmatprep.subr.bf16.mxu0 0
    %5100 = vmatpush1.bf16.msra.mxu0 %v3744
    %5101 = vmatprep.subr.bf16.mxu0 0
    %5102 = vmatpush1.bf16.msra.mxu0 %v3743
    %5103 = vmatprep.subr.bf16.mxu0 0
    %5104 = vmatpush1.bf16.msra.mxu0 %v3742
    %5105 = vmatprep.subr.bf16.mxu0 0
    %5106 = vmatpush1.bf16.msra.mxu0 %v3741
    %5107 = vmatprep.subr.bf16.mxu0 0
    %5108 = vmatpush1.bf16.msra.mxu0 %v3740
    %5109 = vmatprep.subr.bf16.mxu0 0
    %5110 = vmatpush1.bf16.msra.mxu0 %v3739
    %5111 = vmatprep.subr.bf16.mxu0 0
    %5112 = vmatpush2.bf16.msra.mxu0 0
    %5113 = vmatprep.subr.bf16.mxu0 0
    %5114 = vmatpush2.bf16.msra.mxu0 0
    %5115 = vmatprep.subr.bf16.mxu0 0
    %5116 = vmatpush2.bf16.msra.mxu0 0
    %5117 = vmatprep.subr.bf16.mxu0 0
    %5118 = vmatpush2.bf16.msra.mxu0 0
    %5119 = vmatprep.subr.bf16.mxu0 0
    %5120 = vmatpush2.bf16.msra.mxu0 0
    %5121 = vmatprep.subr.bf16.mxu0 0
    %5122 = vmatpush2.bf16.msra.mxu0 0
    %5123 = vmatprep.subr.bf16.mxu0 0
    %5124 = vmatpush2.bf16.msra.mxu0 0
    %5125 = vmatprep.subr.bf16.mxu0 0
    %5126 = vmatpush2.bf16.msra.mxu0 0
    %5127 = vmatprep.mubr.bf16.mxu0 0
    %5128 = vmatmul.mubr.bf16.gmra.mxu0 %v5087
    %v5129 = vpop.f32.mrf.mxu0
    %v5130 = vadd.f32 0.0, %v5129
    %v5131 = vpop.f32.mrf.mxu0
    %v5132 = vpop.f32.mrf.mxu0
    %v5133 = vadd.f32 0.0, %v5132
    %v5134 = vpop.f32.mrf.mxu0
    %5135 = vmatprep.mubr.bf16.mxu0 0
    %5136 = vmatmul.mubr.bf16.gmra.mxu0 %v5088
    %v5137 = vpop.f32.mrf.mxu0
    %v5138 = vadd.f32 0.0, %v5137
    %v5139 = vpop.f32.mrf.mxu0
    %v5140 = vpop.f32.mrf.mxu0
    %v5141 = vadd.f32 0.0, %v5140
    %v5142 = vpop.f32.mrf.mxu0
    %5143 = vmatprep.mubr.bf16.mxu0 0
    %5144 = vmatmul.mubr.bf16.gmra.mxu0 %v5089
    %v5145 = vpop.f32.mrf.mxu0
    %v5146 = vadd.f32 0.0, %v5145
    %v5147 = vpop.f32.mrf.mxu0
    %v5148 = vpop.f32.mrf.mxu0
    %v5149 = vadd.f32 0.0, %v5148
    %v5150 = vpop.f32.mrf.mxu0
    %5151 = vmatprep.mubr.bf16.mxu0 0
    %5152 = vmatmul.mubr.bf16.gmra.mxu0 %v5090
    %v5153 = vpop.f32.mrf.mxu0
    %v5154 = vadd.f32 0.0, %v5153
    %v5155 = vpop.f32.mrf.mxu0
    %v5156 = vpop.f32.mrf.mxu0
    %v5157 = vadd.f32 0.0, %v5156
    %v5158 = vpop.f32.mrf.mxu0
    %5159 = vmatprep.mubr.bf16.mxu0 0
    %5160 = vmatmul.mubr.bf16.gmra.mxu0 %v5091
    %v5161 = vpop.f32.mrf.mxu0
    %v5162 = vadd.f32 0.0, %v5161
    %v5163 = vpop.f32.mrf.mxu0
    %v5164 = vpop.f32.mrf.mxu0
    %v5165 = vadd.f32 0.0, %v5164
    %v5166 = vpop.f32.mrf.mxu0
    %5167 = vmatprep.mubr.bf16.mxu0 0
    %5168 = vmatmul.mubr.bf16.gmra.mxu0 %v5092
    %v5169 = vpop.f32.mrf.mxu0
    %v5170 = vadd.f32 0.0, %v5169
    %v5171 = vpop.f32.mrf.mxu0
    %v5172 = vpop.f32.mrf.mxu0
    %v5173 = vadd.f32 0.0, %v5172
    %v5174 = vpop.f32.mrf.mxu0
    %5175 = vmatprep.mubr.bf16.mxu0 0
    %5176 = vmatmul.mubr.bf16.gmra.mxu0 %v5093
    %v5177 = vpop.f32.mrf.mxu0
    %v5178 = vadd.f32 0.0, %v5177
    %v5179 = vpop.f32.mrf.mxu0
    %v5180 = vpop.f32.mrf.mxu0
    %v5181 = vadd.f32 0.0, %v5180
    %v5182 = vpop.f32.mrf.mxu0
    %5183 = vmatprep.mubr.bf16.mxu0 0
    %5184 = vmatmul.mubr.bf16.gmra.mxu0 %v5094
    %v5185 = vpop.f32.mrf.mxu0
    %v5186 = vadd.f32 0.0, %v5185
    %v5187 = vpop.f32.mrf.mxu0
    %v5188 = vpop.f32.mrf.mxu0
    %v5189 = vpop.f32.mrf.mxu0
    %5190 = vdwg.mxu0
    %v5191 = vadd.f32 %v5057, %v5130
    %v5192 = vadd.f32 %v5058, %v5133
    %v5193 = vadd.f32 %v5059, %v5138
    %v5194 = vadd.f32 %v5060, %v5141
    %v5195 = vadd.f32 %v5061, %v5146
    %v5196 = vadd.f32 %v5062, %v5149
    %v5197 = vadd.f32 %v5063, %v5154
    %v5198 = vadd.f32 %v5064, %v5157
    %v5199 = vadd.f32 %v5065, %v5162
    %v5200 = vadd.f32 %v5066, %v5165
    %v5201 = vadd.f32 %v5067, %v5170
    %v5202 = vadd.f32 %v5068, %v5173
    %v5203 = vadd.f32 %v5069, %v5178
    %v5204 = vadd.f32 %v5070, %v5181
    %v5205 = vadd.f32 %v5071, %v5186
    %v5206 = vadd.f32 %v5191, %v3871
    %v5207 = vadd.f32 %v5192, %v3871
    %v5208 = vadd.f32 %v5193, %v3871
    %v5209 = vadd.f32 %v5194, %v3871
    %v5210 = vadd.f32 %v5195, %v3871
    %v5211 = vadd.f32 %v5196, %v3871
    %v5212 = vadd.f32 %v5197, %v3871
    %v5213 = vadd.f32 %v5198, %v3871
    %v5214 = vadd.f32 %v5199, %v3871
    %v5215 = vadd.f32 %v5200, %v3871
    %v5216 = vadd.f32 %v5201, %v3871
    %v5217 = vadd.f32 %v5202, %v3871
    %v5218 = vadd.f32 %v5203, %v3871
    %v5219 = vadd.f32 %v5204, %v3871
    %v5220 = vadd.f32 %v5205, %v3871
    %v5221 = vmax.f32 %v5206, 0.0
    %v5222 = vmax.f32 %v5207, 0.0
    %v5223 = vmax.f32 %v5208, 0.0
    %v5224 = vmax.f32 %v5209, 0.0
    %v5225 = vmax.f32 %v5210, 0.0
    %v5226 = vmax.f32 %v5211, 0.0
    %v5227 = vmax.f32 %v5212, 0.0
    %v5228 = vmax.f32 %v5213, 0.0
    %v5229 = vmax.f32 %v5214, 0.0
    %v5230 = vmax.f32 %v5215, 0.0
    %v5231 = vmax.f32 %v5216, 0.0
    %v5232 = vmax.f32 %v5217, 0.0
    %v5233 = vmax.f32 %v5218, 0.0
    %v5234 = vmax.f32 %v5219, 0.0
    %v5235 = vmax.f32 %v5220, 0.0
    %v5236 = vld [vmem:[%s1 + $0x78] sm:$0xff]
    %v5237 = vld [vmem:[%s1 + $0x80] sm:$0xff]
    %v5238 = vld [vmem:[%s1 + $0x88] sm:$0xff]
    %v5239 = vld [vmem:[%s1 + $0x90] sm:$0xff]
    %v5240 = vld [vmem:[%s1 + $0x98] sm:$0xff]
    %v5241 = vld [vmem:[%s1 + $0xa0] sm:$0xff]
    %v5242 = vld [vmem:[%s1 + $0xa8] sm:$0xff]
    %v5243 = vld [vmem:[%s1 + $0xb0] sm:$0xff]
    %v5244 = vld [vmem:[%s1 + $0xb8] sm:$0xff]
    %v5245 = vld [vmem:[%s1 + $0xc0] sm:$0xff]
    %v5246 = vld [vmem:[%s1 + $0xc8] sm:$0xff]
    %v5247 = vld [vmem:[%s1 + $0xd0] sm:$0xff]
    %v5248 = vld [vmem:[%s1 + $0xd8] sm:$0xff]
    %v5249 = vld [vmem:[%s1 + $0xe0] sm:$0xff]
    %v5250 = vld [vmem:[%s1 + $0xe8] sm:$0xff]
    %5252 = vset.pattern.permute.xlu0 0
    %5253 = vperm.xlu0 %5252, %v5236
    %v5254 = vpop.permute.xlu0 %5253
    %5257 = vset.pattern.permute.xlu0 0
    %5258 = vperm.xlu0 %5257, %v5237
    %v5259 = vpop.permute.xlu0 %5258
    %5262 = vset.pattern.permute.xlu0 0
    %5263 = vperm.xlu0 %5262, %v5238
    %v5264 = vpop.permute.xlu0 %5263
    %5267 = vset.pattern.permute.xlu0 0
    %5268 = vperm.xlu0 %5267, %v5239
    %v5269 = vpop.permute.xlu0 %5268
    %5272 = vset.pattern.permute.xlu0 0
    %5273 = vperm.xlu0 %5272, %v5240
    %v5274 = vpop.permute.xlu0 %5273
    %5277 = vset.pattern.permute.xlu0 0
    %5278 = vperm.xlu0 %5277, %v5241
    %v5279 = vpop.permute.xlu0 %5278
    %5282 = vset.pattern.permute.xlu0 0
    %5283 = vperm.xlu0 %5282, %v5242
    %v5284 = vpop.permute.xlu0 %5283
    %5287 = vset.pattern.permute.xlu0 0
    %5288 = vperm.xlu0 %5287, %v5243
    %v5289 = vpop.permute.xlu0 %5288
    %5292 = vset.pattern.permute.xlu0 0
    %5293 = vperm.xlu0 %5292, %v5244
    %v5294 = vpop.permute.xlu0 %5293
    %5297 = vset.pattern.permute.xlu0 0
    %5298 = vperm.xlu0 %5297, %v5245
    %v5299 = vpop.permute.xlu0 %5298
    %5302 = vset.pattern.permute.xlu0 0
    %5303 = vperm.xlu0 %5302, %v5246
    %v5304 = vpop.permute.xlu0 %5303
    %5307 = vset.pattern.permute.xlu0 0
    %5308 = vperm.xlu0 %5307, %v5247
    %v5309 = vpop.permute.xlu0 %5308
    %5312 = vset.pattern.permute.xlu0 0
    %5313 = vperm.xlu0 %5312, %v5248
    %v5314 = vpop.permute.xlu0 %5313
    %5317 = vset.pattern.permute.xlu0 0
    %5318 = vperm.xlu0 %5317, %v5249
    %v5319 = vpop.permute.xlu0 %5318
    %5322 = vset.pattern.permute.xlu0 0
    %5323 = vperm.xlu0 %5322, %v5250
    %v5324 = vpop.permute.xlu0 %5323
    %v5326 = vmul.f32 %v5221, %v5254
    %v5327 = vmul.f32 %v5222, %v5259
    %v5328 = vmul.f32 %v5223, %v5264
    %v5329 = vmul.f32 %v5224, %v5269
    %v5330 = vmul.f32 %v5225, %v5274
    %v5331 = vmul.f32 %v5226, %v5279
    %v5332 = vmul.f32 %v5227, %v5284
    %v5333 = vmul.f32 %v5228, %v5289
    %v5334 = vmul.f32 %v5229, %v5294
    %v5335 = vmul.f32 %v5230, %v5299
    %v5336 = vmul.f32 %v5231, %v5304
    %v5337 = vmul.f32 %v5232, %v5309
    %v5338 = vmul.f32 %v5233, %v5314
    %v5339 = vmul.f32 %v5234, %v5319
    %v5340 = vmul.f32 %v5235, %v5324
    %v5341 = vadd.f32 %v5326, %v5327
    %v5342 = vadd.f32 %v5341, %v5328
    %v5343 = vadd.f32 %v5342, %v5329
    %v5344 = vadd.f32 %v5343, %v5330
    %v5345 = vadd.f32 %v5344, %v5331
    %v5346 = vadd.f32 %v5345, %v5332
    %v5347 = vadd.f32 %v5346, %v5333
    %v5348 = vadd.f32 %v5347, %v5334
    %v5349 = vadd.f32 %v5348, %v5335
    %v5350 = vadd.f32 %v5349, %v5336
    %v5351 = vadd.f32 %v5350, %v5337
    %v5352 = vadd.f32 %v5351, %v5338
    %v5353 = vadd.f32 %v5352, %v5339
    %v5354 = vadd.f32 %v5353, %v5340
    %v5355 = vrot.slane %v5354, 4
    %v5356 = vadd.f32 %v5354, %v5355
    %v5357 = vrot.slane %v5356, 2
    %v5358 = vadd.f32 %v5356, %v5357
    %v5359 = vrot.slane %v5358, 1
    %v5360 = vadd.f32 %v5358, %v5359
    %v5361 = vmul.f32 %v5360, 0.00390625
    %v5362 = vadd.f32 %v4029, %v5361
    %v5363 = vld [vmem:[#allocation2 + $0xf3] sm:$0xff]
    %v5364 = vld [vmem:[#allocation2 + $0xfb] sm:$0xff]
    %v5365 = vld [vmem:[#allocation2 + $0x103] sm:$0xff]
    %v5366 = vld [vmem:[#allocation2 + $0x10b] sm:$0xff]
    %v5367 = vld [vmem:[#allocation2 + $0x113] sm:$0xff]
    %v5368 = vld [vmem:[#allocation2 + $0x11b] sm:$0xff]
    %v5369 = vld [vmem:[#allocation2 + $0x123] sm:$0xff]
    %v5370 = vld [vmem:[#allocation2 + $0x12b] sm:$0xff]
    %v5371 = vld [vmem:[#allocation2 + $0x133] sm:$0xff]
    %v5372 = vld [vmem:[#allocation2 + $0x13b] sm:$0xff]
    %v5373 = vld [vmem:[#allocation2 + $0x143] sm:$0xff]
    %v5374 = vld [vmem:[#allocation2 + $0x14b] sm:$0xff]
    %v5375 = vld [vmem:[#allocation2 + $0x153] sm:$0xff]
    %v5376 = vld [vmem:[#allocation2 + $0x15b] sm:$0xff]
    %v5377 = vld [vmem:[#allocation2 + $0x163] sm:$0xff]
    %v5378 = vpack.c.bf16 %v5364, %v5363
    %v5379 = vpack.c.bf16 %v5366, %v5365
    %v5380 = vpack.c.bf16 %v5368, %v5367
    %v5381 = vpack.c.bf16 %v5370, %v5369
    %v5382 = vpack.c.bf16 %v5372, %v5371
    %v5383 = vpack.c.bf16 %v5374, %v5373
    %v5384 = vpack.c.bf16 %v5376, %v5375
    %v5385 = vpack.c.bf16 %v5377, %v5377
    %v5386 = vld [vmem:[#allocation2 + $0xf4] sm:$0xff]
    %v5387 = vld [vmem:[#allocation2 + $0xfc] sm:$0xff]
    %v5388 = vld [vmem:[#allocation2 + $0x104] sm:$0xff]
    %v5389 = vld [vmem:[#allocation2 + $0x10c] sm:$0xff]
    %v5390 = vld [vmem:[#allocation2 + $0x114] sm:$0xff]
    %v5391 = vld [vmem:[#allocation2 + $0x11c] sm:$0xff]
    %v5392 = vld [vmem:[#allocation2 + $0x124] sm:$0xff]
    %v5393 = vld [vmem:[#allocation2 + $0x12c] sm:$0xff]
    %v5394 = vld [vmem:[#allocation2 + $0x134] sm:$0xff]
    %v5395 = vld [vmem:[#allocation2 + $0x13c] sm:$0xff]
    %v5396 = vld [vmem:[#allocation2 + $0x144] sm:$0xff]
    %v5397 = vld [vmem:[#allocation2 + $0x14c] sm:$0xff]
    %v5398 = vld [vmem:[#allocation2 + $0x154] sm:$0xff]
    %v5399 = vld [vmem:[#allocation2 + $0x15c] sm:$0xff]
    %v5400 = vld [vmem:[#allocation2 + $0x164] sm:$0xff]
    %v5401 = vpack.c.bf16 %v5387, %v5386
    %v5402 = vpack.c.bf16 %v5389, %v5388
    %v5403 = vpack.c.bf16 %v5391, %v5390
    %v5404 = vpack.c.bf16 %v5393, %v5392
    %v5405 = vpack.c.bf16 %v5395, %v5394
    %v5406 = vpack.c.bf16 %v5397, %v5396
    %v5407 = vpack.c.bf16 %v5399, %v5398
    %v5408 = vpack.c.bf16 %v5400, %v5400
    %5409 = vmatprep.subr.bf16.mxu0 0
    %5410 = vmatpush1.bf16.msra.mxu0 %v2231
    %5411 = vmatprep.subr.bf16.mxu0 0
    %5412 = vmatpush1.bf16.msra.mxu0 %v2230
    %5413 = vmatprep.subr.bf16.mxu0 0
    %5414 = vmatpush1.bf16.msra.mxu0 %v2229
    %5415 = vmatprep.subr.bf16.mxu0 0
    %5416 = vmatpush1.bf16.msra.mxu0 %v2228
    %5417 = vmatprep.subr.bf16.mxu0 0
    %5418 = vmatpush1.bf16.msra.mxu0 %v2227
    %5419 = vmatprep.subr.bf16.mxu0 0
    %5420 = vmatpush1.bf16.msra.mxu0 %v2226
    %5421 = vmatprep.subr.bf16.mxu0 0
    %5422 = vmatpush1.bf16.msra.mxu0 %v2225
    %5423 = vmatprep.subr.bf16.mxu0 0
    %5424 = vmatpush1.bf16.msra.mxu0 %v2224
    %5425 = vmatprep.subr.bf16.mxu0 0
    %5426 = vmatpush2.bf16.msra.mxu0 0
    %5427 = vmatprep.subr.bf16.mxu0 0
    %5428 = vmatpush2.bf16.msra.mxu0 0
    %5429 = vmatprep.subr.bf16.mxu0 0
    %5430 = vmatpush2.bf16.msra.mxu0 0
    %5431 = vmatprep.subr.bf16.mxu0 0
    %5432 = vmatpush2.bf16.msra.mxu0 0
    %5433 = vmatprep.subr.bf16.mxu0 0
    %5434 = vmatpush2.bf16.msra.mxu0 0
    %5435 = vmatprep.subr.bf16.mxu0 0
    %5436 = vmatpush2.bf16.msra.mxu0 0
    %5437 = vmatprep.subr.bf16.mxu0 0
    %5438 = vmatpush2.bf16.msra.mxu0 0
    %5439 = vmatprep.subr.bf16.mxu0 0
    %5440 = vmatpush2.bf16.msra.mxu0 0
    %5441 = vmatprep.mubr.bf16.mxu0 0
    %5442 = vmatmul.mubr.bf16.gmra.mxu0 %v5401
    %v5443 = vpop.f32.mrf.mxu0
    %v5444 = vadd.f32 0.0, %v5443
    %v5445 = vpop.f32.mrf.mxu0
    %v5446 = vpop.f32.mrf.mxu0
    %v5447 = vadd.f32 0.0, %v5446
    %v5448 = vpop.f32.mrf.mxu0
    %5449 = vmatprep.mubr.bf16.mxu0 0
    %5450 = vmatmul.mubr.bf16.gmra.mxu0 %v5402
    %v5451 = vpop.f32.mrf.mxu0
    %v5452 = vadd.f32 0.0, %v5451
    %v5453 = vpop.f32.mrf.mxu0
    %v5454 = vpop.f32.mrf.mxu0
    %v5455 = vadd.f32 0.0, %v5454
    %v5456 = vpop.f32.mrf.mxu0
    %5457 = vmatprep.mubr.bf16.mxu0 0
    %5458 = vmatmul.mubr.bf16.gmra.mxu0 %v5403
    %v5459 = vpop.f32.mrf.mxu0
    %v5460 = vadd.f32 0.0, %v5459
    %v5461 = vpop.f32.mrf.mxu0
    %v5462 = vpop.f32.mrf.mxu0
    %v5463 = vadd.f32 0.0, %v5462
    %v5464 = vpop.f32.mrf.mxu0
    %5465 = vmatprep.mubr.bf16.mxu0 0
    %5466 = vmatmul.mubr.bf16.gmra.mxu0 %v5404
    %v5467 = vpop.f32.mrf.mxu0
    %v5468 = vadd.f32 0.0, %v5467
    %v5469 = vpop.f32.mrf.mxu0
    %v5470 = vpop.f32.mrf.mxu0
    %v5471 = vadd.f32 0.0, %v5470
    %v5472 = vpop.f32.mrf.mxu0
    %5473 = vmatprep.mubr.bf16.mxu0 0
    %5474 = vmatmul.mubr.bf16.gmra.mxu0 %v5405
    %v5475 = vpop.f32.mrf.mxu0
    %v5476 = vadd.f32 0.0, %v5475
    %v5477 = vpop.f32.mrf.mxu0
    %v5478 = vpop.f32.mrf.mxu0
    %v5479 = vadd.f32 0.0, %v5478
    %v5480 = vpop.f32.mrf.mxu0
    %5481 = vmatprep.mubr.bf16.mxu0 0
    %5482 = vmatmul.mubr.bf16.gmra.mxu0 %v5406
    %v5483 = vpop.f32.mrf.mxu0
    %v5484 = vadd.f32 0.0, %v5483
    %v5485 = vpop.f32.mrf.mxu0
    %v5486 = vpop.f32.mrf.mxu0
    %v5487 = vadd.f32 0.0, %v5486
    %v5488 = vpop.f32.mrf.mxu0
    %5489 = vmatprep.mubr.bf16.mxu0 0
    %5490 = vmatmul.mubr.bf16.gmra.mxu0 %v5407
    %v5491 = vpop.f32.mrf.mxu0
    %v5492 = vadd.f32 0.0, %v5491
    %v5493 = vpop.f32.mrf.mxu0
    %v5494 = vpop.f32.mrf.mxu0
    %v5495 = vadd.f32 0.0, %v5494
    %v5496 = vpop.f32.mrf.mxu0
    %5497 = vmatprep.mubr.bf16.mxu0 0
    %5498 = vmatmul.mubr.bf16.gmra.mxu0 %v5408
    %v5499 = vpop.f32.mrf.mxu0
    %v5500 = vadd.f32 0.0, %v5499
    %v5501 = vpop.f32.mrf.mxu0
    %v5502 = vpop.f32.mrf.mxu0
    %v5503 = vpop.f32.mrf.mxu0
    %5504 = vdwg.mxu0
    %5505 = vmatprep.subr.bf16.mxu0 0
    %5506 = vmatpush1.bf16.msra.mxu0 %v2375
    %5507 = vmatprep.subr.bf16.mxu0 0
    %5508 = vmatpush1.bf16.msra.mxu0 %v2374
    %5509 = vmatprep.subr.bf16.mxu0 0
    %5510 = vmatpush1.bf16.msra.mxu0 %v2373
    %5511 = vmatprep.subr.bf16.mxu0 0
    %5512 = vmatpush1.bf16.msra.mxu0 %v2372
    %5513 = vmatprep.subr.bf16.mxu0 0
    %5514 = vmatpush1.bf16.msra.mxu0 %v2371
    %5515 = vmatprep.subr.bf16.mxu0 0
    %5516 = vmatpush1.bf16.msra.mxu0 %v2370
    %5517 = vmatprep.subr.bf16.mxu0 0
    %5518 = vmatpush1.bf16.msra.mxu0 %v2369
    %5519 = vmatprep.subr.bf16.mxu0 0
    %5520 = vmatpush1.bf16.msra.mxu0 %v2368
    %5521 = vmatprep.subr.bf16.mxu0 0
    %5522 = vmatpush2.bf16.msra.mxu0 0
    %5523 = vmatprep.subr.bf16.mxu0 0
    %5524 = vmatpush2.bf16.msra.mxu0 0
    %5525 = vmatprep.subr.bf16.mxu0 0
    %5526 = vmatpush2.bf16.msra.mxu0 0
    %5527 = vmatprep.subr.bf16.mxu0 0
    %5528 = vmatpush2.bf16.msra.mxu0 0
    %5529 = vmatprep.subr.bf16.mxu0 0
    %5530 = vmatpush2.bf16.msra.mxu0 0
    %5531 = vmatprep.subr.bf16.mxu0 0
    %5532 = vmatpush2.bf16.msra.mxu0 0
    %5533 = vmatprep.subr.bf16.mxu0 0
    %5534 = vmatpush2.bf16.msra.mxu0 0
    %5535 = vmatprep.subr.bf16.mxu0 0
    %5536 = vmatpush2.bf16.msra.mxu0 0
    %5537 = vmatprep.mubr.bf16.mxu0 0
    %5538 = vmatmul.mubr.bf16.gmra.mxu0 %v5378
    %v5539 = vpop.f32.mrf.mxu0
    %v5540 = vadd.f32 %v5444, %v5539
    %v5541 = vpop.f32.mrf.mxu0
    %v5542 = vpop.f32.mrf.mxu0
    %v5543 = vadd.f32 %v5447, %v5542
    %v5544 = vpop.f32.mrf.mxu0
    %5545 = vmatprep.mubr.bf16.mxu0 0
    %5546 = vmatmul.mubr.bf16.gmra.mxu0 %v5379
    %v5547 = vpop.f32.mrf.mxu0
    %v5548 = vadd.f32 %v5452, %v5547
    %v5549 = vpop.f32.mrf.mxu0
    %v5550 = vpop.f32.mrf.mxu0
    %v5551 = vadd.f32 %v5455, %v5550
    %v5552 = vpop.f32.mrf.mxu0
    %5553 = vmatprep.mubr.bf16.mxu0 0
    %5554 = vmatmul.mubr.bf16.gmra.mxu0 %v5380
    %v5555 = vpop.f32.mrf.mxu0
    %v5556 = vadd.f32 %v5460, %v5555
    %v5557 = vpop.f32.mrf.mxu0
    %v5558 = vpop.f32.mrf.mxu0
    %v5559 = vadd.f32 %v5463, %v5558
    %v5560 = vpop.f32.mrf.mxu0
    %5561 = vmatprep.mubr.bf16.mxu0 0
    %5562 = vmatmul.mubr.bf16.gmra.mxu0 %v5381
    %v5563 = vpop.f32.mrf.mxu0
    %v5564 = vadd.f32 %v5468, %v5563
    %v5565 = vpop.f32.mrf.mxu0
    %v5566 = vpop.f32.mrf.mxu0
    %v5567 = vadd.f32 %v5471, %v5566
    %v5568 = vpop.f32.mrf.mxu0
    %5569 = vmatprep.mubr.bf16.mxu0 0
    %5570 = vmatmul.mubr.bf16.gmra.mxu0 %v5382
    %v5571 = vpop.f32.mrf.mxu0
    %v5572 = vadd.f32 %v5476, %v5571
    %v5573 = vpop.f32.mrf.mxu0
    %v5574 = vpop.f32.mrf.mxu0
    %v5575 = vadd.f32 %v5479, %v5574
    %v5576 = vpop.f32.mrf.mxu0
    %5577 = vmatprep.mubr.bf16.mxu0 0
    %5578 = vmatmul.mubr.bf16.gmra.mxu0 %v5383
    %v5579 = vpop.f32.mrf.mxu0
    %v5580 = vadd.f32 %v5484, %v5579
    %v5581 = vpop.f32.mrf.mxu0
    %v5582 = vpop.f32.mrf.mxu0
    %v5583 = vadd.f32 %v5487, %v5582
    %v5584 = vpop.f32.mrf.mxu0
    %5585 = vmatprep.mubr.bf16.mxu0 0
    %5586 = vmatmul.mubr.bf16.gmra.mxu0 %v5384
    %v5587 = vpop.f32.mrf.mxu0
    %v5588 = vadd.f32 %v5492, %v5587
    %v5589 = vpop.f32.mrf.mxu0
    %v5590 = vpop.f32.mrf.mxu0
    %v5591 = vadd.f32 %v5495, %v5590
    %v5592 = vpop.f32.mrf.mxu0
    %5593 = vmatprep.mubr.bf16.mxu0 0
    %5594 = vmatmul.mubr.bf16.gmra.mxu0 %v5385
    %v5595 = vpop.f32.mrf.mxu0
    %v5596 = vadd.f32 %v5500, %v5595
    %v5597 = vpop.f32.mrf.mxu0
    %v5598 = vpop.f32.mrf.mxu0
    %v5599 = vpop.f32.mrf.mxu0
    %5600 = vdwg.mxu0
    %v5601 = vld [vmem:[#allocation2 + $0xf5] sm:$0xff]
    %v5602 = vld [vmem:[#allocation2 + $0xfd] sm:$0xff]
    %v5603 = vld [vmem:[#allocation2 + $0x105] sm:$0xff]
    %v5604 = vld [vmem:[#allocation2 + $0x10d] sm:$0xff]
    %v5605 = vld [vmem:[#allocation2 + $0x115] sm:$0xff]
    %v5606 = vld [vmem:[#allocation2 + $0x11d] sm:$0xff]
    %v5607 = vld [vmem:[#allocation2 + $0x125] sm:$0xff]
    %v5608 = vld [vmem:[#allocation2 + $0x12d] sm:$0xff]
    %v5609 = vld [vmem:[#allocation2 + $0x135] sm:$0xff]
    %v5610 = vld [vmem:[#allocation2 + $0x13d] sm:$0xff]
    %v5611 = vld [vmem:[#allocation2 + $0x145] sm:$0xff]
    %v5612 = vld [vmem:[#allocation2 + $0x14d] sm:$0xff]
    %v5613 = vld [vmem:[#allocation2 + $0x155] sm:$0xff]
    %v5614 = vld [vmem:[#allocation2 + $0x15d] sm:$0xff]
    %v5615 = vld [vmem:[#allocation2 + $0x165] sm:$0xff]
    %v5616 = vpack.c.bf16 %v5602, %v5601
    %v5617 = vpack.c.bf16 %v5604, %v5603
    %v5618 = vpack.c.bf16 %v5606, %v5605
    %v5619 = vpack.c.bf16 %v5608, %v5607
    %v5620 = vpack.c.bf16 %v5610, %v5609
    %v5621 = vpack.c.bf16 %v5612, %v5611
    %v5622 = vpack.c.bf16 %v5614, %v5613
    %v5623 = vpack.c.bf16 %v5615, %v5615
    %5624 = vmatprep.subr.bf16.mxu0 0
    %5625 = vmatpush1.bf16.msra.mxu0 %v2558
    %5626 = vmatprep.subr.bf16.mxu0 0
    %5627 = vmatpush1.bf16.msra.mxu0 %v2557
    %5628 = vmatprep.subr.bf16.mxu0 0
    %5629 = vmatpush1.bf16.msra.mxu0 %v2556
    %5630 = vmatprep.subr.bf16.mxu0 0
    %5631 = vmatpush1.bf16.msra.mxu0 %v2555
    %5632 = vmatprep.subr.bf16.mxu0 0
    %5633 = vmatpush1.bf16.msra.mxu0 %v2554
    %5634 = vmatprep.subr.bf16.mxu0 0
    %5635 = vmatpush1.bf16.msra.mxu0 %v2553
    %5636 = vmatprep.subr.bf16.mxu0 0
    %5637 = vmatpush1.bf16.msra.mxu0 %v2552
    %5638 = vmatprep.subr.bf16.mxu0 0
    %5639 = vmatpush1.bf16.msra.mxu0 %v2551
    %5640 = vmatprep.subr.bf16.mxu0 0
    %5641 = vmatpush2.bf16.msra.mxu0 0
    %5642 = vmatprep.subr.bf16.mxu0 0
    %5643 = vmatpush2.bf16.msra.mxu0 0
    %5644 = vmatprep.subr.bf16.mxu0 0
    %5645 = vmatpush2.bf16.msra.mxu0 0
    %5646 = vmatprep.subr.bf16.mxu0 0
    %5647 = vmatpush2.bf16.msra.mxu0 0
    %5648 = vmatprep.subr.bf16.mxu0 0
    %5649 = vmatpush2.bf16.msra.mxu0 0
    %5650 = vmatprep.subr.bf16.mxu0 0
    %5651 = vmatpush2.bf16.msra.mxu0 0
    %5652 = vmatprep.subr.bf16.mxu0 0
    %5653 = vmatpush2.bf16.msra.mxu0 0
    %5654 = vmatprep.subr.bf16.mxu0 0
    %5655 = vmatpush2.bf16.msra.mxu0 0
    %5656 = vmatprep.mubr.bf16.mxu0 0
    %5657 = vmatmul.mubr.bf16.gmra.mxu0 %v5616
    %v5658 = vpop.f32.mrf.mxu0
    %v5659 = vadd.f32 0.0, %v5658
    %v5660 = vpop.f32.mrf.mxu0
    %v5661 = vpop.f32.mrf.mxu0
    %v5662 = vadd.f32 0.0, %v5661
    %v5663 = vpop.f32.mrf.mxu0
    %5664 = vmatprep.mubr.bf16.mxu0 0
    %5665 = vmatmul.mubr.bf16.gmra.mxu0 %v5617
    %v5666 = vpop.f32.mrf.mxu0
    %v5667 = vadd.f32 0.0, %v5666
    %v5668 = vpop.f32.mrf.mxu0
    %v5669 = vpop.f32.mrf.mxu0
    %v5670 = vadd.f32 0.0, %v5669
    %v5671 = vpop.f32.mrf.mxu0
    %5672 = vmatprep.mubr.bf16.mxu0 0
    %5673 = vmatmul.mubr.bf16.gmra.mxu0 %v5618
    %v5674 = vpop.f32.mrf.mxu0
    %v5675 = vadd.f32 0.0, %v5674
    %v5676 = vpop.f32.mrf.mxu0
    %v5677 = vpop.f32.mrf.mxu0
    %v5678 = vadd.f32 0.0, %v5677
    %v5679 = vpop.f32.mrf.mxu0
    %5680 = vmatprep.mubr.bf16.mxu0 0
    %5681 = vmatmul.mubr.bf16.gmra.mxu0 %v5619
    %v5682 = vpop.f32.mrf.mxu0
    %v5683 = vadd.f32 0.0, %v5682
    %v5684 = vpop.f32.mrf.mxu0
    %v5685 = vpop.f32.mrf.mxu0
    %v5686 = vadd.f32 0.0, %v5685
    %v5687 = vpop.f32.mrf.mxu0
    %5688 = vmatprep.mubr.bf16.mxu0 0
    %5689 = vmatmul.mubr.bf16.gmra.mxu0 %v5620
    %v5690 = vpop.f32.mrf.mxu0
    %v5691 = vadd.f32 0.0, %v5690
    %v5692 = vpop.f32.mrf.mxu0
    %v5693 = vpop.f32.mrf.mxu0
    %v5694 = vadd.f32 0.0, %v5693
    %v5695 = vpop.f32.mrf.mxu0
    %5696 = vmatprep.mubr.bf16.mxu0 0
    %5697 = vmatmul.mubr.bf16.gmra.mxu0 %v5621
    %v5698 = vpop.f32.mrf.mxu0
    %v5699 = vadd.f32 0.0, %v5698
    %v5700 = vpop.f32.mrf.mxu0
    %v5701 = vpop.f32.mrf.mxu0
    %v5702 = vadd.f32 0.0, %v5701
    %v5703 = vpop.f32.mrf.mxu0
    %5704 = vmatprep.mubr.bf16.mxu0 0
    %5705 = vmatmul.mubr.bf16.gmra.mxu0 %v5622
    %v5706 = vpop.f32.mrf.mxu0
    %v5707 = vadd.f32 0.0, %v5706
    %v5708 = vpop.f32.mrf.mxu0
    %v5709 = vpop.f32.mrf.mxu0
    %v5710 = vadd.f32 0.0, %v5709
    %v5711 = vpop.f32.mrf.mxu0
    %5712 = vmatprep.mubr.bf16.mxu0 0
    %5713 = vmatmul.mubr.bf16.gmra.mxu0 %v5623
    %v5714 = vpop.f32.mrf.mxu0
    %v5715 = vadd.f32 0.0, %v5714
    %v5716 = vpop.f32.mrf.mxu0
    %v5717 = vpop.f32.mrf.mxu0
    %v5718 = vpop.f32.mrf.mxu0
    %5719 = vdwg.mxu0
    %v5720 = vadd.f32 %v5540, %v5659
    %v5721 = vadd.f32 %v5543, %v5662
    %v5722 = vadd.f32 %v5548, %v5667
    %v5723 = vadd.f32 %v5551, %v5670
    %v5724 = vadd.f32 %v5556, %v5675
    %v5725 = vadd.f32 %v5559, %v5678
    %v5726 = vadd.f32 %v5564, %v5683
    %v5727 = vadd.f32 %v5567, %v5686
    %v5728 = vadd.f32 %v5572, %v5691
    %v5729 = vadd.f32 %v5575, %v5694
    %v5730 = vadd.f32 %v5580, %v5699
    %v5731 = vadd.f32 %v5583, %v5702
    %v5732 = vadd.f32 %v5588, %v5707
    %v5733 = vadd.f32 %v5591, %v5710
    %v5734 = vadd.f32 %v5596, %v5715
    %v5735 = vld [vmem:[#allocation2 + $0x107] sm:$0xff]
    %v5736 = vld [vmem:[#allocation2 + $0x10f] sm:$0xff]
    %v5737 = vld [vmem:[#allocation2 + $0x117] sm:$0xff]
    %v5738 = vld [vmem:[#allocation2 + $0x11f] sm:$0xff]
    %v5739 = vld [vmem:[#allocation2 + $0x127] sm:$0xff]
    %v5740 = vld [vmem:[#allocation2 + $0x12f] sm:$0xff]
    %v5741 = vld [vmem:[#allocation2 + $0x137] sm:$0xff]
    %v5742 = vld [vmem:[#allocation2 + $0x13f] sm:$0xff]
    %v5743 = vld [vmem:[#allocation2 + $0x147] sm:$0xff]
    %v5744 = vld [vmem:[#allocation2 + $0x14f] sm:$0xff]
    %v5745 = vld [vmem:[#allocation2 + $0x157] sm:$0xff]
    %v5746 = vld [vmem:[#allocation2 + $0x15f] sm:$0xff]
    %v5747 = vld [vmem:[#allocation2 + $0x167] sm:$0xff]
    %v5748 = vld [vmem:[#allocation2 + $0x16f] sm:$0xff]
    %v5749 = vld [vmem:[#allocation2 + $0x177] sm:$0xff]
    %v5750 = vpack.c.bf16 %v5736, %v5735
    %v5751 = vpack.c.bf16 %v5738, %v5737
    %v5752 = vpack.c.bf16 %v5740, %v5739
    %v5753 = vpack.c.bf16 %v5742, %v5741
    %v5754 = vpack.c.bf16 %v5744, %v5743
    %v5755 = vpack.c.bf16 %v5746, %v5745
    %v5756 = vpack.c.bf16 %v5748, %v5747
    %v5757 = vpack.c.bf16 %v5749, %v5749
    %5758 = vmatprep.subr.bf16.mxu0 0
    %5759 = vmatpush1.bf16.msra.mxu0 %v2756
    %5760 = vmatprep.subr.bf16.mxu0 0
    %5761 = vmatpush1.bf16.msra.mxu0 %v2755
    %5762 = vmatprep.subr.bf16.mxu0 0
    %5763 = vmatpush1.bf16.msra.mxu0 %v2754
    %5764 = vmatprep.subr.bf16.mxu0 0
    %5765 = vmatpush1.bf16.msra.mxu0 %v2753
    %5766 = vmatprep.subr.bf16.mxu0 0
    %5767 = vmatpush1.bf16.msra.mxu0 %v2752
    %5768 = vmatprep.subr.bf16.mxu0 0
    %5769 = vmatpush1.bf16.msra.mxu0 %v2751
    %5770 = vmatprep.subr.bf16.mxu0 0
    %5771 = vmatpush1.bf16.msra.mxu0 %v2750
    %5772 = vmatprep.subr.bf16.mxu0 0
    %5773 = vmatpush1.bf16.msra.mxu0 %v2749
    %5774 = vmatprep.subr.bf16.mxu0 0
    %5775 = vmatpush2.bf16.msra.mxu0 0
    %5776 = vmatprep.subr.bf16.mxu0 0
    %5777 = vmatpush2.bf16.msra.mxu0 0
    %5778 = vmatprep.subr.bf16.mxu0 0
    %5779 = vmatpush2.bf16.msra.mxu0 0
    %5780 = vmatprep.subr.bf16.mxu0 0
    %5781 = vmatpush2.bf16.msra.mxu0 0
    %5782 = vmatprep.subr.bf16.mxu0 0
    %5783 = vmatpush2.bf16.msra.mxu0 0
    %5784 = vmatprep.subr.bf16.mxu0 0
    %5785 = vmatpush2.bf16.msra.mxu0 0
    %5786 = vmatprep.subr.bf16.mxu0 0
    %5787 = vmatpush2.bf16.msra.mxu0 0
    %5788 = vmatprep.subr.bf16.mxu0 0
    %5789 = vmatpush2.bf16.msra.mxu0 0
    %5790 = vmatprep.mubr.bf16.mxu0 0
    %5791 = vmatmul.mubr.bf16.gmra.mxu0 %v5750
    %v5792 = vpop.f32.mrf.mxu0
    %v5793 = vadd.f32 0.0, %v5792
    %v5794 = vpop.f32.mrf.mxu0
    %v5795 = vpop.f32.mrf.mxu0
    %v5796 = vadd.f32 0.0, %v5795
    %v5797 = vpop.f32.mrf.mxu0
    %5798 = vmatprep.mubr.bf16.mxu0 0
    %5799 = vmatmul.mubr.bf16.gmra.mxu0 %v5751
    %v5800 = vpop.f32.mrf.mxu0
    %v5801 = vadd.f32 0.0, %v5800
    %v5802 = vpop.f32.mrf.mxu0
    %v5803 = vpop.f32.mrf.mxu0
    %v5804 = vadd.f32 0.0, %v5803
    %v5805 = vpop.f32.mrf.mxu0
    %5806 = vmatprep.mubr.bf16.mxu0 0
    %5807 = vmatmul.mubr.bf16.gmra.mxu0 %v5752
    %v5808 = vpop.f32.mrf.mxu0
    %v5809 = vadd.f32 0.0, %v5808
    %v5810 = vpop.f32.mrf.mxu0
    %v5811 = vpop.f32.mrf.mxu0
    %v5812 = vadd.f32 0.0, %v5811
    %v5813 = vpop.f32.mrf.mxu0
    %5814 = vmatprep.mubr.bf16.mxu0 0
    %5815 = vmatmul.mubr.bf16.gmra.mxu0 %v5753
    %v5816 = vpop.f32.mrf.mxu0
    %v5817 = vadd.f32 0.0, %v5816
    %v5818 = vpop.f32.mrf.mxu0
    %v5819 = vpop.f32.mrf.mxu0
    %v5820 = vadd.f32 0.0, %v5819
    %v5821 = vpop.f32.mrf.mxu0
    %5822 = vmatprep.mubr.bf16.mxu0 0
    %5823 = vmatmul.mubr.bf16.gmra.mxu0 %v5754
    %v5824 = vpop.f32.mrf.mxu0
    %v5825 = vadd.f32 0.0, %v5824
    %v5826 = vpop.f32.mrf.mxu0
    %v5827 = vpop.f32.mrf.mxu0
    %v5828 = vadd.f32 0.0, %v5827
    %v5829 = vpop.f32.mrf.mxu0
    %5830 = vmatprep.mubr.bf16.mxu0 0
    %5831 = vmatmul.mubr.bf16.gmra.mxu0 %v5755
    %v5832 = vpop.f32.mrf.mxu0
    %v5833 = vadd.f32 0.0, %v5832
    %v5834 = vpop.f32.mrf.mxu0
    %v5835 = vpop.f32.mrf.mxu0
    %v5836 = vadd.f32 0.0, %v5835
    %v5837 = vpop.f32.mrf.mxu0
    %5838 = vmatprep.mubr.bf16.mxu0 0
    %5839 = vmatmul.mubr.bf16.gmra.mxu0 %v5756
    %v5840 = vpop.f32.mrf.mxu0
    %v5841 = vadd.f32 0.0, %v5840
    %v5842 = vpop.f32.mrf.mxu0
    %v5843 = vpop.f32.mrf.mxu0
    %v5844 = vadd.f32 0.0, %v5843
    %v5845 = vpop.f32.mrf.mxu0
    %5846 = vmatprep.mubr.bf16.mxu0 0
    %5847 = vmatmul.mubr.bf16.gmra.mxu0 %v5757
    %v5848 = vpop.f32.mrf.mxu0
    %v5849 = vadd.f32 0.0, %v5848
    %v5850 = vpop.f32.mrf.mxu0
    %v5851 = vpop.f32.mrf.mxu0
    %v5852 = vpop.f32.mrf.mxu0
    %5853 = vdwg.mxu0
    %v5854 = vadd.f32 %v5720, %v5793
    %v5855 = vadd.f32 %v5721, %v5796
    %v5856 = vadd.f32 %v5722, %v5801
    %v5857 = vadd.f32 %v5723, %v5804
    %v5858 = vadd.f32 %v5724, %v5809
    %v5859 = vadd.f32 %v5725, %v5812
    %v5860 = vadd.f32 %v5726, %v5817
    %v5861 = vadd.f32 %v5727, %v5820
    %v5862 = vadd.f32 %v5728, %v5825
    %v5863 = vadd.f32 %v5729, %v5828
    %v5864 = vadd.f32 %v5730, %v5833
    %v5865 = vadd.f32 %v5731, %v5836
    %v5866 = vadd.f32 %v5732, %v5841
    %v5867 = vadd.f32 %v5733, %v5844
    %v5868 = vadd.f32 %v5734, %v5849
    %v5869 = vld [vmem:[#allocation2 + $0x108] sm:$0xff]
    %v5870 = vld [vmem:[#allocation2 + $0x110] sm:$0xff]
    %v5871 = vld [vmem:[#allocation2 + $0x118] sm:$0xff]
    %v5872 = vld [vmem:[#allocation2 + $0x120] sm:$0xff]
    %v5873 = vld [vmem:[#allocation2 + $0x128] sm:$0xff]
    %v5874 = vld [vmem:[#allocation2 + $0x130] sm:$0xff]
    %v5875 = vld [vmem:[#allocation2 + $0x138] sm:$0xff]
    %v5876 = vld [vmem:[#allocation2 + $0x140] sm:$0xff]
    %v5877 = vld [vmem:[#allocation2 + $0x148] sm:$0xff]
    %v5878 = vld [vmem:[#allocation2 + $0x150] sm:$0xff]
    %v5879 = vld [vmem:[#allocation2 + $0x158] sm:$0xff]
    %v5880 = vld [vmem:[#allocation2 + $0x160] sm:$0xff]
    %v5881 = vld [vmem:[#allocation2 + $0x168] sm:$0xff]
    %v5882 = vld [vmem:[#allocation2 + $0x170] sm:$0xff]
    %v5883 = vld [vmem:[#allocation2 + $0x178] sm:$0xff]
    %v5884 = vpack.c.bf16 %v5870, %v5869
    %v5885 = vpack.c.bf16 %v5872, %v5871
    %v5886 = vpack.c.bf16 %v5874, %v5873
    %v5887 = vpack.c.bf16 %v5876, %v5875
    %v5888 = vpack.c.bf16 %v5878, %v5877
    %v5889 = vpack.c.bf16 %v5880, %v5879
    %v5890 = vpack.c.bf16 %v5882, %v5881
    %v5891 = vpack.c.bf16 %v5883, %v5883
    %5892 = vmatprep.subr.bf16.mxu0 0
    %5893 = vmatpush1.bf16.msra.mxu0 %v2954
    %5894 = vmatprep.subr.bf16.mxu0 0
    %5895 = vmatpush1.bf16.msra.mxu0 %v2953
    %5896 = vmatprep.subr.bf16.mxu0 0
    %5897 = vmatpush1.bf16.msra.mxu0 %v2952
    %5898 = vmatprep.subr.bf16.mxu0 0
    %5899 = vmatpush1.bf16.msra.mxu0 %v2951
    %5900 = vmatprep.subr.bf16.mxu0 0
    %5901 = vmatpush1.bf16.msra.mxu0 %v2950
    %5902 = vmatprep.subr.bf16.mxu0 0
    %5903 = vmatpush1.bf16.msra.mxu0 %v2949
    %5904 = vmatprep.subr.bf16.mxu0 0
    %5905 = vmatpush1.bf16.msra.mxu0 %v2948
    %5906 = vmatprep.subr.bf16.mxu0 0
    %5907 = vmatpush1.bf16.msra.mxu0 %v2947
    %5908 = vmatprep.subr.bf16.mxu0 0
    %5909 = vmatpush2.bf16.msra.mxu0 0
    %5910 = vmatprep.subr.bf16.mxu0 0
    %5911 = vmatpush2.bf16.msra.mxu0 0
    %5912 = vmatprep.subr.bf16.mxu0 0
    %5913 = vmatpush2.bf16.msra.mxu0 0
    %5914 = vmatprep.subr.bf16.mxu0 0
    %5915 = vmatpush2.bf16.msra.mxu0 0
    %5916 = vmatprep.subr.bf16.mxu0 0
    %5917 = vmatpush2.bf16.msra.mxu0 0
    %5918 = vmatprep.subr.bf16.mxu0 0
    %5919 = vmatpush2.bf16.msra.mxu0 0
    %5920 = vmatprep.subr.bf16.mxu0 0
    %5921 = vmatpush2.bf16.msra.mxu0 0
    %5922 = vmatprep.subr.bf16.mxu0 0
    %5923 = vmatpush2.bf16.msra.mxu0 0
    %5924 = vmatprep.mubr.bf16.mxu0 0
    %5925 = vmatmul.mubr.bf16.gmra.mxu0 %v5884
    %v5926 = vpop.f32.mrf.mxu0
    %v5927 = vadd.f32 0.0, %v5926
    %v5928 = vpop.f32.mrf.mxu0
    %v5929 = vpop.f32.mrf.mxu0
    %v5930 = vadd.f32 0.0, %v5929
    %v5931 = vpop.f32.mrf.mxu0
    %5932 = vmatprep.mubr.bf16.mxu0 0
    %5933 = vmatmul.mubr.bf16.gmra.mxu0 %v5885
    %v5934 = vpop.f32.mrf.mxu0
    %v5935 = vadd.f32 0.0, %v5934
    %v5936 = vpop.f32.mrf.mxu0
    %v5937 = vpop.f32.mrf.mxu0
    %v5938 = vadd.f32 0.0, %v5937
    %v5939 = vpop.f32.mrf.mxu0
    %5940 = vmatprep.mubr.bf16.mxu0 0
    %5941 = vmatmul.mubr.bf16.gmra.mxu0 %v5886
    %v5942 = vpop.f32.mrf.mxu0
    %v5943 = vadd.f32 0.0, %v5942
    %v5944 = vpop.f32.mrf.mxu0
    %v5945 = vpop.f32.mrf.mxu0
    %v5946 = vadd.f32 0.0, %v5945
    %v5947 = vpop.f32.mrf.mxu0
    %5948 = vmatprep.mubr.bf16.mxu0 0
    %5949 = vmatmul.mubr.bf16.gmra.mxu0 %v5887
    %v5950 = vpop.f32.mrf.mxu0
    %v5951 = vadd.f32 0.0, %v5950
    %v5952 = vpop.f32.mrf.mxu0
    %v5953 = vpop.f32.mrf.mxu0
    %v5954 = vadd.f32 0.0, %v5953
    %v5955 = vpop.f32.mrf.mxu0
    %5956 = vmatprep.mubr.bf16.mxu0 0
    %5957 = vmatmul.mubr.bf16.gmra.mxu0 %v5888
    %v5958 = vpop.f32.mrf.mxu0
    %v5959 = vadd.f32 0.0, %v5958
    %v5960 = vpop.f32.mrf.mxu0
    %v5961 = vpop.f32.mrf.mxu0
    %v5962 = vadd.f32 0.0, %v5961
    %v5963 = vpop.f32.mrf.mxu0
    %5964 = vmatprep.mubr.bf16.mxu0 0
    %5965 = vmatmul.mubr.bf16.gmra.mxu0 %v5889
    %v5966 = vpop.f32.mrf.mxu0
    %v5967 = vadd.f32 0.0, %v5966
    %v5968 = vpop.f32.mrf.mxu0
    %v5969 = vpop.f32.mrf.mxu0
    %v5970 = vadd.f32 0.0, %v5969
    %v5971 = vpop.f32.mrf.mxu0
    %5972 = vmatprep.mubr.bf16.mxu0 0
    %5973 = vmatmul.mubr.bf16.gmra.mxu0 %v5890
    %v5974 = vpop.f32.mrf.mxu0
    %v5975 = vadd.f32 0.0, %v5974
    %v5976 = vpop.f32.mrf.mxu0
    %v5977 = vpop.f32.mrf.mxu0
    %v5978 = vadd.f32 0.0, %v5977
    %v5979 = vpop.f32.mrf.mxu0
    %5980 = vmatprep.mubr.bf16.mxu0 0
    %5981 = vmatmul.mubr.bf16.gmra.mxu0 %v5891
    %v5982 = vpop.f32.mrf.mxu0
    %v5983 = vadd.f32 0.0, %v5982
    %v5984 = vpop.f32.mrf.mxu0
    %v5985 = vpop.f32.mrf.mxu0
    %v5986 = vpop.f32.mrf.mxu0
    %5987 = vdwg.mxu0
    %v5988 = vadd.f32 %v5854, %v5927
    %v5989 = vadd.f32 %v5855, %v5930
    %v5990 = vadd.f32 %v5856, %v5935
    %v5991 = vadd.f32 %v5857, %v5938
    %v5992 = vadd.f32 %v5858, %v5943
    %v5993 = vadd.f32 %v5859, %v5946
    %v5994 = vadd.f32 %v5860, %v5951
    %v5995 = vadd.f32 %v5861, %v5954
    %v5996 = vadd.f32 %v5862, %v5959
    %v5997 = vadd.f32 %v5863, %v5962
    %v5998 = vadd.f32 %v5864, %v5967
    %v5999 = vadd.f32 %v5865, %v5970
    %v6000 = vadd.f32 %v5866, %v5975
    %v6001 = vadd.f32 %v5867, %v5978
    %v6002 = vadd.f32 %v5868, %v5983
    %v6003 = vld [vmem:[#allocation2 + $0x109] sm:$0xff]
    %v6004 = vld [vmem:[#allocation2 + $0x111] sm:$0xff]
    %v6005 = vld [vmem:[#allocation2 + $0x119] sm:$0xff]
    %v6006 = vld [vmem:[#allocation2 + $0x121] sm:$0xff]
    %v6007 = vld [vmem:[#allocation2 + $0x129] sm:$0xff]
    %v6008 = vld [vmem:[#allocation2 + $0x131] sm:$0xff]
    %v6009 = vld [vmem:[#allocation2 + $0x139] sm:$0xff]
    %v6010 = vld [vmem:[#allocation2 + $0x141] sm:$0xff]
    %v6011 = vld [vmem:[#allocation2 + $0x149] sm:$0xff]
    %v6012 = vld [vmem:[#allocation2 + $0x151] sm:$0xff]
    %v6013 = vld [vmem:[#allocation2 + $0x159] sm:$0xff]
    %v6014 = vld [vmem:[#allocation2 + $0x161] sm:$0xff]
    %v6015 = vld [vmem:[#allocation2 + $0x169] sm:$0xff]
    %v6016 = vld [vmem:[#allocation2 + $0x171] sm:$0xff]
    %v6017 = vld [vmem:[#allocation2 + $0x179] sm:$0xff]
    %v6018 = vpack.c.bf16 %v6004, %v6003
    %v6019 = vpack.c.bf16 %v6006, %v6005
    %v6020 = vpack.c.bf16 %v6008, %v6007
    %v6021 = vpack.c.bf16 %v6010, %v6009
    %v6022 = vpack.c.bf16 %v6012, %v6011
    %v6023 = vpack.c.bf16 %v6014, %v6013
    %v6024 = vpack.c.bf16 %v6016, %v6015
    %v6025 = vpack.c.bf16 %v6017, %v6017
    %6026 = vmatprep.subr.bf16.mxu0 0
    %6027 = vmatpush1.bf16.msra.mxu0 %v3152
    %6028 = vmatprep.subr.bf16.mxu0 0
    %6029 = vmatpush1.bf16.msra.mxu0 %v3151
    %6030 = vmatprep.subr.bf16.mxu0 0
    %6031 = vmatpush1.bf16.msra.mxu0 %v3150
    %6032 = vmatprep.subr.bf16.mxu0 0
    %6033 = vmatpush1.bf16.msra.mxu0 %v3149
    %6034 = vmatprep.subr.bf16.mxu0 0
    %6035 = vmatpush1.bf16.msra.mxu0 %v3148
    %6036 = vmatprep.subr.bf16.mxu0 0
    %6037 = vmatpush1.bf16.msra.mxu0 %v3147
    %6038 = vmatprep.subr.bf16.mxu0 0
    %6039 = vmatpush1.bf16.msra.mxu0 %v3146
    %6040 = vmatprep.subr.bf16.mxu0 0
    %6041 = vmatpush1.bf16.msra.mxu0 %v3145
    %6042 = vmatprep.subr.bf16.mxu0 0
    %6043 = vmatpush2.bf16.msra.mxu0 0
    %6044 = vmatprep.subr.bf16.mxu0 0
    %6045 = vmatpush2.bf16.msra.mxu0 0
    %6046 = vmatprep.subr.bf16.mxu0 0
    %6047 = vmatpush2.bf16.msra.mxu0 0
    %6048 = vmatprep.subr.bf16.mxu0 0
    %6049 = vmatpush2.bf16.msra.mxu0 0
    %6050 = vmatprep.subr.bf16.mxu0 0
    %6051 = vmatpush2.bf16.msra.mxu0 0
    %6052 = vmatprep.subr.bf16.mxu0 0
    %6053 = vmatpush2.bf16.msra.mxu0 0
    %6054 = vmatprep.subr.bf16.mxu0 0
    %6055 = vmatpush2.bf16.msra.mxu0 0
    %6056 = vmatprep.subr.bf16.mxu0 0
    %6057 = vmatpush2.bf16.msra.mxu0 0
    %6058 = vmatprep.mubr.bf16.mxu0 0
    %6059 = vmatmul.mubr.bf16.gmra.mxu0 %v6018
    %v6060 = vpop.f32.mrf.mxu0
    %v6061 = vadd.f32 0.0, %v6060
    %v6062 = vpop.f32.mrf.mxu0
    %v6063 = vpop.f32.mrf.mxu0
    %v6064 = vadd.f32 0.0, %v6063
    %v6065 = vpop.f32.mrf.mxu0
    %6066 = vmatprep.mubr.bf16.mxu0 0
    %6067 = vmatmul.mubr.bf16.gmra.mxu0 %v6019
    %v6068 = vpop.f32.mrf.mxu0
    %v6069 = vadd.f32 0.0, %v6068
    %v6070 = vpop.f32.mrf.mxu0
    %v6071 = vpop.f32.mrf.mxu0
    %v6072 = vadd.f32 0.0, %v6071
    %v6073 = vpop.f32.mrf.mxu0
    %6074 = vmatprep.mubr.bf16.mxu0 0
    %6075 = vmatmul.mubr.bf16.gmra.mxu0 %v6020
    %v6076 = vpop.f32.mrf.mxu0
    %v6077 = vadd.f32 0.0, %v6076
    %v6078 = vpop.f32.mrf.mxu0
    %v6079 = vpop.f32.mrf.mxu0
    %v6080 = vadd.f32 0.0, %v6079
    %v6081 = vpop.f32.mrf.mxu0
    %6082 = vmatprep.mubr.bf16.mxu0 0
    %6083 = vmatmul.mubr.bf16.gmra.mxu0 %v6021
    %v6084 = vpop.f32.mrf.mxu0
    %v6085 = vadd.f32 0.0, %v6084
    %v6086 = vpop.f32.mrf.mxu0
    %v6087 = vpop.f32.mrf.mxu0
    %v6088 = vadd.f32 0.0, %v6087
    %v6089 = vpop.f32.mrf.mxu0
    %6090 = vmatprep.mubr.bf16.mxu0 0
    %6091 = vmatmul.mubr.bf16.gmra.mxu0 %v6022
    %v6092 = vpop.f32.mrf.mxu0
    %v6093 = vadd.f32 0.0, %v6092
    %v6094 = vpop.f32.mrf.mxu0
    %v6095 = vpop.f32.mrf.mxu0
    %v6096 = vadd.f32 0.0, %v6095
    %v6097 = vpop.f32.mrf.mxu0
    %6098 = vmatprep.mubr.bf16.mxu0 0
    %6099 = vmatmul.mubr.bf16.gmra.mxu0 %v6023
    %v6100 = vpop.f32.mrf.mxu0
    %v6101 = vadd.f32 0.0, %v6100
    %v6102 = vpop.f32.mrf.mxu0
    %v6103 = vpop.f32.mrf.mxu0
    %v6104 = vadd.f32 0.0, %v6103
    %v6105 = vpop.f32.mrf.mxu0
    %6106 = vmatprep.mubr.bf16.mxu0 0
    %6107 = vmatmul.mubr.bf16.gmra.mxu0 %v6024
    %v6108 = vpop.f32.mrf.mxu0
    %v6109 = vadd.f32 0.0, %v6108
    %v6110 = vpop.f32.mrf.mxu0
    %v6111 = vpop.f32.mrf.mxu0
    %v6112 = vadd.f32 0.0, %v6111
    %v6113 = vpop.f32.mrf.mxu0
    %6114 = vmatprep.mubr.bf16.mxu0 0
    %6115 = vmatmul.mubr.bf16.gmra.mxu0 %v6025
    %v6116 = vpop.f32.mrf.mxu0
    %v6117 = vadd.f32 0.0, %v6116
    %v6118 = vpop.f32.mrf.mxu0
    %v6119 = vpop.f32.mrf.mxu0
    %v6120 = vpop.f32.mrf.mxu0
    %6121 = vdwg.mxu0
    %v6122 = vadd.f32 %v5988, %v6061
    %v6123 = vadd.f32 %v5989, %v6064
    %v6124 = vadd.f32 %v5990, %v6069
    %v6125 = vadd.f32 %v5991, %v6072
    %v6126 = vadd.f32 %v5992, %v6077
    %v6127 = vadd.f32 %v5993, %v6080
    %v6128 = vadd.f32 %v5994, %v6085
    %v6129 = vadd.f32 %v5995, %v6088
    %v6130 = vadd.f32 %v5996, %v6093
    %v6131 = vadd.f32 %v5997, %v6096
    %v6132 = vadd.f32 %v5998, %v6101
    %v6133 = vadd.f32 %v5999, %v6104
    %v6134 = vadd.f32 %v6000, %v6109
    %v6135 = vadd.f32 %v6001, %v6112
    %v6136 = vadd.f32 %v6002, %v6117
    %v6137 = vld [vmem:[#allocation2 + $0x11b] sm:$0xff]
    %v6138 = vld [vmem:[#allocation2 + $0x123] sm:$0xff]
    %v6139 = vld [vmem:[#allocation2 + $0x12b] sm:$0xff]
    %v6140 = vld [vmem:[#allocation2 + $0x133] sm:$0xff]
    %v6141 = vld [vmem:[#allocation2 + $0x13b] sm:$0xff]
    %v6142 = vld [vmem:[#allocation2 + $0x143] sm:$0xff]
    %v6143 = vld [vmem:[#allocation2 + $0x14b] sm:$0xff]
    %v6144 = vld [vmem:[#allocation2 + $0x153] sm:$0xff]
    %v6145 = vld [vmem:[#allocation2 + $0x15b] sm:$0xff]
    %v6146 = vld [vmem:[#allocation2 + $0x163] sm:$0xff]
    %v6147 = vld [vmem:[#allocation2 + $0x16b] sm:$0xff]
    %v6148 = vld [vmem:[#allocation2 + $0x173] sm:$0xff]
    %v6149 = vld [vmem:[#allocation2 + $0x17b] sm:$0xff]
    %v6150 = vld [vmem:[#allocation2 + $0x183] sm:$0xff]
    %v6151 = vld [vmem:[#allocation2 + $0x18b] sm:$0xff]
    %v6152 = vpack.c.bf16 %v6138, %v6137
    %v6153 = vpack.c.bf16 %v6140, %v6139
    %v6154 = vpack.c.bf16 %v6142, %v6141
    %v6155 = vpack.c.bf16 %v6144, %v6143
    %v6156 = vpack.c.bf16 %v6146, %v6145
    %v6157 = vpack.c.bf16 %v6148, %v6147
    %v6158 = vpack.c.bf16 %v6150, %v6149
    %v6159 = vpack.c.bf16 %v6151, %v6151
    %6160 = vmatprep.subr.bf16.mxu0 0
    %6161 = vmatpush1.bf16.msra.mxu0 %v3350
    %6162 = vmatprep.subr.bf16.mxu0 0
    %6163 = vmatpush1.bf16.msra.mxu0 %v3349
    %6164 = vmatprep.subr.bf16.mxu0 0
    %6165 = vmatpush1.bf16.msra.mxu0 %v3348
    %6166 = vmatprep.subr.bf16.mxu0 0
    %6167 = vmatpush1.bf16.msra.mxu0 %v3347
    %6168 = vmatprep.subr.bf16.mxu0 0
    %6169 = vmatpush1.bf16.msra.mxu0 %v3346
    %6170 = vmatprep.subr.bf16.mxu0 0
    %6171 = vmatpush1.bf16.msra.mxu0 %v3345
    %6172 = vmatprep.subr.bf16.mxu0 0
    %6173 = vmatpush1.bf16.msra.mxu0 %v3344
    %6174 = vmatprep.subr.bf16.mxu0 0
    %6175 = vmatpush1.bf16.msra.mxu0 %v3343
    %6176 = vmatprep.subr.bf16.mxu0 0
    %6177 = vmatpush2.bf16.msra.mxu0 0
    %6178 = vmatprep.subr.bf16.mxu0 0
    %6179 = vmatpush2.bf16.msra.mxu0 0
    %6180 = vmatprep.subr.bf16.mxu0 0
    %6181 = vmatpush2.bf16.msra.mxu0 0
    %6182 = vmatprep.subr.bf16.mxu0 0
    %6183 = vmatpush2.bf16.msra.mxu0 0
    %6184 = vmatprep.subr.bf16.mxu0 0
    %6185 = vmatpush2.bf16.msra.mxu0 0
    %6186 = vmatprep.subr.bf16.mxu0 0
    %6187 = vmatpush2.bf16.msra.mxu0 0
    %6188 = vmatprep.subr.bf16.mxu0 0
    %6189 = vmatpush2.bf16.msra.mxu0 0
    %6190 = vmatprep.subr.bf16.mxu0 0
    %6191 = vmatpush2.bf16.msra.mxu0 0
    %6192 = vmatprep.mubr.bf16.mxu0 0
    %6193 = vmatmul.mubr.bf16.gmra.mxu0 %v6152
    %v6194 = vpop.f32.mrf.mxu0
    %v6195 = vadd.f32 0.0, %v6194
    %v6196 = vpop.f32.mrf.mxu0
    %v6197 = vpop.f32.mrf.mxu0
    %v6198 = vadd.f32 0.0, %v6197
    %v6199 = vpop.f32.mrf.mxu0
    %6200 = vmatprep.mubr.bf16.mxu0 0
    %6201 = vmatmul.mubr.bf16.gmra.mxu0 %v6153
    %v6202 = vpop.f32.mrf.mxu0
    %v6203 = vadd.f32 0.0, %v6202
    %v6204 = vpop.f32.mrf.mxu0
    %v6205 = vpop.f32.mrf.mxu0
    %v6206 = vadd.f32 0.0, %v6205
    %v6207 = vpop.f32.mrf.mxu0
    %6208 = vmatprep.mubr.bf16.mxu0 0
    %6209 = vmatmul.mubr.bf16.gmra.mxu0 %v6154
    %v6210 = vpop.f32.mrf.mxu0
    %v6211 = vadd.f32 0.0, %v6210
    %v6212 = vpop.f32.mrf.mxu0
    %v6213 = vpop.f32.mrf.mxu0
    %v6214 = vadd.f32 0.0, %v6213
    %v6215 = vpop.f32.mrf.mxu0
    %6216 = vmatprep.mubr.bf16.mxu0 0
    %6217 = vmatmul.mubr.bf16.gmra.mxu0 %v6155
    %v6218 = vpop.f32.mrf.mxu0
    %v6219 = vadd.f32 0.0, %v6218
    %v6220 = vpop.f32.mrf.mxu0
    %v6221 = vpop.f32.mrf.mxu0
    %v6222 = vadd.f32 0.0, %v6221
    %v6223 = vpop.f32.mrf.mxu0
    %6224 = vmatprep.mubr.bf16.mxu0 0
    %6225 = vmatmul.mubr.bf16.gmra.mxu0 %v6156
    %v6226 = vpop.f32.mrf.mxu0
    %v6227 = vadd.f32 0.0, %v6226
    %v6228 = vpop.f32.mrf.mxu0
    %v6229 = vpop.f32.mrf.mxu0
    %v6230 = vadd.f32 0.0, %v6229
    %v6231 = vpop.f32.mrf.mxu0
    %6232 = vmatprep.mubr.bf16.mxu0 0
    %6233 = vmatmul.mubr.bf16.gmra.mxu0 %v6157
    %v6234 = vpop.f32.mrf.mxu0
    %v6235 = vadd.f32 0.0, %v6234
    %v6236 = vpop.f32.mrf.mxu0
    %v6237 = vpop.f32.mrf.mxu0
    %v6238 = vadd.f32 0.0, %v6237
    %v6239 = vpop.f32.mrf.mxu0
    %6240 = vmatprep.mubr.bf16.mxu0 0
    %6241 = vmatmul.mubr.bf16.gmra.mxu0 %v6158
    %v6242 = vpop.f32.mrf.mxu0
    %v6243 = vadd.f32 0.0, %v6242
    %v6244 = vpop.f32.mrf.mxu0
    %v6245 = vpop.f32.mrf.mxu0
    %v6246 = vadd.f32 0.0, %v6245
    %v6247 = vpop.f32.mrf.mxu0
    %6248 = vmatprep.mubr.bf16.mxu0 0
    %6249 = vmatmul.mubr.bf16.gmra.mxu0 %v6159
    %v6250 = vpop.f32.mrf.mxu0
    %v6251 = vadd.f32 0.0, %v6250
    %v6252 = vpop.f32.mrf.mxu0
    %v6253 = vpop.f32.mrf.mxu0
    %v6254 = vpop.f32.mrf.mxu0
    %6255 = vdwg.mxu0
    %v6256 = vadd.f32 %v6122, %v6195
    %v6257 = vadd.f32 %v6123, %v6198
    %v6258 = vadd.f32 %v6124, %v6203
    %v6259 = vadd.f32 %v6125, %v6206
    %v6260 = vadd.f32 %v6126, %v6211
    %v6261 = vadd.f32 %v6127, %v6214
    %v6262 = vadd.f32 %v6128, %v6219
    %v6263 = vadd.f32 %v6129, %v6222
    %v6264 = vadd.f32 %v6130, %v6227
    %v6265 = vadd.f32 %v6131, %v6230
    %v6266 = vadd.f32 %v6132, %v6235
    %v6267 = vadd.f32 %v6133, %v6238
    %v6268 = vadd.f32 %v6134, %v6243
    %v6269 = vadd.f32 %v6135, %v6246
    %v6270 = vadd.f32 %v6136, %v6251
    %v6271 = vld [vmem:[#allocation2 + $0x11c] sm:$0xff]
    %v6272 = vld [vmem:[#allocation2 + $0x124] sm:$0xff]
    %v6273 = vld [vmem:[#allocation2 + $0x12c] sm:$0xff]
    %v6274 = vld [vmem:[#allocation2 + $0x134] sm:$0xff]
    %v6275 = vld [vmem:[#allocation2 + $0x13c] sm:$0xff]
    %v6276 = vld [vmem:[#allocation2 + $0x144] sm:$0xff]
    %v6277 = vld [vmem:[#allocation2 + $0x14c] sm:$0xff]
    %v6278 = vld [vmem:[#allocation2 + $0x154] sm:$0xff]
    %v6279 = vld [vmem:[#allocation2 + $0x15c] sm:$0xff]
    %v6280 = vld [vmem:[#allocation2 + $0x164] sm:$0xff]
    %v6281 = vld [vmem:[#allocation2 + $0x16c] sm:$0xff]
    %v6282 = vld [vmem:[#allocation2 + $0x174] sm:$0xff]
    %v6283 = vld [vmem:[#allocation2 + $0x17c] sm:$0xff]
    %v6284 = vld [vmem:[#allocation2 + $0x184] sm:$0xff]
    %v6285 = vld [vmem:[#allocation2 + $0x18c] sm:$0xff]
    %v6286 = vpack.c.bf16 %v6272, %v6271
    %v6287 = vpack.c.bf16 %v6274, %v6273
    %v6288 = vpack.c.bf16 %v6276, %v6275
    %v6289 = vpack.c.bf16 %v6278, %v6277
    %v6290 = vpack.c.bf16 %v6280, %v6279
    %v6291 = vpack.c.bf16 %v6282, %v6281
    %v6292 = vpack.c.bf16 %v6284, %v6283
    %v6293 = vpack.c.bf16 %v6285, %v6285
    %6294 = vmatprep.subr.bf16.mxu0 0
    %6295 = vmatpush1.bf16.msra.mxu0 %v3548
    %6296 = vmatprep.subr.bf16.mxu0 0
    %6297 = vmatpush1.bf16.msra.mxu0 %v3547
    %6298 = vmatprep.subr.bf16.mxu0 0
    %6299 = vmatpush1.bf16.msra.mxu0 %v3546
    %6300 = vmatprep.subr.bf16.mxu0 0
    %6301 = vmatpush1.bf16.msra.mxu0 %v3545
    %6302 = vmatprep.subr.bf16.mxu0 0
    %6303 = vmatpush1.bf16.msra.mxu0 %v3544
    %6304 = vmatprep.subr.bf16.mxu0 0
    %6305 = vmatpush1.bf16.msra.mxu0 %v3543
    %6306 = vmatprep.subr.bf16.mxu0 0
    %6307 = vmatpush1.bf16.msra.mxu0 %v3542
    %6308 = vmatprep.subr.bf16.mxu0 0
    %6309 = vmatpush1.bf16.msra.mxu0 %v3541
    %6310 = vmatprep.subr.bf16.mxu0 0
    %6311 = vmatpush2.bf16.msra.mxu0 0
    %6312 = vmatprep.subr.bf16.mxu0 0
    %6313 = vmatpush2.bf16.msra.mxu0 0
    %6314 = vmatprep.subr.bf16.mxu0 0
    %6315 = vmatpush2.bf16.msra.mxu0 0
    %6316 = vmatprep.subr.bf16.mxu0 0
    %6317 = vmatpush2.bf16.msra.mxu0 0
    %6318 = vmatprep.subr.bf16.mxu0 0
    %6319 = vmatpush2.bf16.msra.mxu0 0
    %6320 = vmatprep.subr.bf16.mxu0 0
    %6321 = vmatpush2.bf16.msra.mxu0 0
    %6322 = vmatprep.subr.bf16.mxu0 0
    %6323 = vmatpush2.bf16.msra.mxu0 0
    %6324 = vmatprep.subr.bf16.mxu0 0
    %6325 = vmatpush2.bf16.msra.mxu0 0
    %6326 = vmatprep.mubr.bf16.mxu0 0
    %6327 = vmatmul.mubr.bf16.gmra.mxu0 %v6286
    %v6328 = vpop.f32.mrf.mxu0
    %v6329 = vadd.f32 0.0, %v6328
    %v6330 = vpop.f32.mrf.mxu0
    %v6331 = vpop.f32.mrf.mxu0
    %v6332 = vadd.f32 0.0, %v6331
    %v6333 = vpop.f32.mrf.mxu0
    %6334 = vmatprep.mubr.bf16.mxu0 0
    %6335 = vmatmul.mubr.bf16.gmra.mxu0 %v6287
    %v6336 = vpop.f32.mrf.mxu0
    %v6337 = vadd.f32 0.0, %v6336
    %v6338 = vpop.f32.mrf.mxu0
    %v6339 = vpop.f32.mrf.mxu0
    %v6340 = vadd.f32 0.0, %v6339
    %v6341 = vpop.f32.mrf.mxu0
    %6342 = vmatprep.mubr.bf16.mxu0 0
    %6343 = vmatmul.mubr.bf16.gmra.mxu0 %v6288
    %v6344 = vpop.f32.mrf.mxu0
    %v6345 = vadd.f32 0.0, %v6344
    %v6346 = vpop.f32.mrf.mxu0
    %v6347 = vpop.f32.mrf.mxu0
    %v6348 = vadd.f32 0.0, %v6347
    %v6349 = vpop.f32.mrf.mxu0
    %6350 = vmatprep.mubr.bf16.mxu0 0
    %6351 = vmatmul.mubr.bf16.gmra.mxu0 %v6289
    %v6352 = vpop.f32.mrf.mxu0
    %v6353 = vadd.f32 0.0, %v6352
    %v6354 = vpop.f32.mrf.mxu0
    %v6355 = vpop.f32.mrf.mxu0
    %v6356 = vadd.f32 0.0, %v6355
    %v6357 = vpop.f32.mrf.mxu0
    %6358 = vmatprep.mubr.bf16.mxu0 0
    %6359 = vmatmul.mubr.bf16.gmra.mxu0 %v6290
    %v6360 = vpop.f32.mrf.mxu0
    %v6361 = vadd.f32 0.0, %v6360
    %v6362 = vpop.f32.mrf.mxu0
    %v6363 = vpop.f32.mrf.mxu0
    %v6364 = vadd.f32 0.0, %v6363
    %v6365 = vpop.f32.mrf.mxu0
    %6366 = vmatprep.mubr.bf16.mxu0 0
    %6367 = vmatmul.mubr.bf16.gmra.mxu0 %v6291
    %v6368 = vpop.f32.mrf.mxu0
    %v6369 = vadd.f32 0.0, %v6368
    %v6370 = vpop.f32.mrf.mxu0
    %v6371 = vpop.f32.mrf.mxu0
    %v6372 = vadd.f32 0.0, %v6371
    %v6373 = vpop.f32.mrf.mxu0
    %6374 = vmatprep.mubr.bf16.mxu0 0
    %6375 = vmatmul.mubr.bf16.gmra.mxu0 %v6292
    %v6376 = vpop.f32.mrf.mxu0
    %v6377 = vadd.f32 0.0, %v6376
    %v6378 = vpop.f32.mrf.mxu0
    %v6379 = vpop.f32.mrf.mxu0
    %v6380 = vadd.f32 0.0, %v6379
    %v6381 = vpop.f32.mrf.mxu0
    %6382 = vmatprep.mubr.bf16.mxu0 0
    %6383 = vmatmul.mubr.bf16.gmra.mxu0 %v6293
    %v6384 = vpop.f32.mrf.mxu0
    %v6385 = vadd.f32 0.0, %v6384
    %v6386 = vpop.f32.mrf.mxu0
    %v6387 = vpop.f32.mrf.mxu0
    %v6388 = vpop.f32.mrf.mxu0
    %6389 = vdwg.mxu0
    %v6390 = vadd.f32 %v6256, %v6329
    %v6391 = vadd.f32 %v6257, %v6332
    %v6392 = vadd.f32 %v6258, %v6337
    %v6393 = vadd.f32 %v6259, %v6340
    %v6394 = vadd.f32 %v6260, %v6345
    %v6395 = vadd.f32 %v6261, %v6348
    %v6396 = vadd.f32 %v6262, %v6353
    %v6397 = vadd.f32 %v6263, %v6356
    %v6398 = vadd.f32 %v6264, %v6361
    %v6399 = vadd.f32 %v6265, %v6364
    %v6400 = vadd.f32 %v6266, %v6369
    %v6401 = vadd.f32 %v6267, %v6372
    %v6402 = vadd.f32 %v6268, %v6377
    %v6403 = vadd.f32 %v6269, %v6380
    %v6404 = vadd.f32 %v6270, %v6385
    %v6405 = vld [vmem:[#allocation2 + $0x11d] sm:$0xff]
    %v6406 = vld [vmem:[#allocation2 + $0x125] sm:$0xff]
    %v6407 = vld [vmem:[#allocation2 + $0x12d] sm:$0xff]
    %v6408 = vld [vmem:[#allocation2 + $0x135] sm:$0xff]
    %v6409 = vld [vmem:[#allocation2 + $0x13d] sm:$0xff]
    %v6410 = vld [vmem:[#allocation2 + $0x145] sm:$0xff]
    %v6411 = vld [vmem:[#allocation2 + $0x14d] sm:$0xff]
    %v6412 = vld [vmem:[#allocation2 + $0x155] sm:$0xff]
    %v6413 = vld [vmem:[#allocation2 + $0x15d] sm:$0xff]
    %v6414 = vld [vmem:[#allocation2 + $0x165] sm:$0xff]
    %v6415 = vld [vmem:[#allocation2 + $0x16d] sm:$0xff]
    %v6416 = vld [vmem:[#allocation2 + $0x175] sm:$0xff]
    %v6417 = vld [vmem:[#allocation2 + $0x17d] sm:$0xff]
    %v6418 = vld [vmem:[#allocation2 + $0x185] sm:$0xff]
    %v6419 = vld [vmem:[#allocation2 + $0x18d] sm:$0xff]
    %v6420 = vpack.c.bf16 %v6406, %v6405
    %v6421 = vpack.c.bf16 %v6408, %v6407
    %v6422 = vpack.c.bf16 %v6410, %v6409
    %v6423 = vpack.c.bf16 %v6412, %v6411
    %v6424 = vpack.c.bf16 %v6414, %v6413
    %v6425 = vpack.c.bf16 %v6416, %v6415
    %v6426 = vpack.c.bf16 %v6418, %v6417
    %v6427 = vpack.c.bf16 %v6419, %v6419
    %6428 = vmatprep.subr.bf16.mxu0 0
    %6429 = vmatpush1.bf16.msra.mxu0 %v3746
    %6430 = vmatprep.subr.bf16.mxu0 0
    %6431 = vmatpush1.bf16.msra.mxu0 %v3745
    %6432 = vmatprep.subr.bf16.mxu0 0
    %6433 = vmatpush1.bf16.msra.mxu0 %v3744
    %6434 = vmatprep.subr.bf16.mxu0 0
    %6435 = vmatpush1.bf16.msra.mxu0 %v3743
    %6436 = vmatprep.subr.bf16.mxu0 0
    %6437 = vmatpush1.bf16.msra.mxu0 %v3742
    %6438 = vmatprep.subr.bf16.mxu0 0
    %6439 = vmatpush1.bf16.msra.mxu0 %v3741
    %6440 = vmatprep.subr.bf16.mxu0 0
    %6441 = vmatpush1.bf16.msra.mxu0 %v3740
    %6442 = vmatprep.subr.bf16.mxu0 0
    %6443 = vmatpush1.bf16.msra.mxu0 %v3739
    %6444 = vmatprep.subr.bf16.mxu0 0
    %6445 = vmatpush2.bf16.msra.mxu0 0
    %6446 = vmatprep.subr.bf16.mxu0 0
    %6447 = vmatpush2.bf16.msra.mxu0 0
    %6448 = vmatprep.subr.bf16.mxu0 0
    %6449 = vmatpush2.bf16.msra.mxu0 0
    %6450 = vmatprep.subr.bf16.mxu0 0
    %6451 = vmatpush2.bf16.msra.mxu0 0
    %6452 = vmatprep.subr.bf16.mxu0 0
    %6453 = vmatpush2.bf16.msra.mxu0 0
    %6454 = vmatprep.subr.bf16.mxu0 0
    %6455 = vmatpush2.bf16.msra.mxu0 0
    %6456 = vmatprep.subr.bf16.mxu0 0
    %6457 = vmatpush2.bf16.msra.mxu0 0
    %6458 = vmatprep.subr.bf16.mxu0 0
    %6459 = vmatpush2.bf16.msra.mxu0 0
    %6460 = vmatprep.mubr.bf16.mxu0 0
    %6461 = vmatmul.mubr.bf16.gmra.mxu0 %v6420
    %v6462 = vpop.f32.mrf.mxu0
    %v6463 = vadd.f32 0.0, %v6462
    %v6464 = vpop.f32.mrf.mxu0
    %v6465 = vpop.f32.mrf.mxu0
    %v6466 = vadd.f32 0.0, %v6465
    %v6467 = vpop.f32.mrf.mxu0
    %6468 = vmatprep.mubr.bf16.mxu0 0
    %6469 = vmatmul.mubr.bf16.gmra.mxu0 %v6421
    %v6470 = vpop.f32.mrf.mxu0
    %v6471 = vadd.f32 0.0, %v6470
    %v6472 = vpop.f32.mrf.mxu0
    %v6473 = vpop.f32.mrf.mxu0
    %v6474 = vadd.f32 0.0, %v6473
    %v6475 = vpop.f32.mrf.mxu0
    %6476 = vmatprep.mubr.bf16.mxu0 0
    %6477 = vmatmul.mubr.bf16.gmra.mxu0 %v6422
    %v6478 = vpop.f32.mrf.mxu0
    %v6479 = vadd.f32 0.0, %v6478
    %v6480 = vpop.f32.mrf.mxu0
    %v6481 = vpop.f32.mrf.mxu0
    %v6482 = vadd.f32 0.0, %v6481
    %v6483 = vpop.f32.mrf.mxu0
    %6484 = vmatprep.mubr.bf16.mxu0 0
    %6485 = vmatmul.mubr.bf16.gmra.mxu0 %v6423
    %v6486 = vpop.f32.mrf.mxu0
    %v6487 = vadd.f32 0.0, %v6486
    %v6488 = vpop.f32.mrf.mxu0
    %v6489 = vpop.f32.mrf.mxu0
    %v6490 = vadd.f32 0.0, %v6489
    %v6491 = vpop.f32.mrf.mxu0
    %6492 = vmatprep.mubr.bf16.mxu0 0
    %6493 = vmatmul.mubr.bf16.gmra.mxu0 %v6424
    %v6494 = vpop.f32.mrf.mxu0
    %v6495 = vadd.f32 0.0, %v6494
    %v6496 = vpop.f32.mrf.mxu0
    %v6497 = vpop.f32.mrf.mxu0
    %v6498 = vadd.f32 0.0, %v6497
    %v6499 = vpop.f32.mrf.mxu0
    %6500 = vmatprep.mubr.bf16.mxu0 0
    %6501 = vmatmul.mubr.bf16.gmra.mxu0 %v6425
    %v6502 = vpop.f32.mrf.mxu0
    %v6503 = vadd.f32 0.0, %v6502
    %v6504 = vpop.f32.mrf.mxu0
    %v6505 = vpop.f32.mrf.mxu0
    %v6506 = vadd.f32 0.0, %v6505
    %v6507 = vpop.f32.mrf.mxu0
    %6508 = vmatprep.mubr.bf16.mxu0 0
    %6509 = vmatmul.mubr.bf16.gmra.mxu0 %v6426
    %v6510 = vpop.f32.mrf.mxu0
    %v6511 = vadd.f32 0.0, %v6510
    %v6512 = vpop.f32.mrf.mxu0
    %v6513 = vpop.f32.mrf.mxu0
    %v6514 = vadd.f32 0.0, %v6513
    %v6515 = vpop.f32.mrf.mxu0
    %6516 = vmatprep.mubr.bf16.mxu0 0
    %6517 = vmatmul.mubr.bf16.gmra.mxu0 %v6427
    %v6518 = vpop.f32.mrf.mxu0
    %v6519 = vadd.f32 0.0, %v6518
    %v6520 = vpop.f32.mrf.mxu0
    %v6521 = vpop.f32.mrf.mxu0
    %v6522 = vpop.f32.mrf.mxu0
    %6523 = vdwg.mxu0
    %v6524 = vadd.f32 %v6390, %v6463
    %v6525 = vadd.f32 %v6391, %v6466
    %v6526 = vadd.f32 %v6392, %v6471
    %v6527 = vadd.f32 %v6393, %v6474
    %v6528 = vadd.f32 %v6394, %v6479
    %v6529 = vadd.f32 %v6395, %v6482
    %v6530 = vadd.f32 %v6396, %v6487
    %v6531 = vadd.f32 %v6397, %v6490
    %v6532 = vadd.f32 %v6398, %v6495
    %v6533 = vadd.f32 %v6399, %v6498
    %v6534 = vadd.f32 %v6400, %v6503
    %v6535 = vadd.f32 %v6401, %v6506
    %v6536 = vadd.f32 %v6402, %v6511
    %v6537 = vadd.f32 %v6403, %v6514
    %v6538 = vadd.f32 %v6404, %v6519
    %v6539 = vadd.f32 %v6524, %v3871
    %v6540 = vadd.f32 %v6525, %v3871
    %v6541 = vadd.f32 %v6526, %v3871
    %v6542 = vadd.f32 %v6527, %v3871
    %v6543 = vadd.f32 %v6528, %v3871
    %v6544 = vadd.f32 %v6529, %v3871
    %v6545 = vadd.f32 %v6530, %v3871
    %v6546 = vadd.f32 %v6531, %v3871
    %v6547 = vadd.f32 %v6532, %v3871
    %v6548 = vadd.f32 %v6533, %v3871
    %v6549 = vadd.f32 %v6534, %v3871
    %v6550 = vadd.f32 %v6535, %v3871
    %v6551 = vadd.f32 %v6536, %v3871
    %v6552 = vadd.f32 %v6537, %v3871
    %v6553 = vadd.f32 %v6538, %v3871
    %v6554 = vmax.f32 %v6539, 0.0
    %v6555 = vmax.f32 %v6540, 0.0
    %v6556 = vmax.f32 %v6541, 0.0
    %v6557 = vmax.f32 %v6542, 0.0
    %v6558 = vmax.f32 %v6543, 0.0
    %v6559 = vmax.f32 %v6544, 0.0
    %v6560 = vmax.f32 %v6545, 0.0
    %v6561 = vmax.f32 %v6546, 0.0
    %v6562 = vmax.f32 %v6547, 0.0
    %v6563 = vmax.f32 %v6548, 0.0
    %v6564 = vmax.f32 %v6549, 0.0
    %v6565 = vmax.f32 %v6550, 0.0
    %v6566 = vmax.f32 %v6551, 0.0
    %v6567 = vmax.f32 %v6552, 0.0
    %v6568 = vmax.f32 %v6553, 0.0
    %v6569 = vld [vmem:[%s1 + $0xf0] sm:$0xff]
    %v6570 = vld [vmem:[%s1 + $0xf8] sm:$0xff]
    %v6571 = vld [vmem:[%s1 + $0x100] sm:$0xff]
    %v6572 = vld [vmem:[%s1 + $0x108] sm:$0xff]
    %v6573 = vld [vmem:[%s1 + $0x110] sm:$0xff]
    %v6574 = vld [vmem:[%s1 + $0x118] sm:$0xff]
    %v6575 = vld [vmem:[%s1 + $0x120] sm:$0xff]
    %v6576 = vld [vmem:[%s1 + $0x128] sm:$0xff]
    %v6577 = vld [vmem:[%s1 + $0x130] sm:$0xff]
    %v6578 = vld [vmem:[%s1 + $0x138] sm:$0xff]
    %v6579 = vld [vmem:[%s1 + $0x140] sm:$0xff]
    %v6580 = vld [vmem:[%s1 + $0x148] sm:$0xff]
    %v6581 = vld [vmem:[%s1 + $0x150] sm:$0xff]
    %v6582 = vld [vmem:[%s1 + $0x158] sm:$0xff]
    %v6583 = vld [vmem:[%s1 + $0x160] sm:$0xff]
    %6585 = vset.pattern.permute.xlu0 0
    %6586 = vperm.xlu0 %6585, %v6569
    %v6587 = vpop.permute.xlu0 %6586
    %6590 = vset.pattern.permute.xlu0 0
    %6591 = vperm.xlu0 %6590, %v6570
    %v6592 = vpop.permute.xlu0 %6591
    %6595 = vset.pattern.permute.xlu0 0
    %6596 = vperm.xlu0 %6595, %v6571
    %v6597 = vpop.permute.xlu0 %6596
    %6600 = vset.pattern.permute.xlu0 0
    %6601 = vperm.xlu0 %6600, %v6572
    %v6602 = vpop.permute.xlu0 %6601
    %6605 = vset.pattern.permute.xlu0 0
    %6606 = vperm.xlu0 %6605, %v6573
    %v6607 = vpop.permute.xlu0 %6606
    %6610 = vset.pattern.permute.xlu0 0
    %6611 = vperm.xlu0 %6610, %v6574
    %v6612 = vpop.permute.xlu0 %6611
    %6615 = vset.pattern.permute.xlu0 0
    %6616 = vperm.xlu0 %6615, %v6575
    %v6617 = vpop.permute.xlu0 %6616
    %6620 = vset.pattern.permute.xlu0 0
    %6621 = vperm.xlu0 %6620, %v6576
    %v6622 = vpop.permute.xlu0 %6621
    %6625 = vset.pattern.permute.xlu0 0
    %6626 = vperm.xlu0 %6625, %v6577
    %v6627 = vpop.permute.xlu0 %6626
    %6630 = vset.pattern.permute.xlu0 0
    %6631 = vperm.xlu0 %6630, %v6578
    %v6632 = vpop.permute.xlu0 %6631
    %6635 = vset.pattern.permute.xlu0 0
    %6636 = vperm.xlu0 %6635, %v6579
    %v6637 = vpop.permute.xlu0 %6636
    %6640 = vset.pattern.permute.xlu0 0
    %6641 = vperm.xlu0 %6640, %v6580
    %v6642 = vpop.permute.xlu0 %6641
    %6645 = vset.pattern.permute.xlu0 0
    %6646 = vperm.xlu0 %6645, %v6581
    %v6647 = vpop.permute.xlu0 %6646
    %6650 = vset.pattern.permute.xlu0 0
    %6651 = vperm.xlu0 %6650, %v6582
    %v6652 = vpop.permute.xlu0 %6651
    %6655 = vset.pattern.permute.xlu0 0
    %6656 = vperm.xlu0 %6655, %v6583
    %v6657 = vpop.permute.xlu0 %6656
    %v6659 = vmul.f32 %v6554, %v6587
    %v6660 = vmul.f32 %v6555, %v6592
    %v6661 = vmul.f32 %v6556, %v6597
    %v6662 = vmul.f32 %v6557, %v6602
    %v6663 = vmul.f32 %v6558, %v6607
    %v6664 = vmul.f32 %v6559, %v6612
    %v6665 = vmul.f32 %v6560, %v6617
    %v6666 = vmul.f32 %v6561, %v6622
    %v6667 = vmul.f32 %v6562, %v6627
    %v6668 = vmul.f32 %v6563, %v6632
    %v6669 = vmul.f32 %v6564, %v6637
    %v6670 = vmul.f32 %v6565, %v6642
    %v6671 = vmul.f32 %v6566, %v6647
    %v6672 = vmul.f32 %v6567, %v6652
    %v6673 = vmul.f32 %v6568, %v6657
    %v6674 = vadd.f32 %v6659, %v6660
    %v6675 = vadd.f32 %v6674, %v6661
    %v6676 = vadd.f32 %v6675, %v6662
    %v6677 = vadd.f32 %v6676, %v6663
    %v6678 = vadd.f32 %v6677, %v6664
    %v6679 = vadd.f32 %v6678, %v6665
    %v6680 = vadd.f32 %v6679, %v6666
    %v6681 = vadd.f32 %v6680, %v6667
    %v6682 = vadd.f32 %v6681, %v6668
    %v6683 = vadd.f32 %v6682, %v6669
    %v6684 = vadd.f32 %v6683, %v6670
    %v6685 = vadd.f32 %v6684, %v6671
    %v6686 = vadd.f32 %v6685, %v6672
    %v6687 = vadd.f32 %v6686, %v6673
    %v6688 = vrot.slane %v6687, 4
    %v6689 = vadd.f32 %v6687, %v6688
    %v6690 = vrot.slane %v6689, 2
    %v6691 = vadd.f32 %v6689, %v6690
    %v6692 = vrot.slane %v6691, 1
    %v6693 = vadd.f32 %v6691, %v6692
    %v6694 = vmul.f32 %v6693, 0.00390625
    %v6695 = vadd.f32 %v5362, %v6694
    %v6696 = vld [vmem:[#allocation2 + $0x16b] sm:$0xff]
    %v6697 = vld [vmem:[#allocation2 + $0x173] sm:$0xff]
    %v6698 = vld [vmem:[#allocation2 + $0x17b] sm:$0xff]
    %v6699 = vld [vmem:[#allocation2 + $0x183] sm:$0xff]
    %v6700 = vld [vmem:[#allocation2 + $0x18b] sm:$0xff]
    %v6701 = vld [vmem:[#allocation2 + $0x193] sm:$0xff]
    %v6702 = vld [vmem:[#allocation2 + $0x19b] sm:$0xff]
    %v6703 = vld [vmem:[#allocation2 + $0x1a3] sm:$0xff]
    %v6704 = vld [vmem:[#allocation2 + $0x1ab] sm:$0xff]
    %v6705 = vld [vmem:[#allocation2 + $0x1b3] sm:$0xff]
    %v6706 = vld [vmem:[#allocation2 + $0x1bb] sm:$0xff]
    %v6707 = vld [vmem:[#allocation2 + $0x1c3] sm:$0xff]
    %v6708 = vld [vmem:[#allocation2 + $0x1cb] sm:$0xff]
    %v6709 = vld [vmem:[#allocation2 + $0x1d3] sm:$0xff]
    %v6710 = vld [vmem:[#allocation2 + $0x1db] sm:$0xff]
    %v6711 = vpack.c.bf16 %v6697, %v6696
    %v6712 = vpack.c.bf16 %v6699, %v6698
    %v6713 = vpack.c.bf16 %v6701, %v6700
    %v6714 = vpack.c.bf16 %v6703, %v6702
    %v6715 = vpack.c.bf16 %v6705, %v6704
    %v6716 = vpack.c.bf16 %v6707, %v6706
    %v6717 = vpack.c.bf16 %v6709, %v6708
    %v6718 = vpack.c.bf16 %v6710, %v6710
    %v6719 = vld [vmem:[#allocation2 + $0x16c] sm:$0xff]
    %v6720 = vld [vmem:[#allocation2 + $0x174] sm:$0xff]
    %v6721 = vld [vmem:[#allocation2 + $0x17c] sm:$0xff]
    %v6722 = vld [vmem:[#allocation2 + $0x184] sm:$0xff]
    %v6723 = vld [vmem:[#allocation2 + $0x18c] sm:$0xff]
    %v6724 = vld [vmem:[#allocation2 + $0x194] sm:$0xff]
    %v6725 = vld [vmem:[#allocation2 + $0x19c] sm:$0xff]
    %v6726 = vld [vmem:[#allocation2 + $0x1a4] sm:$0xff]
    %v6727 = vld [vmem:[#allocation2 + $0x1ac] sm:$0xff]
    %v6728 = vld [vmem:[#allocation2 + $0x1b4] sm:$0xff]
    %v6729 = vld [vmem:[#allocation2 + $0x1bc] sm:$0xff]
    %v6730 = vld [vmem:[#allocation2 + $0x1c4] sm:$0xff]
    %v6731 = vld [vmem:[#allocation2 + $0x1cc] sm:$0xff]
    %v6732 = vld [vmem:[#allocation2 + $0x1d4] sm:$0xff]
    %v6733 = vld [vmem:[#allocation2 + $0x1dc] sm:$0xff]
    %v6734 = vpack.c.bf16 %v6720, %v6719
    %v6735 = vpack.c.bf16 %v6722, %v6721
    %v6736 = vpack.c.bf16 %v6724, %v6723
    %v6737 = vpack.c.bf16 %v6726, %v6725
    %v6738 = vpack.c.bf16 %v6728, %v6727
    %v6739 = vpack.c.bf16 %v6730, %v6729
    %v6740 = vpack.c.bf16 %v6732, %v6731
    %v6741 = vpack.c.bf16 %v6733, %v6733
    %6742 = vmatprep.subr.bf16.mxu0 0
    %6743 = vmatpush1.bf16.msra.mxu0 %v2231
    %6744 = vmatprep.subr.bf16.mxu0 0
    %6745 = vmatpush1.bf16.msra.mxu0 %v2230
    %6746 = vmatprep.subr.bf16.mxu0 0
    %6747 = vmatpush1.bf16.msra.mxu0 %v2229
    %6748 = vmatprep.subr.bf16.mxu0 0
    %6749 = vmatpush1.bf16.msra.mxu0 %v2228
    %6750 = vmatprep.subr.bf16.mxu0 0
    %6751 = vmatpush1.bf16.msra.mxu0 %v2227
    %6752 = vmatprep.subr.bf16.mxu0 0
    %6753 = vmatpush1.bf16.msra.mxu0 %v2226
    %6754 = vmatprep.subr.bf16.mxu0 0
    %6755 = vmatpush1.bf16.msra.mxu0 %v2225
    %6756 = vmatprep.subr.bf16.mxu0 0
    %6757 = vmatpush1.bf16.msra.mxu0 %v2224
    %6758 = vmatprep.subr.bf16.mxu0 0
    %6759 = vmatpush2.bf16.msra.mxu0 0
    %6760 = vmatprep.subr.bf16.mxu0 0
    %6761 = vmatpush2.bf16.msra.mxu0 0
    %6762 = vmatprep.subr.bf16.mxu0 0
    %6763 = vmatpush2.bf16.msra.mxu0 0
    %6764 = vmatprep.subr.bf16.mxu0 0
    %6765 = vmatpush2.bf16.msra.mxu0 0
    %6766 = vmatprep.subr.bf16.mxu0 0
    %6767 = vmatpush2.bf16.msra.mxu0 0
    %6768 = vmatprep.subr.bf16.mxu0 0
    %6769 = vmatpush2.bf16.msra.mxu0 0
    %6770 = vmatprep.subr.bf16.mxu0 0
    %6771 = vmatpush2.bf16.msra.mxu0 0
    %6772 = vmatprep.subr.bf16.mxu0 0
    %6773 = vmatpush2.bf16.msra.mxu0 0
    %6774 = vmatprep.mubr.bf16.mxu0 0
    %6775 = vmatmul.mubr.bf16.gmra.mxu0 %v6734
    %v6776 = vpop.f32.mrf.mxu0
    %v6777 = vadd.f32 0.0, %v6776
    %v6778 = vpop.f32.mrf.mxu0
    %v6779 = vpop.f32.mrf.mxu0
    %v6780 = vadd.f32 0.0, %v6779
    %v6781 = vpop.f32.mrf.mxu0
    %6782 = vmatprep.mubr.bf16.mxu0 0
    %6783 = vmatmul.mubr.bf16.gmra.mxu0 %v6735
    %v6784 = vpop.f32.mrf.mxu0
    %v6785 = vadd.f32 0.0, %v6784
    %v6786 = vpop.f32.mrf.mxu0
    %v6787 = vpop.f32.mrf.mxu0
    %v6788 = vadd.f32 0.0, %v6787
    %v6789 = vpop.f32.mrf.mxu0
    %6790 = vmatprep.mubr.bf16.mxu0 0
    %6791 = vmatmul.mubr.bf16.gmra.mxu0 %v6736
    %v6792 = vpop.f32.mrf.mxu0
    %v6793 = vadd.f32 0.0, %v6792
    %v6794 = vpop.f32.mrf.mxu0
    %v6795 = vpop.f32.mrf.mxu0
    %v6796 = vadd.f32 0.0, %v6795
    %v6797 = vpop.f32.mrf.mxu0
    %6798 = vmatprep.mubr.bf16.mxu0 0
    %6799 = vmatmul.mubr.bf16.gmra.mxu0 %v6737
    %v6800 = vpop.f32.mrf.mxu0
    %v6801 = vadd.f32 0.0, %v6800
    %v6802 = vpop.f32.mrf.mxu0
    %v6803 = vpop.f32.mrf.mxu0
    %v6804 = vadd.f32 0.0, %v6803
    %v6805 = vpop.f32.mrf.mxu0
    %6806 = vmatprep.mubr.bf16.mxu0 0
    %6807 = vmatmul.mubr.bf16.gmra.mxu0 %v6738
    %v6808 = vpop.f32.mrf.mxu0
    %v6809 = vadd.f32 0.0, %v6808
    %v6810 = vpop.f32.mrf.mxu0
    %v6811 = vpop.f32.mrf.mxu0
    %v6812 = vadd.f32 0.0, %v6811
    %v6813 = vpop.f32.mrf.mxu0
    %6814 = vmatprep.mubr.bf16.mxu0 0
    %6815 = vmatmul.mubr.bf16.gmra.mxu0 %v6739
    %v6816 = vpop.f32.mrf.mxu0
    %v6817 = vadd.f32 0.0, %v6816
    %v6818 = vpop.f32.mrf.mxu0
    %v6819 = vpop.f32.mrf.mxu0
    %v6820 = vadd.f32 0.0, %v6819
    %v6821 = vpop.f32.mrf.mxu0
    %6822 = vmatprep.mubr.bf16.mxu0 0
    %6823 = vmatmul.mubr.bf16.gmra.mxu0 %v6740
    %v6824 = vpop.f32.mrf.mxu0
    %v6825 = vadd.f32 0.0, %v6824
    %v6826 = vpop.f32.mrf.mxu0
    %v6827 = vpop.f32.mrf.mxu0
    %v6828 = vadd.f32 0.0, %v6827
    %v6829 = vpop.f32.mrf.mxu0
    %6830 = vmatprep.mubr.bf16.mxu0 0
    %6831 = vmatmul.mubr.bf16.gmra.mxu0 %v6741
    %v6832 = vpop.f32.mrf.mxu0
    %v6833 = vadd.f32 0.0, %v6832
    %v6834 = vpop.f32.mrf.mxu0
    %v6835 = vpop.f32.mrf.mxu0
    %v6836 = vpop.f32.mrf.mxu0
    %6837 = vdwg.mxu0
    %6838 = vmatprep.subr.bf16.mxu0 0
    %6839 = vmatpush1.bf16.msra.mxu0 %v2375
    %6840 = vmatprep.subr.bf16.mxu0 0
    %6841 = vmatpush1.bf16.msra.mxu0 %v2374
    %6842 = vmatprep.subr.bf16.mxu0 0
    %6843 = vmatpush1.bf16.msra.mxu0 %v2373
    %6844 = vmatprep.subr.bf16.mxu0 0
    %6845 = vmatpush1.bf16.msra.mxu0 %v2372
    %6846 = vmatprep.subr.bf16.mxu0 0
    %6847 = vmatpush1.bf16.msra.mxu0 %v2371
    %6848 = vmatprep.subr.bf16.mxu0 0
    %6849 = vmatpush1.bf16.msra.mxu0 %v2370
    %6850 = vmatprep.subr.bf16.mxu0 0
    %6851 = vmatpush1.bf16.msra.mxu0 %v2369
    %6852 = vmatprep.subr.bf16.mxu0 0
    %6853 = vmatpush1.bf16.msra.mxu0 %v2368
    %6854 = vmatprep.subr.bf16.mxu0 0
    %6855 = vmatpush2.bf16.msra.mxu0 0
    %6856 = vmatprep.subr.bf16.mxu0 0
    %6857 = vmatpush2.bf16.msra.mxu0 0
    %6858 = vmatprep.subr.bf16.mxu0 0
    %6859 = vmatpush2.bf16.msra.mxu0 0
    %6860 = vmatprep.subr.bf16.mxu0 0
    %6861 = vmatpush2.bf16.msra.mxu0 0
    %6862 = vmatprep.subr.bf16.mxu0 0
    %6863 = vmatpush2.bf16.msra.mxu0 0
    %6864 = vmatprep.subr.bf16.mxu0 0
    %6865 = vmatpush2.bf16.msra.mxu0 0
    %6866 = vmatprep.subr.bf16.mxu0 0
    %6867 = vmatpush2.bf16.msra.mxu0 0
    %6868 = vmatprep.subr.bf16.mxu0 0
    %6869 = vmatpush2.bf16.msra.mxu0 0
    %6870 = vmatprep.mubr.bf16.mxu0 0
    %6871 = vmatmul.mubr.bf16.gmra.mxu0 %v6711
    %v6872 = vpop.f32.mrf.mxu0
    %v6873 = vadd.f32 %v6777, %v6872
    %v6874 = vpop.f32.mrf.mxu0
    %v6875 = vpop.f32.mrf.mxu0
    %v6876 = vadd.f32 %v6780, %v6875
    %v6877 = vpop.f32.mrf.mxu0
    %6878 = vmatprep.mubr.bf16.mxu0 0
    %6879 = vmatmul.mubr.bf16.gmra.mxu0 %v6712
    %v6880 = vpop.f32.mrf.mxu0
    %v6881 = vadd.f32 %v6785, %v6880
    %v6882 = vpop.f32.mrf.mxu0
    %v6883 = vpop.f32.mrf.mxu0
    %v6884 = vadd.f32 %v6788, %v6883
    %v6885 = vpop.f32.mrf.mxu0
    %6886 = vmatprep.mubr.bf16.mxu0 0
    %6887 = vmatmul.mubr.bf16.gmra.mxu0 %v6713
    %v6888 = vpop.f32.mrf.mxu0
    %v6889 = vadd.f32 %v6793, %v6888
    %v6890 = vpop.f32.mrf.mxu0
    %v6891 = vpop.f32.mrf.mxu0
    %v6892 = vadd.f32 %v6796, %v6891
    %v6893 = vpop.f32.mrf.mxu0
    %6894 = vmatprep.mubr.bf16.mxu0 0
    %6895 = vmatmul.mubr.bf16.gmra.mxu0 %v6714
    %v6896 = vpop.f32.mrf.mxu0
    %v6897 = vadd.f32 %v6801, %v6896
    %v6898 = vpop.f32.mrf.mxu0
    %v6899 = vpop.f32.mrf.mxu0
    %v6900 = vadd.f32 %v6804, %v6899
    %v6901 = vpop.f32.mrf.mxu0
    %6902 = vmatprep.mubr.bf16.mxu0 0
    %6903 = vmatmul.mubr.bf16.gmra.mxu0 %v6715
    %v6904 = vpop.f32.mrf.mxu0
    %v6905 = vadd.f32 %v6809, %v6904
    %v6906 = vpop.f32.mrf.mxu0
    %v6907 = vpop.f32.mrf.mxu0
    %v6908 = vadd.f32 %v6812, %v6907
    %v6909 = vpop.f32.mrf.mxu0
    %6910 = vmatprep.mubr.bf16.mxu0 0
    %6911 = vmatmul.mubr.bf16.gmra.mxu0 %v6716
    %v6912 = vpop.f32.mrf.mxu0
    %v6913 = vadd.f32 %v6817, %v6912
    %v6914 = vpop.f32.mrf.mxu0
    %v6915 = vpop.f32.mrf.mxu0
    %v6916 = vadd.f32 %v6820, %v6915
    %v6917 = vpop.f32.mrf.mxu0
    %6918 = vmatprep.mubr.bf16.mxu0 0
    %6919 = vmatmul.mubr.bf16.gmra.mxu0 %v6717
    %v6920 = vpop.f32.mrf.mxu0
    %v6921 = vadd.f32 %v6825, %v6920
    %v6922 = vpop.f32.mrf.mxu0
    %v6923 = vpop.f32.mrf.mxu0
    %v6924 = vadd.f32 %v6828, %v6923
    %v6925 = vpop.f32.mrf.mxu0
    %6926 = vmatprep.mubr.bf16.mxu0 0
    %6927 = vmatmul.mubr.bf16.gmra.mxu0 %v6718
    %v6928 = vpop.f32.mrf.mxu0
    %v6929 = vadd.f32 %v6833, %v6928
    %v6930 = vpop.f32.mrf.mxu0
    %v6931 = vpop.f32.mrf.mxu0
    %v6932 = vpop.f32.mrf.mxu0
    %6933 = vdwg.mxu0
    %v6934 = vld [vmem:[#allocation2 + $0x16d] sm:$0xff]
    %v6935 = vld [vmem:[#allocation2 + $0x175] sm:$0xff]
    %v6936 = vld [vmem:[#allocation2 + $0x17d] sm:$0xff]
    %v6937 = vld [vmem:[#allocation2 + $0x185] sm:$0xff]
    %v6938 = vld [vmem:[#allocation2 + $0x18d] sm:$0xff]
    %v6939 = vld [vmem:[#allocation2 + $0x195] sm:$0xff]
    %v6940 = vld [vmem:[#allocation2 + $0x19d] sm:$0xff]
    %v6941 = vld [vmem:[#allocation2 + $0x1a5] sm:$0xff]
    %v6942 = vld [vmem:[#allocation2 + $0x1ad] sm:$0xff]
    %v6943 = vld [vmem:[#allocation2 + $0x1b5] sm:$0xff]
    %v6944 = vld [vmem:[#allocation2 + $0x1bd] sm:$0xff]
    %v6945 = vld [vmem:[#allocation2 + $0x1c5] sm:$0xff]
    %v6946 = vld [vmem:[#allocation2 + $0x1cd] sm:$0xff]
    %v6947 = vld [vmem:[#allocation2 + $0x1d5] sm:$0xff]
    %v6948 = vld [vmem:[#allocation2 + $0x1dd] sm:$0xff]
    %v6949 = vpack.c.bf16 %v6935, %v6934
    %v6950 = vpack.c.bf16 %v6937, %v6936
    %v6951 = vpack.c.bf16 %v6939, %v6938
    %v6952 = vpack.c.bf16 %v6941, %v6940
    %v6953 = vpack.c.bf16 %v6943, %v6942
    %v6954 = vpack.c.bf16 %v6945, %v6944
    %v6955 = vpack.c.bf16 %v6947, %v6946
    %v6956 = vpack.c.bf16 %v6948, %v6948
    %6957 = vmatprep.subr.bf16.mxu0 0
    %6958 = vmatpush1.bf16.msra.mxu0 %v2558
    %6959 = vmatprep.subr.bf16.mxu0 0
    %6960 = vmatpush1.bf16.msra.mxu0 %v2557
    %6961 = vmatprep.subr.bf16.mxu0 0
    %6962 = vmatpush1.bf16.msra.mxu0 %v2556
    %6963 = vmatprep.subr.bf16.mxu0 0
    %6964 = vmatpush1.bf16.msra.mxu0 %v2555
    %6965 = vmatprep.subr.bf16.mxu0 0
    %6966 = vmatpush1.bf16.msra.mxu0 %v2554
    %6967 = vmatprep.subr.bf16.mxu0 0
    %6968 = vmatpush1.bf16.msra.mxu0 %v2553
    %6969 = vmatprep.subr.bf16.mxu0 0
    %6970 = vmatpush1.bf16.msra.mxu0 %v2552
    %6971 = vmatprep.subr.bf16.mxu0 0
    %6972 = vmatpush1.bf16.msra.mxu0 %v2551
    %6973 = vmatprep.subr.bf16.mxu0 0
    %6974 = vmatpush2.bf16.msra.mxu0 0
    %6975 = vmatprep.subr.bf16.mxu0 0
    %6976 = vmatpush2.bf16.msra.mxu0 0
    %6977 = vmatprep.subr.bf16.mxu0 0
    %6978 = vmatpush2.bf16.msra.mxu0 0
    %6979 = vmatprep.subr.bf16.mxu0 0
    %6980 = vmatpush2.bf16.msra.mxu0 0
    %6981 = vmatprep.subr.bf16.mxu0 0
    %6982 = vmatpush2.bf16.msra.mxu0 0
    %6983 = vmatprep.subr.bf16.mxu0 0
    %6984 = vmatpush2.bf16.msra.mxu0 0
    %6985 = vmatprep.subr.bf16.mxu0 0
    %6986 = vmatpush2.bf16.msra.mxu0 0
    %6987 = vmatprep.subr.bf16.mxu0 0
    %6988 = vmatpush2.bf16.msra.mxu0 0
    %6989 = vmatprep.mubr.bf16.mxu0 0
    %6990 = vmatmul.mubr.bf16.gmra.mxu0 %v6949
    %v6991 = vpop.f32.mrf.mxu0
    %v6992 = vadd.f32 0.0, %v6991
    %v6993 = vpop.f32.mrf.mxu0
    %v6994 = vpop.f32.mrf.mxu0
    %v6995 = vadd.f32 0.0, %v6994
    %v6996 = vpop.f32.mrf.mxu0
    %6997 = vmatprep.mubr.bf16.mxu0 0
    %6998 = vmatmul.mubr.bf16.gmra.mxu0 %v6950
    %v6999 = vpop.f32.mrf.mxu0
    %v7000 = vadd.f32 0.0, %v6999
    %v7001 = vpop.f32.mrf.mxu0
    %v7002 = vpop.f32.mrf.mxu0
    %v7003 = vadd.f32 0.0, %v7002
    %v7004 = vpop.f32.mrf.mxu0
    %7005 = vmatprep.mubr.bf16.mxu0 0
    %7006 = vmatmul.mubr.bf16.gmra.mxu0 %v6951
    %v7007 = vpop.f32.mrf.mxu0
    %v7008 = vadd.f32 0.0, %v7007
    %v7009 = vpop.f32.mrf.mxu0
    %v7010 = vpop.f32.mrf.mxu0
    %v7011 = vadd.f32 0.0, %v7010
    %v7012 = vpop.f32.mrf.mxu0
    %7013 = vmatprep.mubr.bf16.mxu0 0
    %7014 = vmatmul.mubr.bf16.gmra.mxu0 %v6952
    %v7015 = vpop.f32.mrf.mxu0
    %v7016 = vadd.f32 0.0, %v7015
    %v7017 = vpop.f32.mrf.mxu0
    %v7018 = vpop.f32.mrf.mxu0
    %v7019 = vadd.f32 0.0, %v7018
    %v7020 = vpop.f32.mrf.mxu0
    %7021 = vmatprep.mubr.bf16.mxu0 0
    %7022 = vmatmul.mubr.bf16.gmra.mxu0 %v6953
    %v7023 = vpop.f32.mrf.mxu0
    %v7024 = vadd.f32 0.0, %v7023
    %v7025 = vpop.f32.mrf.mxu0
    %v7026 = vpop.f32.mrf.mxu0
    %v7027 = vadd.f32 0.0, %v7026
    %v7028 = vpop.f32.mrf.mxu0
    %7029 = vmatprep.mubr.bf16.mxu0 0
    %7030 = vmatmul.mubr.bf16.gmra.mxu0 %v6954
    %v7031 = vpop.f32.mrf.mxu0
    %v7032 = vadd.f32 0.0, %v7031
    %v7033 = vpop.f32.mrf.mxu0
    %v7034 = vpop.f32.mrf.mxu0
    %v7035 = vadd.f32 0.0, %v7034
    %v7036 = vpop.f32.mrf.mxu0
    %7037 = vmatprep.mubr.bf16.mxu0 0
    %7038 = vmatmul.mubr.bf16.gmra.mxu0 %v6955
    %v7039 = vpop.f32.mrf.mxu0
    %v7040 = vadd.f32 0.0, %v7039
    %v7041 = vpop.f32.mrf.mxu0
    %v7042 = vpop.f32.mrf.mxu0
    %v7043 = vadd.f32 0.0, %v7042
    %v7044 = vpop.f32.mrf.mxu0
    %7045 = vmatprep.mubr.bf16.mxu0 0
    %7046 = vmatmul.mubr.bf16.gmra.mxu0 %v6956
    %v7047 = vpop.f32.mrf.mxu0
    %v7048 = vadd.f32 0.0, %v7047
    %v7049 = vpop.f32.mrf.mxu0
    %v7050 = vpop.f32.mrf.mxu0
    %v7051 = vpop.f32.mrf.mxu0
    %7052 = vdwg.mxu0
    %v7053 = vadd.f32 %v6873, %v6992
    %v7054 = vadd.f32 %v6876, %v6995
    %v7055 = vadd.f32 %v6881, %v7000
    %v7056 = vadd.f32 %v6884, %v7003
    %v7057 = vadd.f32 %v6889, %v7008
    %v7058 = vadd.f32 %v6892, %v7011
    %v7059 = vadd.f32 %v6897, %v7016
    %v7060 = vadd.f32 %v6900, %v7019
    %v7061 = vadd.f32 %v6905, %v7024
    %v7062 = vadd.f32 %v6908, %v7027
    %v7063 = vadd.f32 %v6913, %v7032
    %v7064 = vadd.f32 %v6916, %v7035
    %v7065 = vadd.f32 %v6921, %v7040
    %v7066 = vadd.f32 %v6924, %v7043
    %v7067 = vadd.f32 %v6929, %v7048
    %v7068 = vld [vmem:[#allocation2 + $0x17f] sm:$0xff]
    %v7069 = vld [vmem:[#allocation2 + $0x187] sm:$0xff]
    %v7070 = vld [vmem:[#allocation2 + $0x18f] sm:$0xff]
    %v7071 = vld [vmem:[#allocation2 + $0x197] sm:$0xff]
    %v7072 = vld [vmem:[#allocation2 + $0x19f] sm:$0xff]
    %v7073 = vld [vmem:[#allocation2 + $0x1a7] sm:$0xff]
    %v7074 = vld [vmem:[#allocation2 + $0x1af] sm:$0xff]
    %v7075 = vld [vmem:[#allocation2 + $0x1b7] sm:$0xff]
    %v7076 = vld [vmem:[#allocation2 + $0x1bf] sm:$0xff]
    %v7077 = vld [vmem:[#allocation2 + $0x1c7] sm:$0xff]
    %v7078 = vld [vmem:[#allocation2 + $0x1cf] sm:$0xff]
    %v7079 = vld [vmem:[#allocation2 + $0x1d7] sm:$0xff]
    %v7080 = vld [vmem:[#allocation2 + $0x1df] sm:$0xff]
    %v7081 = vld [vmem:[#allocation2 + $0x1e7] sm:$0xff]
    %v7082 = vld [vmem:[#allocation2 + $0x1ef] sm:$0xff]
    %v7083 = vpack.c.bf16 %v7069, %v7068
    %v7084 = vpack.c.bf16 %v7071, %v7070
    %v7085 = vpack.c.bf16 %v7073, %v7072
    %v7086 = vpack.c.bf16 %v7075, %v7074
    %v7087 = vpack.c.bf16 %v7077, %v7076
    %v7088 = vpack.c.bf16 %v7079, %v7078
    %v7089 = vpack.c.bf16 %v7081, %v7080
    %v7090 = vpack.c.bf16 %v7082, %v7082
    %7091 = vmatprep.subr.bf16.mxu0 0
    %7092 = vmatpush1.bf16.msra.mxu0 %v2756
    %7093 = vmatprep.subr.bf16.mxu0 0
    %7094 = vmatpush1.bf16.msra.mxu0 %v2755
    %7095 = vmatprep.subr.bf16.mxu0 0
    %7096 = vmatpush1.bf16.msra.mxu0 %v2754
    %7097 = vmatprep.subr.bf16.mxu0 0
    %7098 = vmatpush1.bf16.msra.mxu0 %v2753
    %7099 = vmatprep.subr.bf16.mxu0 0
    %7100 = vmatpush1.bf16.msra.mxu0 %v2752
    %7101 = vmatprep.subr.bf16.mxu0 0
    %7102 = vmatpush1.bf16.msra.mxu0 %v2751
    %7103 = vmatprep.subr.bf16.mxu0 0
    %7104 = vmatpush1.bf16.msra.mxu0 %v2750
    %7105 = vmatprep.subr.bf16.mxu0 0
    %7106 = vmatpush1.bf16.msra.mxu0 %v2749
    %7107 = vmatprep.subr.bf16.mxu0 0
    %7108 = vmatpush2.bf16.msra.mxu0 0
    %7109 = vmatprep.subr.bf16.mxu0 0
    %7110 = vmatpush2.bf16.msra.mxu0 0
    %7111 = vmatprep.subr.bf16.mxu0 0
    %7112 = vmatpush2.bf16.msra.mxu0 0
    %7113 = vmatprep.subr.bf16.mxu0 0
    %7114 = vmatpush2.bf16.msra.mxu0 0
    %7115 = vmatprep.subr.bf16.mxu0 0
    %7116 = vmatpush2.bf16.msra.mxu0 0
    %7117 = vmatprep.subr.bf16.mxu0 0
    %7118 = vmatpush2.bf16.msra.mxu0 0
    %7119 = vmatprep.subr.bf16.mxu0 0
    %7120 = vmatpush2.bf16.msra.mxu0 0
    %7121 = vmatprep.subr.bf16.mxu0 0
    %7122 = vmatpush2.bf16.msra.mxu0 0
    %7123 = vmatprep.mubr.bf16.mxu0 0
    %7124 = vmatmul.mubr.bf16.gmra.mxu0 %v7083
    %v7125 = vpop.f32.mrf.mxu0
    %v7126 = vadd.f32 0.0, %v7125
    %v7127 = vpop.f32.mrf.mxu0
    %v7128 = vpop.f32.mrf.mxu0
    %v7129 = vadd.f32 0.0, %v7128
    %v7130 = vpop.f32.mrf.mxu0
    %7131 = vmatprep.mubr.bf16.mxu0 0
    %7132 = vmatmul.mubr.bf16.gmra.mxu0 %v7084
    %v7133 = vpop.f32.mrf.mxu0
    %v7134 = vadd.f32 0.0, %v7133
    %v7135 = vpop.f32.mrf.mxu0
    %v7136 = vpop.f32.mrf.mxu0
    %v7137 = vadd.f32 0.0, %v7136
    %v7138 = vpop.f32.mrf.mxu0
    %7139 = vmatprep.mubr.bf16.mxu0 0
    %7140 = vmatmul.mubr.bf16.gmra.mxu0 %v7085
    %v7141 = vpop.f32.mrf.mxu0
    %v7142 = vadd.f32 0.0, %v7141
    %v7143 = vpop.f32.mrf.mxu0
    %v7144 = vpop.f32.mrf.mxu0
    %v7145 = vadd.f32 0.0, %v7144
    %v7146 = vpop.f32.mrf.mxu0
    %7147 = vmatprep.mubr.bf16.mxu0 0
    %7148 = vmatmul.mubr.bf16.gmra.mxu0 %v7086
    %v7149 = vpop.f32.mrf.mxu0
    %v7150 = vadd.f32 0.0, %v7149
    %v7151 = vpop.f32.mrf.mxu0
    %v7152 = vpop.f32.mrf.mxu0
    %v7153 = vadd.f32 0.0, %v7152
    %v7154 = vpop.f32.mrf.mxu0
    %7155 = vmatprep.mubr.bf16.mxu0 0
    %7156 = vmatmul.mubr.bf16.gmra.mxu0 %v7087
    %v7157 = vpop.f32.mrf.mxu0
    %v7158 = vadd.f32 0.0, %v7157
    %v7159 = vpop.f32.mrf.mxu0
    %v7160 = vpop.f32.mrf.mxu0
    %v7161 = vadd.f32 0.0, %v7160
    %v7162 = vpop.f32.mrf.mxu0
    %7163 = vmatprep.mubr.bf16.mxu0 0
    %7164 = vmatmul.mubr.bf16.gmra.mxu0 %v7088
    %v7165 = vpop.f32.mrf.mxu0
    %v7166 = vadd.f32 0.0, %v7165
    %v7167 = vpop.f32.mrf.mxu0
    %v7168 = vpop.f32.mrf.mxu0
    %v7169 = vadd.f32 0.0, %v7168
    %v7170 = vpop.f32.mrf.mxu0
    %7171 = vmatprep.mubr.bf16.mxu0 0
    %7172 = vmatmul.mubr.bf16.gmra.mxu0 %v7089
    %v7173 = vpop.f32.mrf.mxu0
    %v7174 = vadd.f32 0.0, %v7173
    %v7175 = vpop.f32.mrf.mxu0
    %v7176 = vpop.f32.mrf.mxu0
    %v7177 = vadd.f32 0.0, %v7176
    %v7178 = vpop.f32.mrf.mxu0
    %7179 = vmatprep.mubr.bf16.mxu0 0
    %7180 = vmatmul.mubr.bf16.gmra.mxu0 %v7090
    %v7181 = vpop.f32.mrf.mxu0
    %v7182 = vadd.f32 0.0, %v7181
    %v7183 = vpop.f32.mrf.mxu0
    %v7184 = vpop.f32.mrf.mxu0
    %v7185 = vpop.f32.mrf.mxu0
    %7186 = vdwg.mxu0
    %v7187 = vadd.f32 %v7053, %v7126
    %v7188 = vadd.f32 %v7054, %v7129
    %v7189 = vadd.f32 %v7055, %v7134
    %v7190 = vadd.f32 %v7056, %v7137
    %v7191 = vadd.f32 %v7057, %v7142
    %v7192 = vadd.f32 %v7058, %v7145
    %v7193 = vadd.f32 %v7059, %v7150
    %v7194 = vadd.f32 %v7060, %v7153
    %v7195 = vadd.f32 %v7061, %v7158
    %v7196 = vadd.f32 %v7062, %v7161
    %v7197 = vadd.f32 %v7063, %v7166
    %v7198 = vadd.f32 %v7064, %v7169
    %v7199 = vadd.f32 %v7065, %v7174
    %v7200 = vadd.f32 %v7066, %v7177
    %v7201 = vadd.f32 %v7067, %v7182
    %v7202 = vld [vmem:[#allocation2 + $0x180] sm:$0xff]
    %v7203 = vld [vmem:[#allocation2 + $0x188] sm:$0xff]
    %v7204 = vld [vmem:[#allocation2 + $0x190] sm:$0xff]
    %v7205 = vld [vmem:[#allocation2 + $0x198] sm:$0xff]
    %v7206 = vld [vmem:[#allocation2 + $0x1a0] sm:$0xff]
    %v7207 = vld [vmem:[#allocation2 + $0x1a8] sm:$0xff]
    %v7208 = vld [vmem:[#allocation2 + $0x1b0] sm:$0xff]
    %v7209 = vld [vmem:[#allocation2 + $0x1b8] sm:$0xff]
    %v7210 = vld [vmem:[#allocation2 + $0x1c0] sm:$0xff]
    %v7211 = vld [vmem:[#allocation2 + $0x1c8] sm:$0xff]
    %v7212 = vld [vmem:[#allocation2 + $0x1d0] sm:$0xff]
    %v7213 = vld [vmem:[#allocation2 + $0x1d8] sm:$0xff]
    %v7214 = vld [vmem:[#allocation2 + $0x1e0] sm:$0xff]
    %v7215 = vld [vmem:[#allocation2 + $0x1e8] sm:$0xff]
    %v7216 = vld [vmem:[#allocation2 + $0x1f0] sm:$0xff]
    %v7217 = vpack.c.bf16 %v7203, %v7202
    %v7218 = vpack.c.bf16 %v7205, %v7204
    %v7219 = vpack.c.bf16 %v7207, %v7206
    %v7220 = vpack.c.bf16 %v7209, %v7208
    %v7221 = vpack.c.bf16 %v7211, %v7210
    %v7222 = vpack.c.bf16 %v7213, %v7212
    %v7223 = vpack.c.bf16 %v7215, %v7214
    %v7224 = vpack.c.bf16 %v7216, %v7216
    %7225 = vmatprep.subr.bf16.mxu0 0
    %7226 = vmatpush1.bf16.msra.mxu0 %v2954
    %7227 = vmatprep.subr.bf16.mxu0 0
    %7228 = vmatpush1.bf16.msra.mxu0 %v2953
    %7229 = vmatprep.subr.bf16.mxu0 0
    %7230 = vmatpush1.bf16.msra.mxu0 %v2952
    %7231 = vmatprep.subr.bf16.mxu0 0
    %7232 = vmatpush1.bf16.msra.mxu0 %v2951
    %7233 = vmatprep.subr.bf16.mxu0 0
    %7234 = vmatpush1.bf16.msra.mxu0 %v2950
    %7235 = vmatprep.subr.bf16.mxu0 0
    %7236 = vmatpush1.bf16.msra.mxu0 %v2949
    %7237 = vmatprep.subr.bf16.mxu0 0
    %7238 = vmatpush1.bf16.msra.mxu0 %v2948
    %7239 = vmatprep.subr.bf16.mxu0 0
    %7240 = vmatpush1.bf16.msra.mxu0 %v2947
    %7241 = vmatprep.subr.bf16.mxu0 0
    %7242 = vmatpush2.bf16.msra.mxu0 0
    %7243 = vmatprep.subr.bf16.mxu0 0
    %7244 = vmatpush2.bf16.msra.mxu0 0
    %7245 = vmatprep.subr.bf16.mxu0 0
    %7246 = vmatpush2.bf16.msra.mxu0 0
    %7247 = vmatprep.subr.bf16.mxu0 0
    %7248 = vmatpush2.bf16.msra.mxu0 0
    %7249 = vmatprep.subr.bf16.mxu0 0
    %7250 = vmatpush2.bf16.msra.mxu0 0
    %7251 = vmatprep.subr.bf16.mxu0 0
    %7252 = vmatpush2.bf16.msra.mxu0 0
    %7253 = vmatprep.subr.bf16.mxu0 0
    %7254 = vmatpush2.bf16.msra.mxu0 0
    %7255 = vmatprep.subr.bf16.mxu0 0
    %7256 = vmatpush2.bf16.msra.mxu0 0
    %7257 = vmatprep.mubr.bf16.mxu0 0
    %7258 = vmatmul.mubr.bf16.gmra.mxu0 %v7217
    %v7259 = vpop.f32.mrf.mxu0
    %v7260 = vadd.f32 0.0, %v7259
    %v7261 = vpop.f32.mrf.mxu0
    %v7262 = vpop.f32.mrf.mxu0
    %v7263 = vadd.f32 0.0, %v7262
    %v7264 = vpop.f32.mrf.mxu0
    %7265 = vmatprep.mubr.bf16.mxu0 0
    %7266 = vmatmul.mubr.bf16.gmra.mxu0 %v7218
    %v7267 = vpop.f32.mrf.mxu0
    %v7268 = vadd.f32 0.0, %v7267
    %v7269 = vpop.f32.mrf.mxu0
    %v7270 = vpop.f32.mrf.mxu0
    %v7271 = vadd.f32 0.0, %v7270
    %v7272 = vpop.f32.mrf.mxu0
    %7273 = vmatprep.mubr.bf16.mxu0 0
    %7274 = vmatmul.mubr.bf16.gmra.mxu0 %v7219
    %v7275 = vpop.f32.mrf.mxu0
    %v7276 = vadd.f32 0.0, %v7275
    %v7277 = vpop.f32.mrf.mxu0
    %v7278 = vpop.f32.mrf.mxu0
    %v7279 = vadd.f32 0.0, %v7278
    %v7280 = vpop.f32.mrf.mxu0
    %7281 = vmatprep.mubr.bf16.mxu0 0
    %7282 = vmatmul.mubr.bf16.gmra.mxu0 %v7220
    %v7283 = vpop.f32.mrf.mxu0
    %v7284 = vadd.f32 0.0, %v7283
    %v7285 = vpop.f32.mrf.mxu0
    %v7286 = vpop.f32.mrf.mxu0
    %v7287 = vadd.f32 0.0, %v7286
    %v7288 = vpop.f32.mrf.mxu0
    %7289 = vmatprep.mubr.bf16.mxu0 0
    %7290 = vmatmul.mubr.bf16.gmra.mxu0 %v7221
    %v7291 = vpop.f32.mrf.mxu0
    %v7292 = vadd.f32 0.0, %v7291
    %v7293 = vpop.f32.mrf.mxu0
    %v7294 = vpop.f32.mrf.mxu0
    %v7295 = vadd.f32 0.0, %v7294
    %v7296 = vpop.f32.mrf.mxu0
    %7297 = vmatprep.mubr.bf16.mxu0 0
    %7298 = vmatmul.mubr.bf16.gmra.mxu0 %v7222
    %v7299 = vpop.f32.mrf.mxu0
    %v7300 = vadd.f32 0.0, %v7299
    %v7301 = vpop.f32.mrf.mxu0
    %v7302 = vpop.f32.mrf.mxu0
    %v7303 = vadd.f32 0.0, %v7302
    %v7304 = vpop.f32.mrf.mxu0
    %7305 = vmatprep.mubr.bf16.mxu0 0
    %7306 = vmatmul.mubr.bf16.gmra.mxu0 %v7223
    %v7307 = vpop.f32.mrf.mxu0
    %v7308 = vadd.f32 0.0, %v7307
    %v7309 = vpop.f32.mrf.mxu0
    %v7310 = vpop.f32.mrf.mxu0
    %v7311 = vadd.f32 0.0, %v7310
    %v7312 = vpop.f32.mrf.mxu0
    %7313 = vmatprep.mubr.bf16.mxu0 0
    %7314 = vmatmul.mubr.bf16.gmra.mxu0 %v7224
    %v7315 = vpop.f32.mrf.mxu0
    %v7316 = vadd.f32 0.0, %v7315
    %v7317 = vpop.f32.mrf.mxu0
    %v7318 = vpop.f32.mrf.mxu0
    %v7319 = vpop.f32.mrf.mxu0
    %7320 = vdwg.mxu0
    %v7321 = vadd.f32 %v7187, %v7260
    %v7322 = vadd.f32 %v7188, %v7263
    %v7323 = vadd.f32 %v7189, %v7268
    %v7324 = vadd.f32 %v7190, %v7271
    %v7325 = vadd.f32 %v7191, %v7276
    %v7326 = vadd.f32 %v7192, %v7279
    %v7327 = vadd.f32 %v7193, %v7284
    %v7328 = vadd.f32 %v7194, %v7287
    %v7329 = vadd.f32 %v7195, %v7292
    %v7330 = vadd.f32 %v7196, %v7295
    %v7331 = vadd.f32 %v7197, %v7300
    %v7332 = vadd.f32 %v7198, %v7303
    %v7333 = vadd.f32 %v7199, %v7308
    %v7334 = vadd.f32 %v7200, %v7311
    %v7335 = vadd.f32 %v7201, %v7316
    %v7336 = vld [vmem:[#allocation2 + $0x181] sm:$0xff]
    %v7337 = vld [vmem:[#allocation2 + $0x189] sm:$0xff]
    %v7338 = vld [vmem:[#allocation2 + $0x191] sm:$0xff]
    %v7339 = vld [vmem:[#allocation2 + $0x199] sm:$0xff]
    %v7340 = vld [vmem:[#allocation2 + $0x1a1] sm:$0xff]
    %v7341 = vld [vmem:[#allocation2 + $0x1a9] sm:$0xff]
    %v7342 = vld [vmem:[#allocation2 + $0x1b1] sm:$0xff]
    %v7343 = vld [vmem:[#allocation2 + $0x1b9] sm:$0xff]
    %v7344 = vld [vmem:[#allocation2 + $0x1c1] sm:$0xff]
    %v7345 = vld [vmem:[#allocation2 + $0x1c9] sm:$0xff]
    %v7346 = vld [vmem:[#allocation2 + $0x1d1] sm:$0xff]
    %v7347 = vld [vmem:[#allocation2 + $0x1d9] sm:$0xff]
    %v7348 = vld [vmem:[#allocation2 + $0x1e1] sm:$0xff]
    %v7349 = vld [vmem:[#allocation2 + $0x1e9] sm:$0xff]
    %v7350 = vld [vmem:[#allocation2 + $0x1f1] sm:$0xff]
    %v7351 = vpack.c.bf16 %v7337, %v7336
    %v7352 = vpack.c.bf16 %v7339, %v7338
    %v7353 = vpack.c.bf16 %v7341, %v7340
    %v7354 = vpack.c.bf16 %v7343, %v7342
    %v7355 = vpack.c.bf16 %v7345, %v7344
    %v7356 = vpack.c.bf16 %v7347, %v7346
    %v7357 = vpack.c.bf16 %v7349, %v7348
    %v7358 = vpack.c.bf16 %v7350, %v7350
    %7359 = vmatprep.subr.bf16.mxu0 0
    %7360 = vmatpush1.bf16.msra.mxu0 %v3152
    %7361 = vmatprep.subr.bf16.mxu0 0
    %7362 = vmatpush1.bf16.msra.mxu0 %v3151
    %7363 = vmatprep.subr.bf16.mxu0 0
    %7364 = vmatpush1.bf16.msra.mxu0 %v3150
    %7365 = vmatprep.subr.bf16.mxu0 0
    %7366 = vmatpush1.bf16.msra.mxu0 %v3149
    %7367 = vmatprep.subr.bf16.mxu0 0
    %7368 = vmatpush1.bf16.msra.mxu0 %v3148
    %7369 = vmatprep.subr.bf16.mxu0 0
    %7370 = vmatpush1.bf16.msra.mxu0 %v3147
    %7371 = vmatprep.subr.bf16.mxu0 0
    %7372 = vmatpush1.bf16.msra.mxu0 %v3146
    %7373 = vmatprep.subr.bf16.mxu0 0
    %7374 = vmatpush1.bf16.msra.mxu0 %v3145
    %7375 = vmatprep.subr.bf16.mxu0 0
    %7376 = vmatpush2.bf16.msra.mxu0 0
    %7377 = vmatprep.subr.bf16.mxu0 0
    %7378 = vmatpush2.bf16.msra.mxu0 0
    %7379 = vmatprep.subr.bf16.mxu0 0
    %7380 = vmatpush2.bf16.msra.mxu0 0
    %7381 = vmatprep.subr.bf16.mxu0 0
    %7382 = vmatpush2.bf16.msra.mxu0 0
    %7383 = vmatprep.subr.bf16.mxu0 0
    %7384 = vmatpush2.bf16.msra.mxu0 0
    %7385 = vmatprep.subr.bf16.mxu0 0
    %7386 = vmatpush2.bf16.msra.mxu0 0
    %7387 = vmatprep.subr.bf16.mxu0 0
    %7388 = vmatpush2.bf16.msra.mxu0 0
    %7389 = vmatprep.subr.bf16.mxu0 0
    %7390 = vmatpush2.bf16.msra.mxu0 0
    %7391 = vmatprep.mubr.bf16.mxu0 0
    %7392 = vmatmul.mubr.bf16.gmra.mxu0 %v7351
    %v7393 = vpop.f32.mrf.mxu0
    %v7394 = vadd.f32 0.0, %v7393
    %v7395 = vpop.f32.mrf.mxu0
    %v7396 = vpop.f32.mrf.mxu0
    %v7397 = vadd.f32 0.0, %v7396
    %v7398 = vpop.f32.mrf.mxu0
    %7399 = vmatprep.mubr.bf16.mxu0 0
    %7400 = vmatmul.mubr.bf16.gmra.mxu0 %v7352
    %v7401 = vpop.f32.mrf.mxu0
    %v7402 = vadd.f32 0.0, %v7401
    %v7403 = vpop.f32.mrf.mxu0
    %v7404 = vpop.f32.mrf.mxu0
    %v7405 = vadd.f32 0.0, %v7404
    %v7406 = vpop.f32.mrf.mxu0
    %7407 = vmatprep.mubr.bf16.mxu0 0
    %7408 = vmatmul.mubr.bf16.gmra.mxu0 %v7353
    %v7409 = vpop.f32.mrf.mxu0
    %v7410 = vadd.f32 0.0, %v7409
    %v7411 = vpop.f32.mrf.mxu0
    %v7412 = vpop.f32.mrf.mxu0
    %v7413 = vadd.f32 0.0, %v7412
    %v7414 = vpop.f32.mrf.mxu0
    %7415 = vmatprep.mubr.bf16.mxu0 0
    %7416 = vmatmul.mubr.bf16.gmra.mxu0 %v7354
    %v7417 = vpop.f32.mrf.mxu0
    %v7418 = vadd.f32 0.0, %v7417
    %v7419 = vpop.f32.mrf.mxu0
    %v7420 = vpop.f32.mrf.mxu0
    %v7421 = vadd.f32 0.0, %v7420
    %v7422 = vpop.f32.mrf.mxu0
    %7423 = vmatprep.mubr.bf16.mxu0 0
    %7424 = vmatmul.mubr.bf16.gmra.mxu0 %v7355
    %v7425 = vpop.f32.mrf.mxu0
    %v7426 = vadd.f32 0.0, %v7425
    %v7427 = vpop.f32.mrf.mxu0
    %v7428 = vpop.f32.mrf.mxu0
    %v7429 = vadd.f32 0.0, %v7428
    %v7430 = vpop.f32.mrf.mxu0
    %7431 = vmatprep.mubr.bf16.mxu0 0
    %7432 = vmatmul.mubr.bf16.gmra.mxu0 %v7356
    %v7433 = vpop.f32.mrf.mxu0
    %v7434 = vadd.f32 0.0, %v7433
    %v7435 = vpop.f32.mrf.mxu0
    %v7436 = vpop.f32.mrf.mxu0
    %v7437 = vadd.f32 0.0, %v7436
    %v7438 = vpop.f32.mrf.mxu0
    %7439 = vmatprep.mubr.bf16.mxu0 0
    %7440 = vmatmul.mubr.bf16.gmra.mxu0 %v7357
    %v7441 = vpop.f32.mrf.mxu0
    %v7442 = vadd.f32 0.0, %v7441
    %v7443 = vpop.f32.mrf.mxu0
    %v7444 = vpop.f32.mrf.mxu0
    %v7445 = vadd.f32 0.0, %v7444
    %v7446 = vpop.f32.mrf.mxu0
    %7447 = vmatprep.mubr.bf16.mxu0 0
    %7448 = vmatmul.mubr.bf16.gmra.mxu0 %v7358
    %v7449 = vpop.f32.mrf.mxu0
    %v7450 = vadd.f32 0.0, %v7449
    %v7451 = vpop.f32.mrf.mxu0
    %v7452 = vpop.f32.mrf.mxu0
    %v7453 = vpop.f32.mrf.mxu0
    %7454 = vdwg.mxu0
    %v7455 = vadd.f32 %v7321, %v7394
    %v7456 = vadd.f32 %v7322, %v7397
    %v7457 = vadd.f32 %v7323, %v7402
    %v7458 = vadd.f32 %v7324, %v7405
    %v7459 = vadd.f32 %v7325, %v7410
    %v7460 = vadd.f32 %v7326, %v7413
    %v7461 = vadd.f32 %v7327, %v7418
    %v7462 = vadd.f32 %v7328, %v7421
    %v7463 = vadd.f32 %v7329, %v7426
    %v7464 = vadd.f32 %v7330, %v7429
    %v7465 = vadd.f32 %v7331, %v7434
    %v7466 = vadd.f32 %v7332, %v7437
    %v7467 = vadd.f32 %v7333, %v7442
    %v7468 = vadd.f32 %v7334, %v7445
    %v7469 = vadd.f32 %v7335, %v7450
    %v7470 = vld [vmem:[#allocation2 + $0x193] sm:$0xff]
    %v7471 = vld [vmem:[#allocation2 + $0x19b] sm:$0xff]
    %v7472 = vld [vmem:[#allocation2 + $0x1a3] sm:$0xff]
    %v7473 = vld [vmem:[#allocation2 + $0x1ab] sm:$0xff]
    %v7474 = vld [vmem:[#allocation2 + $0x1b3] sm:$0xff]
    %v7475 = vld [vmem:[#allocation2 + $0x1bb] sm:$0xff]
    %v7476 = vld [vmem:[#allocation2 + $0x1c3] sm:$0xff]
    %v7477 = vld [vmem:[#allocation2 + $0x1cb] sm:$0xff]
    %v7478 = vld [vmem:[#allocation2 + $0x1d3] sm:$0xff]
    %v7479 = vld [vmem:[#allocation2 + $0x1db] sm:$0xff]
    %v7480 = vld [vmem:[#allocation2 + $0x1e3] sm:$0xff]
    %v7481 = vld [vmem:[#allocation2 + $0x1eb] sm:$0xff]
    %v7482 = vld [vmem:[#allocation2 + $0x1f3] sm:$0xff]
    %v7483 = vld [vmem:[#allocation2 + $0x1fb] sm:$0xff]
    %v7484 = vld [vmem:[#allocation2 + $0x203] sm:$0xff]
    %v7485 = vpack.c.bf16 %v7471, %v7470
    %v7486 = vpack.c.bf16 %v7473, %v7472
    %v7487 = vpack.c.bf16 %v7475, %v7474
    %v7488 = vpack.c.bf16 %v7477, %v7476
    %v7489 = vpack.c.bf16 %v7479, %v7478
    %v7490 = vpack.c.bf16 %v7481, %v7480
    %v7491 = vpack.c.bf16 %v7483, %v7482
    %v7492 = vpack.c.bf16 %v7484, %v7484
    %7493 = vmatprep.subr.bf16.mxu0 0
    %7494 = vmatpush1.bf16.msra.mxu0 %v3350
    %7495 = vmatprep.subr.bf16.mxu0 0
    %7496 = vmatpush1.bf16.msra.mxu0 %v3349
    %7497 = vmatprep.subr.bf16.mxu0 0
    %7498 = vmatpush1.bf16.msra.mxu0 %v3348
    %7499 = vmatprep.subr.bf16.mxu0 0
    %7500 = vmatpush1.bf16.msra.mxu0 %v3347
    %7501 = vmatprep.subr.bf16.mxu0 0
    %7502 = vmatpush1.bf16.msra.mxu0 %v3346
    %7503 = vmatprep.subr.bf16.mxu0 0
    %7504 = vmatpush1.bf16.msra.mxu0 %v3345
    %7505 = vmatprep.subr.bf16.mxu0 0
    %7506 = vmatpush1.bf16.msra.mxu0 %v3344
    %7507 = vmatprep.subr.bf16.mxu0 0
    %7508 = vmatpush1.bf16.msra.mxu0 %v3343
    %7509 = vmatprep.subr.bf16.mxu0 0
    %7510 = vmatpush2.bf16.msra.mxu0 0
    %7511 = vmatprep.subr.bf16.mxu0 0
    %7512 = vmatpush2.bf16.msra.mxu0 0
    %7513 = vmatprep.subr.bf16.mxu0 0
    %7514 = vmatpush2.bf16.msra.mxu0 0
    %7515 = vmatprep.subr.bf16.mxu0 0
    %7516 = vmatpush2.bf16.msra.mxu0 0
    %7517 = vmatprep.subr.bf16.mxu0 0
    %7518 = vmatpush2.bf16.msra.mxu0 0
    %7519 = vmatprep.subr.bf16.mxu0 0
    %7520 = vmatpush2.bf16.msra.mxu0 0
    %7521 = vmatprep.subr.bf16.mxu0 0
    %7522 = vmatpush2.bf16.msra.mxu0 0
    %7523 = vmatprep.subr.bf16.mxu0 0
    %7524 = vmatpush2.bf16.msra.mxu0 0
    %7525 = vmatprep.mubr.bf16.mxu0 0
    %7526 = vmatmul.mubr.bf16.gmra.mxu0 %v7485
    %v7527 = vpop.f32.mrf.mxu0
    %v7528 = vadd.f32 0.0, %v7527
    %v7529 = vpop.f32.mrf.mxu0
    %v7530 = vpop.f32.mrf.mxu0
    %v7531 = vadd.f32 0.0, %v7530
    %v7532 = vpop.f32.mrf.mxu0
    %7533 = vmatprep.mubr.bf16.mxu0 0
    %7534 = vmatmul.mubr.bf16.gmra.mxu0 %v7486
    %v7535 = vpop.f32.mrf.mxu0
    %v7536 = vadd.f32 0.0, %v7535
    %v7537 = vpop.f32.mrf.mxu0
    %v7538 = vpop.f32.mrf.mxu0
    %v7539 = vadd.f32 0.0, %v7538
    %v7540 = vpop.f32.mrf.mxu0
    %7541 = vmatprep.mubr.bf16.mxu0 0
    %7542 = vmatmul.mubr.bf16.gmra.mxu0 %v7487
    %v7543 = vpop.f32.mrf.mxu0
    %v7544 = vadd.f32 0.0, %v7543
    %v7545 = vpop.f32.mrf.mxu0
    %v7546 = vpop.f32.mrf.mxu0
    %v7547 = vadd.f32 0.0, %v7546
    %v7548 = vpop.f32.mrf.mxu0
    %7549 = vmatprep.mubr.bf16.mxu0 0
    %7550 = vmatmul.mubr.bf16.gmra.mxu0 %v7488
    %v7551 = vpop.f32.mrf.mxu0
    %v7552 = vadd.f32 0.0, %v7551
    %v7553 = vpop.f32.mrf.mxu0
    %v7554 = vpop.f32.mrf.mxu0
    %v7555 = vadd.f32 0.0, %v7554
    %v7556 = vpop.f32.mrf.mxu0
    %7557 = vmatprep.mubr.bf16.mxu0 0
    %7558 = vmatmul.mubr.bf16.gmra.mxu0 %v7489
    %v7559 = vpop.f32.mrf.mxu0
    %v7560 = vadd.f32 0.0, %v7559
    %v7561 = vpop.f32.mrf.mxu0
    %v7562 = vpop.f32.mrf.mxu0
    %v7563 = vadd.f32 0.0, %v7562
    %v7564 = vpop.f32.mrf.mxu0
    %7565 = vmatprep.mubr.bf16.mxu0 0
    %7566 = vmatmul.mubr.bf16.gmra.mxu0 %v7490
    %v7567 = vpop.f32.mrf.mxu0
    %v7568 = vadd.f32 0.0, %v7567
    %v7569 = vpop.f32.mrf.mxu0
    %v7570 = vpop.f32.mrf.mxu0
    %v7571 = vadd.f32 0.0, %v7570
    %v7572 = vpop.f32.mrf.mxu0
    %7573 = vmatprep.mubr.bf16.mxu0 0
    %7574 = vmatmul.mubr.bf16.gmra.mxu0 %v7491
    %v7575 = vpop.f32.mrf.mxu0
    %v7576 = vadd.f32 0.0, %v7575
    %v7577 = vpop.f32.mrf.mxu0
    %v7578 = vpop.f32.mrf.mxu0
    %v7579 = vadd.f32 0.0, %v7578
    %v7580 = vpop.f32.mrf.mxu0
    %7581 = vmatprep.mubr.bf16.mxu0 0
    %7582 = vmatmul.mubr.bf16.gmra.mxu0 %v7492
    %v7583 = vpop.f32.mrf.mxu0
    %v7584 = vadd.f32 0.0, %v7583
    %v7585 = vpop.f32.mrf.mxu0
    %v7586 = vpop.f32.mrf.mxu0
    %v7587 = vpop.f32.mrf.mxu0
    %7588 = vdwg.mxu0
    %v7589 = vadd.f32 %v7455, %v7528
    %v7590 = vadd.f32 %v7456, %v7531
    %v7591 = vadd.f32 %v7457, %v7536
    %v7592 = vadd.f32 %v7458, %v7539
    %v7593 = vadd.f32 %v7459, %v7544
    %v7594 = vadd.f32 %v7460, %v7547
    %v7595 = vadd.f32 %v7461, %v7552
    %v7596 = vadd.f32 %v7462, %v7555
    %v7597 = vadd.f32 %v7463, %v7560
    %v7598 = vadd.f32 %v7464, %v7563
    %v7599 = vadd.f32 %v7465, %v7568
    %v7600 = vadd.f32 %v7466, %v7571
    %v7601 = vadd.f32 %v7467, %v7576
    %v7602 = vadd.f32 %v7468, %v7579
    %v7603 = vadd.f32 %v7469, %v7584
    %v7604 = vld [vmem:[#allocation2 + $0x194] sm:$0xff]
    %v7605 = vld [vmem:[#allocation2 + $0x19c] sm:$0xff]
    %v7606 = vld [vmem:[#allocation2 + $0x1a4] sm:$0xff]
    %v7607 = vld [vmem:[#allocation2 + $0x1ac] sm:$0xff]
    %v7608 = vld [vmem:[#allocation2 + $0x1b4] sm:$0xff]
    %v7609 = vld [vmem:[#allocation2 + $0x1bc] sm:$0xff]
    %v7610 = vld [vmem:[#allocation2 + $0x1c4] sm:$0xff]
    %v7611 = vld [vmem:[#allocation2 + $0x1cc] sm:$0xff]
    %v7612 = vld [vmem:[#allocation2 + $0x1d4] sm:$0xff]
    %v7613 = vld [vmem:[#allocation2 + $0x1dc] sm:$0xff]
    %v7614 = vld [vmem:[#allocation2 + $0x1e4] sm:$0xff]
    %v7615 = vld [vmem:[#allocation2 + $0x1ec] sm:$0xff]
    %v7616 = vld [vmem:[#allocation2 + $0x1f4] sm:$0xff]
    %v7617 = vld [vmem:[#allocation2 + $0x1fc] sm:$0xff]
    %v7618 = vld [vmem:[#allocation2 + $0x204] sm:$0xff]
    %v7619 = vpack.c.bf16 %v7605, %v7604
    %v7620 = vpack.c.bf16 %v7607, %v7606
    %v7621 = vpack.c.bf16 %v7609, %v7608
    %v7622 = vpack.c.bf16 %v7611, %v7610
    %v7623 = vpack.c.bf16 %v7613, %v7612
    %v7624 = vpack.c.bf16 %v7615, %v7614
    %v7625 = vpack.c.bf16 %v7617, %v7616
    %v7626 = vpack.c.bf16 %v7618, %v7618
    %7627 = vmatprep.subr.bf16.mxu0 0
    %7628 = vmatpush1.bf16.msra.mxu0 %v3548
    %7629 = vmatprep.subr.bf16.mxu0 0
    %7630 = vmatpush1.bf16.msra.mxu0 %v3547
    %7631 = vmatprep.subr.bf16.mxu0 0
    %7632 = vmatpush1.bf16.msra.mxu0 %v3546
    %7633 = vmatprep.subr.bf16.mxu0 0
    %7634 = vmatpush1.bf16.msra.mxu0 %v3545
    %7635 = vmatprep.subr.bf16.mxu0 0
    %7636 = vmatpush1.bf16.msra.mxu0 %v3544
    %7637 = vmatprep.subr.bf16.mxu0 0
    %7638 = vmatpush1.bf16.msra.mxu0 %v3543
    %7639 = vmatprep.subr.bf16.mxu0 0
    %7640 = vmatpush1.bf16.msra.mxu0 %v3542
    %7641 = vmatprep.subr.bf16.mxu0 0
    %7642 = vmatpush1.bf16.msra.mxu0 %v3541
    %7643 = vmatprep.subr.bf16.mxu0 0
    %7644 = vmatpush2.bf16.msra.mxu0 0
    %7645 = vmatprep.subr.bf16.mxu0 0
    %7646 = vmatpush2.bf16.msra.mxu0 0
    %7647 = vmatprep.subr.bf16.mxu0 0
    %7648 = vmatpush2.bf16.msra.mxu0 0
    %7649 = vmatprep.subr.bf16.mxu0 0
    %7650 = vmatpush2.bf16.msra.mxu0 0
    %7651 = vmatprep.subr.bf16.mxu0 0
    %7652 = vmatpush2.bf16.msra.mxu0 0
    %7653 = vmatprep.subr.bf16.mxu0 0
    %7654 = vmatpush2.bf16.msra.mxu0 0
    %7655 = vmatprep.subr.bf16.mxu0 0
    %7656 = vmatpush2.bf16.msra.mxu0 0
    %7657 = vmatprep.subr.bf16.mxu0 0
    %7658 = vmatpush2.bf16.msra.mxu0 0
    %7659 = vmatprep.mubr.bf16.mxu0 0
    %7660 = vmatmul.mubr.bf16.gmra.mxu0 %v7619
    %v7661 = vpop.f32.mrf.mxu0
    %v7662 = vadd.f32 0.0, %v7661
    %v7663 = vpop.f32.mrf.mxu0
    %v7664 = vpop.f32.mrf.mxu0
    %v7665 = vadd.f32 0.0, %v7664
    %v7666 = vpop.f32.mrf.mxu0
    %7667 = vmatprep.mubr.bf16.mxu0 0
    %7668 = vmatmul.mubr.bf16.gmra.mxu0 %v7620
    %v7669 = vpop.f32.mrf.mxu0
    %v7670 = vadd.f32 0.0, %v7669
    %v7671 = vpop.f32.mrf.mxu0
    %v7672 = vpop.f32.mrf.mxu0
    %v7673 = vadd.f32 0.0, %v7672
    %v7674 = vpop.f32.mrf.mxu0
    %7675 = vmatprep.mubr.bf16.mxu0 0
    %7676 = vmatmul.mubr.bf16.gmra.mxu0 %v7621
    %v7677 = vpop.f32.mrf.mxu0
    %v7678 = vadd.f32 0.0, %v7677
    %v7679 = vpop.f32.mrf.mxu0
    %v7680 = vpop.f32.mrf.mxu0
    %v7681 = vadd.f32 0.0, %v7680
    %v7682 = vpop.f32.mrf.mxu0
    %7683 = vmatprep.mubr.bf16.mxu0 0
    %7684 = vmatmul.mubr.bf16.gmra.mxu0 %v7622
    %v7685 = vpop.f32.mrf.mxu0
    %v7686 = vadd.f32 0.0, %v7685
    %v7687 = vpop.f32.mrf.mxu0
    %v7688 = vpop.f32.mrf.mxu0
    %v7689 = vadd.f32 0.0, %v7688
    %v7690 = vpop.f32.mrf.mxu0
    %7691 = vmatprep.mubr.bf16.mxu0 0
    %7692 = vmatmul.mubr.bf16.gmra.mxu0 %v7623
    %v7693 = vpop.f32.mrf.mxu0
    %v7694 = vadd.f32 0.0, %v7693
    %v7695 = vpop.f32.mrf.mxu0
    %v7696 = vpop.f32.mrf.mxu0
    %v7697 = vadd.f32 0.0, %v7696
    %v7698 = vpop.f32.mrf.mxu0
    %7699 = vmatprep.mubr.bf16.mxu0 0
    %7700 = vmatmul.mubr.bf16.gmra.mxu0 %v7624
    %v7701 = vpop.f32.mrf.mxu0
    %v7702 = vadd.f32 0.0, %v7701
    %v7703 = vpop.f32.mrf.mxu0
    %v7704 = vpop.f32.mrf.mxu0
    %v7705 = vadd.f32 0.0, %v7704
    %v7706 = vpop.f32.mrf.mxu0
    %7707 = vmatprep.mubr.bf16.mxu0 0
    %7708 = vmatmul.mubr.bf16.gmra.mxu0 %v7625
    %v7709 = vpop.f32.mrf.mxu0
    %v7710 = vadd.f32 0.0, %v7709
    %v7711 = vpop.f32.mrf.mxu0
    %v7712 = vpop.f32.mrf.mxu0
    %v7713 = vadd.f32 0.0, %v7712
    %v7714 = vpop.f32.mrf.mxu0
    %7715 = vmatprep.mubr.bf16.mxu0 0
    %7716 = vmatmul.mubr.bf16.gmra.mxu0 %v7626
    %v7717 = vpop.f32.mrf.mxu0
    %v7718 = vadd.f32 0.0, %v7717
    %v7719 = vpop.f32.mrf.mxu0
    %v7720 = vpop.f32.mrf.mxu0
    %v7721 = vpop.f32.mrf.mxu0
    %7722 = vdwg.mxu0
    %v7723 = vadd.f32 %v7589, %v7662
    %v7724 = vadd.f32 %v7590, %v7665
    %v7725 = vadd.f32 %v7591, %v7670
    %v7726 = vadd.f32 %v7592, %v7673
    %v7727 = vadd.f32 %v7593, %v7678
    %v7728 = vadd.f32 %v7594, %v7681
    %v7729 = vadd.f32 %v7595, %v7686
    %v7730 = vadd.f32 %v7596, %v7689
    %v7731 = vadd.f32 %v7597, %v7694
    %v7732 = vadd.f32 %v7598, %v7697
    %v7733 = vadd.f32 %v7599, %v7702
    %v7734 = vadd.f32 %v7600, %v7705
    %v7735 = vadd.f32 %v7601, %v7710
    %v7736 = vadd.f32 %v7602, %v7713
    %v7737 = vadd.f32 %v7603, %v7718
    %v7738 = vld [vmem:[#allocation2 + $0x195] sm:$0xff]
    %v7739 = vld [vmem:[#allocation2 + $0x19d] sm:$0xff]
    %v7740 = vld [vmem:[#allocation2 + $0x1a5] sm:$0xff]
    %v7741 = vld [vmem:[#allocation2 + $0x1ad] sm:$0xff]
    %v7742 = vld [vmem:[#allocation2 + $0x1b5] sm:$0xff]
    %v7743 = vld [vmem:[#allocation2 + $0x1bd] sm:$0xff]
    %v7744 = vld [vmem:[#allocation2 + $0x1c5] sm:$0xff]
    %v7745 = vld [vmem:[#allocation2 + $0x1cd] sm:$0xff]
    %v7746 = vld [vmem:[#allocation2 + $0x1d5] sm:$0xff]
    %v7747 = vld [vmem:[#allocation2 + $0x1dd] sm:$0xff]
    %v7748 = vld [vmem:[#allocation2 + $0x1e5] sm:$0xff]
    %v7749 = vld [vmem:[#allocation2 + $0x1ed] sm:$0xff]
    %v7750 = vld [vmem:[#allocation2 + $0x1f5] sm:$0xff]
    %v7751 = vld [vmem:[#allocation2 + $0x1fd] sm:$0xff]
    %v7752 = vld [vmem:[#allocation2 + $0x205] sm:$0xff]
    %v7753 = vpack.c.bf16 %v7739, %v7738
    %v7754 = vpack.c.bf16 %v7741, %v7740
    %v7755 = vpack.c.bf16 %v7743, %v7742
    %v7756 = vpack.c.bf16 %v7745, %v7744
    %v7757 = vpack.c.bf16 %v7747, %v7746
    %v7758 = vpack.c.bf16 %v7749, %v7748
    %v7759 = vpack.c.bf16 %v7751, %v7750
    %v7760 = vpack.c.bf16 %v7752, %v7752
    %7761 = vmatprep.subr.bf16.mxu0 0
    %7762 = vmatpush1.bf16.msra.mxu0 %v3746
    %7763 = vmatprep.subr.bf16.mxu0 0
    %7764 = vmatpush1.bf16.msra.mxu0 %v3745
    %7765 = vmatprep.subr.bf16.mxu0 0
    %7766 = vmatpush1.bf16.msra.mxu0 %v3744
    %7767 = vmatprep.subr.bf16.mxu0 0
    %7768 = vmatpush1.bf16.msra.mxu0 %v3743
    %7769 = vmatprep.subr.bf16.mxu0 0
    %7770 = vmatpush1.bf16.msra.mxu0 %v3742
    %7771 = vmatprep.subr.bf16.mxu0 0
    %7772 = vmatpush1.bf16.msra.mxu0 %v3741
    %7773 = vmatprep.subr.bf16.mxu0 0
    %7774 = vmatpush1.bf16.msra.mxu0 %v3740
    %7775 = vmatprep.subr.bf16.mxu0 0
    %7776 = vmatpush1.bf16.msra.mxu0 %v3739
    %7777 = vmatprep.subr.bf16.mxu0 0
    %7778 = vmatpush2.bf16.msra.mxu0 0
    %7779 = vmatprep.subr.bf16.mxu0 0
    %7780 = vmatpush2.bf16.msra.mxu0 0
    %7781 = vmatprep.subr.bf16.mxu0 0
    %7782 = vmatpush2.bf16.msra.mxu0 0
    %7783 = vmatprep.subr.bf16.mxu0 0
    %7784 = vmatpush2.bf16.msra.mxu0 0
    %7785 = vmatprep.subr.bf16.mxu0 0
    %7786 = vmatpush2.bf16.msra.mxu0 0
    %7787 = vmatprep.subr.bf16.mxu0 0
    %7788 = vmatpush2.bf16.msra.mxu0 0
    %7789 = vmatprep.subr.bf16.mxu0 0
    %7790 = vmatpush2.bf16.msra.mxu0 0
    %7791 = vmatprep.subr.bf16.mxu0 0
    %7792 = vmatpush2.bf16.msra.mxu0 0
    %7793 = vmatprep.mubr.bf16.mxu0 0
    %7794 = vmatmul.mubr.bf16.gmra.mxu0 %v7753
    %v7795 = vpop.f32.mrf.mxu0
    %v7796 = vadd.f32 0.0, %v7795
    %v7797 = vpop.f32.mrf.mxu0
    %v7798 = vpop.f32.mrf.mxu0
    %v7799 = vadd.f32 0.0, %v7798
    %v7800 = vpop.f32.mrf.mxu0
    %7801 = vmatprep.mubr.bf16.mxu0 0
    %7802 = vmatmul.mubr.bf16.gmra.mxu0 %v7754
    %v7803 = vpop.f32.mrf.mxu0
    %v7804 = vadd.f32 0.0, %v7803
    %v7805 = vpop.f32.mrf.mxu0
    %v7806 = vpop.f32.mrf.mxu0
    %v7807 = vadd.f32 0.0, %v7806
    %v7808 = vpop.f32.mrf.mxu0
    %7809 = vmatprep.mubr.bf16.mxu0 0
    %7810 = vmatmul.mubr.bf16.gmra.mxu0 %v7755
    %v7811 = vpop.f32.mrf.mxu0
    %v7812 = vadd.f32 0.0, %v7811
    %v7813 = vpop.f32.mrf.mxu0
    %v7814 = vpop.f32.mrf.mxu0
    %v7815 = vadd.f32 0.0, %v7814
    %v7816 = vpop.f32.mrf.mxu0
    %7817 = vmatprep.mubr.bf16.mxu0 0
    %7818 = vmatmul.mubr.bf16.gmra.mxu0 %v7756
    %v7819 = vpop.f32.mrf.mxu0
    %v7820 = vadd.f32 0.0, %v7819
    %v7821 = vpop.f32.mrf.mxu0
    %v7822 = vpop.f32.mrf.mxu0
    %v7823 = vadd.f32 0.0, %v7822
    %v7824 = vpop.f32.mrf.mxu0
    %7825 = vmatprep.mubr.bf16.mxu0 0
    %7826 = vmatmul.mubr.bf16.gmra.mxu0 %v7757
    %v7827 = vpop.f32.mrf.mxu0
    %v7828 = vadd.f32 0.0, %v7827
    %v7829 = vpop.f32.mrf.mxu0
    %v7830 = vpop.f32.mrf.mxu0
    %v7831 = vadd.f32 0.0, %v7830
    %v7832 = vpop.f32.mrf.mxu0
    %7833 = vmatprep.mubr.bf16.mxu0 0
    %7834 = vmatmul.mubr.bf16.gmra.mxu0 %v7758
    %v7835 = vpop.f32.mrf.mxu0
    %v7836 = vadd.f32 0.0, %v7835
    %v7837 = vpop.f32.mrf.mxu0
    %v7838 = vpop.f32.mrf.mxu0
    %v7839 = vadd.f32 0.0, %v7838
    %v7840 = vpop.f32.mrf.mxu0
    %7841 = vmatprep.mubr.bf16.mxu0 0
    %7842 = vmatmul.mubr.bf16.gmra.mxu0 %v7759
    %v7843 = vpop.f32.mrf.mxu0
    %v7844 = vadd.f32 0.0, %v7843
    %v7845 = vpop.f32.mrf.mxu0
    %v7846 = vpop.f32.mrf.mxu0
    %v7847 = vadd.f32 0.0, %v7846
    %v7848 = vpop.f32.mrf.mxu0
    %7849 = vmatprep.mubr.bf16.mxu0 0
    %7850 = vmatmul.mubr.bf16.gmra.mxu0 %v7760
    %v7851 = vpop.f32.mrf.mxu0
    %v7852 = vadd.f32 0.0, %v7851
    %v7853 = vpop.f32.mrf.mxu0
    %v7854 = vpop.f32.mrf.mxu0
    %v7855 = vpop.f32.mrf.mxu0
    %7856 = vdwg.mxu0
    %v7857 = vadd.f32 %v7723, %v7796
    %v7858 = vadd.f32 %v7724, %v7799
    %v7859 = vadd.f32 %v7725, %v7804
    %v7860 = vadd.f32 %v7726, %v7807
    %v7861 = vadd.f32 %v7727, %v7812
    %v7862 = vadd.f32 %v7728, %v7815
    %v7863 = vadd.f32 %v7729, %v7820
    %v7864 = vadd.f32 %v7730, %v7823
    %v7865 = vadd.f32 %v7731, %v7828
    %v7866 = vadd.f32 %v7732, %v7831
    %v7867 = vadd.f32 %v7733, %v7836
    %v7868 = vadd.f32 %v7734, %v7839
    %v7869 = vadd.f32 %v7735, %v7844
    %v7870 = vadd.f32 %v7736, %v7847
    %v7871 = vadd.f32 %v7737, %v7852
    %v7872 = vadd.f32 %v7857, %v3871
    %v7873 = vadd.f32 %v7858, %v3871
    %v7874 = vadd.f32 %v7859, %v3871
    %v7875 = vadd.f32 %v7860, %v3871
    %v7876 = vadd.f32 %v7861, %v3871
    %v7877 = vadd.f32 %v7862, %v3871
    %v7878 = vadd.f32 %v7863, %v3871
    %v7879 = vadd.f32 %v7864, %v3871
    %v7880 = vadd.f32 %v7865, %v3871
    %v7881 = vadd.f32 %v7866, %v3871
    %v7882 = vadd.f32 %v7867, %v3871
    %v7883 = vadd.f32 %v7868, %v3871
    %v7884 = vadd.f32 %v7869, %v3871
    %v7885 = vadd.f32 %v7870, %v3871
    %v7886 = vadd.f32 %v7871, %v3871
    %v7887 = vmax.f32 %v7872, 0.0
    %v7888 = vmax.f32 %v7873, 0.0
    %v7889 = vmax.f32 %v7874, 0.0
    %v7890 = vmax.f32 %v7875, 0.0
    %v7891 = vmax.f32 %v7876, 0.0
    %v7892 = vmax.f32 %v7877, 0.0
    %v7893 = vmax.f32 %v7878, 0.0
    %v7894 = vmax.f32 %v7879, 0.0
    %v7895 = vmax.f32 %v7880, 0.0
    %v7896 = vmax.f32 %v7881, 0.0
    %v7897 = vmax.f32 %v7882, 0.0
    %v7898 = vmax.f32 %v7883, 0.0
    %v7899 = vmax.f32 %v7884, 0.0
    %v7900 = vmax.f32 %v7885, 0.0
    %v7901 = vmax.f32 %v7886, 0.0
    %v7902 = vmul.f32 %v7887, %v3921
    %v7903 = vmul.f32 %v7888, %v3926
    %v7904 = vmul.f32 %v7889, %v3931
    %v7905 = vmul.f32 %v7890, %v3936
    %v7906 = vmul.f32 %v7891, %v3941
    %v7907 = vmul.f32 %v7892, %v3946
    %v7908 = vmul.f32 %v7893, %v3951
    %v7909 = vmul.f32 %v7894, %v3956
    %v7910 = vmul.f32 %v7895, %v3961
    %v7911 = vmul.f32 %v7896, %v3966
    %v7912 = vmul.f32 %v7897, %v3971
    %v7913 = vmul.f32 %v7898, %v3976
    %v7914 = vmul.f32 %v7899, %v3981
    %v7915 = vmul.f32 %v7900, %v3986
    %v7916 = vmul.f32 %v7901, %v3991
    %v7917 = vadd.f32 %v7902, %v7903
    %v7918 = vadd.f32 %v7917, %v7904
    %v7919 = vadd.f32 %v7918, %v7905
    %v7920 = vadd.f32 %v7919, %v7906
    %v7921 = vadd.f32 %v7920, %v7907
    %v7922 = vadd.f32 %v7921, %v7908
    %v7923 = vadd.f32 %v7922, %v7909
    %v7924 = vadd.f32 %v7923, %v7910
    %v7925 = vadd.f32 %v7924, %v7911
    %v7926 = vadd.f32 %v7925, %v7912
    %v7927 = vadd.f32 %v7926, %v7913
    %v7928 = vadd.f32 %v7927, %v7914
    %v7929 = vadd.f32 %v7928, %v7915
    %v7930 = vadd.f32 %v7929, %v7916
    %v7931 = vrot.slane %v7930, 4
    %v7932 = vadd.f32 %v7930, %v7931
    %v7933 = vrot.slane %v7932, 2
    %v7934 = vadd.f32 %v7932, %v7933
    %v7935 = vrot.slane %v7934, 1
    %v7936 = vadd.f32 %v7934, %v7935
    %v7937 = vmul.f32 %v7936, 0.00390625
    %v7938 = vadd.f32 %v7937, 0.0
    %v7939 = vld [vmem:[#allocation2 + $0x1e3] sm:$0xff]
    %v7940 = vld [vmem:[#allocation2 + $0x1eb] sm:$0xff]
    %v7941 = vld [vmem:[#allocation2 + $0x1f3] sm:$0xff]
    %v7942 = vld [vmem:[#allocation2 + $0x1fb] sm:$0xff]
    %v7943 = vld [vmem:[#allocation2 + $0x203] sm:$0xff]
    %v7944 = vld [vmem:[#allocation2 + $0x20b] sm:$0xff]
    %v7945 = vld [vmem:[#allocation2 + $0x213] sm:$0xff]
    %v7946 = vld [vmem:[#allocation2 + $0x21b] sm:$0xff]
    %v7947 = vld [vmem:[#allocation2 + $0x223] sm:$0xff]
    %v7948 = vld [vmem:[#allocation2 + $0x22b] sm:$0xff]
    %v7949 = vld [vmem:[#allocation2 + $0x233] sm:$0xff]
    %v7950 = vld [vmem:[#allocation2 + $0x23b] sm:$0xff]
    %v7951 = vld [vmem:[#allocation2 + $0x243] sm:$0xff]
    %v7952 = vld [vmem:[#allocation2 + $0x24b] sm:$0xff]
    %v7953 = vld [vmem:[#allocation2 + $0x253] sm:$0xff]
    %v7954 = vpack.c.bf16 %v7940, %v7939
    %v7955 = vpack.c.bf16 %v7942, %v7941
    %v7956 = vpack.c.bf16 %v7944, %v7943
    %v7957 = vpack.c.bf16 %v7946, %v7945
    %v7958 = vpack.c.bf16 %v7948, %v7947
    %v7959 = vpack.c.bf16 %v7950, %v7949
    %v7960 = vpack.c.bf16 %v7952, %v7951
    %v7961 = vpack.c.bf16 %v7953, %v7953
    %v7962 = vld [vmem:[#allocation2 + $0x1e4] sm:$0xff]
    %v7963 = vld [vmem:[#allocation2 + $0x1ec] sm:$0xff]
    %v7964 = vld [vmem:[#allocation2 + $0x1f4] sm:$0xff]
    %v7965 = vld [vmem:[#allocation2 + $0x1fc] sm:$0xff]
    %v7966 = vld [vmem:[#allocation2 + $0x204] sm:$0xff]
    %v7967 = vld [vmem:[#allocation2 + $0x20c] sm:$0xff]
    %v7968 = vld [vmem:[#allocation2 + $0x214] sm:$0xff]
    %v7969 = vld [vmem:[#allocation2 + $0x21c] sm:$0xff]
    %v7970 = vld [vmem:[#allocation2 + $0x224] sm:$0xff]
    %v7971 = vld [vmem:[#allocation2 + $0x22c] sm:$0xff]
    %v7972 = vld [vmem:[#allocation2 + $0x234] sm:$0xff]
    %v7973 = vld [vmem:[#allocation2 + $0x23c] sm:$0xff]
    %v7974 = vld [vmem:[#allocation2 + $0x244] sm:$0xff]
    %v7975 = vld [vmem:[#allocation2 + $0x24c] sm:$0xff]
    %v7976 = vld [vmem:[#allocation2 + $0x254] sm:$0xff]
    %v7977 = vpack.c.bf16 %v7963, %v7962
    %v7978 = vpack.c.bf16 %v7965, %v7964
    %v7979 = vpack.c.bf16 %v7967, %v7966
    %v7980 = vpack.c.bf16 %v7969, %v7968
    %v7981 = vpack.c.bf16 %v7971, %v7970
    %v7982 = vpack.c.bf16 %v7973, %v7972
    %v7983 = vpack.c.bf16 %v7975, %v7974
    %v7984 = vpack.c.bf16 %v7976, %v7976
    %7985 = vmatprep.subr.bf16.mxu0 0
    %7986 = vmatpush1.bf16.msra.mxu0 %v2231
    %7987 = vmatprep.subr.bf16.mxu0 0
    %7988 = vmatpush1.bf16.msra.mxu0 %v2230
    %7989 = vmatprep.subr.bf16.mxu0 0
    %7990 = vmatpush1.bf16.msra.mxu0 %v2229
    %7991 = vmatprep.subr.bf16.mxu0 0
    %7992 = vmatpush1.bf16.msra.mxu0 %v2228
    %7993 = vmatprep.subr.bf16.mxu0 0
    %7994 = vmatpush1.bf16.msra.mxu0 %v2227
    %7995 = vmatprep.subr.bf16.mxu0 0
    %7996 = vmatpush1.bf16.msra.mxu0 %v2226
    %7997 = vmatprep.subr.bf16.mxu0 0
    %7998 = vmatpush1.bf16.msra.mxu0 %v2225
    %7999 = vmatprep.subr.bf16.mxu0 0
    %8000 = vmatpush1.bf16.msra.mxu0 %v2224
    %8001 = vmatprep.subr.bf16.mxu0 0
    %8002 = vmatpush2.bf16.msra.mxu0 0
    %8003 = vmatprep.subr.bf16.mxu0 0
    %8004 = vmatpush2.bf16.msra.mxu0 0
    %8005 = vmatprep.subr.bf16.mxu0 0
    %8006 = vmatpush2.bf16.msra.mxu0 0
    %8007 = vmatprep.subr.bf16.mxu0 0
    %8008 = vmatpush2.bf16.msra.mxu0 0
    %8009 = vmatprep.subr.bf16.mxu0 0
    %8010 = vmatpush2.bf16.msra.mxu0 0
    %8011 = vmatprep.subr.bf16.mxu0 0
    %8012 = vmatpush2.bf16.msra.mxu0 0
    %8013 = vmatprep.subr.bf16.mxu0 0
    %8014 = vmatpush2.bf16.msra.mxu0 0
    %8015 = vmatprep.subr.bf16.mxu0 0
    %8016 = vmatpush2.bf16.msra.mxu0 0
    %8017 = vmatprep.mubr.bf16.mxu0 0
    %8018 = vmatmul.mubr.bf16.gmra.mxu0 %v7977
    %v8019 = vpop.f32.mrf.mxu0
    %v8020 = vadd.f32 0.0, %v8019
    %v8021 = vpop.f32.mrf.mxu0
    %v8022 = vpop.f32.mrf.mxu0
    %v8023 = vadd.f32 0.0, %v8022
    %v8024 = vpop.f32.mrf.mxu0
    %8025 = vmatprep.mubr.bf16.mxu0 0
    %8026 = vmatmul.mubr.bf16.gmra.mxu0 %v7978
    %v8027 = vpop.f32.mrf.mxu0
    %v8028 = vadd.f32 0.0, %v8027
    %v8029 = vpop.f32.mrf.mxu0
    %v8030 = vpop.f32.mrf.mxu0
    %v8031 = vadd.f32 0.0, %v8030
    %v8032 = vpop.f32.mrf.mxu0
    %8033 = vmatprep.mubr.bf16.mxu0 0
    %8034 = vmatmul.mubr.bf16.gmra.mxu0 %v7979
    %v8035 = vpop.f32.mrf.mxu0
    %v8036 = vadd.f32 0.0, %v8035
    %v8037 = vpop.f32.mrf.mxu0
    %v8038 = vpop.f32.mrf.mxu0
    %v8039 = vadd.f32 0.0, %v8038
    %v8040 = vpop.f32.mrf.mxu0
    %8041 = vmatprep.mubr.bf16.mxu0 0
    %8042 = vmatmul.mubr.bf16.gmra.mxu0 %v7980
    %v8043 = vpop.f32.mrf.mxu0
    %v8044 = vadd.f32 0.0, %v8043
    %v8045 = vpop.f32.mrf.mxu0
    %v8046 = vpop.f32.mrf.mxu0
    %v8047 = vadd.f32 0.0, %v8046
    %v8048 = vpop.f32.mrf.mxu0
    %8049 = vmatprep.mubr.bf16.mxu0 0
    %8050 = vmatmul.mubr.bf16.gmra.mxu0 %v7981
    %v8051 = vpop.f32.mrf.mxu0
    %v8052 = vadd.f32 0.0, %v8051
    %v8053 = vpop.f32.mrf.mxu0
    %v8054 = vpop.f32.mrf.mxu0
    %v8055 = vadd.f32 0.0, %v8054
    %v8056 = vpop.f32.mrf.mxu0
    %8057 = vmatprep.mubr.bf16.mxu0 0
    %8058 = vmatmul.mubr.bf16.gmra.mxu0 %v7982
    %v8059 = vpop.f32.mrf.mxu0
    %v8060 = vadd.f32 0.0, %v8059
    %v8061 = vpop.f32.mrf.mxu0
    %v8062 = vpop.f32.mrf.mxu0
    %v8063 = vadd.f32 0.0, %v8062
    %v8064 = vpop.f32.mrf.mxu0
    %8065 = vmatprep.mubr.bf16.mxu0 0
    %8066 = vmatmul.mubr.bf16.gmra.mxu0 %v7983
    %v8067 = vpop.f32.mrf.mxu0
    %v8068 = vadd.f32 0.0, %v8067
    %v8069 = vpop.f32.mrf.mxu0
    %v8070 = vpop.f32.mrf.mxu0
    %v8071 = vadd.f32 0.0, %v8070
    %v8072 = vpop.f32.mrf.mxu0
    %8073 = vmatprep.mubr.bf16.mxu0 0
    %8074 = vmatmul.mubr.bf16.gmra.mxu0 %v7984
    %v8075 = vpop.f32.mrf.mxu0
    %v8076 = vadd.f32 0.0, %v8075
    %v8077 = vpop.f32.mrf.mxu0
    %v8078 = vpop.f32.mrf.mxu0
    %v8079 = vpop.f32.mrf.mxu0
    %8080 = vdwg.mxu0
    %8081 = vmatprep.subr.bf16.mxu0 0
    %8082 = vmatpush1.bf16.msra.mxu0 %v2375
    %8083 = vmatprep.subr.bf16.mxu0 0
    %8084 = vmatpush1.bf16.msra.mxu0 %v2374
    %8085 = vmatprep.subr.bf16.mxu0 0
    %8086 = vmatpush1.bf16.msra.mxu0 %v2373
    %8087 = vmatprep.subr.bf16.mxu0 0
    %8088 = vmatpush1.bf16.msra.mxu0 %v2372
    %8089 = vmatprep.subr.bf16.mxu0 0
    %8090 = vmatpush1.bf16.msra.mxu0 %v2371
    %8091 = vmatprep.subr.bf16.mxu0 0
    %8092 = vmatpush1.bf16.msra.mxu0 %v2370
    %8093 = vmatprep.subr.bf16.mxu0 0
    %8094 = vmatpush1.bf16.msra.mxu0 %v2369
    %8095 = vmatprep.subr.bf16.mxu0 0
    %8096 = vmatpush1.bf16.msra.mxu0 %v2368
    %8097 = vmatprep.subr.bf16.mxu0 0
    %8098 = vmatpush2.bf16.msra.mxu0 0
    %8099 = vmatprep.subr.bf16.mxu0 0
    %8100 = vmatpush2.bf16.msra.mxu0 0
    %8101 = vmatprep.subr.bf16.mxu0 0
    %8102 = vmatpush2.bf16.msra.mxu0 0
    %8103 = vmatprep.subr.bf16.mxu0 0
    %8104 = vmatpush2.bf16.msra.mxu0 0
    %8105 = vmatprep.subr.bf16.mxu0 0
    %8106 = vmatpush2.bf16.msra.mxu0 0
    %8107 = vmatprep.subr.bf16.mxu0 0
    %8108 = vmatpush2.bf16.msra.mxu0 0
    %8109 = vmatprep.subr.bf16.mxu0 0
    %8110 = vmatpush2.bf16.msra.mxu0 0
    %8111 = vmatprep.subr.bf16.mxu0 0
    %8112 = vmatpush2.bf16.msra.mxu0 0
    %8113 = vmatprep.mubr.bf16.mxu0 0
    %8114 = vmatmul.mubr.bf16.gmra.mxu0 %v7954
    %v8115 = vpop.f32.mrf.mxu0
    %v8116 = vadd.f32 %v8020, %v8115
    %v8117 = vpop.f32.mrf.mxu0
    %v8118 = vpop.f32.mrf.mxu0
    %v8119 = vadd.f32 %v8023, %v8118
    %v8120 = vpop.f32.mrf.mxu0
    %8121 = vmatprep.mubr.bf16.mxu0 0
    %8122 = vmatmul.mubr.bf16.gmra.mxu0 %v7955
    %v8123 = vpop.f32.mrf.mxu0
    %v8124 = vadd.f32 %v8028, %v8123
    %v8125 = vpop.f32.mrf.mxu0
    %v8126 = vpop.f32.mrf.mxu0
    %v8127 = vadd.f32 %v8031, %v8126
    %v8128 = vpop.f32.mrf.mxu0
    %8129 = vmatprep.mubr.bf16.mxu0 0
    %8130 = vmatmul.mubr.bf16.gmra.mxu0 %v7956
    %v8131 = vpop.f32.mrf.mxu0
    %v8132 = vadd.f32 %v8036, %v8131
    %v8133 = vpop.f32.mrf.mxu0
    %v8134 = vpop.f32.mrf.mxu0
    %v8135 = vadd.f32 %v8039, %v8134
    %v8136 = vpop.f32.mrf.mxu0
    %8137 = vmatprep.mubr.bf16.mxu0 0
    %8138 = vmatmul.mubr.bf16.gmra.mxu0 %v7957
    %v8139 = vpop.f32.mrf.mxu0
    %v8140 = vadd.f32 %v8044, %v8139
    %v8141 = vpop.f32.mrf.mxu0
    %v8142 = vpop.f32.mrf.mxu0
    %v8143 = vadd.f32 %v8047, %v8142
    %v8144 = vpop.f32.mrf.mxu0
    %8145 = vmatprep.mubr.bf16.mxu0 0
    %8146 = vmatmul.mubr.bf16.gmra.mxu0 %v7958
    %v8147 = vpop.f32.mrf.mxu0
    %v8148 = vadd.f32 %v8052, %v8147
    %v8149 = vpop.f32.mrf.mxu0
    %v8150 = vpop.f32.mrf.mxu0
    %v8151 = vadd.f32 %v8055, %v8150
    %v8152 = vpop.f32.mrf.mxu0
    %8153 = vmatprep.mubr.bf16.mxu0 0
    %8154 = vmatmul.mubr.bf16.gmra.mxu0 %v7959
    %v8155 = vpop.f32.mrf.mxu0
    %v8156 = vadd.f32 %v8060, %v8155
    %v8157 = vpop.f32.mrf.mxu0
    %v8158 = vpop.f32.mrf.mxu0
    %v8159 = vadd.f32 %v8063, %v8158
    %v8160 = vpop.f32.mrf.mxu0
    %8161 = vmatprep.mubr.bf16.mxu0 0
    %8162 = vmatmul.mubr.bf16.gmra.mxu0 %v7960
    %v8163 = vpop.f32.mrf.mxu0
    %v8164 = vadd.f32 %v8068, %v8163
    %v8165 = vpop.f32.mrf.mxu0
    %v8166 = vpop.f32.mrf.mxu0
    %v8167 = vadd.f32 %v8071, %v8166
    %v8168 = vpop.f32.mrf.mxu0
    %8169 = vmatprep.mubr.bf16.mxu0 0
    %8170 = vmatmul.mubr.bf16.gmra.mxu0 %v7961
    %v8171 = vpop.f32.mrf.mxu0
    %v8172 = vadd.f32 %v8076, %v8171
    %v8173 = vpop.f32.mrf.mxu0
    %v8174 = vpop.f32.mrf.mxu0
    %v8175 = vpop.f32.mrf.mxu0
    %8176 = vdwg.mxu0
    %v8177 = vld [vmem:[#allocation2 + $0x1e5] sm:$0xff]
    %v8178 = vld [vmem:[#allocation2 + $0x1ed] sm:$0xff]
    %v8179 = vld [vmem:[#allocation2 + $0x1f5] sm:$0xff]
    %v8180 = vld [vmem:[#allocation2 + $0x1fd] sm:$0xff]
    %v8181 = vld [vmem:[#allocation2 + $0x205] sm:$0xff]
    %v8182 = vld [vmem:[#allocation2 + $0x20d] sm:$0xff]
    %v8183 = vld [vmem:[#allocation2 + $0x215] sm:$0xff]
    %v8184 = vld [vmem:[#allocation2 + $0x21d] sm:$0xff]
    %v8185 = vld [vmem:[#allocation2 + $0x225] sm:$0xff]
    %v8186 = vld [vmem:[#allocation2 + $0x22d] sm:$0xff]
    %v8187 = vld [vmem:[#allocation2 + $0x235] sm:$0xff]
    %v8188 = vld [vmem:[#allocation2 + $0x23d] sm:$0xff]
    %v8189 = vld [vmem:[#allocation2 + $0x245] sm:$0xff]
    %v8190 = vld [vmem:[#allocation2 + $0x24d] sm:$0xff]
    %v8191 = vld [vmem:[#allocation2 + $0x255] sm:$0xff]
    %v8192 = vpack.c.bf16 %v8178, %v8177
    %v8193 = vpack.c.bf16 %v8180, %v8179
    %v8194 = vpack.c.bf16 %v8182, %v8181
    %v8195 = vpack.c.bf16 %v8184, %v8183
    %v8196 = vpack.c.bf16 %v8186, %v8185
    %v8197 = vpack.c.bf16 %v8188, %v8187
    %v8198 = vpack.c.bf16 %v8190, %v8189
    %v8199 = vpack.c.bf16 %v8191, %v8191
    %8200 = vmatprep.subr.bf16.mxu0 0
    %8201 = vmatpush1.bf16.msra.mxu0 %v2558
    %8202 = vmatprep.subr.bf16.mxu0 0
    %8203 = vmatpush1.bf16.msra.mxu0 %v2557
    %8204 = vmatprep.subr.bf16.mxu0 0
    %8205 = vmatpush1.bf16.msra.mxu0 %v2556
    %8206 = vmatprep.subr.bf16.mxu0 0
    %8207 = vmatpush1.bf16.msra.mxu0 %v2555
    %8208 = vmatprep.subr.bf16.mxu0 0
    %8209 = vmatpush1.bf16.msra.mxu0 %v2554
    %8210 = vmatprep.subr.bf16.mxu0 0
    %8211 = vmatpush1.bf16.msra.mxu0 %v2553
    %8212 = vmatprep.subr.bf16.mxu0 0
    %8213 = vmatpush1.bf16.msra.mxu0 %v2552
    %8214 = vmatprep.subr.bf16.mxu0 0
    %8215 = vmatpush1.bf16.msra.mxu0 %v2551
    %8216 = vmatprep.subr.bf16.mxu0 0
    %8217 = vmatpush2.bf16.msra.mxu0 0
    %8218 = vmatprep.subr.bf16.mxu0 0
    %8219 = vmatpush2.bf16.msra.mxu0 0
    %8220 = vmatprep.subr.bf16.mxu0 0
    %8221 = vmatpush2.bf16.msra.mxu0 0
    %8222 = vmatprep.subr.bf16.mxu0 0
    %8223 = vmatpush2.bf16.msra.mxu0 0
    %8224 = vmatprep.subr.bf16.mxu0 0
    %8225 = vmatpush2.bf16.msra.mxu0 0
    %8226 = vmatprep.subr.bf16.mxu0 0
    %8227 = vmatpush2.bf16.msra.mxu0 0
    %8228 = vmatprep.subr.bf16.mxu0 0
    %8229 = vmatpush2.bf16.msra.mxu0 0
    %8230 = vmatprep.subr.bf16.mxu0 0
    %8231 = vmatpush2.bf16.msra.mxu0 0
    %8232 = vmatprep.mubr.bf16.mxu0 0
    %8233 = vmatmul.mubr.bf16.gmra.mxu0 %v8192
    %v8234 = vpop.f32.mrf.mxu0
    %v8235 = vadd.f32 0.0, %v8234
    %v8236 = vpop.f32.mrf.mxu0
    %v8237 = vpop.f32.mrf.mxu0
    %v8238 = vadd.f32 0.0, %v8237
    %v8239 = vpop.f32.mrf.mxu0
    %8240 = vmatprep.mubr.bf16.mxu0 0
    %8241 = vmatmul.mubr.bf16.gmra.mxu0 %v8193
    %v8242 = vpop.f32.mrf.mxu0
    %v8243 = vadd.f32 0.0, %v8242
    %v8244 = vpop.f32.mrf.mxu0
    %v8245 = vpop.f32.mrf.mxu0
    %v8246 = vadd.f32 0.0, %v8245
    %v8247 = vpop.f32.mrf.mxu0
    %8248 = vmatprep.mubr.bf16.mxu0 0
    %8249 = vmatmul.mubr.bf16.gmra.mxu0 %v8194
    %v8250 = vpop.f32.mrf.mxu0
    %v8251 = vadd.f32 0.0, %v8250
    %v8252 = vpop.f32.mrf.mxu0
    %v8253 = vpop.f32.mrf.mxu0
    %v8254 = vadd.f32 0.0, %v8253
    %v8255 = vpop.f32.mrf.mxu0
    %8256 = vmatprep.mubr.bf16.mxu0 0
    %8257 = vmatmul.mubr.bf16.gmra.mxu0 %v8195
    %v8258 = vpop.f32.mrf.mxu0
    %v8259 = vadd.f32 0.0, %v8258
    %v8260 = vpop.f32.mrf.mxu0
    %v8261 = vpop.f32.mrf.mxu0
    %v8262 = vadd.f32 0.0, %v8261
    %v8263 = vpop.f32.mrf.mxu0
    %8264 = vmatprep.mubr.bf16.mxu0 0
    %8265 = vmatmul.mubr.bf16.gmra.mxu0 %v8196
    %v8266 = vpop.f32.mrf.mxu0
    %v8267 = vadd.f32 0.0, %v8266
    %v8268 = vpop.f32.mrf.mxu0
    %v8269 = vpop.f32.mrf.mxu0
    %v8270 = vadd.f32 0.0, %v8269
    %v8271 = vpop.f32.mrf.mxu0
    %8272 = vmatprep.mubr.bf16.mxu0 0
    %8273 = vmatmul.mubr.bf16.gmra.mxu0 %v8197
    %v8274 = vpop.f32.mrf.mxu0
    %v8275 = vadd.f32 0.0, %v8274
    %v8276 = vpop.f32.mrf.mxu0
    %v8277 = vpop.f32.mrf.mxu0
    %v8278 = vadd.f32 0.0, %v8277
    %v8279 = vpop.f32.mrf.mxu0
    %8280 = vmatprep.mubr.bf16.mxu0 0
    %8281 = vmatmul.mubr.bf16.gmra.mxu0 %v8198
    %v8282 = vpop.f32.mrf.mxu0
    %v8283 = vadd.f32 0.0, %v8282
    %v8284 = vpop.f32.mrf.mxu0
    %v8285 = vpop.f32.mrf.mxu0
    %v8286 = vadd.f32 0.0, %v8285
    %v8287 = vpop.f32.mrf.mxu0
    %8288 = vmatprep.mubr.bf16.mxu0 0
    %8289 = vmatmul.mubr.bf16.gmra.mxu0 %v8199
    %v8290 = vpop.f32.mrf.mxu0
    %v8291 = vadd.f32 0.0, %v8290
    %v8292 = vpop.f32.mrf.mxu0
    %v8293 = vpop.f32.mrf.mxu0
    %v8294 = vpop.f32.mrf.mxu0
    %8295 = vdwg.mxu0
    %v8296 = vadd.f32 %v8116, %v8235
    %v8297 = vadd.f32 %v8119, %v8238
    %v8298 = vadd.f32 %v8124, %v8243
    %v8299 = vadd.f32 %v8127, %v8246
    %v8300 = vadd.f32 %v8132, %v8251
    %v8301 = vadd.f32 %v8135, %v8254
    %v8302 = vadd.f32 %v8140, %v8259
    %v8303 = vadd.f32 %v8143, %v8262
    %v8304 = vadd.f32 %v8148, %v8267
    %v8305 = vadd.f32 %v8151, %v8270
    %v8306 = vadd.f32 %v8156, %v8275
    %v8307 = vadd.f32 %v8159, %v8278
    %v8308 = vadd.f32 %v8164, %v8283
    %v8309 = vadd.f32 %v8167, %v8286
    %v8310 = vadd.f32 %v8172, %v8291
    %v8311 = vld [vmem:[#allocation2 + $0x1f7] sm:$0xff]
    %v8312 = vld [vmem:[#allocation2 + $0x1ff] sm:$0xff]
    %v8313 = vld [vmem:[#allocation2 + $0x207] sm:$0xff]
    %v8314 = vld [vmem:[#allocation2 + $0x20f] sm:$0xff]
    %v8315 = vld [vmem:[#allocation2 + $0x217] sm:$0xff]
    %v8316 = vld [vmem:[#allocation2 + $0x21f] sm:$0xff]
    %v8317 = vld [vmem:[#allocation2 + $0x227] sm:$0xff]
    %v8318 = vld [vmem:[#allocation2 + $0x22f] sm:$0xff]
    %v8319 = vld [vmem:[#allocation2 + $0x237] sm:$0xff]
    %v8320 = vld [vmem:[#allocation2 + $0x23f] sm:$0xff]
    %v8321 = vld [vmem:[#allocation2 + $0x247] sm:$0xff]
    %v8322 = vld [vmem:[#allocation2 + $0x24f] sm:$0xff]
    %v8323 = vld [vmem:[#allocation2 + $0x257] sm:$0xff]
    %v8324 = vld [vmem:[#allocation2 + $0x25f] sm:$0xff]
    %v8325 = vld [vmem:[#allocation2 + $0x267] sm:$0xff]
    %v8326 = vpack.c.bf16 %v8312, %v8311
    %v8327 = vpack.c.bf16 %v8314, %v8313
    %v8328 = vpack.c.bf16 %v8316, %v8315
    %v8329 = vpack.c.bf16 %v8318, %v8317
    %v8330 = vpack.c.bf16 %v8320, %v8319
    %v8331 = vpack.c.bf16 %v8322, %v8321
    %v8332 = vpack.c.bf16 %v8324, %v8323
    %v8333 = vpack.c.bf16 %v8325, %v8325
    %8334 = vmatprep.subr.bf16.mxu0 0
    %8335 = vmatpush1.bf16.msra.mxu0 %v2756
    %8336 = vmatprep.subr.bf16.mxu0 0
    %8337 = vmatpush1.bf16.msra.mxu0 %v2755
    %8338 = vmatprep.subr.bf16.mxu0 0
    %8339 = vmatpush1.bf16.msra.mxu0 %v2754
    %8340 = vmatprep.subr.bf16.mxu0 0
    %8341 = vmatpush1.bf16.msra.mxu0 %v2753
    %8342 = vmatprep.subr.bf16.mxu0 0
    %8343 = vmatpush1.bf16.msra.mxu0 %v2752
    %8344 = vmatprep.subr.bf16.mxu0 0
    %8345 = vmatpush1.bf16.msra.mxu0 %v2751
    %8346 = vmatprep.subr.bf16.mxu0 0
    %8347 = vmatpush1.bf16.msra.mxu0 %v2750
    %8348 = vmatprep.subr.bf16.mxu0 0
    %8349 = vmatpush1.bf16.msra.mxu0 %v2749
    %8350 = vmatprep.subr.bf16.mxu0 0
    %8351 = vmatpush2.bf16.msra.mxu0 0
    %8352 = vmatprep.subr.bf16.mxu0 0
    %8353 = vmatpush2.bf16.msra.mxu0 0
    %8354 = vmatprep.subr.bf16.mxu0 0
    %8355 = vmatpush2.bf16.msra.mxu0 0
    %8356 = vmatprep.subr.bf16.mxu0 0
    %8357 = vmatpush2.bf16.msra.mxu0 0
    %8358 = vmatprep.subr.bf16.mxu0 0
    %8359 = vmatpush2.bf16.msra.mxu0 0
    %8360 = vmatprep.subr.bf16.mxu0 0
    %8361 = vmatpush2.bf16.msra.mxu0 0
    %8362 = vmatprep.subr.bf16.mxu0 0
    %8363 = vmatpush2.bf16.msra.mxu0 0
    %8364 = vmatprep.subr.bf16.mxu0 0
    %8365 = vmatpush2.bf16.msra.mxu0 0
    %8366 = vmatprep.mubr.bf16.mxu0 0
    %8367 = vmatmul.mubr.bf16.gmra.mxu0 %v8326
    %v8368 = vpop.f32.mrf.mxu0
    %v8369 = vadd.f32 0.0, %v8368
    %v8370 = vpop.f32.mrf.mxu0
    %v8371 = vpop.f32.mrf.mxu0
    %v8372 = vadd.f32 0.0, %v8371
    %v8373 = vpop.f32.mrf.mxu0
    %8374 = vmatprep.mubr.bf16.mxu0 0
    %8375 = vmatmul.mubr.bf16.gmra.mxu0 %v8327
    %v8376 = vpop.f32.mrf.mxu0
    %v8377 = vadd.f32 0.0, %v8376
    %v8378 = vpop.f32.mrf.mxu0
    %v8379 = vpop.f32.mrf.mxu0
    %v8380 = vadd.f32 0.0, %v8379
    %v8381 = vpop.f32.mrf.mxu0
    %8382 = vmatprep.mubr.bf16.mxu0 0
    %8383 = vmatmul.mubr.bf16.gmra.mxu0 %v8328
    %v8384 = vpop.f32.mrf.mxu0
    %v8385 = vadd.f32 0.0, %v8384
    %v8386 = vpop.f32.mrf.mxu0
    %v8387 = vpop.f32.mrf.mxu0
    %v8388 = vadd.f32 0.0, %v8387
    %v8389 = vpop.f32.mrf.mxu0
    %8390 = vmatprep.mubr.bf16.mxu0 0
    %8391 = vmatmul.mubr.bf16.gmra.mxu0 %v8329
    %v8392 = vpop.f32.mrf.mxu0
    %v8393 = vadd.f32 0.0, %v8392
    %v8394 = vpop.f32.mrf.mxu0
    %v8395 = vpop.f32.mrf.mxu0
    %v8396 = vadd.f32 0.0, %v8395
    %v8397 = vpop.f32.mrf.mxu0
    %8398 = vmatprep.mubr.bf16.mxu0 0
    %8399 = vmatmul.mubr.bf16.gmra.mxu0 %v8330
    %v8400 = vpop.f32.mrf.mxu0
    %v8401 = vadd.f32 0.0, %v8400
    %v8402 = vpop.f32.mrf.mxu0
    %v8403 = vpop.f32.mrf.mxu0
    %v8404 = vadd.f32 0.0, %v8403
    %v8405 = vpop.f32.mrf.mxu0
    %8406 = vmatprep.mubr.bf16.mxu0 0
    %8407 = vmatmul.mubr.bf16.gmra.mxu0 %v8331
    %v8408 = vpop.f32.mrf.mxu0
    %v8409 = vadd.f32 0.0, %v8408
    %v8410 = vpop.f32.mrf.mxu0
    %v8411 = vpop.f32.mrf.mxu0
    %v8412 = vadd.f32 0.0, %v8411
    %v8413 = vpop.f32.mrf.mxu0
    %8414 = vmatprep.mubr.bf16.mxu0 0
    %8415 = vmatmul.mubr.bf16.gmra.mxu0 %v8332
    %v8416 = vpop.f32.mrf.mxu0
    %v8417 = vadd.f32 0.0, %v8416
    %v8418 = vpop.f32.mrf.mxu0
    %v8419 = vpop.f32.mrf.mxu0
    %v8420 = vadd.f32 0.0, %v8419
    %v8421 = vpop.f32.mrf.mxu0
    %8422 = vmatprep.mubr.bf16.mxu0 0
    %8423 = vmatmul.mubr.bf16.gmra.mxu0 %v8333
    %v8424 = vpop.f32.mrf.mxu0
    %v8425 = vadd.f32 0.0, %v8424
    %v8426 = vpop.f32.mrf.mxu0
    %v8427 = vpop.f32.mrf.mxu0
    %v8428 = vpop.f32.mrf.mxu0
    %8429 = vdwg.mxu0
    %v8430 = vadd.f32 %v8296, %v8369
    %v8431 = vadd.f32 %v8297, %v8372
    %v8432 = vadd.f32 %v8298, %v8377
    %v8433 = vadd.f32 %v8299, %v8380
    %v8434 = vadd.f32 %v8300, %v8385
    %v8435 = vadd.f32 %v8301, %v8388
    %v8436 = vadd.f32 %v8302, %v8393
    %v8437 = vadd.f32 %v8303, %v8396
    %v8438 = vadd.f32 %v8304, %v8401
    %v8439 = vadd.f32 %v8305, %v8404
    %v8440 = vadd.f32 %v8306, %v8409
    %v8441 = vadd.f32 %v8307, %v8412
    %v8442 = vadd.f32 %v8308, %v8417
    %v8443 = vadd.f32 %v8309, %v8420
    %v8444 = vadd.f32 %v8310, %v8425
    %v8445 = vld [vmem:[#allocation2 + $0x1f8] sm:$0xff]
    %v8446 = vld [vmem:[#allocation2 + $0x200] sm:$0xff]
    %v8447 = vld [vmem:[#allocation2 + $0x208] sm:$0xff]
    %v8448 = vld [vmem:[#allocation2 + $0x210] sm:$0xff]
    %v8449 = vld [vmem:[#allocation2 + $0x218] sm:$0xff]
    %v8450 = vld [vmem:[#allocation2 + $0x220] sm:$0xff]
    %v8451 = vld [vmem:[#allocation2 + $0x228] sm:$0xff]
    %v8452 = vld [vmem:[#allocation2 + $0x230] sm:$0xff]
    %v8453 = vld [vmem:[#allocation2 + $0x238] sm:$0xff]
    %v8454 = vld [vmem:[#allocation2 + $0x240] sm:$0xff]
    %v8455 = vld [vmem:[#allocation2 + $0x248] sm:$0xff]
    %v8456 = vld [vmem:[#allocation2 + $0x250] sm:$0xff]
    %v8457 = vld [vmem:[#allocation2 + $0x258] sm:$0xff]
    %v8458 = vld [vmem:[#allocation2 + $0x260] sm:$0xff]
    %v8459 = vld [vmem:[#allocation2 + $0x268] sm:$0xff]
    %v8460 = vpack.c.bf16 %v8446, %v8445
    %v8461 = vpack.c.bf16 %v8448, %v8447
    %v8462 = vpack.c.bf16 %v8450, %v8449
    %v8463 = vpack.c.bf16 %v8452, %v8451
    %v8464 = vpack.c.bf16 %v8454, %v8453
    %v8465 = vpack.c.bf16 %v8456, %v8455
    %v8466 = vpack.c.bf16 %v8458, %v8457
    %v8467 = vpack.c.bf16 %v8459, %v8459
    %8468 = vmatprep.subr.bf16.mxu0 0
    %8469 = vmatpush1.bf16.msra.mxu0 %v2954
    %8470 = vmatprep.subr.bf16.mxu0 0
    %8471 = vmatpush1.bf16.msra.mxu0 %v2953
    %8472 = vmatprep.subr.bf16.mxu0 0
    %8473 = vmatpush1.bf16.msra.mxu0 %v2952
    %8474 = vmatprep.subr.bf16.mxu0 0
    %8475 = vmatpush1.bf16.msra.mxu0 %v2951
    %8476 = vmatprep.subr.bf16.mxu0 0
    %8477 = vmatpush1.bf16.msra.mxu0 %v2950
    %8478 = vmatprep.subr.bf16.mxu0 0
    %8479 = vmatpush1.bf16.msra.mxu0 %v2949
    %8480 = vmatprep.subr.bf16.mxu0 0
    %8481 = vmatpush1.bf16.msra.mxu0 %v2948
    %8482 = vmatprep.subr.bf16.mxu0 0
    %8483 = vmatpush1.bf16.msra.mxu0 %v2947
    %8484 = vmatprep.subr.bf16.mxu0 0
    %8485 = vmatpush2.bf16.msra.mxu0 0
    %8486 = vmatprep.subr.bf16.mxu0 0
    %8487 = vmatpush2.bf16.msra.mxu0 0
    %8488 = vmatprep.subr.bf16.mxu0 0
    %8489 = vmatpush2.bf16.msra.mxu0 0
    %8490 = vmatprep.subr.bf16.mxu0 0
    %8491 = vmatpush2.bf16.msra.mxu0 0
    %8492 = vmatprep.subr.bf16.mxu0 0
    %8493 = vmatpush2.bf16.msra.mxu0 0
    %8494 = vmatprep.subr.bf16.mxu0 0
    %8495 = vmatpush2.bf16.msra.mxu0 0
    %8496 = vmatprep.subr.bf16.mxu0 0
    %8497 = vmatpush2.bf16.msra.mxu0 0
    %8498 = vmatprep.subr.bf16.mxu0 0
    %8499 = vmatpush2.bf16.msra.mxu0 0
    %8500 = vmatprep.mubr.bf16.mxu0 0
    %8501 = vmatmul.mubr.bf16.gmra.mxu0 %v8460
    %v8502 = vpop.f32.mrf.mxu0
    %v8503 = vadd.f32 0.0, %v8502
    %v8504 = vpop.f32.mrf.mxu0
    %v8505 = vpop.f32.mrf.mxu0
    %v8506 = vadd.f32 0.0, %v8505
    %v8507 = vpop.f32.mrf.mxu0
    %8508 = vmatprep.mubr.bf16.mxu0 0
    %8509 = vmatmul.mubr.bf16.gmra.mxu0 %v8461
    %v8510 = vpop.f32.mrf.mxu0
    %v8511 = vadd.f32 0.0, %v8510
    %v8512 = vpop.f32.mrf.mxu0
    %v8513 = vpop.f32.mrf.mxu0
    %v8514 = vadd.f32 0.0, %v8513
    %v8515 = vpop.f32.mrf.mxu0
    %8516 = vmatprep.mubr.bf16.mxu0 0
    %8517 = vmatmul.mubr.bf16.gmra.mxu0 %v8462
    %v8518 = vpop.f32.mrf.mxu0
    %v8519 = vadd.f32 0.0, %v8518
    %v8520 = vpop.f32.mrf.mxu0
    %v8521 = vpop.f32.mrf.mxu0
    %v8522 = vadd.f32 0.0, %v8521
    %v8523 = vpop.f32.mrf.mxu0
    %8524 = vmatprep.mubr.bf16.mxu0 0
    %8525 = vmatmul.mubr.bf16.gmra.mxu0 %v8463
    %v8526 = vpop.f32.mrf.mxu0
    %v8527 = vadd.f32 0.0, %v8526
    %v8528 = vpop.f32.mrf.mxu0
    %v8529 = vpop.f32.mrf.mxu0
    %v8530 = vadd.f32 0.0, %v8529
    %v8531 = vpop.f32.mrf.mxu0
    %8532 = vmatprep.mubr.bf16.mxu0 0
    %8533 = vmatmul.mubr.bf16.gmra.mxu0 %v8464
    %v8534 = vpop.f32.mrf.mxu0
    %v8535 = vadd.f32 0.0, %v8534
    %v8536 = vpop.f32.mrf.mxu0
    %v8537 = vpop.f32.mrf.mxu0
    %v8538 = vadd.f32 0.0, %v8537
    %v8539 = vpop.f32.mrf.mxu0
    %8540 = vmatprep.mubr.bf16.mxu0 0
    %8541 = vmatmul.mubr.bf16.gmra.mxu0 %v8465
    %v8542 = vpop.f32.mrf.mxu0
    %v8543 = vadd.f32 0.0, %v8542
    %v8544 = vpop.f32.mrf.mxu0
    %v8545 = vpop.f32.mrf.mxu0
    %v8546 = vadd.f32 0.0, %v8545
    %v8547 = vpop.f32.mrf.mxu0
    %8548 = vmatprep.mubr.bf16.mxu0 0
    %8549 = vmatmul.mubr.bf16.gmra.mxu0 %v8466
    %v8550 = vpop.f32.mrf.mxu0
    %v8551 = vadd.f32 0.0, %v8550
    %v8552 = vpop.f32.mrf.mxu0
    %v8553 = vpop.f32.mrf.mxu0
    %v8554 = vadd.f32 0.0, %v8553
    %v8555 = vpop.f32.mrf.mxu0
    %8556 = vmatprep.mubr.bf16.mxu0 0
    %8557 = vmatmul.mubr.bf16.gmra.mxu0 %v8467
    %v8558 = vpop.f32.mrf.mxu0
    %v8559 = vadd.f32 0.0, %v8558
    %v8560 = vpop.f32.mrf.mxu0
    %v8561 = vpop.f32.mrf.mxu0
    %v8562 = vpop.f32.mrf.mxu0
    %8563 = vdwg.mxu0
    %v8564 = vadd.f32 %v8430, %v8503
    %v8565 = vadd.f32 %v8431, %v8506
    %v8566 = vadd.f32 %v8432, %v8511
    %v8567 = vadd.f32 %v8433, %v8514
    %v8568 = vadd.f32 %v8434, %v8519
    %v8569 = vadd.f32 %v8435, %v8522
    %v8570 = vadd.f32 %v8436, %v8527
    %v8571 = vadd.f32 %v8437, %v8530
    %v8572 = vadd.f32 %v8438, %v8535
    %v8573 = vadd.f32 %v8439, %v8538
    %v8574 = vadd.f32 %v8440, %v8543
    %v8575 = vadd.f32 %v8441, %v8546
    %v8576 = vadd.f32 %v8442, %v8551
    %v8577 = vadd.f32 %v8443, %v8554
    %v8578 = vadd.f32 %v8444, %v8559
    %v8579 = vld [vmem:[#allocation2 + $0x1f9] sm:$0xff]
    %v8580 = vld [vmem:[#allocation2 + $0x201] sm:$0xff]
    %v8581 = vld [vmem:[#allocation2 + $0x209] sm:$0xff]
    %v8582 = vld [vmem:[#allocation2 + $0x211] sm:$0xff]
    %v8583 = vld [vmem:[#allocation2 + $0x219] sm:$0xff]
    %v8584 = vld [vmem:[#allocation2 + $0x221] sm:$0xff]
    %v8585 = vld [vmem:[#allocation2 + $0x229] sm:$0xff]
    %v8586 = vld [vmem:[#allocation2 + $0x231] sm:$0xff]
    %v8587 = vld [vmem:[#allocation2 + $0x239] sm:$0xff]
    %v8588 = vld [vmem:[#allocation2 + $0x241] sm:$0xff]
    %v8589 = vld [vmem:[#allocation2 + $0x249] sm:$0xff]
    %v8590 = vld [vmem:[#allocation2 + $0x251] sm:$0xff]
    %v8591 = vld [vmem:[#allocation2 + $0x259] sm:$0xff]
    %v8592 = vld [vmem:[#allocation2 + $0x261] sm:$0xff]
    %v8593 = vld [vmem:[#allocation2 + $0x269] sm:$0xff]
    %v8594 = vpack.c.bf16 %v8580, %v8579
    %v8595 = vpack.c.bf16 %v8582, %v8581
    %v8596 = vpack.c.bf16 %v8584, %v8583
    %v8597 = vpack.c.bf16 %v8586, %v8585
    %v8598 = vpack.c.bf16 %v8588, %v8587
    %v8599 = vpack.c.bf16 %v8590, %v8589
    %v8600 = vpack.c.bf16 %v8592, %v8591
    %v8601 = vpack.c.bf16 %v8593, %v8593
    %8602 = vmatprep.subr.bf16.mxu0 0
    %8603 = vmatpush1.bf16.msra.mxu0 %v3152
    %8604 = vmatprep.subr.bf16.mxu0 0
    %8605 = vmatpush1.bf16.msra.mxu0 %v3151
    %8606 = vmatprep.subr.bf16.mxu0 0
    %8607 = vmatpush1.bf16.msra.mxu0 %v3150
    %8608 = vmatprep.subr.bf16.mxu0 0
    %8609 = vmatpush1.bf16.msra.mxu0 %v3149
    %8610 = vmatprep.subr.bf16.mxu0 0
    %8611 = vmatpush1.bf16.msra.mxu0 %v3148
    %8612 = vmatprep.subr.bf16.mxu0 0
    %8613 = vmatpush1.bf16.msra.mxu0 %v3147
    %8614 = vmatprep.subr.bf16.mxu0 0
    %8615 = vmatpush1.bf16.msra.mxu0 %v3146
    %8616 = vmatprep.subr.bf16.mxu0 0
    %8617 = vmatpush1.bf16.msra.mxu0 %v3145
    %8618 = vmatprep.subr.bf16.mxu0 0
    %8619 = vmatpush2.bf16.msra.mxu0 0
    %8620 = vmatprep.subr.bf16.mxu0 0
    %8621 = vmatpush2.bf16.msra.mxu0 0
    %8622 = vmatprep.subr.bf16.mxu0 0
    %8623 = vmatpush2.bf16.msra.mxu0 0
    %8624 = vmatprep.subr.bf16.mxu0 0
    %8625 = vmatpush2.bf16.msra.mxu0 0
    %8626 = vmatprep.subr.bf16.mxu0 0
    %8627 = vmatpush2.bf16.msra.mxu0 0
    %8628 = vmatprep.subr.bf16.mxu0 0
    %8629 = vmatpush2.bf16.msra.mxu0 0
    %8630 = vmatprep.subr.bf16.mxu0 0
    %8631 = vmatpush2.bf16.msra.mxu0 0
    %8632 = vmatprep.subr.bf16.mxu0 0
    %8633 = vmatpush2.bf16.msra.mxu0 0
    %8634 = vmatprep.mubr.bf16.mxu0 0
    %8635 = vmatmul.mubr.bf16.gmra.mxu0 %v8594
    %v8636 = vpop.f32.mrf.mxu0
    %v8637 = vadd.f32 0.0, %v8636
    %v8638 = vpop.f32.mrf.mxu0
    %v8639 = vpop.f32.mrf.mxu0
    %v8640 = vadd.f32 0.0, %v8639
    %v8641 = vpop.f32.mrf.mxu0
    %8642 = vmatprep.mubr.bf16.mxu0 0
    %8643 = vmatmul.mubr.bf16.gmra.mxu0 %v8595
    %v8644 = vpop.f32.mrf.mxu0
    %v8645 = vadd.f32 0.0, %v8644
    %v8646 = vpop.f32.mrf.mxu0
    %v8647 = vpop.f32.mrf.mxu0
    %v8648 = vadd.f32 0.0, %v8647
    %v8649 = vpop.f32.mrf.mxu0
    %8650 = vmatprep.mubr.bf16.mxu0 0
    %8651 = vmatmul.mubr.bf16.gmra.mxu0 %v8596
    %v8652 = vpop.f32.mrf.mxu0
    %v8653 = vadd.f32 0.0, %v8652
    %v8654 = vpop.f32.mrf.mxu0
    %v8655 = vpop.f32.mrf.mxu0
    %v8656 = vadd.f32 0.0, %v8655
    %v8657 = vpop.f32.mrf.mxu0
    %8658 = vmatprep.mubr.bf16.mxu0 0
    %8659 = vmatmul.mubr.bf16.gmra.mxu0 %v8597
    %v8660 = vpop.f32.mrf.mxu0
    %v8661 = vadd.f32 0.0, %v8660
    %v8662 = vpop.f32.mrf.mxu0
    %v8663 = vpop.f32.mrf.mxu0
    %v8664 = vadd.f32 0.0, %v8663
    %v8665 = vpop.f32.mrf.mxu0
    %8666 = vmatprep.mubr.bf16.mxu0 0
    %8667 = vmatmul.mubr.bf16.gmra.mxu0 %v8598
    %v8668 = vpop.f32.mrf.mxu0
    %v8669 = vadd.f32 0.0, %v8668
    %v8670 = vpop.f32.mrf.mxu0
    %v8671 = vpop.f32.mrf.mxu0
    %v8672 = vadd.f32 0.0, %v8671
    %v8673 = vpop.f32.mrf.mxu0
    %8674 = vmatprep.mubr.bf16.mxu0 0
    %8675 = vmatmul.mubr.bf16.gmra.mxu0 %v8599
    %v8676 = vpop.f32.mrf.mxu0
    %v8677 = vadd.f32 0.0, %v8676
    %v8678 = vpop.f32.mrf.mxu0
    %v8679 = vpop.f32.mrf.mxu0
    %v8680 = vadd.f32 0.0, %v8679
    %v8681 = vpop.f32.mrf.mxu0
    %8682 = vmatprep.mubr.bf16.mxu0 0
    %8683 = vmatmul.mubr.bf16.gmra.mxu0 %v8600
    %v8684 = vpop.f32.mrf.mxu0
    %v8685 = vadd.f32 0.0, %v8684
    %v8686 = vpop.f32.mrf.mxu0
    %v8687 = vpop.f32.mrf.mxu0
    %v8688 = vadd.f32 0.0, %v8687
    %v8689 = vpop.f32.mrf.mxu0
    %8690 = vmatprep.mubr.bf16.mxu0 0
    %8691 = vmatmul.mubr.bf16.gmra.mxu0 %v8601
    %v8692 = vpop.f32.mrf.mxu0
    %v8693 = vadd.f32 0.0, %v8692
    %v8694 = vpop.f32.mrf.mxu0
    %v8695 = vpop.f32.mrf.mxu0
    %v8696 = vpop.f32.mrf.mxu0
    %8697 = vdwg.mxu0
    %v8698 = vadd.f32 %v8564, %v8637
    %v8699 = vadd.f32 %v8565, %v8640
    %v8700 = vadd.f32 %v8566, %v8645
    %v8701 = vadd.f32 %v8567, %v8648
    %v8702 = vadd.f32 %v8568, %v8653
    %v8703 = vadd.f32 %v8569, %v8656
    %v8704 = vadd.f32 %v8570, %v8661
    %v8705 = vadd.f32 %v8571, %v8664
    %v8706 = vadd.f32 %v8572, %v8669
    %v8707 = vadd.f32 %v8573, %v8672
    %v8708 = vadd.f32 %v8574, %v8677
    %v8709 = vadd.f32 %v8575, %v8680
    %v8710 = vadd.f32 %v8576, %v8685
    %v8711 = vadd.f32 %v8577, %v8688
    %v8712 = vadd.f32 %v8578, %v8693
    %v8713 = vld [vmem:[#allocation2 + $0x20b] sm:$0xff]
    %v8714 = vld [vmem:[#allocation2 + $0x213] sm:$0xff]
    %v8715 = vld [vmem:[#allocation2 + $0x21b] sm:$0xff]
    %v8716 = vld [vmem:[#allocation2 + $0x223] sm:$0xff]
    %v8717 = vld [vmem:[#allocation2 + $0x22b] sm:$0xff]
    %v8718 = vld [vmem:[#allocation2 + $0x233] sm:$0xff]
    %v8719 = vld [vmem:[#allocation2 + $0x23b] sm:$0xff]
    %v8720 = vld [vmem:[#allocation2 + $0x243] sm:$0xff]
    %v8721 = vld [vmem:[#allocation2 + $0x24b] sm:$0xff]
    %v8722 = vld [vmem:[#allocation2 + $0x253] sm:$0xff]
    %v8723 = vld [vmem:[#allocation2 + $0x25b] sm:$0xff]
    %v8724 = vld [vmem:[#allocation2 + $0x263] sm:$0xff]
    %v8725 = vld [vmem:[#allocation2 + $0x26b] sm:$0xff]
    %v8726 = vld [vmem:[#allocation2 + $0x273] sm:$0xff]
    %v8727 = vld [vmem:[#allocation2 + $0x27b] sm:$0xff]
    %v8728 = vpack.c.bf16 %v8714, %v8713
    %v8729 = vpack.c.bf16 %v8716, %v8715
    %v8730 = vpack.c.bf16 %v8718, %v8717
    %v8731 = vpack.c.bf16 %v8720, %v8719
    %v8732 = vpack.c.bf16 %v8722, %v8721
    %v8733 = vpack.c.bf16 %v8724, %v8723
    %v8734 = vpack.c.bf16 %v8726, %v8725
    %v8735 = vpack.c.bf16 %v8727, %v8727
    %8736 = vmatprep.subr.bf16.mxu0 0
    %8737 = vmatpush1.bf16.msra.mxu0 %v3350
    %8738 = vmatprep.subr.bf16.mxu0 0
    %8739 = vmatpush1.bf16.msra.mxu0 %v3349
    %8740 = vmatprep.subr.bf16.mxu0 0
    %8741 = vmatpush1.bf16.msra.mxu0 %v3348
    %8742 = vmatprep.subr.bf16.mxu0 0
    %8743 = vmatpush1.bf16.msra.mxu0 %v3347
    %8744 = vmatprep.subr.bf16.mxu0 0
    %8745 = vmatpush1.bf16.msra.mxu0 %v3346
    %8746 = vmatprep.subr.bf16.mxu0 0
    %8747 = vmatpush1.bf16.msra.mxu0 %v3345
    %8748 = vmatprep.subr.bf16.mxu0 0
    %8749 = vmatpush1.bf16.msra.mxu0 %v3344
    %8750 = vmatprep.subr.bf16.mxu0 0
    %8751 = vmatpush1.bf16.msra.mxu0 %v3343
    %8752 = vmatprep.subr.bf16.mxu0 0
    %8753 = vmatpush2.bf16.msra.mxu0 0
    %8754 = vmatprep.subr.bf16.mxu0 0
    %8755 = vmatpush2.bf16.msra.mxu0 0
    %8756 = vmatprep.subr.bf16.mxu0 0
    %8757 = vmatpush2.bf16.msra.mxu0 0
    %8758 = vmatprep.subr.bf16.mxu0 0
    %8759 = vmatpush2.bf16.msra.mxu0 0
    %8760 = vmatprep.subr.bf16.mxu0 0
    %8761 = vmatpush2.bf16.msra.mxu0 0
    %8762 = vmatprep.subr.bf16.mxu0 0
    %8763 = vmatpush2.bf16.msra.mxu0 0
    %8764 = vmatprep.subr.bf16.mxu0 0
    %8765 = vmatpush2.bf16.msra.mxu0 0
    %8766 = vmatprep.subr.bf16.mxu0 0
    %8767 = vmatpush2.bf16.msra.mxu0 0
    %8768 = vmatprep.mubr.bf16.mxu0 0
    %8769 = vmatmul.mubr.bf16.gmra.mxu0 %v8728
    %v8770 = vpop.f32.mrf.mxu0
    %v8771 = vadd.f32 0.0, %v8770
    %v8772 = vpop.f32.mrf.mxu0
    %v8773 = vpop.f32.mrf.mxu0
    %v8774 = vadd.f32 0.0, %v8773
    %v8775 = vpop.f32.mrf.mxu0
    %8776 = vmatprep.mubr.bf16.mxu0 0
    %8777 = vmatmul.mubr.bf16.gmra.mxu0 %v8729
    %v8778 = vpop.f32.mrf.mxu0
    %v8779 = vadd.f32 0.0, %v8778
    %v8780 = vpop.f32.mrf.mxu0
    %v8781 = vpop.f32.mrf.mxu0
    %v8782 = vadd.f32 0.0, %v8781
    %v8783 = vpop.f32.mrf.mxu0
    %8784 = vmatprep.mubr.bf16.mxu0 0
    %8785 = vmatmul.mubr.bf16.gmra.mxu0 %v8730
    %v8786 = vpop.f32.mrf.mxu0
    %v8787 = vadd.f32 0.0, %v8786
    %v8788 = vpop.f32.mrf.mxu0
    %v8789 = vpop.f32.mrf.mxu0
    %v8790 = vadd.f32 0.0, %v8789
    %v8791 = vpop.f32.mrf.mxu0
    %8792 = vmatprep.mubr.bf16.mxu0 0
    %8793 = vmatmul.mubr.bf16.gmra.mxu0 %v8731
    %v8794 = vpop.f32.mrf.mxu0
    %v8795 = vadd.f32 0.0, %v8794
    %v8796 = vpop.f32.mrf.mxu0
    %v8797 = vpop.f32.mrf.mxu0
    %v8798 = vadd.f32 0.0, %v8797
    %v8799 = vpop.f32.mrf.mxu0
    %8800 = vmatprep.mubr.bf16.mxu0 0
    %8801 = vmatmul.mubr.bf16.gmra.mxu0 %v8732
    %v8802 = vpop.f32.mrf.mxu0
    %v8803 = vadd.f32 0.0, %v8802
    %v8804 = vpop.f32.mrf.mxu0
    %v8805 = vpop.f32.mrf.mxu0
    %v8806 = vadd.f32 0.0, %v8805
    %v8807 = vpop.f32.mrf.mxu0
    %8808 = vmatprep.mubr.bf16.mxu0 0
    %8809 = vmatmul.mubr.bf16.gmra.mxu0 %v8733
    %v8810 = vpop.f32.mrf.mxu0
    %v8811 = vadd.f32 0.0, %v8810
    %v8812 = vpop.f32.mrf.mxu0
    %v8813 = vpop.f32.mrf.mxu0
    %v8814 = vadd.f32 0.0, %v8813
    %v8815 = vpop.f32.mrf.mxu0
    %8816 = vmatprep.mubr.bf16.mxu0 0
    %8817 = vmatmul.mubr.bf16.gmra.mxu0 %v8734
    %v8818 = vpop.f32.mrf.mxu0
    %v8819 = vadd.f32 0.0, %v8818
    %v8820 = vpop.f32.mrf.mxu0
    %v8821 = vpop.f32.mrf.mxu0
    %v8822 = vadd.f32 0.0, %v8821
    %v8823 = vpop.f32.mrf.mxu0
    %8824 = vmatprep.mubr.bf16.mxu0 0
    %8825 = vmatmul.mubr.bf16.gmra.mxu0 %v8735
    %v8826 = vpop.f32.mrf.mxu0
    %v8827 = vadd.f32 0.0, %v8826
    %v8828 = vpop.f32.mrf.mxu0
    %v8829 = vpop.f32.mrf.mxu0
    %v8830 = vpop.f32.mrf.mxu0
    %8831 = vdwg.mxu0
    %v8832 = vadd.f32 %v8698, %v8771
    %v8833 = vadd.f32 %v8699, %v8774
    %v8834 = vadd.f32 %v8700, %v8779
    %v8835 = vadd.f32 %v8701, %v8782
    %v8836 = vadd.f32 %v8702, %v8787
    %v8837 = vadd.f32 %v8703, %v8790
    %v8838 = vadd.f32 %v8704, %v8795
    %v8839 = vadd.f32 %v8705, %v8798
    %v8840 = vadd.f32 %v8706, %v8803
    %v8841 = vadd.f32 %v8707, %v8806
    %v8842 = vadd.f32 %v8708, %v8811
    %v8843 = vadd.f32 %v8709, %v8814
    %v8844 = vadd.f32 %v8710, %v8819
    %v8845 = vadd.f32 %v8711, %v8822
    %v8846 = vadd.f32 %v8712, %v8827
    %v8847 = vld [vmem:[#allocation2 + $0x20c] sm:$0xff]
    %v8848 = vld [vmem:[#allocation2 + $0x214] sm:$0xff]
    %v8849 = vld [vmem:[#allocation2 + $0x21c] sm:$0xff]
    %v8850 = vld [vmem:[#allocation2 + $0x224] sm:$0xff]
    %v8851 = vld [vmem:[#allocation2 + $0x22c] sm:$0xff]
    %v8852 = vld [vmem:[#allocation2 + $0x234] sm:$0xff]
    %v8853 = vld [vmem:[#allocation2 + $0x23c] sm:$0xff]
    %v8854 = vld [vmem:[#allocation2 + $0x244] sm:$0xff]
    %v8855 = vld [vmem:[#allocation2 + $0x24c] sm:$0xff]
    %v8856 = vld [vmem:[#allocation2 + $0x254] sm:$0xff]
    %v8857 = vld [vmem:[#allocation2 + $0x25c] sm:$0xff]
    %v8858 = vld [vmem:[#allocation2 + $0x264] sm:$0xff]
    %v8859 = vld [vmem:[#allocation2 + $0x26c] sm:$0xff]
    %v8860 = vld [vmem:[#allocation2 + $0x274] sm:$0xff]
    %v8861 = vld [vmem:[#allocation2 + $0x27c] sm:$0xff]
    %v8862 = vpack.c.bf16 %v8848, %v8847
    %v8863 = vpack.c.bf16 %v8850, %v8849
    %v8864 = vpack.c.bf16 %v8852, %v8851
    %v8865 = vpack.c.bf16 %v8854, %v8853
    %v8866 = vpack.c.bf16 %v8856, %v8855
    %v8867 = vpack.c.bf16 %v8858, %v8857
    %v8868 = vpack.c.bf16 %v8860, %v8859
    %v8869 = vpack.c.bf16 %v8861, %v8861
    %8870 = vmatprep.subr.bf16.mxu0 0
    %8871 = vmatpush1.bf16.msra.mxu0 %v3548
    %8872 = vmatprep.subr.bf16.mxu0 0
    %8873 = vmatpush1.bf16.msra.mxu0 %v3547
    %8874 = vmatprep.subr.bf16.mxu0 0
    %8875 = vmatpush1.bf16.msra.mxu0 %v3546
    %8876 = vmatprep.subr.bf16.mxu0 0
    %8877 = vmatpush1.bf16.msra.mxu0 %v3545
    %8878 = vmatprep.subr.bf16.mxu0 0
    %8879 = vmatpush1.bf16.msra.mxu0 %v3544
    %8880 = vmatprep.subr.bf16.mxu0 0
    %8881 = vmatpush1.bf16.msra.mxu0 %v3543
    %8882 = vmatprep.subr.bf16.mxu0 0
    %8883 = vmatpush1.bf16.msra.mxu0 %v3542
    %8884 = vmatprep.subr.bf16.mxu0 0
    %8885 = vmatpush1.bf16.msra.mxu0 %v3541
    %8886 = vmatprep.subr.bf16.mxu0 0
    %8887 = vmatpush2.bf16.msra.mxu0 0
    %8888 = vmatprep.subr.bf16.mxu0 0
    %8889 = vmatpush2.bf16.msra.mxu0 0
    %8890 = vmatprep.subr.bf16.mxu0 0
    %8891 = vmatpush2.bf16.msra.mxu0 0
    %8892 = vmatprep.subr.bf16.mxu0 0
    %8893 = vmatpush2.bf16.msra.mxu0 0
    %8894 = vmatprep.subr.bf16.mxu0 0
    %8895 = vmatpush2.bf16.msra.mxu0 0
    %8896 = vmatprep.subr.bf16.mxu0 0
    %8897 = vmatpush2.bf16.msra.mxu0 0
    %8898 = vmatprep.subr.bf16.mxu0 0
    %8899 = vmatpush2.bf16.msra.mxu0 0
    %8900 = vmatprep.subr.bf16.mxu0 0
    %8901 = vmatpush2.bf16.msra.mxu0 0
    %8902 = vmatprep.mubr.bf16.mxu0 0
    %8903 = vmatmul.mubr.bf16.gmra.mxu0 %v8862
    %v8904 = vpop.f32.mrf.mxu0
    %v8905 = vadd.f32 0.0, %v8904
    %v8906 = vpop.f32.mrf.mxu0
    %v8907 = vpop.f32.mrf.mxu0
    %v8908 = vadd.f32 0.0, %v8907
    %v8909 = vpop.f32.mrf.mxu0
    %8910 = vmatprep.mubr.bf16.mxu0 0
    %8911 = vmatmul.mubr.bf16.gmra.mxu0 %v8863
    %v8912 = vpop.f32.mrf.mxu0
    %v8913 = vadd.f32 0.0, %v8912
    %v8914 = vpop.f32.mrf.mxu0
    %v8915 = vpop.f32.mrf.mxu0
    %v8916 = vadd.f32 0.0, %v8915
    %v8917 = vpop.f32.mrf.mxu0
    %8918 = vmatprep.mubr.bf16.mxu0 0
    %8919 = vmatmul.mubr.bf16.gmra.mxu0 %v8864
    %v8920 = vpop.f32.mrf.mxu0
    %v8921 = vadd.f32 0.0, %v8920
    %v8922 = vpop.f32.mrf.mxu0
    %v8923 = vpop.f32.mrf.mxu0
    %v8924 = vadd.f32 0.0, %v8923
    %v8925 = vpop.f32.mrf.mxu0
    %8926 = vmatprep.mubr.bf16.mxu0 0
    %8927 = vmatmul.mubr.bf16.gmra.mxu0 %v8865
    %v8928 = vpop.f32.mrf.mxu0
    %v8929 = vadd.f32 0.0, %v8928
    %v8930 = vpop.f32.mrf.mxu0
    %v8931 = vpop.f32.mrf.mxu0
    %v8932 = vadd.f32 0.0, %v8931
    %v8933 = vpop.f32.mrf.mxu0
    %8934 = vmatprep.mubr.bf16.mxu0 0
    %8935 = vmatmul.mubr.bf16.gmra.mxu0 %v8866
    %v8936 = vpop.f32.mrf.mxu0
    %v8937 = vadd.f32 0.0, %v8936
    %v8938 = vpop.f32.mrf.mxu0
    %v8939 = vpop.f32.mrf.mxu0
    %v8940 = vadd.f32 0.0, %v8939
    %v8941 = vpop.f32.mrf.mxu0
    %8942 = vmatprep.mubr.bf16.mxu0 0
    %8943 = vmatmul.mubr.bf16.gmra.mxu0 %v8867
    %v8944 = vpop.f32.mrf.mxu0
    %v8945 = vadd.f32 0.0, %v8944
    %v8946 = vpop.f32.mrf.mxu0
    %v8947 = vpop.f32.mrf.mxu0
    %v8948 = vadd.f32 0.0, %v8947
    %v8949 = vpop.f32.mrf.mxu0
    %8950 = vmatprep.mubr.bf16.mxu0 0
    %8951 = vmatmul.mubr.bf16.gmra.mxu0 %v8868
    %v8952 = vpop.f32.mrf.mxu0
    %v8953 = vadd.f32 0.0, %v8952
    %v8954 = vpop.f32.mrf.mxu0
    %v8955 = vpop.f32.mrf.mxu0
    %v8956 = vadd.f32 0.0, %v8955
    %v8957 = vpop.f32.mrf.mxu0
    %8958 = vmatprep.mubr.bf16.mxu0 0
    %8959 = vmatmul.mubr.bf16.gmra.mxu0 %v8869
    %v8960 = vpop.f32.mrf.mxu0
    %v8961 = vadd.f32 0.0, %v8960
    %v8962 = vpop.f32.mrf.mxu0
    %v8963 = vpop.f32.mrf.mxu0
    %v8964 = vpop.f32.mrf.mxu0
    %8965 = vdwg.mxu0
    %v8966 = vadd.f32 %v8832, %v8905
    %v8967 = vadd.f32 %v8833, %v8908
    %v8968 = vadd.f32 %v8834, %v8913
    %v8969 = vadd.f32 %v8835, %v8916
    %v8970 = vadd.f32 %v8836, %v8921
    %v8971 = vadd.f32 %v8837, %v8924
    %v8972 = vadd.f32 %v8838, %v8929
    %v8973 = vadd.f32 %v8839, %v8932
    %v8974 = vadd.f32 %v8840, %v8937
    %v8975 = vadd.f32 %v8841, %v8940
    %v8976 = vadd.f32 %v8842, %v8945
    %v8977 = vadd.f32 %v8843, %v8948
    %v8978 = vadd.f32 %v8844, %v8953
    %v8979 = vadd.f32 %v8845, %v8956
    %v8980 = vadd.f32 %v8846, %v8961
    %v8981 = vld [vmem:[#allocation2 + $0x20d] sm:$0xff]
    %v8982 = vld [vmem:[#allocation2 + $0x215] sm:$0xff]
    %v8983 = vld [vmem:[#allocation2 + $0x21d] sm:$0xff]
    %v8984 = vld [vmem:[#allocation2 + $0x225] sm:$0xff]
    %v8985 = vld [vmem:[#allocation2 + $0x22d] sm:$0xff]
    %v8986 = vld [vmem:[#allocation2 + $0x235] sm:$0xff]
    %v8987 = vld [vmem:[#allocation2 + $0x23d] sm:$0xff]
    %v8988 = vld [vmem:[#allocation2 + $0x245] sm:$0xff]
    %v8989 = vld [vmem:[#allocation2 + $0x24d] sm:$0xff]
    %v8990 = vld [vmem:[#allocation2 + $0x255] sm:$0xff]
    %v8991 = vld [vmem:[#allocation2 + $0x25d] sm:$0xff]
    %v8992 = vld [vmem:[#allocation2 + $0x265] sm:$0xff]
    %v8993 = vld [vmem:[#allocation2 + $0x26d] sm:$0xff]
    %v8994 = vld [vmem:[#allocation2 + $0x275] sm:$0xff]
    %v8995 = vld [vmem:[#allocation2 + $0x27d] sm:$0xff]
    %v8996 = vpack.c.bf16 %v8982, %v8981
    %v8997 = vpack.c.bf16 %v8984, %v8983
    %v8998 = vpack.c.bf16 %v8986, %v8985
    %v8999 = vpack.c.bf16 %v8988, %v8987
    %v9000 = vpack.c.bf16 %v8990, %v8989
    %v9001 = vpack.c.bf16 %v8992, %v8991
    %v9002 = vpack.c.bf16 %v8994, %v8993
    %v9003 = vpack.c.bf16 %v8995, %v8995
    %9004 = vmatprep.subr.bf16.mxu0 0
    %9005 = vmatpush1.bf16.msra.mxu0 %v3746
    %9006 = vmatprep.subr.bf16.mxu0 0
    %9007 = vmatpush1.bf16.msra.mxu0 %v3745
    %9008 = vmatprep.subr.bf16.mxu0 0
    %9009 = vmatpush1.bf16.msra.mxu0 %v3744
    %9010 = vmatprep.subr.bf16.mxu0 0
    %9011 = vmatpush1.bf16.msra.mxu0 %v3743
    %9012 = vmatprep.subr.bf16.mxu0 0
    %9013 = vmatpush1.bf16.msra.mxu0 %v3742
    %9014 = vmatprep.subr.bf16.mxu0 0
    %9015 = vmatpush1.bf16.msra.mxu0 %v3741
    %9016 = vmatprep.subr.bf16.mxu0 0
    %9017 = vmatpush1.bf16.msra.mxu0 %v3740
    %9018 = vmatprep.subr.bf16.mxu0 0
    %9019 = vmatpush1.bf16.msra.mxu0 %v3739
    %9020 = vmatprep.subr.bf16.mxu0 0
    %9021 = vmatpush2.bf16.msra.mxu0 0
    %9022 = vmatprep.subr.bf16.mxu0 0
    %9023 = vmatpush2.bf16.msra.mxu0 0
    %9024 = vmatprep.subr.bf16.mxu0 0
    %9025 = vmatpush2.bf16.msra.mxu0 0
    %9026 = vmatprep.subr.bf16.mxu0 0
    %9027 = vmatpush2.bf16.msra.mxu0 0
    %9028 = vmatprep.subr.bf16.mxu0 0
    %9029 = vmatpush2.bf16.msra.mxu0 0
    %9030 = vmatprep.subr.bf16.mxu0 0
    %9031 = vmatpush2.bf16.msra.mxu0 0
    %9032 = vmatprep.subr.bf16.mxu0 0
    %9033 = vmatpush2.bf16.msra.mxu0 0
    %9034 = vmatprep.subr.bf16.mxu0 0
    %9035 = vmatpush2.bf16.msra.mxu0 0
    %9036 = vmatprep.mubr.bf16.mxu0 0
    %9037 = vmatmul.mubr.bf16.gmra.mxu0 %v8996
    %v9038 = vpop.f32.mrf.mxu0
    %v9039 = vadd.f32 0.0, %v9038
    %v9040 = vpop.f32.mrf.mxu0
    %v9041 = vpop.f32.mrf.mxu0
    %v9042 = vadd.f32 0.0, %v9041
    %v9043 = vpop.f32.mrf.mxu0
    %9044 = vmatprep.mubr.bf16.mxu0 0
    %9045 = vmatmul.mubr.bf16.gmra.mxu0 %v8997
    %v9046 = vpop.f32.mrf.mxu0
    %v9047 = vadd.f32 0.0, %v9046
    %v9048 = vpop.f32.mrf.mxu0
    %v9049 = vpop.f32.mrf.mxu0
    %v9050 = vadd.f32 0.0, %v9049
    %v9051 = vpop.f32.mrf.mxu0
    %9052 = vmatprep.mubr.bf16.mxu0 0
    %9053 = vmatmul.mubr.bf16.gmra.mxu0 %v8998
    %v9054 = vpop.f32.mrf.mxu0
    %v9055 = vadd.f32 0.0, %v9054
    %v9056 = vpop.f32.mrf.mxu0
    %v9057 = vpop.f32.mrf.mxu0
    %v9058 = vadd.f32 0.0, %v9057
    %v9059 = vpop.f32.mrf.mxu0
    %9060 = vmatprep.mubr.bf16.mxu0 0
    %9061 = vmatmul.mubr.bf16.gmra.mxu0 %v8999
    %v9062 = vpop.f32.mrf.mxu0
    %v9063 = vadd.f32 0.0, %v9062
    %v9064 = vpop.f32.mrf.mxu0
    %v9065 = vpop.f32.mrf.mxu0
    %v9066 = vadd.f32 0.0, %v9065
    %v9067 = vpop.f32.mrf.mxu0
    %9068 = vmatprep.mubr.bf16.mxu0 0
    %9069 = vmatmul.mubr.bf16.gmra.mxu0 %v9000
    %v9070 = vpop.f32.mrf.mxu0
    %v9071 = vadd.f32 0.0, %v9070
    %v9072 = vpop.f32.mrf.mxu0
    %v9073 = vpop.f32.mrf.mxu0
    %v9074 = vadd.f32 0.0, %v9073
    %v9075 = vpop.f32.mrf.mxu0
    %9076 = vmatprep.mubr.bf16.mxu0 0
    %9077 = vmatmul.mubr.bf16.gmra.mxu0 %v9001
    %v9078 = vpop.f32.mrf.mxu0
    %v9079 = vadd.f32 0.0, %v9078
    %v9080 = vpop.f32.mrf.mxu0
    %v9081 = vpop.f32.mrf.mxu0
    %v9082 = vadd.f32 0.0, %v9081
    %v9083 = vpop.f32.mrf.mxu0
    %9084 = vmatprep.mubr.bf16.mxu0 0
    %9085 = vmatmul.mubr.bf16.gmra.mxu0 %v9002
    %v9086 = vpop.f32.mrf.mxu0
    %v9087 = vadd.f32 0.0, %v9086
    %v9088 = vpop.f32.mrf.mxu0
    %v9089 = vpop.f32.mrf.mxu0
    %v9090 = vadd.f32 0.0, %v9089
    %v9091 = vpop.f32.mrf.mxu0
    %9092 = vmatprep.mubr.bf16.mxu0 0
    %9093 = vmatmul.mubr.bf16.gmra.mxu0 %v9003
    %v9094 = vpop.f32.mrf.mxu0
    %v9095 = vadd.f32 0.0, %v9094
    %v9096 = vpop.f32.mrf.mxu0
    %v9097 = vpop.f32.mrf.mxu0
    %v9098 = vpop.f32.mrf.mxu0
    %9099 = vdwg.mxu0
    %v9100 = vadd.f32 %v8966, %v9039
    %v9101 = vadd.f32 %v8967, %v9042
    %v9102 = vadd.f32 %v8968, %v9047
    %v9103 = vadd.f32 %v8969, %v9050
    %v9104 = vadd.f32 %v8970, %v9055
    %v9105 = vadd.f32 %v8971, %v9058
    %v9106 = vadd.f32 %v8972, %v9063
    %v9107 = vadd.f32 %v8973, %v9066
    %v9108 = vadd.f32 %v8974, %v9071
    %v9109 = vadd.f32 %v8975, %v9074
    %v9110 = vadd.f32 %v8976, %v9079
    %v9111 = vadd.f32 %v8977, %v9082
    %v9112 = vadd.f32 %v8978, %v9087
    %v9113 = vadd.f32 %v8979, %v9090
    %v9114 = vadd.f32 %v8980, %v9095
    %v9115 = vadd.f32 %v9100, %v3871
    %v9116 = vadd.f32 %v9101, %v3871
    %v9117 = vadd.f32 %v9102, %v3871
    %v9118 = vadd.f32 %v9103, %v3871
    %v9119 = vadd.f32 %v9104, %v3871
    %v9120 = vadd.f32 %v9105, %v3871
    %v9121 = vadd.f32 %v9106, %v3871
    %v9122 = vadd.f32 %v9107, %v3871
    %v9123 = vadd.f32 %v9108, %v3871
    %v9124 = vadd.f32 %v9109, %v3871
    %v9125 = vadd.f32 %v9110, %v3871
    %v9126 = vadd.f32 %v9111, %v3871
    %v9127 = vadd.f32 %v9112, %v3871
    %v9128 = vadd.f32 %v9113, %v3871
    %v9129 = vadd.f32 %v9114, %v3871
    %v9130 = vmax.f32 %v9115, 0.0
    %v9131 = vmax.f32 %v9116, 0.0
    %v9132 = vmax.f32 %v9117, 0.0
    %v9133 = vmax.f32 %v9118, 0.0
    %v9134 = vmax.f32 %v9119, 0.0
    %v9135 = vmax.f32 %v9120, 0.0
    %v9136 = vmax.f32 %v9121, 0.0
    %v9137 = vmax.f32 %v9122, 0.0
    %v9138 = vmax.f32 %v9123, 0.0
    %v9139 = vmax.f32 %v9124, 0.0
    %v9140 = vmax.f32 %v9125, 0.0
    %v9141 = vmax.f32 %v9126, 0.0
    %v9142 = vmax.f32 %v9127, 0.0
    %v9143 = vmax.f32 %v9128, 0.0
    %v9144 = vmax.f32 %v9129, 0.0
    %v9145 = vmul.f32 %v9130, %v5254
    %v9146 = vmul.f32 %v9131, %v5259
    %v9147 = vmul.f32 %v9132, %v5264
    %v9148 = vmul.f32 %v9133, %v5269
    %v9149 = vmul.f32 %v9134, %v5274
    %v9150 = vmul.f32 %v9135, %v5279
    %v9151 = vmul.f32 %v9136, %v5284
    %v9152 = vmul.f32 %v9137, %v5289
    %v9153 = vmul.f32 %v9138, %v5294
    %v9154 = vmul.f32 %v9139, %v5299
    %v9155 = vmul.f32 %v9140, %v5304
    %v9156 = vmul.f32 %v9141, %v5309
    %v9157 = vmul.f32 %v9142, %v5314
    %v9158 = vmul.f32 %v9143, %v5319
    %v9159 = vmul.f32 %v9144, %v5324
    %v9160 = vadd.f32 %v9145, %v9146
    %v9161 = vadd.f32 %v9160, %v9147
    %v9162 = vadd.f32 %v9161, %v9148
    %v9163 = vadd.f32 %v9162, %v9149
    %v9164 = vadd.f32 %v9163, %v9150
    %v9165 = vadd.f32 %v9164, %v9151
    %v9166 = vadd.f32 %v9165, %v9152
    %v9167 = vadd.f32 %v9166, %v9153
    %v9168 = vadd.f32 %v9167, %v9154
    %v9169 = vadd.f32 %v9168, %v9155
    %v9170 = vadd.f32 %v9169, %v9156
    %v9171 = vadd.f32 %v9170, %v9157
    %v9172 = vadd.f32 %v9171, %v9158
    %v9173 = vadd.f32 %v9172, %v9159
    %v9174 = vrot.slane %v9173, 4
    %v9175 = vadd.f32 %v9173, %v9174
    %v9176 = vrot.slane %v9175, 2
    %v9177 = vadd.f32 %v9175, %v9176
    %v9178 = vrot.slane %v9177, 1
    %v9179 = vadd.f32 %v9177, %v9178
    %v9180 = vmul.f32 %v9179, 0.00390625
    %v9181 = vadd.f32 %v7938, %v9180
    %v9182 = vld [vmem:[#allocation2 + $0x25b] sm:$0xff]
    %v9183 = vld [vmem:[#allocation2 + $0x263] sm:$0xff]
    %v9184 = vld [vmem:[#allocation2 + $0x26b] sm:$0xff]
    %v9185 = vld [vmem:[#allocation2 + $0x273] sm:$0xff]
    %v9186 = vld [vmem:[#allocation2 + $0x27b] sm:$0xff]
    %v9187 = vld [vmem:[#allocation2 + $0x283] sm:$0xff]
    %v9188 = vld [vmem:[#allocation2 + $0x28b] sm:$0xff]
    %v9189 = vld [vmem:[#allocation2 + $0x293] sm:$0xff]
    %v9190 = vld [vmem:[#allocation2 + $0x29b] sm:$0xff]
    %v9191 = vld [vmem:[#allocation2 + $0x2a3] sm:$0xff]
    %v9192 = vld [vmem:[#allocation2 + $0x2ab] sm:$0xff]
    %v9193 = vld [vmem:[#allocation2 + $0x2b3] sm:$0xff]
    %v9194 = vld [vmem:[#allocation2 + $0x2bb] sm:$0xff]
    %v9195 = vld [vmem:[#allocation2 + $0x2c3] sm:$0xff]
    %v9196 = vld [vmem:[#allocation2 + $0x2cb] sm:$0xff]
    %v9197 = vpack.c.bf16 %v9183, %v9182
    %v9198 = vpack.c.bf16 %v9185, %v9184
    %v9199 = vpack.c.bf16 %v9187, %v9186
    %v9200 = vpack.c.bf16 %v9189, %v9188
    %v9201 = vpack.c.bf16 %v9191, %v9190
    %v9202 = vpack.c.bf16 %v9193, %v9192
    %v9203 = vpack.c.bf16 %v9195, %v9194
    %v9204 = vpack.c.bf16 %v9196, %v9196
    %v9205 = vld [vmem:[#allocation2 + $0x25c] sm:$0xff]
    %v9206 = vld [vmem:[#allocation2 + $0x264] sm:$0xff]
    %v9207 = vld [vmem:[#allocation2 + $0x26c] sm:$0xff]
    %v9208 = vld [vmem:[#allocation2 + $0x274] sm:$0xff]
    %v9209 = vld [vmem:[#allocation2 + $0x27c] sm:$0xff]
    %v9210 = vld [vmem:[#allocation2 + $0x284] sm:$0xff]
    %v9211 = vld [vmem:[#allocation2 + $0x28c] sm:$0xff]
    %v9212 = vld [vmem:[#allocation2 + $0x294] sm:$0xff]
    %v9213 = vld [vmem:[#allocation2 + $0x29c] sm:$0xff]
    %v9214 = vld [vmem:[#allocation2 + $0x2a4] sm:$0xff]
    %v9215 = vld [vmem:[#allocation2 + $0x2ac] sm:$0xff]
    %v9216 = vld [vmem:[#allocation2 + $0x2b4] sm:$0xff]
    %v9217 = vld [vmem:[#allocation2 + $0x2bc] sm:$0xff]
    %v9218 = vld [vmem:[#allocation2 + $0x2c4] sm:$0xff]
    %v9219 = vld [vmem:[#allocation2 + $0x2cc] sm:$0xff]
    %v9220 = vpack.c.bf16 %v9206, %v9205
    %v9221 = vpack.c.bf16 %v9208, %v9207
    %v9222 = vpack.c.bf16 %v9210, %v9209
    %v9223 = vpack.c.bf16 %v9212, %v9211
    %v9224 = vpack.c.bf16 %v9214, %v9213
    %v9225 = vpack.c.bf16 %v9216, %v9215
    %v9226 = vpack.c.bf16 %v9218, %v9217
    %v9227 = vpack.c.bf16 %v9219, %v9219
    %9228 = vmatprep.subr.bf16.mxu0 0
    %9229 = vmatpush1.bf16.msra.mxu0 %v2231
    %9230 = vmatprep.subr.bf16.mxu0 0
    %9231 = vmatpush1.bf16.msra.mxu0 %v2230
    %9232 = vmatprep.subr.bf16.mxu0 0
    %9233 = vmatpush1.bf16.msra.mxu0 %v2229
    %9234 = vmatprep.subr.bf16.mxu0 0
    %9235 = vmatpush1.bf16.msra.mxu0 %v2228
    %9236 = vmatprep.subr.bf16.mxu0 0
    %9237 = vmatpush1.bf16.msra.mxu0 %v2227
    %9238 = vmatprep.subr.bf16.mxu0 0
    %9239 = vmatpush1.bf16.msra.mxu0 %v2226
    %9240 = vmatprep.subr.bf16.mxu0 0
    %9241 = vmatpush1.bf16.msra.mxu0 %v2225
    %9242 = vmatprep.subr.bf16.mxu0 0
    %9243 = vmatpush1.bf16.msra.mxu0 %v2224
    %9244 = vmatprep.subr.bf16.mxu0 0
    %9245 = vmatpush2.bf16.msra.mxu0 0
    %9246 = vmatprep.subr.bf16.mxu0 0
    %9247 = vmatpush2.bf16.msra.mxu0 0
    %9248 = vmatprep.subr.bf16.mxu0 0
    %9249 = vmatpush2.bf16.msra.mxu0 0
    %9250 = vmatprep.subr.bf16.mxu0 0
    %9251 = vmatpush2.bf16.msra.mxu0 0
    %9252 = vmatprep.subr.bf16.mxu0 0
    %9253 = vmatpush2.bf16.msra.mxu0 0
    %9254 = vmatprep.subr.bf16.mxu0 0
    %9255 = vmatpush2.bf16.msra.mxu0 0
    %9256 = vmatprep.subr.bf16.mxu0 0
    %9257 = vmatpush2.bf16.msra.mxu0 0
    %9258 = vmatprep.subr.bf16.mxu0 0
    %9259 = vmatpush2.bf16.msra.mxu0 0
    %9260 = vmatprep.mubr.bf16.mxu0 0
    %9261 = vmatmul.mubr.bf16.gmra.mxu0 %v9220
    %v9262 = vpop.f32.mrf.mxu0
    %v9263 = vadd.f32 0.0, %v9262
    %v9264 = vpop.f32.mrf.mxu0
    %v9265 = vpop.f32.mrf.mxu0
    %v9266 = vadd.f32 0.0, %v9265
    %v9267 = vpop.f32.mrf.mxu0
    %9268 = vmatprep.mubr.bf16.mxu0 0
    %9269 = vmatmul.mubr.bf16.gmra.mxu0 %v9221
    %v9270 = vpop.f32.mrf.mxu0
    %v9271 = vadd.f32 0.0, %v9270
    %v9272 = vpop.f32.mrf.mxu0
    %v9273 = vpop.f32.mrf.mxu0
    %v9274 = vadd.f32 0.0, %v9273
    %v9275 = vpop.f32.mrf.mxu0
    %9276 = vmatprep.mubr.bf16.mxu0 0
    %9277 = vmatmul.mubr.bf16.gmra.mxu0 %v9222
    %v9278 = vpop.f32.mrf.mxu0
    %v9279 = vadd.f32 0.0, %v9278
    %v9280 = vpop.f32.mrf.mxu0
    %v9281 = vpop.f32.mrf.mxu0
    %v9282 = vadd.f32 0.0, %v9281
    %v9283 = vpop.f32.mrf.mxu0
    %9284 = vmatprep.mubr.bf16.mxu0 0
    %9285 = vmatmul.mubr.bf16.gmra.mxu0 %v9223
    %v9286 = vpop.f32.mrf.mxu0
    %v9287 = vadd.f32 0.0, %v9286
    %v9288 = vpop.f32.mrf.mxu0
    %v9289 = vpop.f32.mrf.mxu0
    %v9290 = vadd.f32 0.0, %v9289
    %v9291 = vpop.f32.mrf.mxu0
    %9292 = vmatprep.mubr.bf16.mxu0 0
    %9293 = vmatmul.mubr.bf16.gmra.mxu0 %v9224
    %v9294 = vpop.f32.mrf.mxu0
    %v9295 = vadd.f32 0.0, %v9294
    %v9296 = vpop.f32.mrf.mxu0
    %v9297 = vpop.f32.mrf.mxu0
    %v9298 = vadd.f32 0.0, %v9297
    %v9299 = vpop.f32.mrf.mxu0
    %9300 = vmatprep.mubr.bf16.mxu0 0
    %9301 = vmatmul.mubr.bf16.gmra.mxu0 %v9225
    %v9302 = vpop.f32.mrf.mxu0
    %v9303 = vadd.f32 0.0, %v9302
    %v9304 = vpop.f32.mrf.mxu0
    %v9305 = vpop.f32.mrf.mxu0
    %v9306 = vadd.f32 0.0, %v9305
    %v9307 = vpop.f32.mrf.mxu0
    %9308 = vmatprep.mubr.bf16.mxu0 0
    %9309 = vmatmul.mubr.bf16.gmra.mxu0 %v9226
    %v9310 = vpop.f32.mrf.mxu0
    %v9311 = vadd.f32 0.0, %v9310
    %v9312 = vpop.f32.mrf.mxu0
    %v9313 = vpop.f32.mrf.mxu0
    %v9314 = vadd.f32 0.0, %v9313
    %v9315 = vpop.f32.mrf.mxu0
    %9316 = vmatprep.mubr.bf16.mxu0 0
    %9317 = vmatmul.mubr.bf16.gmra.mxu0 %v9227
    %v9318 = vpop.f32.mrf.mxu0
    %v9319 = vadd.f32 0.0, %v9318
    %v9320 = vpop.f32.mrf.mxu0
    %v9321 = vpop.f32.mrf.mxu0
    %v9322 = vpop.f32.mrf.mxu0
    %9323 = vdwg.mxu0
    %9324 = vmatprep.subr.bf16.mxu0 0
    %9325 = vmatpush1.bf16.msra.mxu0 %v2375
    %9326 = vmatprep.subr.bf16.mxu0 0
    %9327 = vmatpush1.bf16.msra.mxu0 %v2374
    %9328 = vmatprep.subr.bf16.mxu0 0
    %9329 = vmatpush1.bf16.msra.mxu0 %v2373
    %9330 = vmatprep.subr.bf16.mxu0 0
    %9331 = vmatpush1.bf16.msra.mxu0 %v2372
    %9332 = vmatprep.subr.bf16.mxu0 0
    %9333 = vmatpush1.bf16.msra.mxu0 %v2371
    %9334 = vmatprep.subr.bf16.mxu0 0
    %9335 = vmatpush1.bf16.msra.mxu0 %v2370
    %9336 = vmatprep.subr.bf16.mxu0 0
    %9337 = vmatpush1.bf16.msra.mxu0 %v2369
    %9338 = vmatprep.subr.bf16.mxu0 0
    %9339 = vmatpush1.bf16.msra.mxu0 %v2368
    %9340 = vmatprep.subr.bf16.mxu0 0
    %9341 = vmatpush2.bf16.msra.mxu0 0
    %9342 = vmatprep.subr.bf16.mxu0 0
    %9343 = vmatpush2.bf16.msra.mxu0 0
    %9344 = vmatprep.subr.bf16.mxu0 0
    %9345 = vmatpush2.bf16.msra.mxu0 0
    %9346 = vmatprep.subr.bf16.mxu0 0
    %9347 = vmatpush2.bf16.msra.mxu0 0
    %9348 = vmatprep.subr.bf16.mxu0 0
    %9349 = vmatpush2.bf16.msra.mxu0 0
    %9350 = vmatprep.subr.bf16.mxu0 0
    %9351 = vmatpush2.bf16.msra.mxu0 0
    %9352 = vmatprep.subr.bf16.mxu0 0
    %9353 = vmatpush2.bf16.msra.mxu0 0
    %9354 = vmatprep.subr.bf16.mxu0 0
    %9355 = vmatpush2.bf16.msra.mxu0 0
    %9356 = vmatprep.mubr.bf16.mxu0 0
    %9357 = vmatmul.mubr.bf16.gmra.mxu0 %v9197
    %v9358 = vpop.f32.mrf.mxu0
    %v9359 = vadd.f32 %v9263, %v9358
    %v9360 = vpop.f32.mrf.mxu0
    %v9361 = vpop.f32.mrf.mxu0
    %v9362 = vadd.f32 %v9266, %v9361
    %v9363 = vpop.f32.mrf.mxu0
    %9364 = vmatprep.mubr.bf16.mxu0 0
    %9365 = vmatmul.mubr.bf16.gmra.mxu0 %v9198
    %v9366 = vpop.f32.mrf.mxu0
    %v9367 = vadd.f32 %v9271, %v9366
    %v9368 = vpop.f32.mrf.mxu0
    %v9369 = vpop.f32.mrf.mxu0
    %v9370 = vadd.f32 %v9274, %v9369
    %v9371 = vpop.f32.mrf.mxu0
    %9372 = vmatprep.mubr.bf16.mxu0 0
    %9373 = vmatmul.mubr.bf16.gmra.mxu0 %v9199
    %v9374 = vpop.f32.mrf.mxu0
    %v9375 = vadd.f32 %v9279, %v9374
    %v9376 = vpop.f32.mrf.mxu0
    %v9377 = vpop.f32.mrf.mxu0
    %v9378 = vadd.f32 %v9282, %v9377
    %v9379 = vpop.f32.mrf.mxu0
    %9380 = vmatprep.mubr.bf16.mxu0 0
    %9381 = vmatmul.mubr.bf16.gmra.mxu0 %v9200
    %v9382 = vpop.f32.mrf.mxu0
    %v9383 = vadd.f32 %v9287, %v9382
    %v9384 = vpop.f32.mrf.mxu0
    %v9385 = vpop.f32.mrf.mxu0
    %v9386 = vadd.f32 %v9290, %v9385
    %v9387 = vpop.f32.mrf.mxu0
    %9388 = vmatprep.mubr.bf16.mxu0 0
    %9389 = vmatmul.mubr.bf16.gmra.mxu0 %v9201
    %v9390 = vpop.f32.mrf.mxu0
    %v9391 = vadd.f32 %v9295, %v9390
    %v9392 = vpop.f32.mrf.mxu0
    %v9393 = vpop.f32.mrf.mxu0
    %v9394 = vadd.f32 %v9298, %v9393
    %v9395 = vpop.f32.mrf.mxu0
    %9396 = vmatprep.mubr.bf16.mxu0 0
    %9397 = vmatmul.mubr.bf16.gmra.mxu0 %v9202
    %v9398 = vpop.f32.mrf.mxu0
    %v9399 = vadd.f32 %v9303, %v9398
    %v9400 = vpop.f32.mrf.mxu0
    %v9401 = vpop.f32.mrf.mxu0
    %v9402 = vadd.f32 %v9306, %v9401
    %v9403 = vpop.f32.mrf.mxu0
    %9404 = vmatprep.mubr.bf16.mxu0 0
    %9405 = vmatmul.mubr.bf16.gmra.mxu0 %v9203
    %v9406 = vpop.f32.mrf.mxu0
    %v9407 = vadd.f32 %v9311, %v9406
    %v9408 = vpop.f32.mrf.mxu0
    %v9409 = vpop.f32.mrf.mxu0
    %v9410 = vadd.f32 %v9314, %v9409
    %v9411 = vpop.f32.mrf.mxu0
    %9412 = vmatprep.mubr.bf16.mxu0 0
    %9413 = vmatmul.mubr.bf16.gmra.mxu0 %v9204
    %v9414 = vpop.f32.mrf.mxu0
    %v9415 = vadd.f32 %v9319, %v9414
    %v9416 = vpop.f32.mrf.mxu0
    %v9417 = vpop.f32.mrf.mxu0
    %v9418 = vpop.f32.mrf.mxu0
    %9419 = vdwg.mxu0
    %v9420 = vld [vmem:[#allocation2 + $0x25d] sm:$0xff]
    %v9421 = vld [vmem:[#allocation2 + $0x265] sm:$0xff]
    %v9422 = vld [vmem:[#allocation2 + $0x26d] sm:$0xff]
    %v9423 = vld [vmem:[#allocation2 + $0x275] sm:$0xff]
    %v9424 = vld [vmem:[#allocation2 + $0x27d] sm:$0xff]
    %v9425 = vld [vmem:[#allocation2 + $0x285] sm:$0xff]
    %v9426 = vld [vmem:[#allocation2 + $0x28d] sm:$0xff]
    %v9427 = vld [vmem:[#allocation2 + $0x295] sm:$0xff]
    %v9428 = vld [vmem:[#allocation2 + $0x29d] sm:$0xff]
    %v9429 = vld [vmem:[#allocation2 + $0x2a5] sm:$0xff]
    %v9430 = vld [vmem:[#allocation2 + $0x2ad] sm:$0xff]
    %v9431 = vld [vmem:[#allocation2 + $0x2b5] sm:$0xff]
    %v9432 = vld [vmem:[#allocation2 + $0x2bd] sm:$0xff]
    %v9433 = vld [vmem:[#allocation2 + $0x2c5] sm:$0xff]
    %v9434 = vld [vmem:[#allocation2 + $0x2cd] sm:$0xff]
    %v9435 = vpack.c.bf16 %v9421, %v9420
    %v9436 = vpack.c.bf16 %v9423, %v9422
    %v9437 = vpack.c.bf16 %v9425, %v9424
    %v9438 = vpack.c.bf16 %v9427, %v9426
    %v9439 = vpack.c.bf16 %v9429, %v9428
    %v9440 = vpack.c.bf16 %v9431, %v9430
    %v9441 = vpack.c.bf16 %v9433, %v9432
    %v9442 = vpack.c.bf16 %v9434, %v9434
    %9443 = vmatprep.subr.bf16.mxu0 0
    %9444 = vmatpush1.bf16.msra.mxu0 %v2558
    %9445 = vmatprep.subr.bf16.mxu0 0
    %9446 = vmatpush1.bf16.msra.mxu0 %v2557
    %9447 = vmatprep.subr.bf16.mxu0 0
    %9448 = vmatpush1.bf16.msra.mxu0 %v2556
    %9449 = vmatprep.subr.bf16.mxu0 0
    %9450 = vmatpush1.bf16.msra.mxu0 %v2555
    %9451 = vmatprep.subr.bf16.mxu0 0
    %9452 = vmatpush1.bf16.msra.mxu0 %v2554
    %9453 = vmatprep.subr.bf16.mxu0 0
    %9454 = vmatpush1.bf16.msra.mxu0 %v2553
    %9455 = vmatprep.subr.bf16.mxu0 0
    %9456 = vmatpush1.bf16.msra.mxu0 %v2552
    %9457 = vmatprep.subr.bf16.mxu0 0
    %9458 = vmatpush1.bf16.msra.mxu0 %v2551
    %9459 = vmatprep.subr.bf16.mxu0 0
    %9460 = vmatpush2.bf16.msra.mxu0 0
    %9461 = vmatprep.subr.bf16.mxu0 0
    %9462 = vmatpush2.bf16.msra.mxu0 0
    %9463 = vmatprep.subr.bf16.mxu0 0
    %9464 = vmatpush2.bf16.msra.mxu0 0
    %9465 = vmatprep.subr.bf16.mxu0 0
    %9466 = vmatpush2.bf16.msra.mxu0 0
    %9467 = vmatprep.subr.bf16.mxu0 0
    %9468 = vmatpush2.bf16.msra.mxu0 0
    %9469 = vmatprep.subr.bf16.mxu0 0
    %9470 = vmatpush2.bf16.msra.mxu0 0
    %9471 = vmatprep.subr.bf16.mxu0 0
    %9472 = vmatpush2.bf16.msra.mxu0 0
    %9473 = vmatprep.subr.bf16.mxu0 0
    %9474 = vmatpush2.bf16.msra.mxu0 0
    %9475 = vmatprep.mubr.bf16.mxu0 0
    %9476 = vmatmul.mubr.bf16.gmra.mxu0 %v9435
    %v9477 = vpop.f32.mrf.mxu0
    %v9478 = vadd.f32 0.0, %v9477
    %v9479 = vpop.f32.mrf.mxu0
    %v9480 = vpop.f32.mrf.mxu0
    %v9481 = vadd.f32 0.0, %v9480
    %v9482 = vpop.f32.mrf.mxu0
    %9483 = vmatprep.mubr.bf16.mxu0 0
    %9484 = vmatmul.mubr.bf16.gmra.mxu0 %v9436
    %v9485 = vpop.f32.mrf.mxu0
    %v9486 = vadd.f32 0.0, %v9485
    %v9487 = vpop.f32.mrf.mxu0
    %v9488 = vpop.f32.mrf.mxu0
    %v9489 = vadd.f32 0.0, %v9488
    %v9490 = vpop.f32.mrf.mxu0
    %9491 = vmatprep.mubr.bf16.mxu0 0
    %9492 = vmatmul.mubr.bf16.gmra.mxu0 %v9437
    %v9493 = vpop.f32.mrf.mxu0
    %v9494 = vadd.f32 0.0, %v9493
    %v9495 = vpop.f32.mrf.mxu0
    %v9496 = vpop.f32.mrf.mxu0
    %v9497 = vadd.f32 0.0, %v9496
    %v9498 = vpop.f32.mrf.mxu0
    %9499 = vmatprep.mubr.bf16.mxu0 0
    %9500 = vmatmul.mubr.bf16.gmra.mxu0 %v9438
    %v9501 = vpop.f32.mrf.mxu0
    %v9502 = vadd.f32 0.0, %v9501
    %v9503 = vpop.f32.mrf.mxu0
    %v9504 = vpop.f32.mrf.mxu0
    %v9505 = vadd.f32 0.0, %v9504
    %v9506 = vpop.f32.mrf.mxu0
    %9507 = vmatprep.mubr.bf16.mxu0 0
    %9508 = vmatmul.mubr.bf16.gmra.mxu0 %v9439
    %v9509 = vpop.f32.mrf.mxu0
    %v9510 = vadd.f32 0.0, %v9509
    %v9511 = vpop.f32.mrf.mxu0
    %v9512 = vpop.f32.mrf.mxu0
    %v9513 = vadd.f32 0.0, %v9512
    %v9514 = vpop.f32.mrf.mxu0
    %9515 = vmatprep.mubr.bf16.mxu0 0
    %9516 = vmatmul.mubr.bf16.gmra.mxu0 %v9440
    %v9517 = vpop.f32.mrf.mxu0
    %v9518 = vadd.f32 0.0, %v9517
    %v9519 = vpop.f32.mrf.mxu0
    %v9520 = vpop.f32.mrf.mxu0
    %v9521 = vadd.f32 0.0, %v9520
    %v9522 = vpop.f32.mrf.mxu0
    %9523 = vmatprep.mubr.bf16.mxu0 0
    %9524 = vmatmul.mubr.bf16.gmra.mxu0 %v9441
    %v9525 = vpop.f32.mrf.mxu0
    %v9526 = vadd.f32 0.0, %v9525
    %v9527 = vpop.f32.mrf.mxu0
    %v9528 = vpop.f32.mrf.mxu0
    %v9529 = vadd.f32 0.0, %v9528
    %v9530 = vpop.f32.mrf.mxu0
    %9531 = vmatprep.mubr.bf16.mxu0 0
    %9532 = vmatmul.mubr.bf16.gmra.mxu0 %v9442
    %v9533 = vpop.f32.mrf.mxu0
    %v9534 = vadd.f32 0.0, %v9533
    %v9535 = vpop.f32.mrf.mxu0
    %v9536 = vpop.f32.mrf.mxu0
    %v9537 = vpop.f32.mrf.mxu0
    %9538 = vdwg.mxu0
    %v9539 = vadd.f32 %v9359, %v9478
    %v9540 = vadd.f32 %v9362, %v9481
    %v9541 = vadd.f32 %v9367, %v9486
    %v9542 = vadd.f32 %v9370, %v9489
    %v9543 = vadd.f32 %v9375, %v9494
    %v9544 = vadd.f32 %v9378, %v9497
    %v9545 = vadd.f32 %v9383, %v9502
    %v9546 = vadd.f32 %v9386, %v9505
    %v9547 = vadd.f32 %v9391, %v9510
    %v9548 = vadd.f32 %v9394, %v9513
    %v9549 = vadd.f32 %v9399, %v9518
    %v9550 = vadd.f32 %v9402, %v9521
    %v9551 = vadd.f32 %v9407, %v9526
    %v9552 = vadd.f32 %v9410, %v9529
    %v9553 = vadd.f32 %v9415, %v9534
    %v9554 = vld [vmem:[#allocation2 + $0x26f] sm:$0xff]
    %v9555 = vld [vmem:[#allocation2 + $0x277] sm:$0xff]
    %v9556 = vld [vmem:[#allocation2 + $0x27f] sm:$0xff]
    %v9557 = vld [vmem:[#allocation2 + $0x287] sm:$0xff]
    %v9558 = vld [vmem:[#allocation2 + $0x28f] sm:$0xff]
    %v9559 = vld [vmem:[#allocation2 + $0x297] sm:$0xff]
    %v9560 = vld [vmem:[#allocation2 + $0x29f] sm:$0xff]
    %v9561 = vld [vmem:[#allocation2 + $0x2a7] sm:$0xff]
    %v9562 = vld [vmem:[#allocation2 + $0x2af] sm:$0xff]
    %v9563 = vld [vmem:[#allocation2 + $0x2b7] sm:$0xff]
    %v9564 = vld [vmem:[#allocation2 + $0x2bf] sm:$0xff]
    %v9565 = vld [vmem:[#allocation2 + $0x2c7] sm:$0xff]
    %v9566 = vld [vmem:[#allocation2 + $0x2cf] sm:$0xff]
    %v9567 = vld [vmem:[#allocation2 + $0x2d7] sm:$0xff]
    %v9568 = vld [vmem:[#allocation2 + $0x2df] sm:$0xff]
    %v9569 = vpack.c.bf16 %v9555, %v9554
    %v9570 = vpack.c.bf16 %v9557, %v9556
    %v9571 = vpack.c.bf16 %v9559, %v9558
    %v9572 = vpack.c.bf16 %v9561, %v9560
    %v9573 = vpack.c.bf16 %v9563, %v9562
    %v9574 = vpack.c.bf16 %v9565, %v9564
    %v9575 = vpack.c.bf16 %v9567, %v9566
    %v9576 = vpack.c.bf16 %v9568, %v9568
    %9577 = vmatprep.subr.bf16.mxu0 0
    %9578 = vmatpush1.bf16.msra.mxu0 %v2756
    %9579 = vmatprep.subr.bf16.mxu0 0
    %9580 = vmatpush1.bf16.msra.mxu0 %v2755
    %9581 = vmatprep.subr.bf16.mxu0 0
    %9582 = vmatpush1.bf16.msra.mxu0 %v2754
    %9583 = vmatprep.subr.bf16.mxu0 0
    %9584 = vmatpush1.bf16.msra.mxu0 %v2753
    %9585 = vmatprep.subr.bf16.mxu0 0
    %9586 = vmatpush1.bf16.msra.mxu0 %v2752
    %9587 = vmatprep.subr.bf16.mxu0 0
    %9588 = vmatpush1.bf16.msra.mxu0 %v2751
    %9589 = vmatprep.subr.bf16.mxu0 0
    %9590 = vmatpush1.bf16.msra.mxu0 %v2750
    %9591 = vmatprep.subr.bf16.mxu0 0
    %9592 = vmatpush1.bf16.msra.mxu0 %v2749
    %9593 = vmatprep.subr.bf16.mxu0 0
    %9594 = vmatpush2.bf16.msra.mxu0 0
    %9595 = vmatprep.subr.bf16.mxu0 0
    %9596 = vmatpush2.bf16.msra.mxu0 0
    %9597 = vmatprep.subr.bf16.mxu0 0
    %9598 = vmatpush2.bf16.msra.mxu0 0
    %9599 = vmatprep.subr.bf16.mxu0 0
    %9600 = vmatpush2.bf16.msra.mxu0 0
    %9601 = vmatprep.subr.bf16.mxu0 0
    %9602 = vmatpush2.bf16.msra.mxu0 0
    %9603 = vmatprep.subr.bf16.mxu0 0
    %9604 = vmatpush2.bf16.msra.mxu0 0
    %9605 = vmatprep.subr.bf16.mxu0 0
    %9606 = vmatpush2.bf16.msra.mxu0 0
    %9607 = vmatprep.subr.bf16.mxu0 0
    %9608 = vmatpush2.bf16.msra.mxu0 0
    %9609 = vmatprep.mubr.bf16.mxu0 0
    %9610 = vmatmul.mubr.bf16.gmra.mxu0 %v9569
    %v9611 = vpop.f32.mrf.mxu0
    %v9612 = vadd.f32 0.0, %v9611
    %v9613 = vpop.f32.mrf.mxu0
    %v9614 = vpop.f32.mrf.mxu0
    %v9615 = vadd.f32 0.0, %v9614
    %v9616 = vpop.f32.mrf.mxu0
    %9617 = vmatprep.mubr.bf16.mxu0 0
    %9618 = vmatmul.mubr.bf16.gmra.mxu0 %v9570
    %v9619 = vpop.f32.mrf.mxu0
    %v9620 = vadd.f32 0.0, %v9619
    %v9621 = vpop.f32.mrf.mxu0
    %v9622 = vpop.f32.mrf.mxu0
    %v9623 = vadd.f32 0.0, %v9622
    %v9624 = vpop.f32.mrf.mxu0
    %9625 = vmatprep.mubr.bf16.mxu0 0
    %9626 = vmatmul.mubr.bf16.gmra.mxu0 %v9571
    %v9627 = vpop.f32.mrf.mxu0
    %v9628 = vadd.f32 0.0, %v9627
    %v9629 = vpop.f32.mrf.mxu0
    %v9630 = vpop.f32.mrf.mxu0
    %v9631 = vadd.f32 0.0, %v9630
    %v9632 = vpop.f32.mrf.mxu0
    %9633 = vmatprep.mubr.bf16.mxu0 0
    %9634 = vmatmul.mubr.bf16.gmra.mxu0 %v9572
    %v9635 = vpop.f32.mrf.mxu0
    %v9636 = vadd.f32 0.0, %v9635
    %v9637 = vpop.f32.mrf.mxu0
    %v9638 = vpop.f32.mrf.mxu0
    %v9639 = vadd.f32 0.0, %v9638
    %v9640 = vpop.f32.mrf.mxu0
    %9641 = vmatprep.mubr.bf16.mxu0 0
    %9642 = vmatmul.mubr.bf16.gmra.mxu0 %v9573
    %v9643 = vpop.f32.mrf.mxu0
    %v9644 = vadd.f32 0.0, %v9643
    %v9645 = vpop.f32.mrf.mxu0
    %v9646 = vpop.f32.mrf.mxu0
    %v9647 = vadd.f32 0.0, %v9646
    %v9648 = vpop.f32.mrf.mxu0
    %9649 = vmatprep.mubr.bf16.mxu0 0
    %9650 = vmatmul.mubr.bf16.gmra.mxu0 %v9574
    %v9651 = vpop.f32.mrf.mxu0
    %v9652 = vadd.f32 0.0, %v9651
    %v9653 = vpop.f32.mrf.mxu0
    %v9654 = vpop.f32.mrf.mxu0
    %v9655 = vadd.f32 0.0, %v9654
    %v9656 = vpop.f32.mrf.mxu0
    %9657 = vmatprep.mubr.bf16.mxu0 0
    %9658 = vmatmul.mubr.bf16.gmra.mxu0 %v9575
    %v9659 = vpop.f32.mrf.mxu0
    %v9660 = vadd.f32 0.0, %v9659
    %v9661 = vpop.f32.mrf.mxu0
    %v9662 = vpop.f32.mrf.mxu0
    %v9663 = vadd.f32 0.0, %v9662
    %v9664 = vpop.f32.mrf.mxu0
    %9665 = vmatprep.mubr.bf16.mxu0 0
    %9666 = vmatmul.mubr.bf16.gmra.mxu0 %v9576
    %v9667 = vpop.f32.mrf.mxu0
    %v9668 = vadd.f32 0.0, %v9667
    %v9669 = vpop.f32.mrf.mxu0
    %v9670 = vpop.f32.mrf.mxu0
    %v9671 = vpop.f32.mrf.mxu0
    %9672 = vdwg.mxu0
    %v9673 = vadd.f32 %v9539, %v9612
    %v9674 = vadd.f32 %v9540, %v9615
    %v9675 = vadd.f32 %v9541, %v9620
    %v9676 = vadd.f32 %v9542, %v9623
    %v9677 = vadd.f32 %v9543, %v9628
    %v9678 = vadd.f32 %v9544, %v9631
    %v9679 = vadd.f32 %v9545, %v9636
    %v9680 = vadd.f32 %v9546, %v9639
    %v9681 = vadd.f32 %v9547, %v9644
    %v9682 = vadd.f32 %v9548, %v9647
    %v9683 = vadd.f32 %v9549, %v9652
    %v9684 = vadd.f32 %v9550, %v9655
    %v9685 = vadd.f32 %v9551, %v9660
    %v9686 = vadd.f32 %v9552, %v9663
    %v9687 = vadd.f32 %v9553, %v9668
    %v9688 = vld [vmem:[#allocation2 + $0x270] sm:$0xff]
    %v9689 = vld [vmem:[#allocation2 + $0x278] sm:$0xff]
    %v9690 = vld [vmem:[#allocation2 + $0x280] sm:$0xff]
    %v9691 = vld [vmem:[#allocation2 + $0x288] sm:$0xff]
    %v9692 = vld [vmem:[#allocation2 + $0x290] sm:$0xff]
    %v9693 = vld [vmem:[#allocation2 + $0x298] sm:$0xff]
    %v9694 = vld [vmem:[#allocation2 + $0x2a0] sm:$0xff]
    %v9695 = vld [vmem:[#allocation2 + $0x2a8] sm:$0xff]
    %v9696 = vld [vmem:[#allocation2 + $0x2b0] sm:$0xff]
    %v9697 = vld [vmem:[#allocation2 + $0x2b8] sm:$0xff]
    %v9698 = vld [vmem:[#allocation2 + $0x2c0] sm:$0xff]
    %v9699 = vld [vmem:[#allocation2 + $0x2c8] sm:$0xff]
    %v9700 = vld [vmem:[#allocation2 + $0x2d0] sm:$0xff]
    %v9701 = vld [vmem:[#allocation2 + $0x2d8] sm:$0xff]
    %v9702 = vld [vmem:[#allocation2 + $0x2e0] sm:$0xff]
    %v9703 = vpack.c.bf16 %v9689, %v9688
    %v9704 = vpack.c.bf16 %v9691, %v9690
    %v9705 = vpack.c.bf16 %v9693, %v9692
    %v9706 = vpack.c.bf16 %v9695, %v9694
    %v9707 = vpack.c.bf16 %v9697, %v9696
    %v9708 = vpack.c.bf16 %v9699, %v9698
    %v9709 = vpack.c.bf16 %v9701, %v9700
    %v9710 = vpack.c.bf16 %v9702, %v9702
    %9711 = vmatprep.subr.bf16.mxu0 0
    %9712 = vmatpush1.bf16.msra.mxu0 %v2954
    %9713 = vmatprep.subr.bf16.mxu0 0
    %9714 = vmatpush1.bf16.msra.mxu0 %v2953
    %9715 = vmatprep.subr.bf16.mxu0 0
    %9716 = vmatpush1.bf16.msra.mxu0 %v2952
    %9717 = vmatprep.subr.bf16.mxu0 0
    %9718 = vmatpush1.bf16.msra.mxu0 %v2951
    %9719 = vmatprep.subr.bf16.mxu0 0
    %9720 = vmatpush1.bf16.msra.mxu0 %v2950
    %9721 = vmatprep.subr.bf16.mxu0 0
    %9722 = vmatpush1.bf16.msra.mxu0 %v2949
    %9723 = vmatprep.subr.bf16.mxu0 0
    %9724 = vmatpush1.bf16.msra.mxu0 %v2948
    %9725 = vmatprep.subr.bf16.mxu0 0
    %9726 = vmatpush1.bf16.msra.mxu0 %v2947
    %9727 = vmatprep.subr.bf16.mxu0 0
    %9728 = vmatpush2.bf16.msra.mxu0 0
    %9729 = vmatprep.subr.bf16.mxu0 0
    %9730 = vmatpush2.bf16.msra.mxu0 0
    %9731 = vmatprep.subr.bf16.mxu0 0
    %9732 = vmatpush2.bf16.msra.mxu0 0
    %9733 = vmatprep.subr.bf16.mxu0 0
    %9734 = vmatpush2.bf16.msra.mxu0 0
    %9735 = vmatprep.subr.bf16.mxu0 0
    %9736 = vmatpush2.bf16.msra.mxu0 0
    %9737 = vmatprep.subr.bf16.mxu0 0
    %9738 = vmatpush2.bf16.msra.mxu0 0
    %9739 = vmatprep.subr.bf16.mxu0 0
    %9740 = vmatpush2.bf16.msra.mxu0 0
    %9741 = vmatprep.subr.bf16.mxu0 0
    %9742 = vmatpush2.bf16.msra.mxu0 0
    %9743 = vmatprep.mubr.bf16.mxu0 0
    %9744 = vmatmul.mubr.bf16.gmra.mxu0 %v9703
    %v9745 = vpop.f32.mrf.mxu0
    %v9746 = vadd.f32 0.0, %v9745
    %v9747 = vpop.f32.mrf.mxu0
    %v9748 = vpop.f32.mrf.mxu0
    %v9749 = vadd.f32 0.0, %v9748
    %v9750 = vpop.f32.mrf.mxu0
    %9751 = vmatprep.mubr.bf16.mxu0 0
    %9752 = vmatmul.mubr.bf16.gmra.mxu0 %v9704
    %v9753 = vpop.f32.mrf.mxu0
    %v9754 = vadd.f32 0.0, %v9753
    %v9755 = vpop.f32.mrf.mxu0
    %v9756 = vpop.f32.mrf.mxu0
    %v9757 = vadd.f32 0.0, %v9756
    %v9758 = vpop.f32.mrf.mxu0
    %9759 = vmatprep.mubr.bf16.mxu0 0
    %9760 = vmatmul.mubr.bf16.gmra.mxu0 %v9705
    %v9761 = vpop.f32.mrf.mxu0
    %v9762 = vadd.f32 0.0, %v9761
    %v9763 = vpop.f32.mrf.mxu0
    %v9764 = vpop.f32.mrf.mxu0
    %v9765 = vadd.f32 0.0, %v9764
    %v9766 = vpop.f32.mrf.mxu0
    %9767 = vmatprep.mubr.bf16.mxu0 0
    %9768 = vmatmul.mubr.bf16.gmra.mxu0 %v9706
    %v9769 = vpop.f32.mrf.mxu0
    %v9770 = vadd.f32 0.0, %v9769
    %v9771 = vpop.f32.mrf.mxu0
    %v9772 = vpop.f32.mrf.mxu0
    %v9773 = vadd.f32 0.0, %v9772
    %v9774 = vpop.f32.mrf.mxu0
    %9775 = vmatprep.mubr.bf16.mxu0 0
    %9776 = vmatmul.mubr.bf16.gmra.mxu0 %v9707
    %v9777 = vpop.f32.mrf.mxu0
    %v9778 = vadd.f32 0.0, %v9777
    %v9779 = vpop.f32.mrf.mxu0
    %v9780 = vpop.f32.mrf.mxu0
    %v9781 = vadd.f32 0.0, %v9780
    %v9782 = vpop.f32.mrf.mxu0
    %9783 = vmatprep.mubr.bf16.mxu0 0
    %9784 = vmatmul.mubr.bf16.gmra.mxu0 %v9708
    %v9785 = vpop.f32.mrf.mxu0
    %v9786 = vadd.f32 0.0, %v9785
    %v9787 = vpop.f32.mrf.mxu0
    %v9788 = vpop.f32.mrf.mxu0
    %v9789 = vadd.f32 0.0, %v9788
    %v9790 = vpop.f32.mrf.mxu0
    %9791 = vmatprep.mubr.bf16.mxu0 0
    %9792 = vmatmul.mubr.bf16.gmra.mxu0 %v9709
    %v9793 = vpop.f32.mrf.mxu0
    %v9794 = vadd.f32 0.0, %v9793
    %v9795 = vpop.f32.mrf.mxu0
    %v9796 = vpop.f32.mrf.mxu0
    %v9797 = vadd.f32 0.0, %v9796
    %v9798 = vpop.f32.mrf.mxu0
    %9799 = vmatprep.mubr.bf16.mxu0 0
    %9800 = vmatmul.mubr.bf16.gmra.mxu0 %v9710
    %v9801 = vpop.f32.mrf.mxu0
    %v9802 = vadd.f32 0.0, %v9801
    %v9803 = vpop.f32.mrf.mxu0
    %v9804 = vpop.f32.mrf.mxu0
    %v9805 = vpop.f32.mrf.mxu0
    %9806 = vdwg.mxu0
    %v9807 = vadd.f32 %v9673, %v9746
    %v9808 = vadd.f32 %v9674, %v9749
    %v9809 = vadd.f32 %v9675, %v9754
    %v9810 = vadd.f32 %v9676, %v9757
    %v9811 = vadd.f32 %v9677, %v9762
    %v9812 = vadd.f32 %v9678, %v9765
    %v9813 = vadd.f32 %v9679, %v9770
    %v9814 = vadd.f32 %v9680, %v9773
    %v9815 = vadd.f32 %v9681, %v9778
    %v9816 = vadd.f32 %v9682, %v9781
    %v9817 = vadd.f32 %v9683, %v9786
    %v9818 = vadd.f32 %v9684, %v9789
    %v9819 = vadd.f32 %v9685, %v9794
    %v9820 = vadd.f32 %v9686, %v9797
    %v9821 = vadd.f32 %v9687, %v9802
    %v9822 = vld [vmem:[#allocation2 + $0x271] sm:$0xff]
    %v9823 = vld [vmem:[#allocation2 + $0x279] sm:$0xff]
    %v9824 = vld [vmem:[#allocation2 + $0x281] sm:$0xff]
    %v9825 = vld [vmem:[#allocation2 + $0x289] sm:$0xff]
    %v9826 = vld [vmem:[#allocation2 + $0x291] sm:$0xff]
    %v9827 = vld [vmem:[#allocation2 + $0x299] sm:$0xff]
    %v9828 = vld [vmem:[#allocation2 + $0x2a1] sm:$0xff]
    %v9829 = vld [vmem:[#allocation2 + $0x2a9] sm:$0xff]
    %v9830 = vld [vmem:[#allocation2 + $0x2b1] sm:$0xff]
    %v9831 = vld [vmem:[#allocation2 + $0x2b9] sm:$0xff]
    %v9832 = vld [vmem:[#allocation2 + $0x2c1] sm:$0xff]
    %v9833 = vld [vmem:[#allocation2 + $0x2c9] sm:$0xff]
    %v9834 = vld [vmem:[#allocation2 + $0x2d1] sm:$0xff]
    %v9835 = vld [vmem:[#allocation2 + $0x2d9] sm:$0xff]
    %v9836 = vld [vmem:[#allocation2 + $0x2e1] sm:$0xff]
    %v9837 = vpack.c.bf16 %v9823, %v9822
    %v9838 = vpack.c.bf16 %v9825, %v9824
    %v9839 = vpack.c.bf16 %v9827, %v9826
    %v9840 = vpack.c.bf16 %v9829, %v9828
    %v9841 = vpack.c.bf16 %v9831, %v9830
    %v9842 = vpack.c.bf16 %v9833, %v9832
    %v9843 = vpack.c.bf16 %v9835, %v9834
    %v9844 = vpack.c.bf16 %v9836, %v9836
    %9845 = vmatprep.subr.bf16.mxu0 0
    %9846 = vmatpush1.bf16.msra.mxu0 %v3152
    %9847 = vmatprep.subr.bf16.mxu0 0
    %9848 = vmatpush1.bf16.msra.mxu0 %v3151
    %9849 = vmatprep.subr.bf16.mxu0 0
    %9850 = vmatpush1.bf16.msra.mxu0 %v3150
    %9851 = vmatprep.subr.bf16.mxu0 0
    %9852 = vmatpush1.bf16.msra.mxu0 %v3149
    %9853 = vmatprep.subr.bf16.mxu0 0
    %9854 = vmatpush1.bf16.msra.mxu0 %v3148
    %9855 = vmatprep.subr.bf16.mxu0 0
    %9856 = vmatpush1.bf16.msra.mxu0 %v3147
    %9857 = vmatprep.subr.bf16.mxu0 0
    %9858 = vmatpush1.bf16.msra.mxu0 %v3146
    %9859 = vmatprep.subr.bf16.mxu0 0
    %9860 = vmatpush1.bf16.msra.mxu0 %v3145
    %9861 = vmatprep.subr.bf16.mxu0 0
    %9862 = vmatpush2.bf16.msra.mxu0 0
    %9863 = vmatprep.subr.bf16.mxu0 0
    %9864 = vmatpush2.bf16.msra.mxu0 0
    %9865 = vmatprep.subr.bf16.mxu0 0
    %9866 = vmatpush2.bf16.msra.mxu0 0
    %9867 = vmatprep.subr.bf16.mxu0 0
    %9868 = vmatpush2.bf16.msra.mxu0 0
    %9869 = vmatprep.subr.bf16.mxu0 0
    %9870 = vmatpush2.bf16.msra.mxu0 0
    %9871 = vmatprep.subr.bf16.mxu0 0
    %9872 = vmatpush2.bf16.msra.mxu0 0
    %9873 = vmatprep.subr.bf16.mxu0 0
    %9874 = vmatpush2.bf16.msra.mxu0 0
    %9875 = vmatprep.subr.bf16.mxu0 0
    %9876 = vmatpush2.bf16.msra.mxu0 0
    %9877 = vmatprep.mubr.bf16.mxu0 0
    %9878 = vmatmul.mubr.bf16.gmra.mxu0 %v9837
    %v9879 = vpop.f32.mrf.mxu0
    %v9880 = vadd.f32 0.0, %v9879
    %v9881 = vpop.f32.mrf.mxu0
    %v9882 = vpop.f32.mrf.mxu0
    %v9883 = vadd.f32 0.0, %v9882
    %v9884 = vpop.f32.mrf.mxu0
    %9885 = vmatprep.mubr.bf16.mxu0 0
    %9886 = vmatmul.mubr.bf16.gmra.mxu0 %v9838
    %v9887 = vpop.f32.mrf.mxu0
    %v9888 = vadd.f32 0.0, %v9887
    %v9889 = vpop.f32.mrf.mxu0
    %v9890 = vpop.f32.mrf.mxu0
    %v9891 = vadd.f32 0.0, %v9890
    %v9892 = vpop.f32.mrf.mxu0
    %9893 = vmatprep.mubr.bf16.mxu0 0
    %9894 = vmatmul.mubr.bf16.gmra.mxu0 %v9839
    %v9895 = vpop.f32.mrf.mxu0
    %v9896 = vadd.f32 0.0, %v9895
    %v9897 = vpop.f32.mrf.mxu0
    %v9898 = vpop.f32.mrf.mxu0
    %v9899 = vadd.f32 0.0, %v9898
    %v9900 = vpop.f32.mrf.mxu0
    %9901 = vmatprep.mubr.bf16.mxu0 0
    %9902 = vmatmul.mubr.bf16.gmra.mxu0 %v9840
    %v9903 = vpop.f32.mrf.mxu0
    %v9904 = vadd.f32 0.0, %v9903
    %v9905 = vpop.f32.mrf.mxu0
    %v9906 = vpop.f32.mrf.mxu0
    %v9907 = vadd.f32 0.0, %v9906
    %v9908 = vpop.f32.mrf.mxu0
    %9909 = vmatprep.mubr.bf16.mxu0 0
    %9910 = vmatmul.mubr.bf16.gmra.mxu0 %v9841
    %v9911 = vpop.f32.mrf.mxu0
    %v9912 = vadd.f32 0.0, %v9911
    %v9913 = vpop.f32.mrf.mxu0
    %v9914 = vpop.f32.mrf.mxu0
    %v9915 = vadd.f32 0.0, %v9914
    %v9916 = vpop.f32.mrf.mxu0
    %9917 = vmatprep.mubr.bf16.mxu0 0
    %9918 = vmatmul.mubr.bf16.gmra.mxu0 %v9842
    %v9919 = vpop.f32.mrf.mxu0
    %v9920 = vadd.f32 0.0, %v9919
    %v9921 = vpop.f32.mrf.mxu0
    %v9922 = vpop.f32.mrf.mxu0
    %v9923 = vadd.f32 0.0, %v9922
    %v9924 = vpop.f32.mrf.mxu0
    %9925 = vmatprep.mubr.bf16.mxu0 0
    %9926 = vmatmul.mubr.bf16.gmra.mxu0 %v9843
    %v9927 = vpop.f32.mrf.mxu0
    %v9928 = vadd.f32 0.0, %v9927
    %v9929 = vpop.f32.mrf.mxu0
    %v9930 = vpop.f32.mrf.mxu0
    %v9931 = vadd.f32 0.0, %v9930
    %v9932 = vpop.f32.mrf.mxu0
    %9933 = vmatprep.mubr.bf16.mxu0 0
    %9934 = vmatmul.mubr.bf16.gmra.mxu0 %v9844
    %v9935 = vpop.f32.mrf.mxu0
    %v9936 = vadd.f32 0.0, %v9935
    %v9937 = vpop.f32.mrf.mxu0
    %v9938 = vpop.f32.mrf.mxu0
    %v9939 = vpop.f32.mrf.mxu0
    %9940 = vdwg.mxu0
    %v9941 = vadd.f32 %v9807, %v9880
    %v9942 = vadd.f32 %v9808, %v9883
    %v9943 = vadd.f32 %v9809, %v9888
    %v9944 = vadd.f32 %v9810, %v9891
    %v9945 = vadd.f32 %v9811, %v9896
    %v9946 = vadd.f32 %v9812, %v9899
    %v9947 = vadd.f32 %v9813, %v9904
    %v9948 = vadd.f32 %v9814, %v9907
    %v9949 = vadd.f32 %v9815, %v9912
    %v9950 = vadd.f32 %v9816, %v9915
    %v9951 = vadd.f32 %v9817, %v9920
    %v9952 = vadd.f32 %v9818, %v9923
    %v9953 = vadd.f32 %v9819, %v9928
    %v9954 = vadd.f32 %v9820, %v9931
    %v9955 = vadd.f32 %v9821, %v9936
    %v9956 = vld [vmem:[#allocation2 + $0x283] sm:$0xff]
    %v9957 = vld [vmem:[#allocation2 + $0x28b] sm:$0xff]
    %v9958 = vld [vmem:[#allocation2 + $0x293] sm:$0xff]
    %v9959 = vld [vmem:[#allocation2 + $0x29b] sm:$0xff]
    %v9960 = vld [vmem:[#allocation2 + $0x2a3] sm:$0xff]
    %v9961 = vld [vmem:[#allocation2 + $0x2ab] sm:$0xff]
    %v9962 = vld [vmem:[#allocation2 + $0x2b3] sm:$0xff]
    %v9963 = vld [vmem:[#allocation2 + $0x2bb] sm:$0xff]
    %v9964 = vld [vmem:[#allocation2 + $0x2c3] sm:$0xff]
    %v9965 = vld [vmem:[#allocation2 + $0x2cb] sm:$0xff]
    %v9966 = vld [vmem:[#allocation2 + $0x2d3] sm:$0xff]
    %v9967 = vld [vmem:[#allocation2 + $0x2db] sm:$0xff]
    %v9968 = vld [vmem:[#allocation2 + $0x2e3] sm:$0xff]
    %v9969 = vld [vmem:[#allocation2 + $0x2eb] sm:$0xff]
    %v9970 = vld [vmem:[#allocation2 + $0x2f3] sm:$0xff]
    %v9971 = vpack.c.bf16 %v9957, %v9956
    %v9972 = vpack.c.bf16 %v9959, %v9958
    %v9973 = vpack.c.bf16 %v9961, %v9960
    %v9974 = vpack.c.bf16 %v9963, %v9962
    %v9975 = vpack.c.bf16 %v9965, %v9964
    %v9976 = vpack.c.bf16 %v9967, %v9966
    %v9977 = vpack.c.bf16 %v9969, %v9968
    %v9978 = vpack.c.bf16 %v9970, %v9970
    %9979 = vmatprep.subr.bf16.mxu0 0
    %9980 = vmatpush1.bf16.msra.mxu0 %v3350
    %9981 = vmatprep.subr.bf16.mxu0 0
    %9982 = vmatpush1.bf16.msra.mxu0 %v3349
    %9983 = vmatprep.subr.bf16.mxu0 0
    %9984 = vmatpush1.bf16.msra.mxu0 %v3348
    %9985 = vmatprep.subr.bf16.mxu0 0
    %9986 = vmatpush1.bf16.msra.mxu0 %v3347
    %9987 = vmatprep.subr.bf16.mxu0 0
    %9988 = vmatpush1.bf16.msra.mxu0 %v3346
    %9989 = vmatprep.subr.bf16.mxu0 0
    %9990 = vmatpush1.bf16.msra.mxu0 %v3345
    %9991 = vmatprep.subr.bf16.mxu0 0
    %9992 = vmatpush1.bf16.msra.mxu0 %v3344
    %9993 = vmatprep.subr.bf16.mxu0 0
    %9994 = vmatpush1.bf16.msra.mxu0 %v3343
    %9995 = vmatprep.subr.bf16.mxu0 0
    %9996 = vmatpush2.bf16.msra.mxu0 0
    %9997 = vmatprep.subr.bf16.mxu0 0
    %9998 = vmatpush2.bf16.msra.mxu0 0
    %9999 = vmatprep.subr.bf16.mxu0 0
    %10000 = vmatpush2.bf16.msra.mxu0 0
    %10001 = vmatprep.subr.bf16.mxu0 0
    %10002 = vmatpush2.bf16.msra.mxu0 0
    %10003 = vmatprep.subr.bf16.mxu0 0
    %10004 = vmatpush2.bf16.msra.mxu0 0
    %10005 = vmatprep.subr.bf16.mxu0 0
    %10006 = vmatpush2.bf16.msra.mxu0 0
    %10007 = vmatprep.subr.bf16.mxu0 0
    %10008 = vmatpush2.bf16.msra.mxu0 0
    %10009 = vmatprep.subr.bf16.mxu0 0
    %10010 = vmatpush2.bf16.msra.mxu0 0
    %10011 = vmatprep.mubr.bf16.mxu0 0
    %10012 = vmatmul.mubr.bf16.gmra.mxu0 %v9971
    %v10013 = vpop.f32.mrf.mxu0
    %v10014 = vadd.f32 0.0, %v10013
    %v10015 = vpop.f32.mrf.mxu0
    %v10016 = vpop.f32.mrf.mxu0
    %v10017 = vadd.f32 0.0, %v10016
    %v10018 = vpop.f32.mrf.mxu0
    %10019 = vmatprep.mubr.bf16.mxu0 0
    %10020 = vmatmul.mubr.bf16.gmra.mxu0 %v9972
    %v10021 = vpop.f32.mrf.mxu0
    %v10022 = vadd.f32 0.0, %v10021
    %v10023 = vpop.f32.mrf.mxu0
    %v10024 = vpop.f32.mrf.mxu0
    %v10025 = vadd.f32 0.0, %v10024
    %v10026 = vpop.f32.mrf.mxu0
    %10027 = vmatprep.mubr.bf16.mxu0 0
    %10028 = vmatmul.mubr.bf16.gmra.mxu0 %v9973
    %v10029 = vpop.f32.mrf.mxu0
    %v10030 = vadd.f32 0.0, %v10029
    %v10031 = vpop.f32.mrf.mxu0
    %v10032 = vpop.f32.mrf.mxu0
    %v10033 = vadd.f32 0.0, %v10032
    %v10034 = vpop.f32.mrf.mxu0
    %10035 = vmatprep.mubr.bf16.mxu0 0
    %10036 = vmatmul.mubr.bf16.gmra.mxu0 %v9974
    %v10037 = vpop.f32.mrf.mxu0
    %v10038 = vadd.f32 0.0, %v10037
    %v10039 = vpop.f32.mrf.mxu0
    %v10040 = vpop.f32.mrf.mxu0
    %v10041 = vadd.f32 0.0, %v10040
    %v10042 = vpop.f32.mrf.mxu0
    %10043 = vmatprep.mubr.bf16.mxu0 0
    %10044 = vmatmul.mubr.bf16.gmra.mxu0 %v9975
    %v10045 = vpop.f32.mrf.mxu0
    %v10046 = vadd.f32 0.0, %v10045
    %v10047 = vpop.f32.mrf.mxu0
    %v10048 = vpop.f32.mrf.mxu0
    %v10049 = vadd.f32 0.0, %v10048
    %v10050 = vpop.f32.mrf.mxu0
    %10051 = vmatprep.mubr.bf16.mxu0 0
    %10052 = vmatmul.mubr.bf16.gmra.mxu0 %v9976
    %v10053 = vpop.f32.mrf.mxu0
    %v10054 = vadd.f32 0.0, %v10053
    %v10055 = vpop.f32.mrf.mxu0
    %v10056 = vpop.f32.mrf.mxu0
    %v10057 = vadd.f32 0.0, %v10056
    %v10058 = vpop.f32.mrf.mxu0
    %10059 = vmatprep.mubr.bf16.mxu0 0
    %10060 = vmatmul.mubr.bf16.gmra.mxu0 %v9977
    %v10061 = vpop.f32.mrf.mxu0
    %v10062 = vadd.f32 0.0, %v10061
    %v10063 = vpop.f32.mrf.mxu0
    %v10064 = vpop.f32.mrf.mxu0
    %v10065 = vadd.f32 0.0, %v10064
    %v10066 = vpop.f32.mrf.mxu0
    %10067 = vmatprep.mubr.bf16.mxu0 0
    %10068 = vmatmul.mubr.bf16.gmra.mxu0 %v9978
    %v10069 = vpop.f32.mrf.mxu0
    %v10070 = vadd.f32 0.0, %v10069
    %v10071 = vpop.f32.mrf.mxu0
    %v10072 = vpop.f32.mrf.mxu0
    %v10073 = vpop.f32.mrf.mxu0
    %10074 = vdwg.mxu0
    %v10075 = vadd.f32 %v9941, %v10014
    %v10076 = vadd.f32 %v9942, %v10017
    %v10077 = vadd.f32 %v9943, %v10022
    %v10078 = vadd.f32 %v9944, %v10025
    %v10079 = vadd.f32 %v9945, %v10030
    %v10080 = vadd.f32 %v9946, %v10033
    %v10081 = vadd.f32 %v9947, %v10038
    %v10082 = vadd.f32 %v9948, %v10041
    %v10083 = vadd.f32 %v9949, %v10046
    %v10084 = vadd.f32 %v9950, %v10049
    %v10085 = vadd.f32 %v9951, %v10054
    %v10086 = vadd.f32 %v9952, %v10057
    %v10087 = vadd.f32 %v9953, %v10062
    %v10088 = vadd.f32 %v9954, %v10065
    %v10089 = vadd.f32 %v9955, %v10070
    %v10090 = vld [vmem:[#allocation2 + $0x284] sm:$0xff]
    %v10091 = vld [vmem:[#allocation2 + $0x28c] sm:$0xff]
    %v10092 = vld [vmem:[#allocation2 + $0x294] sm:$0xff]
    %v10093 = vld [vmem:[#allocation2 + $0x29c] sm:$0xff]
    %v10094 = vld [vmem:[#allocation2 + $0x2a4] sm:$0xff]
    %v10095 = vld [vmem:[#allocation2 + $0x2ac] sm:$0xff]
    %v10096 = vld [vmem:[#allocation2 + $0x2b4] sm:$0xff]
    %v10097 = vld [vmem:[#allocation2 + $0x2bc] sm:$0xff]
    %v10098 = vld [vmem:[#allocation2 + $0x2c4] sm:$0xff]
    %v10099 = vld [vmem:[#allocation2 + $0x2cc] sm:$0xff]
    %v10100 = vld [vmem:[#allocation2 + $0x2d4] sm:$0xff]
    %v10101 = vld [vmem:[#allocation2 + $0x2dc] sm:$0xff]
    %v10102 = vld [vmem:[#allocation2 + $0x2e4] sm:$0xff]
    %v10103 = vld [vmem:[#allocation2 + $0x2ec] sm:$0xff]
    %v10104 = vld [vmem:[#allocation2 + $0x2f4] sm:$0xff]
    %v10105 = vpack.c.bf16 %v10091, %v10090
    %v10106 = vpack.c.bf16 %v10093, %v10092
    %v10107 = vpack.c.bf16 %v10095, %v10094
    %v10108 = vpack.c.bf16 %v10097, %v10096
    %v10109 = vpack.c.bf16 %v10099, %v10098
    %v10110 = vpack.c.bf16 %v10101, %v10100
    %v10111 = vpack.c.bf16 %v10103, %v10102
    %v10112 = vpack.c.bf16 %v10104, %v10104
    %10113 = vmatprep.subr.bf16.mxu0 0
    %10114 = vmatpush1.bf16.msra.mxu0 %v3548
    %10115 = vmatprep.subr.bf16.mxu0 0
    %10116 = vmatpush1.bf16.msra.mxu0 %v3547
    %10117 = vmatprep.subr.bf16.mxu0 0
    %10118 = vmatpush1.bf16.msra.mxu0 %v3546
    %10119 = vmatprep.subr.bf16.mxu0 0
    %10120 = vmatpush1.bf16.msra.mxu0 %v3545
    %10121 = vmatprep.subr.bf16.mxu0 0
    %10122 = vmatpush1.bf16.msra.mxu0 %v3544
    %10123 = vmatprep.subr.bf16.mxu0 0
    %10124 = vmatpush1.bf16.msra.mxu0 %v3543
    %10125 = vmatprep.subr.bf16.mxu0 0
    %10126 = vmatpush1.bf16.msra.mxu0 %v3542
    %10127 = vmatprep.subr.bf16.mxu0 0
    %10128 = vmatpush1.bf16.msra.mxu0 %v3541
    %10129 = vmatprep.subr.bf16.mxu0 0
    %10130 = vmatpush2.bf16.msra.mxu0 0
    %10131 = vmatprep.subr.bf16.mxu0 0
    %10132 = vmatpush2.bf16.msra.mxu0 0
    %10133 = vmatprep.subr.bf16.mxu0 0
    %10134 = vmatpush2.bf16.msra.mxu0 0
    %10135 = vmatprep.subr.bf16.mxu0 0
    %10136 = vmatpush2.bf16.msra.mxu0 0
    %10137 = vmatprep.subr.bf16.mxu0 0
    %10138 = vmatpush2.bf16.msra.mxu0 0
    %10139 = vmatprep.subr.bf16.mxu0 0
    %10140 = vmatpush2.bf16.msra.mxu0 0
    %10141 = vmatprep.subr.bf16.mxu0 0
    %10142 = vmatpush2.bf16.msra.mxu0 0
    %10143 = vmatprep.subr.bf16.mxu0 0
    %10144 = vmatpush2.bf16.msra.mxu0 0
    %10145 = vmatprep.mubr.bf16.mxu0 0
    %10146 = vmatmul.mubr.bf16.gmra.mxu0 %v10105
    %v10147 = vpop.f32.mrf.mxu0
    %v10148 = vadd.f32 0.0, %v10147
    %v10149 = vpop.f32.mrf.mxu0
    %v10150 = vpop.f32.mrf.mxu0
    %v10151 = vadd.f32 0.0, %v10150
    %v10152 = vpop.f32.mrf.mxu0
    %10153 = vmatprep.mubr.bf16.mxu0 0
    %10154 = vmatmul.mubr.bf16.gmra.mxu0 %v10106
    %v10155 = vpop.f32.mrf.mxu0
    %v10156 = vadd.f32 0.0, %v10155
    %v10157 = vpop.f32.mrf.mxu0
    %v10158 = vpop.f32.mrf.mxu0
    %v10159 = vadd.f32 0.0, %v10158
    %v10160 = vpop.f32.mrf.mxu0
    %10161 = vmatprep.mubr.bf16.mxu0 0
    %10162 = vmatmul.mubr.bf16.gmra.mxu0 %v10107
    %v10163 = vpop.f32.mrf.mxu0
    %v10164 = vadd.f32 0.0, %v10163
    %v10165 = vpop.f32.mrf.mxu0
    %v10166 = vpop.f32.mrf.mxu0
    %v10167 = vadd.f32 0.0, %v10166
    %v10168 = vpop.f32.mrf.mxu0
    %10169 = vmatprep.mubr.bf16.mxu0 0
    %10170 = vmatmul.mubr.bf16.gmra.mxu0 %v10108
    %v10171 = vpop.f32.mrf.mxu0
    %v10172 = vadd.f32 0.0, %v10171
    %v10173 = vpop.f32.mrf.mxu0
    %v10174 = vpop.f32.mrf.mxu0
    %v10175 = vadd.f32 0.0, %v10174
    %v10176 = vpop.f32.mrf.mxu0
    %10177 = vmatprep.mubr.bf16.mxu0 0
    %10178 = vmatmul.mubr.bf16.gmra.mxu0 %v10109
    %v10179 = vpop.f32.mrf.mxu0
    %v10180 = vadd.f32 0.0, %v10179
    %v10181 = vpop.f32.mrf.mxu0
    %v10182 = vpop.f32.mrf.mxu0
    %v10183 = vadd.f32 0.0, %v10182
    %v10184 = vpop.f32.mrf.mxu0
    %10185 = vmatprep.mubr.bf16.mxu0 0
    %10186 = vmatmul.mubr.bf16.gmra.mxu0 %v10110
    %v10187 = vpop.f32.mrf.mxu0
    %v10188 = vadd.f32 0.0, %v10187
    %v10189 = vpop.f32.mrf.mxu0
    %v10190 = vpop.f32.mrf.mxu0
    %v10191 = vadd.f32 0.0, %v10190
    %v10192 = vpop.f32.mrf.mxu0
    %10193 = vmatprep.mubr.bf16.mxu0 0
    %10194 = vmatmul.mubr.bf16.gmra.mxu0 %v10111
    %v10195 = vpop.f32.mrf.mxu0
    %v10196 = vadd.f32 0.0, %v10195
    %v10197 = vpop.f32.mrf.mxu0
    %v10198 = vpop.f32.mrf.mxu0
    %v10199 = vadd.f32 0.0, %v10198
    %v10200 = vpop.f32.mrf.mxu0
    %10201 = vmatprep.mubr.bf16.mxu0 0
    %10202 = vmatmul.mubr.bf16.gmra.mxu0 %v10112
    %v10203 = vpop.f32.mrf.mxu0
    %v10204 = vadd.f32 0.0, %v10203
    %v10205 = vpop.f32.mrf.mxu0
    %v10206 = vpop.f32.mrf.mxu0
    %v10207 = vpop.f32.mrf.mxu0
    %10208 = vdwg.mxu0
    %v10209 = vadd.f32 %v10075, %v10148
    %v10210 = vadd.f32 %v10076, %v10151
    %v10211 = vadd.f32 %v10077, %v10156
    %v10212 = vadd.f32 %v10078, %v10159
    %v10213 = vadd.f32 %v10079, %v10164
    %v10214 = vadd.f32 %v10080, %v10167
    %v10215 = vadd.f32 %v10081, %v10172
    %v10216 = vadd.f32 %v10082, %v10175
    %v10217 = vadd.f32 %v10083, %v10180
    %v10218 = vadd.f32 %v10084, %v10183
    %v10219 = vadd.f32 %v10085, %v10188
    %v10220 = vadd.f32 %v10086, %v10191
    %v10221 = vadd.f32 %v10087, %v10196
    %v10222 = vadd.f32 %v10088, %v10199
    %v10223 = vadd.f32 %v10089, %v10204
    %v10224 = vld [vmem:[#allocation2 + $0x285] sm:$0xff]
    %v10225 = vld [vmem:[#allocation2 + $0x28d] sm:$0xff]
    %v10226 = vld [vmem:[#allocation2 + $0x295] sm:$0xff]
    %v10227 = vld [vmem:[#allocation2 + $0x29d] sm:$0xff]
    %v10228 = vld [vmem:[#allocation2 + $0x2a5] sm:$0xff]
    %v10229 = vld [vmem:[#allocation2 + $0x2ad] sm:$0xff]
    %v10230 = vld [vmem:[#allocation2 + $0x2b5] sm:$0xff]
    %v10231 = vld [vmem:[#allocation2 + $0x2bd] sm:$0xff]
    %v10232 = vld [vmem:[#allocation2 + $0x2c5] sm:$0xff]
    %v10233 = vld [vmem:[#allocation2 + $0x2cd] sm:$0xff]
    %v10234 = vld [vmem:[#allocation2 + $0x2d5] sm:$0xff]
    %v10235 = vld [vmem:[#allocation2 + $0x2dd] sm:$0xff]
    %v10236 = vld [vmem:[#allocation2 + $0x2e5] sm:$0xff]
    %v10237 = vld [vmem:[#allocation2 + $0x2ed] sm:$0xff]
    %v10238 = vld [vmem:[#allocation2 + $0x2f5] sm:$0xff]
    %v10239 = vpack.c.bf16 %v10225, %v10224
    %v10240 = vpack.c.bf16 %v10227, %v10226
    %v10241 = vpack.c.bf16 %v10229, %v10228
    %v10242 = vpack.c.bf16 %v10231, %v10230
    %v10243 = vpack.c.bf16 %v10233, %v10232
    %v10244 = vpack.c.bf16 %v10235, %v10234
    %v10245 = vpack.c.bf16 %v10237, %v10236
    %v10246 = vpack.c.bf16 %v10238, %v10238
    %10247 = vmatprep.subr.bf16.mxu0 0
    %10248 = vmatpush1.bf16.msra.mxu0 %v3746
    %10249 = vmatprep.subr.bf16.mxu0 0
    %10250 = vmatpush1.bf16.msra.mxu0 %v3745
    %10251 = vmatprep.subr.bf16.mxu0 0
    %10252 = vmatpush1.bf16.msra.mxu0 %v3744
    %10253 = vmatprep.subr.bf16.mxu0 0
    %10254 = vmatpush1.bf16.msra.mxu0 %v3743
    %10255 = vmatprep.subr.bf16.mxu0 0
    %10256 = vmatpush1.bf16.msra.mxu0 %v3742
    %10257 = vmatprep.subr.bf16.mxu0 0
    %10258 = vmatpush1.bf16.msra.mxu0 %v3741
    %10259 = vmatprep.subr.bf16.mxu0 0
    %10260 = vmatpush1.bf16.msra.mxu0 %v3740
    %10261 = vmatprep.subr.bf16.mxu0 0
    %10262 = vmatpush1.bf16.msra.mxu0 %v3739
    %10263 = vmatprep.subr.bf16.mxu0 0
    %10264 = vmatpush2.bf16.msra.mxu0 0
    %10265 = vmatprep.subr.bf16.mxu0 0
    %10266 = vmatpush2.bf16.msra.mxu0 0
    %10267 = vmatprep.subr.bf16.mxu0 0
    %10268 = vmatpush2.bf16.msra.mxu0 0
    %10269 = vmatprep.subr.bf16.mxu0 0
    %10270 = vmatpush2.bf16.msra.mxu0 0
    %10271 = vmatprep.subr.bf16.mxu0 0
    %10272 = vmatpush2.bf16.msra.mxu0 0
    %10273 = vmatprep.subr.bf16.mxu0 0
    %10274 = vmatpush2.bf16.msra.mxu0 0
    %10275 = vmatprep.subr.bf16.mxu0 0
    %10276 = vmatpush2.bf16.msra.mxu0 0
    %10277 = vmatprep.subr.bf16.mxu0 0
    %10278 = vmatpush2.bf16.msra.mxu0 0
    %10279 = vmatprep.mubr.bf16.mxu0 0
    %10280 = vmatmul.mubr.bf16.gmra.mxu0 %v10239
    %v10281 = vpop.f32.mrf.mxu0
    %v10282 = vadd.f32 0.0, %v10281
    %v10283 = vpop.f32.mrf.mxu0
    %v10284 = vpop.f32.mrf.mxu0
    %v10285 = vadd.f32 0.0, %v10284
    %v10286 = vpop.f32.mrf.mxu0
    %10287 = vmatprep.mubr.bf16.mxu0 0
    %10288 = vmatmul.mubr.bf16.gmra.mxu0 %v10240
    %v10289 = vpop.f32.mrf.mxu0
    %v10290 = vadd.f32 0.0, %v10289
    %v10291 = vpop.f32.mrf.mxu0
    %v10292 = vpop.f32.mrf.mxu0
    %v10293 = vadd.f32 0.0, %v10292
    %v10294 = vpop.f32.mrf.mxu0
    %10295 = vmatprep.mubr.bf16.mxu0 0
    %10296 = vmatmul.mubr.bf16.gmra.mxu0 %v10241
    %v10297 = vpop.f32.mrf.mxu0
    %v10298 = vadd.f32 0.0, %v10297
    %v10299 = vpop.f32.mrf.mxu0
    %v10300 = vpop.f32.mrf.mxu0
    %v10301 = vadd.f32 0.0, %v10300
    %v10302 = vpop.f32.mrf.mxu0
    %10303 = vmatprep.mubr.bf16.mxu0 0
    %10304 = vmatmul.mubr.bf16.gmra.mxu0 %v10242
    %v10305 = vpop.f32.mrf.mxu0
    %v10306 = vadd.f32 0.0, %v10305
    %v10307 = vpop.f32.mrf.mxu0
    %v10308 = vpop.f32.mrf.mxu0
    %v10309 = vadd.f32 0.0, %v10308
    %v10310 = vpop.f32.mrf.mxu0
    %10311 = vmatprep.mubr.bf16.mxu0 0
    %10312 = vmatmul.mubr.bf16.gmra.mxu0 %v10243
    %v10313 = vpop.f32.mrf.mxu0
    %v10314 = vadd.f32 0.0, %v10313
    %v10315 = vpop.f32.mrf.mxu0
    %v10316 = vpop.f32.mrf.mxu0
    %v10317 = vadd.f32 0.0, %v10316
    %v10318 = vpop.f32.mrf.mxu0
    %10319 = vmatprep.mubr.bf16.mxu0 0
    %10320 = vmatmul.mubr.bf16.gmra.mxu0 %v10244
    %v10321 = vpop.f32.mrf.mxu0
    %v10322 = vadd.f32 0.0, %v10321
    %v10323 = vpop.f32.mrf.mxu0
    %v10324 = vpop.f32.mrf.mxu0
    %v10325 = vadd.f32 0.0, %v10324
    %v10326 = vpop.f32.mrf.mxu0
    %10327 = vmatprep.mubr.bf16.mxu0 0
    %10328 = vmatmul.mubr.bf16.gmra.mxu0 %v10245
    %v10329 = vpop.f32.mrf.mxu0
    %v10330 = vadd.f32 0.0, %v10329
    %v10331 = vpop.f32.mrf.mxu0
    %v10332 = vpop.f32.mrf.mxu0
    %v10333 = vadd.f32 0.0, %v10332
    %v10334 = vpop.f32.mrf.mxu0
    %10335 = vmatprep.mubr.bf16.mxu0 0
    %10336 = vmatmul.mubr.bf16.gmra.mxu0 %v10246
    %v10337 = vpop.f32.mrf.mxu0
    %v10338 = vadd.f32 0.0, %v10337
    %v10339 = vpop.f32.mrf.mxu0
    %v10340 = vpop.f32.mrf.mxu0
    %v10341 = vpop.f32.mrf.mxu0
    %10342 = vdwg.mxu0
    %v10343 = vadd.f32 %v10209, %v10282
    %v10344 = vadd.f32 %v10210, %v10285
    %v10345 = vadd.f32 %v10211, %v10290
    %v10346 = vadd.f32 %v10212, %v10293
    %v10347 = vadd.f32 %v10213, %v10298
    %v10348 = vadd.f32 %v10214, %v10301
    %v10349 = vadd.f32 %v10215, %v10306
    %v10350 = vadd.f32 %v10216, %v10309
    %v10351 = vadd.f32 %v10217, %v10314
    %v10352 = vadd.f32 %v10218, %v10317
    %v10353 = vadd.f32 %v10219, %v10322
    %v10354 = vadd.f32 %v10220, %v10325
    %v10355 = vadd.f32 %v10221, %v10330
    %v10356 = vadd.f32 %v10222, %v10333
    %v10357 = vadd.f32 %v10223, %v10338
    %v10358 = vadd.f32 %v10343, %v3871
    %v10359 = vadd.f32 %v10344, %v3871
    %v10360 = vadd.f32 %v10345, %v3871
    %v10361 = vadd.f32 %v10346, %v3871
    %v10362 = vadd.f32 %v10347, %v3871
    %v10363 = vadd.f32 %v10348, %v3871
    %v10364 = vadd.f32 %v10349, %v3871
    %v10365 = vadd.f32 %v10350, %v3871
    %v10366 = vadd.f32 %v10351, %v3871
    %v10367 = vadd.f32 %v10352, %v3871
    %v10368 = vadd.f32 %v10353, %v3871
    %v10369 = vadd.f32 %v10354, %v3871
    %v10370 = vadd.f32 %v10355, %v3871
    %v10371 = vadd.f32 %v10356, %v3871
    %v10372 = vadd.f32 %v10357, %v3871
    %v10373 = vmax.f32 %v10358, 0.0
    %v10374 = vmax.f32 %v10359, 0.0
    %v10375 = vmax.f32 %v10360, 0.0
    %v10376 = vmax.f32 %v10361, 0.0
    %v10377 = vmax.f32 %v10362, 0.0
    %v10378 = vmax.f32 %v10363, 0.0
    %v10379 = vmax.f32 %v10364, 0.0
    %v10380 = vmax.f32 %v10365, 0.0
    %v10381 = vmax.f32 %v10366, 0.0
    %v10382 = vmax.f32 %v10367, 0.0
    %v10383 = vmax.f32 %v10368, 0.0
    %v10384 = vmax.f32 %v10369, 0.0
    %v10385 = vmax.f32 %v10370, 0.0
    %v10386 = vmax.f32 %v10371, 0.0
    %v10387 = vmax.f32 %v10372, 0.0
    %v10388 = vmul.f32 %v10373, %v6587
    %v10389 = vmul.f32 %v10374, %v6592
    %v10390 = vmul.f32 %v10375, %v6597
    %v10391 = vmul.f32 %v10376, %v6602
    %v10392 = vmul.f32 %v10377, %v6607
    %v10393 = vmul.f32 %v10378, %v6612
    %v10394 = vmul.f32 %v10379, %v6617
    %v10395 = vmul.f32 %v10380, %v6622
    %v10396 = vmul.f32 %v10381, %v6627
    %v10397 = vmul.f32 %v10382, %v6632
    %v10398 = vmul.f32 %v10383, %v6637
    %v10399 = vmul.f32 %v10384, %v6642
    %v10400 = vmul.f32 %v10385, %v6647
    %v10401 = vmul.f32 %v10386, %v6652
    %v10402 = vmul.f32 %v10387, %v6657
    %v10403 = vadd.f32 %v10388, %v10389
    %v10404 = vadd.f32 %v10403, %v10390
    %v10405 = vadd.f32 %v10404, %v10391
    %v10406 = vadd.f32 %v10405, %v10392
    %v10407 = vadd.f32 %v10406, %v10393
    %v10408 = vadd.f32 %v10407, %v10394
    %v10409 = vadd.f32 %v10408, %v10395
    %v10410 = vadd.f32 %v10409, %v10396
    %v10411 = vadd.f32 %v10410, %v10397
    %v10412 = vadd.f32 %v10411, %v10398
    %v10413 = vadd.f32 %v10412, %v10399
    %v10414 = vadd.f32 %v10413, %v10400
    %v10415 = vadd.f32 %v10414, %v10401
    %v10416 = vadd.f32 %v10415, %v10402
    %v10417 = vrot.slane %v10416, 4
    %v10418 = vadd.f32 %v10416, %v10417
    %v10419 = vrot.slane %v10418, 2
    %v10420 = vadd.f32 %v10418, %v10419
    %v10421 = vrot.slane %v10420, 1
    %v10422 = vadd.f32 %v10420, %v10421
    %v10423 = vmul.f32 %v10422, 0.00390625
    %v10424 = vadd.f32 %v9181, %v10423
    %vm10425 = vcmask 1040384
    %v10426 = vsel %vm10425, %v6695, %v10424
    %v10427 = vld [vmem:[%s6] sm:$0xff]
    %v10428 = vld [vmem:[%s6 + $0x8] sm:$0xff]
    %v10429 = vld [vmem:[%s6 + $0x10] sm:$0xff]
    %v10430 = vld [vmem:[%s6 + $0x18] sm:$0xff]
    %v10431 = vld [vmem:[%s6 + $0x20] sm:$0xff]
    %v10432 = vld [vmem:[%s6 + $0x28] sm:$0xff]
    %v10433 = vld [vmem:[%s6 + $0x30] sm:$0xff]
    %v10434 = vld [vmem:[%s6 + $0x38] sm:$0xff]
    %v10435 = vld [vmem:[%s6 + $0x40] sm:$0xff]
    %v10436 = vld [vmem:[%s6 + $0x48] sm:$0xff]
    %v10437 = vld [vmem:[%s6 + $0x50] sm:$0xff]
    %v10438 = vld [vmem:[%s6 + $0x58] sm:$0xff]
    %v10439 = vld [vmem:[%s6 + $0x60] sm:$0xff]
    %v10440 = vld [vmem:[%s6 + $0x68] sm:$0xff]
    %v10441 = vld [vmem:[%s6 + $0x70] sm:$0xff]
    %v10442 = vld [vmem:[%s6 + $0x78] sm:$0xff]
    %v10443 = vld [vmem:[%s6 + $0x80] sm:$0xff]
    %v10444 = vld [vmem:[%s6 + $0x88] sm:$0xff]
    %v10445 = vld [vmem:[%s6 + $0x90] sm:$0xff]
    %v10446 = vld [vmem:[%s6 + $0x98] sm:$0xff]
    %v10447 = vld [vmem:[%s6 + $0xa0] sm:$0xff]
    %v10448 = vld [vmem:[%s6 + $0xa8] sm:$0xff]
    %v10449 = vld [vmem:[%s6 + $0xb0] sm:$0xff]
    %v10450 = vld [vmem:[%s6 + $0xb8] sm:$0xff]
    %v10451 = vld [vmem:[%s6 + $0xc0] sm:$0xff]
    %v10452 = vld [vmem:[%s6 + $0xc8] sm:$0xff]
    %v10453 = vld [vmem:[%s6 + $0xd0] sm:$0xff]
    %v10454 = vld [vmem:[%s6 + $0xd8] sm:$0xff]
    %v10455 = vld [vmem:[%s6 + $0xe0] sm:$0xff]
    %v10456 = vld [vmem:[%s6 + $0xe8] sm:$0xff]
    %v10457 = vld [vmem:[%s6 + $0xf0] sm:$0xff]
    %v10458 = vld [vmem:[%s6 + $0xf8] sm:$0xff]
    %v10459 = vld [vmem:[%s6 + $0x100] sm:$0xff]
    %v10460 = vld [vmem:[%s6 + $0x108] sm:$0xff]
    %v10461 = vld [vmem:[%s6 + $0x110] sm:$0xff]
    %v10462 = vld [vmem:[%s6 + $0x118] sm:$0xff]
    %v10463 = vld [vmem:[%s6 + $0x120] sm:$0xff]
    %v10464 = vld [vmem:[%s6 + $0x128] sm:$0xff]
    %v10465 = vld [vmem:[%s6 + $0x130] sm:$0xff]
    %v10466 = vld [vmem:[%s6 + $0x138] sm:$0xff]
    %v10467 = vld [vmem:[%s6 + $0x140] sm:$0xff]
    %v10468 = vld [vmem:[%s6 + $0x148] sm:$0xff]
    %v10469 = vld [vmem:[%s6 + $0x150] sm:$0xff]
    %v10470 = vld [vmem:[%s6 + $0x158] sm:$0xff]
    %v10471 = vld [vmem:[%s6 + $0x160] sm:$0xff]
    %v10472 = vld [vmem:[%s6 + $0x168] sm:$0xff]
    %v10473 = vld [vmem:[%s6 + $0x170] sm:$0xff]
    %v10474 = vld [vmem:[%s6 + $0x178] sm:$0xff]
    %v10475 = vld [vmem:[%s6 + $0x180] sm:$0xff]
    %v10476 = vld [vmem:[%s6 + $0x188] sm:$0xff]
    %v10477 = vld [vmem:[%s6 + $0x190] sm:$0xff]
    %v10478 = vld [vmem:[%s6 + $0x198] sm:$0xff]
    %v10479 = vld [vmem:[%s6 + $0x1a0] sm:$0xff]
    %v10480 = vld [vmem:[%s6 + $0x1a8] sm:$0xff]
    %v10481 = vld [vmem:[%s6 + $0x1b0] sm:$0xff]
    %v10482 = vld [vmem:[%s6 + $0x1b8] sm:$0xff]
    %v10483 = vld [vmem:[%s6 + $0x1c0] sm:$0xff]
    %v10484 = vld [vmem:[%s6 + $0x1c8] sm:$0xff]
    %v10485 = vld [vmem:[%s6 + $0x1d0] sm:$0xff]
    %v10486 = vld [vmem:[%s6 + $0x1d8] sm:$0xff]
    %v10487 = vld [vmem:[%s6 + $0x1e0] sm:$0xff]
    %v10488 = vld [vmem:[%s6 + $0x1e8] sm:$0xff]
    %v10489 = vld [vmem:[%s6 + $0x1f0] sm:$0xff]
    %v10490 = vld [vmem:[%s6 + $0x1f8] sm:$0xff]
    %v10491 = vld [vmem:[%s6 + $0x200] sm:$0xff]
    %v10492 = vld [vmem:[%s6 + $0x208] sm:$0xff]
    %v10493 = vld [vmem:[%s6 + $0x210] sm:$0xff]
    %v10494 = vld [vmem:[%s6 + $0x218] sm:$0xff]
    %v10495 = vld [vmem:[%s6 + $0x220] sm:$0xff]
    %v10496 = vld [vmem:[%s6 + $0x228] sm:$0xff]
    %v10497 = vld [vmem:[%s6 + $0x230] sm:$0xff]
    %v10498 = vld [vmem:[%s6 + $0x238] sm:$0xff]
    %v10499 = vld [vmem:[%s6 + $0x240] sm:$0xff]
    %v10500 = vld [vmem:[%s6 + $0x248] sm:$0xff]
    %v10501 = vld [vmem:[%s6 + $0x250] sm:$0xff]
    %v10502 = vld [vmem:[%s6 + $0x258] sm:$0xff]
    %v10503 = vld [vmem:[%s6 + $0x260] sm:$0xff]
    %v10504 = vld [vmem:[%s6 + $0x268] sm:$0xff]
    %v10505 = vld [vmem:[%s6 + $0x270] sm:$0xff]
    %v10506 = vld [vmem:[%s6 + $0x278] sm:$0xff]
    %v10507 = vld [vmem:[%s6 + $0x280] sm:$0xff]
    %v10508 = vld [vmem:[%s6 + $0x288] sm:$0xff]
    %v10509 = vld [vmem:[%s6 + $0x290] sm:$0xff]
    %v10510 = vld [vmem:[%s6 + $0x298] sm:$0xff]
    %v10511 = vld [vmem:[%s6 + $0x2a0] sm:$0xff]
    %v10512 = vld [vmem:[%s6 + $0x2a8] sm:$0xff]
    %v10513 = vld [vmem:[%s6 + $0x2b0] sm:$0xff]
    %v10514 = vld [vmem:[%s6 + $0x2b8] sm:$0xff]
    %v10515 = vld [vmem:[%s6 + $0x2c0] sm:$0xff]
    %v10516 = vld [vmem:[%s6 + $0x2c8] sm:$0xff]
    %v10517 = vld [vmem:[%s6 + $0x2d0] sm:$0xff]
    %v10518 = vld [vmem:[%s6 + $0x2d8] sm:$0xff]
    %v10519 = vld [vmem:[%s6 + $0x2e0] sm:$0xff]
    %v10520 = vld [vmem:[%s6 + $0x2e8] sm:$0xff]
    %v10521 = vld [vmem:[%s6 + $0x2f0] sm:$0xff]
    %v10522 = vld [vmem:[%s6 + $0x2f8] sm:$0xff]
    %v10523 = vld [vmem:[%s6 + $0x300] sm:$0xff]
    %v10524 = vld [vmem:[%s6 + $0x308] sm:$0xff]
    %v10525 = vld [vmem:[%s6 + $0x310] sm:$0xff]
    %v10526 = vld [vmem:[%s6 + $0x318] sm:$0xff]
    %v10527 = vld [vmem:[%s6 + $0x320] sm:$0xff]
    %v10528 = vld [vmem:[%s6 + $0x328] sm:$0xff]
    %v10529 = vld [vmem:[%s6 + $0x330] sm:$0xff]
    %v10530 = vld [vmem:[%s6 + $0x338] sm:$0xff]
    %v10531 = vld [vmem:[%s6 + $0x340] sm:$0xff]
    %v10532 = vld [vmem:[%s6 + $0x348] sm:$0xff]
    %v10533 = vld [vmem:[%s6 + $0x350] sm:$0xff]
    %v10534 = vld [vmem:[%s6 + $0x358] sm:$0xff]
    %v10535 = vld [vmem:[%s6 + $0x360] sm:$0xff]
    %v10536 = vld [vmem:[%s6 + $0x368] sm:$0xff]
    %v10537 = vld [vmem:[%s6 + $0x370] sm:$0xff]
    %v10538 = vld [vmem:[%s6 + $0x378] sm:$0xff]
    %v10539 = vld [vmem:[%s6 + $0x380] sm:$0xff]
    %v10540 = vld [vmem:[%s6 + $0x388] sm:$0xff]
    %v10541 = vld [vmem:[%s6 + $0x390] sm:$0xff]
    %v10542 = vld [vmem:[%s6 + $0x398] sm:$0xff]
    %v10543 = vld [vmem:[%s6 + $0x3a0] sm:$0xff]
    %v10544 = vld [vmem:[%s6 + $0x3a8] sm:$0xff]
    %v10545 = vld [vmem:[%s6 + $0x3b0] sm:$0xff]
    %v10546 = vld [vmem:[%s6 + $0x3b8] sm:$0xff]
    %v10547 = vld [vmem:[%s6 + $0x3c0] sm:$0xff]
    %v10548 = vld [vmem:[%s6 + $0x3c8] sm:$0xff]
    %v10549 = vld [vmem:[%s6 + $0x3d0] sm:$0xff]
    %v10550 = vld [vmem:[%s6 + $0x3d8] sm:$0xff]
    %v10551 = vld [vmem:[%s6 + $0x3e0] sm:$0xff]
    %v10552 = vld [vmem:[%s6 + $0x3e8] sm:$0xff]
    %v10553 = vld [vmem:[%s6 + $0x3f0] sm:$0xff]
    %v10554 = vld [vmem:[%s6 + $0x3f8] sm:$0xff]
    %v10555 = vld [vmem:[%s7] sm:$0xff]
    %v10557 = vlaneseq
    %v10558 = vshrl.u32 %v10557, 7
    %v10559 = vsub.s32 0, %v10558
    %v10560 = vrot.slane %v10555, %v10559
    %v10561 = vlaneseq
    %v10562 = vshrl.u32 %v10561, 7
    %v10563 = vsub.s32 1, %v10562
    %v10564 = vrot.slane %v10555, %v10563
    %v10565 = vlaneseq
    %v10566 = vshrl.u32 %v10565, 7
    %v10567 = vsub.s32 2, %v10566
    %v10568 = vrot.slane %v10555, %v10567
    %v10569 = vlaneseq
    %v10570 = vshrl.u32 %v10569, 7
    %v10571 = vsub.s32 3, %v10570
    %v10572 = vrot.slane %v10555, %v10571
    %v10573 = vlaneseq
    %v10574 = vshrl.u32 %v10573, 7
    %v10575 = vsub.s32 4, %v10574
    %v10576 = vrot.slane %v10555, %v10575
    %v10577 = vlaneseq
    %v10578 = vshrl.u32 %v10577, 7
    %v10579 = vsub.s32 5, %v10578
    %v10580 = vrot.slane %v10555, %v10579
    %v10581 = vlaneseq
    %v10582 = vshrl.u32 %v10581, 7
    %v10583 = vsub.s32 6, %v10582
    %v10584 = vrot.slane %v10555, %v10583
    %v10585 = vlaneseq
    %v10586 = vshrl.u32 %v10585, 7
    %v10587 = vsub.s32 7, %v10586
    %v10588 = vrot.slane %v10555, %v10587
    %10597 = vmatprep.subr.mxu0 %v10548
    %10598 = vmatpush1.msra.mxu0 %v10547
    %10599 = vmatprep.subr.mxu0 %v10540
    %10600 = vmatpush1.msra.mxu0 %v10539
    %10601 = vmatprep.subr.mxu0 %v10532
    %10602 = vmatpush1.msra.mxu0 %v10531
    %10603 = vmatprep.subr.mxu0 %v10524
    %10604 = vmatpush1.msra.mxu0 %v10523
    %10605 = vmatprep.subr.mxu0 %v10516
    %10606 = vmatpush1.msra.mxu0 %v10515
    %10607 = vmatprep.subr.mxu0 %v10508
    %10608 = vmatpush1.msra.mxu0 %v10507
    %10609 = vmatprep.subr.mxu0 %v10500
    %10610 = vmatpush1.msra.mxu0 %v10499
    %10611 = vmatprep.subr.mxu0 %v10492
    %10612 = vmatpush1.msra.mxu0 %v10491
    %10613 = vmatprep.subr.mxu0 %v10484
    %10614 = vmatpush1.msra.mxu0 %v10483
    %10615 = vmatprep.subr.mxu0 %v10476
    %10616 = vmatpush1.msra.mxu0 %v10475
    %10617 = vmatprep.subr.mxu0 %v10468
    %10618 = vmatpush1.msra.mxu0 %v10467
    %10619 = vmatprep.subr.mxu0 %v10460
    %10620 = vmatpush1.msra.mxu0 %v10459
    %10621 = vmatprep.subr.mxu0 %v10452
    %10622 = vmatpush1.msra.mxu0 %v10451
    %10623 = vmatprep.subr.mxu0 %v10444
    %10624 = vmatpush1.msra.mxu0 %v10443
    %10625 = vmatprep.subr.mxu0 %v10436
    %10626 = vmatpush1.msra.mxu0 %v10435
    %10627 = vmatprep.subr.mxu0 %v10428
    %10628 = vmatpush1.msra.mxu0 %v10427
    %10629 = vmatprep.subr.mxu0 0.0
    %10630 = vmatpush2.msra.mxu0 0.0
    %10631 = vmatprep.subr.mxu0 0.0
    %10632 = vmatpush2.msra.mxu0 0.0
    %10633 = vmatprep.subr.mxu0 0.0
    %10634 = vmatpush2.msra.mxu0 0.0
    %10635 = vmatprep.subr.mxu0 0.0
    %10636 = vmatpush2.msra.mxu0 0.0
    %10637 = vmatprep.subr.mxu0 0.0
    %10638 = vmatpush2.msra.mxu0 0.0
    %10639 = vmatprep.subr.mxu0 0.0
    %10640 = vmatpush2.msra.mxu0 0.0
    %10641 = vmatprep.subr.mxu0 0.0
    %10642 = vmatpush2.msra.mxu0 0.0
    %10643 = vmatprep.subr.mxu0 0.0
    %10644 = vmatpush2.msra.mxu0 0.0
    %10645 = vmatprep.subr.mxu0 0.0
    %10646 = vmatpush2.msra.mxu0 0.0
    %10647 = vmatprep.subr.mxu0 0.0
    %10648 = vmatpush2.msra.mxu0 0.0
    %10649 = vmatprep.subr.mxu0 0.0
    %10650 = vmatpush2.msra.mxu0 0.0
    %10651 = vmatprep.subr.mxu0 0.0
    %10652 = vmatpush2.msra.mxu0 0.0
    %10653 = vmatprep.subr.mxu0 0.0
    %10654 = vmatpush2.msra.mxu0 0.0
    %10655 = vmatprep.subr.mxu0 0.0
    %10656 = vmatpush2.msra.mxu0 0.0
    %10657 = vmatprep.subr.mxu0 0.0
    %10658 = vmatpush2.msra.mxu0 0.0
    %10659 = vmatprep.subr.mxu0 0.0
    %10660 = vmatpush2.msra.mxu0 0.0
    %10661 = vmatprep.mubr.f32.mxu0 0.0
    %10662 = vmatmul.mubr.f32.gmra.mxu0 %v10426
    %v10663 = vpop.f32.mrf.mxu0
    %v10664 = vadd.f32 %v10560, %v10663
    %v10665 = vpop.f32.mrf.mxu0
    %v10666 = vadd.f32 %v10564, %v10665
    %10667 = vdwg.mxu0
    %10668 = vmatprep.subr.mxu0 %v10550
    %10669 = vmatpush1.msra.mxu0 %v10549
    %10670 = vmatprep.subr.mxu0 %v10542
    %10671 = vmatpush1.msra.mxu0 %v10541
    %10672 = vmatprep.subr.mxu0 %v10534
    %10673 = vmatpush1.msra.mxu0 %v10533
    %10674 = vmatprep.subr.mxu0 %v10526
    %10675 = vmatpush1.msra.mxu0 %v10525
    %10676 = vmatprep.subr.mxu0 %v10518
    %10677 = vmatpush1.msra.mxu0 %v10517
    %10678 = vmatprep.subr.mxu0 %v10510
    %10679 = vmatpush1.msra.mxu0 %v10509
    %10680 = vmatprep.subr.mxu0 %v10502
    %10681 = vmatpush1.msra.mxu0 %v10501
    %10682 = vmatprep.subr.mxu0 %v10494
    %10683 = vmatpush1.msra.mxu0 %v10493
    %10684 = vmatprep.subr.mxu0 %v10486
    %10685 = vmatpush1.msra.mxu0 %v10485
    %10686 = vmatprep.subr.mxu0 %v10478
    %10687 = vmatpush1.msra.mxu0 %v10477
    %10688 = vmatprep.subr.mxu0 %v10470
    %10689 = vmatpush1.msra.mxu0 %v10469
    %10690 = vmatprep.subr.mxu0 %v10462
    %10691 = vmatpush1.msra.mxu0 %v10461
    %10692 = vmatprep.subr.mxu0 %v10454
    %10693 = vmatpush1.msra.mxu0 %v10453
    %10694 = vmatprep.subr.mxu0 %v10446
    %10695 = vmatpush1.msra.mxu0 %v10445
    %10696 = vmatprep.subr.mxu0 %v10438
    %10697 = vmatpush1.msra.mxu0 %v10437
    %10698 = vmatprep.subr.mxu0 %v10430
    %10699 = vmatpush1.msra.mxu0 %v10429
    %10700 = vmatprep.subr.mxu0 0.0
    %10701 = vmatpush2.msra.mxu0 0.0
    %10702 = vmatprep.subr.mxu0 0.0
    %10703 = vmatpush2.msra.mxu0 0.0
    %10704 = vmatprep.subr.mxu0 0.0
    %10705 = vmatpush2.msra.mxu0 0.0
    %10706 = vmatprep.subr.mxu0 0.0
    %10707 = vmatpush2.msra.mxu0 0.0
    %10708 = vmatprep.subr.mxu0 0.0
    %10709 = vmatpush2.msra.mxu0 0.0
    %10710 = vmatprep.subr.mxu0 0.0
    %10711 = vmatpush2.msra.mxu0 0.0
    %10712 = vmatprep.subr.mxu0 0.0
    %10713 = vmatpush2.msra.mxu0 0.0
    %10714 = vmatprep.subr.mxu0 0.0
    %10715 = vmatpush2.msra.mxu0 0.0
    %10716 = vmatprep.subr.mxu0 0.0
    %10717 = vmatpush2.msra.mxu0 0.0
    %10718 = vmatprep.subr.mxu0 0.0
    %10719 = vmatpush2.msra.mxu0 0.0
    %10720 = vmatprep.subr.mxu0 0.0
    %10721 = vmatpush2.msra.mxu0 0.0
    %10722 = vmatprep.subr.mxu0 0.0
    %10723 = vmatpush2.msra.mxu0 0.0
    %10724 = vmatprep.subr.mxu0 0.0
    %10725 = vmatpush2.msra.mxu0 0.0
    %10726 = vmatprep.subr.mxu0 0.0
    %10727 = vmatpush2.msra.mxu0 0.0
    %10728 = vmatprep.subr.mxu0 0.0
    %10729 = vmatpush2.msra.mxu0 0.0
    %10730 = vmatprep.subr.mxu0 0.0
    %10731 = vmatpush2.msra.mxu0 0.0
    %10732 = vmatprep.mubr.f32.mxu0 0.0
    %10733 = vmatmul.mubr.f32.gmra.mxu0 %v10426
    %v10734 = vpop.f32.mrf.mxu0
    %v10735 = vadd.f32 %v10568, %v10734
    %v10736 = vpop.f32.mrf.mxu0
    %v10737 = vadd.f32 %v10572, %v10736
    %10738 = vdwg.mxu0
    %10739 = vmatprep.subr.mxu0 %v10552
    %10740 = vmatpush1.msra.mxu0 %v10551
    %10741 = vmatprep.subr.mxu0 %v10544
    %10742 = vmatpush1.msra.mxu0 %v10543
    %10743 = vmatprep.subr.mxu0 %v10536
    %10744 = vmatpush1.msra.mxu0 %v10535
    %10745 = vmatprep.subr.mxu0 %v10528
    %10746 = vmatpush1.msra.mxu0 %v10527
    %10747 = vmatprep.subr.mxu0 %v10520
    %10748 = vmatpush1.msra.mxu0 %v10519
    %10749 = vmatprep.subr.mxu0 %v10512
    %10750 = vmatpush1.msra.mxu0 %v10511
    %10751 = vmatprep.subr.mxu0 %v10504
    %10752 = vmatpush1.msra.mxu0 %v10503
    %10753 = vmatprep.subr.mxu0 %v10496
    %10754 = vmatpush1.msra.mxu0 %v10495
    %10755 = vmatprep.subr.mxu0 %v10488
    %10756 = vmatpush1.msra.mxu0 %v10487
    %10757 = vmatprep.subr.mxu0 %v10480
    %10758 = vmatpush1.msra.mxu0 %v10479
    %10759 = vmatprep.subr.mxu0 %v10472
    %10760 = vmatpush1.msra.mxu0 %v10471
    %10761 = vmatprep.subr.mxu0 %v10464
    %10762 = vmatpush1.msra.mxu0 %v10463
    %10763 = vmatprep.subr.mxu0 %v10456
    %10764 = vmatpush1.msra.mxu0 %v10455
    %10765 = vmatprep.subr.mxu0 %v10448
    %10766 = vmatpush1.msra.mxu0 %v10447
    %10767 = vmatprep.subr.mxu0 %v10440
    %10768 = vmatpush1.msra.mxu0 %v10439
    %10769 = vmatprep.subr.mxu0 %v10432
    %10770 = vmatpush1.msra.mxu0 %v10431
    %10771 = vmatprep.subr.mxu0 0.0
    %10772 = vmatpush2.msra.mxu0 0.0
    %10773 = vmatprep.subr.mxu0 0.0
    %10774 = vmatpush2.msra.mxu0 0.0
    %10775 = vmatprep.subr.mxu0 0.0
    %10776 = vmatpush2.msra.mxu0 0.0
    %10777 = vmatprep.subr.mxu0 0.0
    %10778 = vmatpush2.msra.mxu0 0.0
    %10779 = vmatprep.subr.mxu0 0.0
    %10780 = vmatpush2.msra.mxu0 0.0
    %10781 = vmatprep.subr.mxu0 0.0
    %10782 = vmatpush2.msra.mxu0 0.0
    %10783 = vmatprep.subr.mxu0 0.0
    %10784 = vmatpush2.msra.mxu0 0.0
    %10785 = vmatprep.subr.mxu0 0.0
    %10786 = vmatpush2.msra.mxu0 0.0
    %10787 = vmatprep.subr.mxu0 0.0
    %10788 = vmatpush2.msra.mxu0 0.0
    %10789 = vmatprep.subr.mxu0 0.0
    %10790 = vmatpush2.msra.mxu0 0.0
    %10791 = vmatprep.subr.mxu0 0.0
    %10792 = vmatpush2.msra.mxu0 0.0
    %10793 = vmatprep.subr.mxu0 0.0
    %10794 = vmatpush2.msra.mxu0 0.0
    %10795 = vmatprep.subr.mxu0 0.0
    %10796 = vmatpush2.msra.mxu0 0.0
    %10797 = vmatprep.subr.mxu0 0.0
    %10798 = vmatpush2.msra.mxu0 0.0
    %10799 = vmatprep.subr.mxu0 0.0
    %10800 = vmatpush2.msra.mxu0 0.0
    %10801 = vmatprep.subr.mxu0 0.0
    %10802 = vmatpush2.msra.mxu0 0.0
    %10803 = vmatprep.mubr.f32.mxu0 0.0
    %10804 = vmatmul.mubr.f32.gmra.mxu0 %v10426
    %v10805 = vpop.f32.mrf.mxu0
    %v10806 = vadd.f32 %v10576, %v10805
    %v10807 = vpop.f32.mrf.mxu0
    %v10808 = vadd.f32 %v10580, %v10807
    %10809 = vdwg.mxu0
    %10810 = vmatprep.subr.mxu0 %v10554
    %10811 = vmatpush1.msra.mxu0 %v10553
    %10812 = vmatprep.subr.mxu0 %v10546
    %10813 = vmatpush1.msra.mxu0 %v10545
    %10814 = vmatprep.subr.mxu0 %v10538
    %10815 = vmatpush1.msra.mxu0 %v10537
    %10816 = vmatprep.subr.mxu0 %v10530
    %10817 = vmatpush1.msra.mxu0 %v10529
    %10818 = vmatprep.subr.mxu0 %v10522
    %10819 = vmatpush1.msra.mxu0 %v10521
    %10820 = vmatprep.subr.mxu0 %v10514
    %10821 = vmatpush1.msra.mxu0 %v10513
    %10822 = vmatprep.subr.mxu0 %v10506
    %10823 = vmatpush1.msra.mxu0 %v10505
    %10824 = vmatprep.subr.mxu0 %v10498
    %10825 = vmatpush1.msra.mxu0 %v10497
    %10826 = vmatprep.subr.mxu0 %v10490
    %10827 = vmatpush1.msra.mxu0 %v10489
    %10828 = vmatprep.subr.mxu0 %v10482
    %10829 = vmatpush1.msra.mxu0 %v10481
    %10830 = vmatprep.subr.mxu0 %v10474
    %10831 = vmatpush1.msra.mxu0 %v10473
    %10832 = vmatprep.subr.mxu0 %v10466
    %10833 = vmatpush1.msra.mxu0 %v10465
    %10834 = vmatprep.subr.mxu0 %v10458
    %10835 = vmatpush1.msra.mxu0 %v10457
    %10836 = vmatprep.subr.mxu0 %v10450
    %10837 = vmatpush1.msra.mxu0 %v10449
    %10838 = vmatprep.subr.mxu0 %v10442
    %10839 = vmatpush1.msra.mxu0 %v10441
    %10840 = vmatprep.subr.mxu0 %v10434
    %10841 = vmatpush1.msra.mxu0 %v10433
    %10842 = vmatprep.subr.mxu0 0.0
    %10843 = vmatpush2.msra.mxu0 0.0
    %10844 = vmatprep.subr.mxu0 0.0
    %10845 = vmatpush2.msra.mxu0 0.0
    %10846 = vmatprep.subr.mxu0 0.0
    %10847 = vmatpush2.msra.mxu0 0.0
    %10848 = vmatprep.subr.mxu0 0.0
    %10849 = vmatpush2.msra.mxu0 0.0
    %10850 = vmatprep.subr.mxu0 0.0
    %10851 = vmatpush2.msra.mxu0 0.0
    %10852 = vmatprep.subr.mxu0 0.0
    %10853 = vmatpush2.msra.mxu0 0.0
    %10854 = vmatprep.subr.mxu0 0.0
    %10855 = vmatpush2.msra.mxu0 0.0
    %10856 = vmatprep.subr.mxu0 0.0
    %10857 = vmatpush2.msra.mxu0 0.0
    %10858 = vmatprep.subr.mxu0 0.0
    %10859 = vmatpush2.msra.mxu0 0.0
    %10860 = vmatprep.subr.mxu0 0.0
    %10861 = vmatpush2.msra.mxu0 0.0
    %10862 = vmatprep.subr.mxu0 0.0
    %10863 = vmatpush2.msra.mxu0 0.0
    %10864 = vmatprep.subr.mxu0 0.0
    %10865 = vmatpush2.msra.mxu0 0.0
    %10866 = vmatprep.subr.mxu0 0.0
    %10867 = vmatpush2.msra.mxu0 0.0
    %10868 = vmatprep.subr.mxu0 0.0
    %10869 = vmatpush2.msra.mxu0 0.0
    %10870 = vmatprep.subr.mxu0 0.0
    %10871 = vmatpush2.msra.mxu0 0.0
    %10872 = vmatprep.subr.mxu0 0.0
    %10873 = vmatpush2.msra.mxu0 0.0
    %10874 = vmatprep.mubr.f32.mxu0 0.0
    %10875 = vmatmul.mubr.f32.gmra.mxu0 %v10426
    %v10876 = vpop.f32.mrf.mxu0
    %v10877 = vadd.f32 %v10584, %v10876
    %v10878 = vpop.f32.mrf.mxu0
    %v10879 = vadd.f32 %v10588, %v10878
    %10880 = vdwg.mxu0
    %v10889 = vcombine.low %v10664, %v10666
    %v10890 = vcombine.low %v10735, %v10737
    %v10892 = vunpack.c.l.s4 1983009808
    %v10893 = vunpack.c.0.s8 %v10892
    %v10894 = vlaneseq
    %v10895 = vshrl.u32 %v10894, 7
    %v10896 = vsub.s32 %v10893, %v10895
    %v10897 = vrot.slane %v10889, %v10896
    %v10899 = vunpack.c.l.s4 1983009808
    %v10900 = vunpack.c.0.s8 %v10899
    %v10901 = vlaneseq
    %v10902 = vshrl.u32 %v10901, 7
    %v10903 = vsub.s32 %v10900, %v10902
    %v10904 = vrot.slane %v10890, %v10903
    %v10905 = vcombine.low %v10897, %v10904
    %v10906 = vcombine.low %v10806, %v10808
    %v10907 = vcombine.low %v10877, %v10879
    %v10909 = vunpack.c.l.s4 1983009808
    %v10910 = vunpack.c.0.s8 %v10909
    %v10911 = vlaneseq
    %v10912 = vshrl.u32 %v10911, 7
    %v10913 = vsub.s32 %v10910, %v10912
    %v10914 = vrot.slane %v10906, %v10913
    %v10916 = vunpack.c.l.s4 1983009808
    %v10917 = vunpack.c.0.s8 %v10916
    %v10918 = vlaneseq
    %v10919 = vshrl.u32 %v10918, 7
    %v10920 = vsub.s32 %v10917, %v10919
    %v10921 = vrot.slane %v10907, %v10920
    %v10922 = vcombine.low %v10914, %v10921
    %10925 = vst [vmem:[#allocation3] sm:$0xff] %v10905
    %10926 = vst [vmem:[#allocation3 + $0x8] sm:$0xff] %v10922
    // Predicated region
    $region34: #{simple_cnn_forward.1} parent=1 // pred_check
      _
    $region35: #{simple_cnn_forward.1} parent=1 // pred_check_branch
      %10928 = sbr.rel (0) target = $region37
    $region36: #{simple_cnn_forward.1} parent=1 // pred_region
      %s10930 = ssub.s32 256, 256
      %10931 = vsyncadd [#allocation4], %s10930
      %s10933 = sshll.u32 [#allocation3], 4
      %s10934 = int_to_ptr.vmem [resolvable:$true] %s10933
      %10936 = dma.vmem_to_hbm [thread:$0]  %s10934, 256, %s8, [#allocation4]
    $region37: #{simple_cnn_forward.1} parent=1 // pred_fallthru
      _
    // Predicated region
    $region38: #{simple_cnn_forward.1} parent=1 // pred_check
      _
    $region39: #{simple_cnn_forward.1} parent=1 // pred_check_branch
      %10938 = sbr.rel (0) target = $region41
    $region40: #{simple_cnn_forward.1} parent=1 // pred_region
      %10939 = dma.done [#allocation4], 256
    $region41: #{simple_cnn_forward.1} parent=1 // pred_fallthru
      _
    %10940 = vsyncpa [#allocation4], 1

</llo_original>
